<compile_context>
chip_gen: v6e
topology: v6e:2x2x1
jax: 0.10.0
libtpu: 0.0.40
codegen_flags: <defaults>
</compile_context>

<pallas_src>
import functools

import jax
import jax.numpy as jnp
import numpy as np
from jax.experimental import pallas as pl
from jax.experimental.pallas import tpu as pltpu


def pointnet_kernel(x_ref, w1_ref, t1_ref, w2_ref, t2_ref, w3_ref, t3_ref,
                    *out_refs, tile_n, chunk_n, write_pf):
    """One grid step: one batch element, one tile of `tile_n` points.

    x_ref : (1, tile_n, 8)   bf16 input tile (K padded 3 -> 8, tail edge-padded)
    w*    : bf16 weights with BN scale pre-folded; t*: f32 shifts (1, C)
    pf_ref: (1, 64, tile_n)  channel-first per-point features (only if write_pf)
    gl_ref: (1, 1, 1024)     running max over point tiles (accumulator)
    """
    if write_pf:
        pf_ref, gl_ref = out_refs
    else:
        (gl_ref,) = out_refs

    i = pl.program_id(1)          # point-tile index (reduction axis)

    x = x_ref[0]                  # (tile_n, 8) bf16

    # mlp1: Linear(3,64) + BN + ReLU   (scale folded into w1; bf16 MXU, f32 acc)
    h1 = jnp.maximum(
        jnp.dot(x, w1_ref[...], preferred_element_type=jnp.float32)
        + t1_ref[...], 0.0)

    if write_pf:
        # channel-first, lane-dense store (64, tile_n)
        pf_ref[0] = h1.T

    # mlp2: Linear(64,128) + BN + ReLU
    h2 = jnp.maximum(
        jnp.dot(h1.astype(jnp.bfloat16), w2_ref[...],
                preferred_element_type=jnp.float32)
        + t2_ref[...], 0.0)
    h2b = h2.astype(jnp.bfloat16)

    # mlp3: Linear(128,1024) + BN + ReLU, fused with the max reduction in
    # chunks of `chunk_n` rows so the full (tile_n, 1024) f32 h3 is never
    # materialised in VMEM.
    run_max = jnp.zeros((1, 1024), jnp.float32)
    for c in range(tile_n // chunk_n):
        hc = h2b[c * chunk_n:(c + 1) * chunk_n]                 # static slice
        h3 = jnp.maximum(
            jnp.dot(hc, w3_ref[...], preferred_element_type=jnp.float32)
            + t3_ref[...], 0.0)
        run_max = jnp.maximum(run_max, jnp.max(h3, axis=0, keepdims=True))

    @pl.when(i == 0)
    def _():
        gl_ref[...] = jnp.zeros_like(gl_ref)      # post-ReLU => 0-init is safe

    gl_ref[0] = jnp.maximum(gl_ref[0], run_max)


def prepare_params(params):
    """Fold BN scale into weight columns, pad W1's K dim 3->8, cast to bf16.

    Call ONCE (outside the per-step jit) so the folded/padded copies are not
    re-materialised on every forward call.
    """
    W1, s1, t1, W2, s2, t2, W3, s3, t3 = params
    w1f = jnp.pad(W1 * s1, ((0, 8 - 3), (0, 0))).astype(jnp.bfloat16)
    w2f = (W2 * s2).astype(jnp.bfloat16)
    w3f = (W3 * s3).astype(jnp.bfloat16)
    return (w1f, t1.astype(jnp.float32),
            w2f, t2.astype(jnp.float32),
            w3f, t3.astype(jnp.float32))


def pointnet_feat(x, kparams, *, global_feat=True, tile_n=1024, chunk_n=256):
    """Pallas-backed PointNetfeat forward.

    x: (B, N, 3) float32.  kparams: output of prepare_params().
    """
    B, N, _ = x.shape
    assert tile_n % 128 == 0, "tile_n must be a multiple of 128 (lane-dense pf)"
    chunk_n = min(chunk_n, tile_n)
    assert tile_n % chunk_n == 0
    w1f, t1, w2f, t2, w3f, t3 = kparams

    num_tiles = int(pl.cdiv(N, tile_n))
    n_pad = num_tiles * tile_n

    # Tail handling: replicate the last real point (edge pad). Duplicated
    # points produce duplicated features, so the max is unchanged and no
    # in-kernel masking is needed; padded pf columns are sliced off below.
    x_pts = x if n_pad == N else jnp.pad(
        x, ((0, 0), (0, n_pad - N), (0, 0)), mode="edge")
    x_p = jnp.pad(x_pts, ((0, 0), (0, 0), (0, 8 - 3))).astype(jnp.bfloat16)

    def full_spec(a):
        nd = a.ndim
        return pl.BlockSpec(a.shape, lambda b, i, _nd=nd: (0,) * _nd)

    gl_spec = pl.BlockSpec((1, 1, 1024), lambda b, i: (b, 0, 0))
    gl_shape = jax.ShapeDtypeStruct((B, 1, 1024), jnp.float32)

    if global_feat:
        out_shape = gl_shape
        out_specs = gl_spec
    else:
        out_shape = (jax.ShapeDtypeStruct((B, 64, n_pad), jnp.float32),
                     gl_shape)
        out_specs = (pl.BlockSpec((1, 64, tile_n), lambda b, i: (b, 0, i)),
                     gl_spec)

    kernel = functools.partial(pointnet_kernel, tile_n=tile_n, chunk_n=chunk_n,
                               write_pf=not global_feat)

    result = pl.pallas_call(
        kernel,
        out_shape=out_shape,
        grid=(B, num_tiles),
        in_specs=[pl.BlockSpec((1, tile_n, 8), lambda b, i: (b, i, 0)),
                  full_spec(w1f), full_spec(t1),
                  full_spec(w2f), full_spec(t2),
                  full_spec(w3f), full_spec(t3)],
        out_specs=out_specs,
        compiler_params=pltpu.CompilerParams(
            # batch axis megacore-shardable; point-tile axis carries the
            # running-max accumulator -> must stay "arbitrary".
            dimension_semantics=("parallel", "arbitrary"),
            vmem_limit_bytes=32 * 1024 * 1024),
    )(x_p, w1f, t1, w2f, t2, w3f, t3)

    if global_feat:
        return result.reshape(B, 1024)

    pf_pad, gl = result
    gl = gl.reshape(B, 1024)
    pf = pf_pad[:, :, :N]                                       # (B, 64, N)
    # broadcast_to feeding the concat (no jnp.repeat materialisation)
    gl_b = jnp.broadcast_to(gl[:, :, None], (B, 1024, N))
    return jnp.concatenate([gl_b, pf], axis=1)                  # (B, 1088, N)


def init_params(key):
    """Deterministic params; BN folded with Linear bias into (scale, shift)."""
    eps = 1e-5
    layer_dims = [(3, 64), (64, 128), (128, 1024)]
    params = []
    for din, dout in layer_dims:
        key, kw, kb = jax.random.split(key, 3)
        bound = 1.0 / np.sqrt(din)
        W = jax.random.uniform(kw, (din, dout), jnp.float32, -bound, bound)
        b = jax.random.uniform(kb, (dout,), jnp.float32, -bound, bound)
        gamma = jnp.ones((dout,), jnp.float32)
        beta = jnp.zeros((dout,), jnp.float32)
        running_mean = jnp.zeros((dout,), jnp.float32)
        running_var = jnp.ones((dout,), jnp.float32)
        scale = gamma / jnp.sqrt(running_var + eps)
        shift = beta - running_mean * scale + b * scale
        params += [W, scale.reshape(1, dout), shift.reshape(1, dout)]
    return params


def reference_forward(x, kparams, global_feat=True):
    """Pure-JAX reference mirroring the kernel arithmetic (folded bf16 weights)."""
    B, N, _ = x.shape
    w1f, t1, w2f, t2, w3f, t3 = kparams

    def layer(h, W, t):
        y = jnp.dot(h.astype(jnp.bfloat16), W,
                    preferred_element_type=jnp.float32)
        return jnp.maximum(y + t, 0.0)

    h = x.reshape(B * N, 3)
    h1 = layer(h, w1f[:3], t1)          # padded rows of w1f are zero
    h2 = layer(h1, w2f, t2)
    h3 = layer(h2, w3f, t3)
    gl = jnp.max(h3.reshape(B, N, 1024), axis=1)
    if global_feat:
        return gl
    pf = jnp.transpose(h1.reshape(B, N, 64), (0, 2, 1))
    tiled = jnp.broadcast_to(gl[:, :, None], (B, 1024, N))
    return jnp.concatenate([tiled, pf], axis=1)


if __name__ == "__main__":
    key = jax.random.PRNGKey(0)
    key, kx = jax.random.split(key)

    B, N = 2, 300                      # N not a multiple of tile_n -> tail pad
    x = jax.random.normal(kx, (B, N, 3), dtype=jnp.float32)
    kparams = prepare_params(init_params(key))

    # 1) global_feat=True, default tile_n=1024 (single point tile, tail pad)
    run = jax.jit(functools.partial(pointnet_feat, global_feat=True))
    out = jax.block_until_ready(run(x, kparams))
    ref = reference_forward(x, kparams, global_feat=True)
    assert out.shape == (B, 1024)
    np.testing.assert_allclose(np.asarray(out), np.asarray(ref),
                               rtol=1e-2, atol=1e-2)

    # 2) global_feat=True, tile_n=128 (multi-tile: exercises the accumulator)
    run_mt = jax.jit(functools.partial(pointnet_feat, global_feat=True,
                                       tile_n=128))
    out_mt = jax.block_until_ready(run_mt(x, kparams))
    np.testing.assert_allclose(np.asarray(out_mt), np.asarray(ref),
                               rtol=1e-2, atol=1e-2)

    # 3) global_feat=False, tile_n=128 (per-point features + concat glue)
    run2 = jax.jit(functools.partial(pointnet_feat, global_feat=False,
                                     tile_n=128))
    out2 = jax.block_until_ready(run2(x, kparams))
    ref2 = reference_forward(x, kparams, global_feat=False)
    assert out2.shape == (B, 1024 + 64, N)
    np.testing.assert_allclose(np.asarray(out2), np.asarray(ref2),
                               rtol=1e-2, atol=1e-2)

    print("KERNEL_OK")
</pallas_src>

<mosaic_0001>
module attributes {stable_mosaic.version = 11 : i64} {
  func.func @pointnet_kernel(%arg0: i32, %arg1: i32, %arg2: memref<1x1024x8xbf16, #tpu.memory_space<vmem>>, %arg3: memref<8x64xbf16, #tpu.memory_space<vmem>>, %arg4: memref<1x64xf32, #tpu.memory_space<vmem>>, %arg5: memref<64x128xbf16, #tpu.memory_space<vmem>>, %arg6: memref<1x128xf32, #tpu.memory_space<vmem>>, %arg7: memref<128x1024xbf16, #tpu.memory_space<vmem>>, %arg8: memref<1x1024xf32, #tpu.memory_space<vmem>>, %arg9: memref<1x1x1024xf32, #tpu.memory_space<vmem>>) attributes {dimension_semantics = [#tpu.dimension_semantics<parallel>, #tpu.dimension_semantics<arbitrary>], iteration_bounds = array<i64: 2, 1>, scalar_prefetch = 0 : i64, scratch_operands = 0 : i64, tpu.core_type = #tpu.core_type<tc>, window_params = [{transform_indices = @transform_0, window_bounds = array<i64: 1, 1024, 8>}, {pipeline_mode = #tpu.pipeline_mode<synchronous>, transform_indices = @transform_1, window_bounds = array<i64: 8, 64>}, {pipeline_mode = #tpu.pipeline_mode<synchronous>, transform_indices = @transform_2, window_bounds = array<i64: 1, 64>}, {pipeline_mode = #tpu.pipeline_mode<synchronous>, transform_indices = @transform_3, window_bounds = array<i64: 64, 128>}, {pipeline_mode = #tpu.pipeline_mode<synchronous>, transform_indices = @transform_4, window_bounds = array<i64: 1, 128>}, {pipeline_mode = #tpu.pipeline_mode<synchronous>, transform_indices = @transform_5, window_bounds = array<i64: 128, 1024>}, {pipeline_mode = #tpu.pipeline_mode<synchronous>, transform_indices = @transform_6, window_bounds = array<i64: 1, 1024>}, {transform_indices = @transform_7, window_bounds = array<i64: 1, 1, 1024>}]} {
    %c0 = arith.constant 0 : index
    %c0_0 = arith.constant 0 : index
    %c0_1 = arith.constant 0 : index
    %0 = vector.load %arg2[%c0, %c0_0, %c0_1] : memref<1x1024x8xbf16, #tpu.memory_space<vmem>>, vector<1x1024x8xbf16>
    %1 = vector.shape_cast %0 : vector<1x1024x8xbf16> to vector<1024x8xbf16>
    %c0_2 = arith.constant 0 : index
    %c0_3 = arith.constant 0 : index
    %2 = vector.load %arg3[%c0_2, %c0_3] : memref<8x64xbf16, #tpu.memory_space<vmem>>, vector<8x64xbf16>
    %cst = arith.constant dense<0.000000e+00> : vector<1024x64xf32>
    %3 = tpu.matmul %1, %2, %cst {dimension_numbers = #tpu.dot_dimension_numbers<[1], [0], [0], [1], [0, 0, 1, 1], [], []>} : vector<1024x8xbf16>, vector<8x64xbf16>, vector<1024x64xf32> -> vector<1024x64xf32>
    %c0_4 = arith.constant 0 : index
    %c0_5 = arith.constant 0 : index
    %4 = vector.load %arg4[%c0_4, %c0_5] : memref<1x64xf32, #tpu.memory_space<vmem>>, vector<1x64xf32>
    %5 = vector.broadcast %4 : vector<1x64xf32> to vector<1024x64xf32>
    %6 = arith.addf %3, %5 : vector<1024x64xf32>
    %cst_6 = arith.constant 0.000000e+00 : f32
    %7 = vector.broadcast %cst_6 : f32 to vector<1024x64xf32>
    %8 = arith.maximumf %6, %7 : vector<1024x64xf32>
    %9 = arith.truncf %8 : vector<1024x64xf32> to vector<1024x64xbf16>
    %c0_7 = arith.constant 0 : index
    %c0_8 = arith.constant 0 : index
    %10 = vector.load %arg5[%c0_7, %c0_8] : memref<64x128xbf16, #tpu.memory_space<vmem>>, vector<64x128xbf16>
    %cst_9 = arith.constant dense<0.000000e+00> : vector<1024x128xf32>
    %11 = tpu.matmul %9, %10, %cst_9 {dimension_numbers = #tpu.dot_dimension_numbers<[1], [0], [0], [1], [0, 0, 1, 1], [], []>} : vector<1024x64xbf16>, vector<64x128xbf16>, vector<1024x128xf32> -> vector<1024x128xf32>
    %c0_10 = arith.constant 0 : index
    %c0_11 = arith.constant 0 : index
    %12 = vector.load %arg6[%c0_10, %c0_11] : memref<1x128xf32, #tpu.memory_space<vmem>>, vector<1x128xf32>
    %13 = vector.broadcast %12 : vector<1x128xf32> to vector<1024x128xf32>
    %14 = arith.addf %11, %13 : vector<1024x128xf32>
    %cst_12 = arith.constant 0.000000e+00 : f32
    %15 = vector.broadcast %cst_12 : f32 to vector<1024x128xf32>
    %16 = arith.maximumf %14, %15 : vector<1024x128xf32>
    %17 = arith.truncf %16 : vector<1024x128xf32> to vector<1024x128xbf16>
    %cst_13 = arith.constant 0.000000e+00 : f32
    %18 = vector.broadcast %cst_13 : f32 to vector<1x1024xf32>
    %19 = vector.extract_strided_slice %17 {offsets = [0, 0], sizes = [256, 128], strides = [1, 1]} : vector<1024x128xbf16> to vector<256x128xbf16>
    %c0_14 = arith.constant 0 : index
    %c0_15 = arith.constant 0 : index
    %20 = vector.load %arg7[%c0_14, %c0_15] : memref<128x1024xbf16, #tpu.memory_space<vmem>>, vector<128x1024xbf16>
    %cst_16 = arith.constant dense<0.000000e+00> : vector<256x1024xf32>
    %21 = tpu.matmul %19, %20, %cst_16 {dimension_numbers = #tpu.dot_dimension_numbers<[1], [0], [0], [1], [0, 0, 1, 1], [], []>} : vector<256x128xbf16>, vector<128x1024xbf16>, vector<256x1024xf32> -> vector<256x1024xf32>
    %c0_17 = arith.constant 0 : index
    %c0_18 = arith.constant 0 : index
    %22 = vector.load %arg8[%c0_17, %c0_18] : memref<1x1024xf32, #tpu.memory_space<vmem>>, vector<1x1024xf32>
    %23 = vector.broadcast %22 : vector<1x1024xf32> to vector<256x1024xf32>
    %24 = arith.addf %21, %23 : vector<256x1024xf32>
    %cst_19 = arith.constant 0.000000e+00 : f32
    %25 = vector.broadcast %cst_19 : f32 to vector<256x1024xf32>
    %26 = arith.maximumf %24, %25 : vector<256x1024xf32>
    %cst_20 = arith.constant dense<0xFF800000> : vector<1024xf32>
    %27 = vector.multi_reduction <maximumf>, %26, %cst_20 [0] : vector<256x1024xf32> to vector<1024xf32>
    %28 = vector.shape_cast %27 : vector<1024xf32> to vector<1x1024xf32>
    %29 = arith.maximumf %18, %28 : vector<1x1024xf32>
    %30 = vector.extract_strided_slice %17 {offsets = [256, 0], sizes = [256, 128], strides = [1, 1]} : vector<1024x128xbf16> to vector<256x128xbf16>
    %c0_21 = arith.constant 0 : index
    %c0_22 = arith.constant 0 : index
    %31 = vector.load %arg7[%c0_21, %c0_22] : memref<128x1024xbf16, #tpu.memory_space<vmem>>, vector<128x1024xbf16>
    %cst_23 = arith.constant dense<0.000000e+00> : vector<256x1024xf32>
    %32 = tpu.matmul %30, %31, %cst_23 {dimension_numbers = #tpu.dot_dimension_numbers<[1], [0], [0], [1], [0, 0, 1, 1], [], []>} : vector<256x128xbf16>, vector<128x1024xbf16>, vector<256x1024xf32> -> vector<256x1024xf32>
    %c0_24 = arith.constant 0 : index
    %c0_25 = arith.constant 0 : index
    %33 = vector.load %arg8[%c0_24, %c0_25] : memref<1x1024xf32, #tpu.memory_space<vmem>>, vector<1x1024xf32>
    %34 = vector.broadcast %33 : vector<1x1024xf32> to vector<256x1024xf32>
    %35 = arith.addf %32, %34 : vector<256x1024xf32>
    %cst_26 = arith.constant 0.000000e+00 : f32
    %36 = vector.broadcast %cst_26 : f32 to vector<256x1024xf32>
    %37 = arith.maximumf %35, %36 : vector<256x1024xf32>
    %cst_27 = arith.constant dense<0xFF800000> : vector<1024xf32>
    %38 = vector.multi_reduction <maximumf>, %37, %cst_27 [0] : vector<256x1024xf32> to vector<1024xf32>
    %39 = vector.shape_cast %38 : vector<1024xf32> to vector<1x1024xf32>
    %40 = arith.maximumf %29, %39 : vector<1x1024xf32>
    %41 = vector.extract_strided_slice %17 {offsets = [512, 0], sizes = [256, 128], strides = [1, 1]} : vector<1024x128xbf16> to vector<256x128xbf16>
    %c0_28 = arith.constant 0 : index
    %c0_29 = arith.constant 0 : index
    %42 = vector.load %arg7[%c0_28, %c0_29] : memref<128x1024xbf16, #tpu.memory_space<vmem>>, vector<128x1024xbf16>
    %cst_30 = arith.constant dense<0.000000e+00> : vector<256x1024xf32>
    %43 = tpu.matmul %41, %42, %cst_30 {dimension_numbers = #tpu.dot_dimension_numbers<[1], [0], [0], [1], [0, 0, 1, 1], [], []>} : vector<256x128xbf16>, vector<128x1024xbf16>, vector<256x1024xf32> -> vector<256x1024xf32>
    %c0_31 = arith.constant 0 : index
    %c0_32 = arith.constant 0 : index
    %44 = vector.load %arg8[%c0_31, %c0_32] : memref<1x1024xf32, #tpu.memory_space<vmem>>, vector<1x1024xf32>
    %45 = vector.broadcast %44 : vector<1x1024xf32> to vector<256x1024xf32>
    %46 = arith.addf %43, %45 : vector<256x1024xf32>
    %cst_33 = arith.constant 0.000000e+00 : f32
    %47 = vector.broadcast %cst_33 : f32 to vector<256x1024xf32>
    %48 = arith.maximumf %46, %47 : vector<256x1024xf32>
    %cst_34 = arith.constant dense<0xFF800000> : vector<1024xf32>
    %49 = vector.multi_reduction <maximumf>, %48, %cst_34 [0] : vector<256x1024xf32> to vector<1024xf32>
    %50 = vector.shape_cast %49 : vector<1024xf32> to vector<1x1024xf32>
    %51 = arith.maximumf %40, %50 : vector<1x1024xf32>
    %52 = vector.extract_strided_slice %17 {offsets = [768, 0], sizes = [256, 128], strides = [1, 1]} : vector<1024x128xbf16> to vector<256x128xbf16>
    %c0_35 = arith.constant 0 : index
    %c0_36 = arith.constant 0 : index
    %53 = vector.load %arg7[%c0_35, %c0_36] : memref<128x1024xbf16, #tpu.memory_space<vmem>>, vector<128x1024xbf16>
    %cst_37 = arith.constant dense<0.000000e+00> : vector<256x1024xf32>
    %54 = tpu.matmul %52, %53, %cst_37 {dimension_numbers = #tpu.dot_dimension_numbers<[1], [0], [0], [1], [0, 0, 1, 1], [], []>} : vector<256x128xbf16>, vector<128x1024xbf16>, vector<256x1024xf32> -> vector<256x1024xf32>
    %c0_38 = arith.constant 0 : index
    %c0_39 = arith.constant 0 : index
    %55 = vector.load %arg8[%c0_38, %c0_39] : memref<1x1024xf32, #tpu.memory_space<vmem>>, vector<1x1024xf32>
    %56 = vector.broadcast %55 : vector<1x1024xf32> to vector<256x1024xf32>
    %57 = arith.addf %54, %56 : vector<256x1024xf32>
    %cst_40 = arith.constant 0.000000e+00 : f32
    %58 = vector.broadcast %cst_40 : f32 to vector<256x1024xf32>
    %59 = arith.maximumf %57, %58 : vector<256x1024xf32>
    %cst_41 = arith.constant dense<0xFF800000> : vector<1024xf32>
    %60 = vector.multi_reduction <maximumf>, %59, %cst_41 [0] : vector<256x1024xf32> to vector<1024xf32>
    %61 = vector.shape_cast %60 : vector<1024xf32> to vector<1x1024xf32>
    %62 = arith.maximumf %51, %61 : vector<1x1024xf32>
    %c0_i32 = arith.constant 0 : i32
    %63 = arith.cmpi eq, %arg1, %c0_i32 : i32
    %64 = arith.extui %63 : i1 to i32
    %c0_i32_42 = arith.constant 0 : i32
    %65 = arith.cmpi ne, %64, %c0_i32_42 : i32
    scf.if %65 {
      %cst_49 = arith.constant 0.000000e+00 : f32
      %72 = vector.broadcast %cst_49 : f32 to vector<1x1x1024xf32>
      %c0_50 = arith.constant 0 : index
      %c0_51 = arith.constant 0 : index
      %c0_52 = arith.constant 0 : index
      %73 = vector.load %arg9[%c0_50, %c0_51, %c0_52] : memref<1x1x1024xf32, #tpu.memory_space<vmem>>, vector<1x1x1024xf32>
      tpu.vector_store %arg9[%c0_50, %c0_51, %c0_52], %72 {strides = array<i32>} : memref<1x1x1024xf32, #tpu.memory_space<vmem>>, vector<1x1x1024xf32>,
    } else {
    }
    %c0_43 = arith.constant 0 : index
    %c0_44 = arith.constant 0 : index
    %c0_45 = arith.constant 0 : index
    %66 = vector.load %arg9[%c0_43, %c0_44, %c0_45] : memref<1x1x1024xf32, #tpu.memory_space<vmem>>, vector<1x1x1024xf32>
    %67 = vector.shape_cast %66 : vector<1x1x1024xf32> to vector<1x1024xf32>
    %68 = arith.maximumf %67, %62 : vector<1x1024xf32>
    %c0_46 = arith.constant 0 : index
    %c0_47 = arith.constant 0 : index
    %c0_48 = arith.constant 0 : index
    %69 = vector.load %arg9[%c0_46, %c0_47, %c0_48] : memref<1x1x1024xf32, #tpu.memory_space<vmem>>, vector<1x1x1024xf32>
    %70 = vector.shape_cast %69 : vector<1x1x1024xf32> to vector<1x1024xf32>
    %71 = vector.shape_cast %68 : vector<1x1024xf32> to vector<1x1x1024xf32>
    tpu.vector_store %arg9[%c0_46, %c0_47, %c0_48], %71 {strides = array<i32>} : memref<1x1x1024xf32, #tpu.memory_space<vmem>>, vector<1x1x1024xf32>,
    return
  }
  func.func @transform_0(%arg0: i32, %arg1: i32) -> (i32, i32, i32) {
    %c0_i32 = arith.constant 0 : i32
    %c0_i32_0 = arith.constant 0 : i32
    return %arg0, %arg1, %c0_i32 : i32, i32, i32
  }
  func.func @transform_1(%arg0: i32, %arg1: i32) -> (i32, i32) {
    %c0_i32 = arith.constant 0 : i32
    %c0_i32_0 = arith.constant 0 : i32
    %c0_i32_1 = arith.constant 0 : i32
    return %c0_i32, %c0_i32_0 : i32, i32
  }
  func.func @transform_2(%arg0: i32, %arg1: i32) -> (i32, i32) {
    %c0_i32 = arith.constant 0 : i32
    %c0_i32_0 = arith.constant 0 : i32
    %c0_i32_1 = arith.constant 0 : i32
    return %c0_i32, %c0_i32_0 : i32, i32
  }
  func.func @transform_3(%arg0: i32, %arg1: i32) -> (i32, i32) {
    %c0_i32 = arith.constant 0 : i32
    %c0_i32_0 = arith.constant 0 : i32
    %c0_i32_1 = arith.constant 0 : i32
    return %c0_i32, %c0_i32_0 : i32, i32
  }
  func.func @transform_4(%arg0: i32, %arg1: i32) -> (i32, i32) {
    %c0_i32 = arith.constant 0 : i32
    %c0_i32_0 = arith.constant 0 : i32
    %c0_i32_1 = arith.constant 0 : i32
    return %c0_i32, %c0_i32_0 : i32, i32
  }
  func.func @transform_5(%arg0: i32, %arg1: i32) -> (i32, i32) {
    %c0_i32 = arith.constant 0 : i32
    %c0_i32_0 = arith.constant 0 : i32
    %c0_i32_1 = arith.constant 0 : i32
    return %c0_i32, %c0_i32_0 : i32, i32
  }
  func.func @transform_6(%arg0: i32, %arg1: i32) -> (i32, i32) {
    %c0_i32 = arith.constant 0 : i32
    %c0_i32_0 = arith.constant 0 : i32
    %c0_i32_1 = arith.constant 0 : i32
    return %c0_i32, %c0_i32_0 : i32, i32
  }
  func.func @transform_7(%arg0: i32, %arg1: i32) -> (i32, i32, i32) {
    %c0_i32 = arith.constant 0 : i32
    %c0_i32_0 = arith.constant 0 : i32
    %c0_i32_1 = arith.constant 0 : i32
    return %arg0, %c0_i32, %c0_i32_0 : i32, i32, i32
  }
}

</mosaic_0001>

<llo_original>
// kernel: pointnet_feat.1
$region0: #{pointnet_feat.1}
  #allocation0 [shape = 'u32[]', space=smem, size = 0x4, offset = 0x4, fixed_abs, tag = 'smem constant byte address 0x4 - core index']
  #allocation1 [shape = 'u32[144,128]{1,0:T(1,128)}', space=vmem, size = 0x12000, scoped, tag = 'internal scratch']
  %s0 = inlined_call_operand.vmem [shape: bf16[2,1024,8], index: 0, kind: input, shape index: {}]
  %s1 = inlined_call_operand.vmem [shape: bf16[8,64], index: 1, kind: input, shape index: {}]
  %s2 = inlined_call_operand.vmem [shape: f32[1,64], index: 2, kind: input, shape index: {}]
  %s3 = inlined_call_operand.vmem [shape: bf16[64,128], index: 3, kind: input, shape index: {}]
  %s4 = inlined_call_operand.vmem [shape: f32[1,128], index: 4, kind: input, shape index: {}]
  %s5 = inlined_call_operand.vmem [shape: bf16[128,1024], index: 5, kind: input, shape index: {}]
  %s6 = inlined_call_operand.vmem [shape: f32[1,1024], index: 6, kind: input, shape index: {}]
  %s7 = inlined_call_operand.vmem [shape: f32[2,1,1024], index: 7, kind: output, shape index: {}]
  %s8 = sld [smem:[#allocation0]]
  $region65: #{pointnet_feat.1} parent=0
    _
  %s10 = ssub.s32 1, %s8
  %s11 = scalar_select 0, %s10, %s8
  loop: start=0, step=1, limit=4
  $region2: #{pointnet_feat.1} parent=0 // loop_pre_header
    _
  $region3: #{pointnet_feat.1} parent=0 // loop_header
    %s13 = sphi 0, %s17
    %p14 = scmp.ge.s32.totalorder %s13, 4
    %s20 = sphi 0, %s32
    %s21 = sphi 0, %s28
    %s22 = sphi 0, %s20
    %s23 = sphi 0, %s21
    %s24 = sphi 0, %s22
    %s25 = sphi 0, %s23
    %s37 = sphi 0, %s39
    %s40 = sphi 0, %s37
    %s41 = sphi 0, %s40
    %s57 = sphi 0, %s41
    %s61 = sphi 0, %s61
    %s63 = sphi 0, %s61
    %s64 = sphi 0, %s63
    %s78 = sphi 0, %s64
    %s82 = sphi 0, %s82
    %s84 = sphi 0, %s82
    %s85 = sphi 0, %s84
    %s99 = sphi 0, %s85
    %s103 = sphi 0, %s103
    %s105 = sphi 0, %s103
    %s106 = sphi 0, %s105
    %s120 = sphi 0, %s106
    %s124 = sphi 0, %s124
    %s126 = sphi 0, %s124
    %s127 = sphi 0, %s126
    %s141 = sphi 0, %s127
    %s145 = sphi 0, %s145
    %s147 = sphi 0, %s145
    %s148 = sphi 0, %s147
    %s162 = sphi 0, %s148
    %s166 = sphi 0, %s166
    %s168 = sphi 0, %s166
    %s169 = sphi 0, %s168
    %s183 = sphi 0, %s169
    %s189 = sphi 0, %s191
    %s192 = sphi 0, %s189
    %s193 = sphi 0, %s192
    %s209 = sphi 0, %s193
  $region4: #{pointnet_feat.1} parent=0 // loop_header_branch
    %16 = sbr.rel (%p14) target = $region8
  $region5: #{pointnet_feat.1} parent=0 // loop_body
    %s18 = ssub.s32 %s13, 1
    %s19 = ssub.s32 %s13, 2
    %s26 = sadd.s32 1, %s21
    %p27 = scmp.ge.s32.totalorder %s26, 1
    %s28 = scalar_select %p27, 0, %s26
    %s29 = sadd.s32 1, %s20
    %s30 = scalar_select %p27, %s29, %s20
    %p31 = scmp.ge.s32.totalorder %s30, 2
    %s32 = scalar_select %p31, 0, %s30
    %s33 = ssub.s32 %s20, %s32
    %s34 = ssub.s32 %s21, %s28
    %s35 = sor.u32 %s33, %s34
    %p36 = scmp.eq.s32.totalorder %s35, 0
    %s38 = sadd.s32 %s37, 1
    %s39 = scalar_select %p36, %s37, %s38
    %p42 = pneg %p36
    %p43 = scmp.eq.s32.totalorder %s13, 1
    %p44 = por %p42, %p43
    %p45 = scmp.ne.s32.totalorder %s37, %s40
    %p46 = scmp.eq.s32.totalorder %s13, 0
    %p47 = por %p45, %p46
    %p48 = scmp.ne.s32.totalorder %s37, %s40
    %p49 = scmp.eq.s32.totalorder %s18, 1
    %p50 = por %p48, %p49
    %p51 = scmp.ne.s32.totalorder %s40, %s41
    %p52 = scmp.eq.s32.totalorder %s18, 0
    %p53 = por %p51, %p52
    %p54 = scmp.ne.s32.totalorder %s40, %s41
    %p55 = scmp.eq.s32.totalorder %s19, 1
    %p56 = por %p54, %p55
    %p58 = scmp.ne.s32.totalorder %s41, %s57
    %p59 = scmp.eq.s32.totalorder %s19, 0
    %p60 = por %p58, %p59
    %s62 = sadd.s32 %s61, 1
    %p65 = scmp.eq.s32.totalorder %s13, 1
    %p66 = scmp.ne.s32.totalorder %s61, %s63
    %p67 = scmp.eq.s32.totalorder %s13, 0
    %p68 = por %p66, %p67
    %p69 = scmp.ne.s32.totalorder %s61, %s63
    %p70 = scmp.eq.s32.totalorder %s18, 1
    %p71 = por %p69, %p70
    %p72 = scmp.ne.s32.totalorder %s63, %s64
    %p73 = scmp.eq.s32.totalorder %s18, 0
    %p74 = por %p72, %p73
    %p75 = scmp.ne.s32.totalorder %s63, %s64
    %p76 = scmp.eq.s32.totalorder %s19, 1
    %p77 = por %p75, %p76
    %p79 = scmp.ne.s32.totalorder %s64, %s78
    %p80 = scmp.eq.s32.totalorder %s19, 0
    %p81 = por %p79, %p80
    %s83 = sadd.s32 %s82, 1
    %p86 = scmp.eq.s32.totalorder %s13, 1
    %p87 = scmp.ne.s32.totalorder %s82, %s84
    %p88 = scmp.eq.s32.totalorder %s13, 0
    %p89 = por %p87, %p88
    %p90 = scmp.ne.s32.totalorder %s82, %s84
    %p91 = scmp.eq.s32.totalorder %s18, 1
    %p92 = por %p90, %p91
    %p93 = scmp.ne.s32.totalorder %s84, %s85
    %p94 = scmp.eq.s32.totalorder %s18, 0
    %p95 = por %p93, %p94
    %p96 = scmp.ne.s32.totalorder %s84, %s85
    %p97 = scmp.eq.s32.totalorder %s19, 1
    %p98 = por %p96, %p97
    %p100 = scmp.ne.s32.totalorder %s85, %s99
    %p101 = scmp.eq.s32.totalorder %s19, 0
    %p102 = por %p100, %p101
    %s104 = sadd.s32 %s103, 1
    %p107 = scmp.eq.s32.totalorder %s13, 1
    %p108 = scmp.ne.s32.totalorder %s103, %s105
    %p109 = scmp.eq.s32.totalorder %s13, 0
    %p110 = por %p108, %p109
    %p111 = scmp.ne.s32.totalorder %s103, %s105
    %p112 = scmp.eq.s32.totalorder %s18, 1
    %p113 = por %p111, %p112
    %p114 = scmp.ne.s32.totalorder %s105, %s106
    %p115 = scmp.eq.s32.totalorder %s18, 0
    %p116 = por %p114, %p115
    %p117 = scmp.ne.s32.totalorder %s105, %s106
    %p118 = scmp.eq.s32.totalorder %s19, 1
    %p119 = por %p117, %p118
    %p121 = scmp.ne.s32.totalorder %s106, %s120
    %p122 = scmp.eq.s32.totalorder %s19, 0
    %p123 = por %p121, %p122
    %s125 = sadd.s32 %s124, 1
    %p128 = scmp.eq.s32.totalorder %s13, 1
    %p129 = scmp.ne.s32.totalorder %s124, %s126
    %p130 = scmp.eq.s32.totalorder %s13, 0
    %p131 = por %p129, %p130
    %p132 = scmp.ne.s32.totalorder %s124, %s126
    %p133 = scmp.eq.s32.totalorder %s18, 1
    %p134 = por %p132, %p133
    %p135 = scmp.ne.s32.totalorder %s126, %s127
    %p136 = scmp.eq.s32.totalorder %s18, 0
    %p137 = por %p135, %p136
    %p138 = scmp.ne.s32.totalorder %s126, %s127
    %p139 = scmp.eq.s32.totalorder %s19, 1
    %p140 = por %p138, %p139
    %p142 = scmp.ne.s32.totalorder %s127, %s141
    %p143 = scmp.eq.s32.totalorder %s19, 0
    %p144 = por %p142, %p143
    %s146 = sadd.s32 %s145, 1
    %p149 = scmp.eq.s32.totalorder %s13, 1
    %p150 = scmp.ne.s32.totalorder %s145, %s147
    %p151 = scmp.eq.s32.totalorder %s13, 0
    %p152 = por %p150, %p151
    %p153 = scmp.ne.s32.totalorder %s145, %s147
    %p154 = scmp.eq.s32.totalorder %s18, 1
    %p155 = por %p153, %p154
    %p156 = scmp.ne.s32.totalorder %s147, %s148
    %p157 = scmp.eq.s32.totalorder %s18, 0
    %p158 = por %p156, %p157
    %p159 = scmp.ne.s32.totalorder %s147, %s148
    %p160 = scmp.eq.s32.totalorder %s19, 1
    %p161 = por %p159, %p160
    %p163 = scmp.ne.s32.totalorder %s148, %s162
    %p164 = scmp.eq.s32.totalorder %s19, 0
    %p165 = por %p163, %p164
    %s167 = sadd.s32 %s166, 1
    %p170 = scmp.eq.s32.totalorder %s13, 1
    %p171 = scmp.ne.s32.totalorder %s166, %s168
    %p172 = scmp.eq.s32.totalorder %s13, 0
    %p173 = por %p171, %p172
    %p174 = scmp.ne.s32.totalorder %s166, %s168
    %p175 = scmp.eq.s32.totalorder %s18, 1
    %p176 = por %p174, %p175
    %p177 = scmp.ne.s32.totalorder %s168, %s169
    %p178 = scmp.eq.s32.totalorder %s18, 0
    %p179 = por %p177, %p178
    %p180 = scmp.ne.s32.totalorder %s168, %s169
    %p181 = scmp.eq.s32.totalorder %s19, 1
    %p182 = por %p180, %p181
    %p184 = scmp.ne.s32.totalorder %s169, %s183
    %p185 = scmp.eq.s32.totalorder %s19, 0
    %p186 = por %p184, %p185
    %s187 = ssub.s32 %s20, %s32
    %p188 = scmp.eq.s32.totalorder %s187, 0
    %s190 = sadd.s32 %s189, 1
    %s191 = scalar_select %p188, %s189, %s190
    %p194 = pneg %p188
    %p195 = scmp.eq.s32.totalorder %s13, 1
    %p196 = por %p194, %p195
    %p197 = scmp.ne.s32.totalorder %s189, %s192
    %p198 = scmp.eq.s32.totalorder %s13, 0
    %p199 = por %p197, %p198
    %p200 = scmp.ne.s32.totalorder %s189, %s192
    %p201 = scmp.eq.s32.totalorder %s18, 1
    %p202 = por %p200, %p201
    %p203 = scmp.ne.s32.totalorder %s192, %s193
    %p204 = scmp.eq.s32.totalorder %s18, 0
    %p205 = por %p203, %p204
    %p206 = scmp.ne.s32.totalorder %s192, %s193
    %p207 = scmp.eq.s32.totalorder %s19, 1
    %p208 = por %p206, %p207
    %p210 = scmp.ne.s32.totalorder %s193, %s209
    %p211 = scmp.eq.s32.totalorder %s19, 0
    %p212 = por %p210, %p211
    %p213 = scmp.le.s32.totalorder 1, %s13
    %p214 = scmp.lt.s32.totalorder %s13, 3
    %p215 = pnand %p213, %p214
    %p216 = pneg %p215
    // Predicated region
    $region9: #{pointnet_feat.1} parent=5 // pred_check
      _
    $region10: #{pointnet_feat.1} parent=5 // pred_check_branch
      %218 = sbr.rel (%p215) target = $region12
    $region11: #{pointnet_feat.1} parent=5 // pred_region
      %s219 = ssub.s32 %s13, 1
      // Predicated region
      $region13: #{pointnet_feat.1} parent=11 // pred_check
        %p220 = pneg %p74
      $region14: #{pointnet_feat.1} parent=11 // pred_check_branch
        %222 = sbr.rel (%p220) target = $region16
      $region15: #{pointnet_feat.1} parent=11 // pred_region
        _
      $region16: #{pointnet_feat.1} parent=11 // pred_fallthru
        _
      // Predicated region
      $region17: #{pointnet_feat.1} parent=11 // pred_check
        %p223 = pneg %p95
      $region18: #{pointnet_feat.1} parent=11 // pred_check_branch
        %225 = sbr.rel (%p223) target = $region20
      $region19: #{pointnet_feat.1} parent=11 // pred_region
        _
      $region20: #{pointnet_feat.1} parent=11 // pred_fallthru
        _
      // Predicated region
      $region21: #{pointnet_feat.1} parent=11 // pred_check
        %p226 = pneg %p116
      $region22: #{pointnet_feat.1} parent=11 // pred_check_branch
        %228 = sbr.rel (%p226) target = $region24
      $region23: #{pointnet_feat.1} parent=11 // pred_region
        _
      $region24: #{pointnet_feat.1} parent=11 // pred_fallthru
        _
      // Predicated region
      $region25: #{pointnet_feat.1} parent=11 // pred_check
        %p229 = pneg %p137
      $region26: #{pointnet_feat.1} parent=11 // pred_check_branch
        %231 = sbr.rel (%p229) target = $region28
      $region27: #{pointnet_feat.1} parent=11 // pred_region
        _
      $region28: #{pointnet_feat.1} parent=11 // pred_fallthru
        _
      // Predicated region
      $region29: #{pointnet_feat.1} parent=11 // pred_check
        %p232 = pneg %p158
      $region30: #{pointnet_feat.1} parent=11 // pred_check_branch
        %234 = sbr.rel (%p232) target = $region32
      $region31: #{pointnet_feat.1} parent=11 // pred_region
        _
      $region32: #{pointnet_feat.1} parent=11 // pred_fallthru
        _
      // Predicated region
      $region33: #{pointnet_feat.1} parent=11 // pred_check
        %p235 = pneg %p179
      $region34: #{pointnet_feat.1} parent=11 // pred_check_branch
        %237 = sbr.rel (%p235) target = $region36
      $region35: #{pointnet_feat.1} parent=11 // pred_region
        _
      $region36: #{pointnet_feat.1} parent=11 // pred_fallthru
        _
    $region12: #{pointnet_feat.1} parent=5 // pred_fallthru
      _
    %p238 = scmp.lt.s32.totalorder %s13, 2
    // Predicated region
    $region37: #{pointnet_feat.1} parent=5 // pred_check
      %p239 = pneg %p238
    $region38: #{pointnet_feat.1} parent=5 // pred_check_branch
      %241 = sbr.rel (%p239) target = $region40
    $region39: #{pointnet_feat.1} parent=5 // pred_region
      // Predicated region
      $region41: #{pointnet_feat.1} parent=39 // pred_check
        %p242 = pneg %p47
      $region42: #{pointnet_feat.1} parent=39 // pred_check_branch
        %244 = sbr.rel (%p242) target = $region44
      $region43: #{pointnet_feat.1} parent=39 // pred_region
        %s245 = smul.u32 128, %s21
        %p246 = scmp.lt.s32.totalorder %s20, 1
        %s247 = scalar_select %p246, %s20, 1
        %p248 = scmp.lt.s32.totalorder %s245, 127
        %s249 = scalar_select %p248, %s245, 127
        %s250 = smul.addr %s247, 128
        %s251 = sadd.s32 %s249, %s250
        %s252 = smul.addr %s251, 4
        %s253 = scalar_lea.vmem %s0, %s252
        %s254 = smul.u32 128, %s21
      $region44: #{pointnet_feat.1} parent=39 // pred_fallthru
        _
    $region40: #{pointnet_feat.1} parent=5 // pred_fallthru
      _
    %p255 = scmp.le.s32.totalorder 1, %s13
    %p256 = scmp.lt.s32.totalorder %s13, 3
    %p257 = pnand %p255, %p256
    %p258 = pneg %p257
    // Predicated region
    $region45: #{pointnet_feat.1} parent=5 // pred_check
      _
    $region46: #{pointnet_feat.1} parent=5 // pred_check_branch
      %260 = sbr.rel (%p257) target = $region48
    $region47: #{pointnet_feat.1} parent=5 // pred_region
      %s261 = ssub.s32 %s13, 1
      %s262 = smul.u32 128, %s23
      %p263 = scmp.lt.s32.totalorder %s22, 1
      %s264 = scalar_select %p263, %s22, 1
      %p265 = scmp.lt.s32.totalorder %s262, 127
      %s266 = scalar_select %p265, %s262, 127
      %s267 = smul.addr %s264, 128
      %s268 = sadd.s32 %s266, %s267
      %s269 = smul.addr %s268, 4
      %s270 = scalar_lea.vmem %s0, %s269
      %p271 = pneg %p53
      %p272 = pneg %p50
      %p273 = pneg %p74
      %p274 = pneg %p71
      %p275 = pneg %p95
      %p276 = pneg %p92
      %p277 = pneg %p116
      %p278 = pneg %p113
      %p279 = pneg %p137
      %p280 = pneg %p134
      %p281 = pneg %p158
      %p282 = pneg %p155
      %p283 = pneg %p179
      %p284 = pneg %p176
      %p285 = pneg %p205
      %p286 = pneg %p202
      %p287 = scmp.lt.s32.totalorder %s22, 1
      %s288 = scalar_select %p287, %s22, 1
      %s289 = smul.addr %s288, 8
      %s290 = scalar_lea.vmem %s7, %s289
      %s291 = smul.u32 128, %s23
      %p292 = scmp.lt.s32.totalorder %s22, 1
      %s293 = scalar_select %p292, %s22, 1
      %p294 = scmp.lt.s32.totalorder %s291, 127
      %s295 = scalar_select %p294, %s291, 127
      %s296 = smul.addr %s293, 128
      %s297 = sadd.s32 %s295, %s296
      %s298 = smul.addr %s297, 4
      %s299 = scalar_lea.vmem %s0, %s298
      %s300 = smul.u32 128, %s23
      %p301 = scmp.lt.s32.totalorder %s22, 1
      %s302 = scalar_select %p301, %s22, 1
      %s303 = smul.addr %s302, 8
      %s304 = scalar_lea.vmem %s7, %s303
      %v306 = vld [vmem:[%s299] sm:$0xf]
      %v307 = vld [vmem:[%s299 + $0x4] sm:$0xf]
      %v308 = vld [vmem:[%s299 + $0x8] sm:$0xf]
      %v309 = vld [vmem:[%s299 + $0xc] sm:$0xf]
      %v310 = vld [vmem:[%s299 + $0x10] sm:$0xf]
      %v311 = vld [vmem:[%s299 + $0x14] sm:$0xf]
      %v312 = vld [vmem:[%s299 + $0x18] sm:$0xf]
      %v313 = vld [vmem:[%s299 + $0x1c] sm:$0xf]
      %v314 = vld [vmem:[%s299 + $0x20] sm:$0xf]
      %v315 = vld [vmem:[%s299 + $0x24] sm:$0xf]
      %v316 = vld [vmem:[%s299 + $0x28] sm:$0xf]
      %v317 = vld [vmem:[%s299 + $0x2c] sm:$0xf]
      %v318 = vld [vmem:[%s299 + $0x30] sm:$0xf]
      %v319 = vld [vmem:[%s299 + $0x34] sm:$0xf]
      %v320 = vld [vmem:[%s299 + $0x38] sm:$0xf]
      %v321 = vld [vmem:[%s299 + $0x3c] sm:$0xf]
      %v322 = vld [vmem:[%s299 + $0x40] sm:$0xf]
      %v323 = vld [vmem:[%s299 + $0x44] sm:$0xf]
      %v324 = vld [vmem:[%s299 + $0x48] sm:$0xf]
      %v325 = vld [vmem:[%s299 + $0x4c] sm:$0xf]
      %v326 = vld [vmem:[%s299 + $0x50] sm:$0xf]
      %v327 = vld [vmem:[%s299 + $0x54] sm:$0xf]
      %v328 = vld [vmem:[%s299 + $0x58] sm:$0xf]
      %v329 = vld [vmem:[%s299 + $0x5c] sm:$0xf]
      %v330 = vld [vmem:[%s299 + $0x60] sm:$0xf]
      %v331 = vld [vmem:[%s299 + $0x64] sm:$0xf]
      %v332 = vld [vmem:[%s299 + $0x68] sm:$0xf]
      %v333 = vld [vmem:[%s299 + $0x6c] sm:$0xf]
      %v334 = vld [vmem:[%s299 + $0x70] sm:$0xf]
      %v335 = vld [vmem:[%s299 + $0x74] sm:$0xf]
      %v336 = vld [vmem:[%s299 + $0x78] sm:$0xf]
      %v337 = vld [vmem:[%s299 + $0x7c] sm:$0xf]
      %v338 = vld [vmem:[%s299 + $0x80] sm:$0xf]
      %v339 = vld [vmem:[%s299 + $0x84] sm:$0xf]
      %v340 = vld [vmem:[%s299 + $0x88] sm:$0xf]
      %v341 = vld [vmem:[%s299 + $0x8c] sm:$0xf]
      %v342 = vld [vmem:[%s299 + $0x90] sm:$0xf]
      %v343 = vld [vmem:[%s299 + $0x94] sm:$0xf]
      %v344 = vld [vmem:[%s299 + $0x98] sm:$0xf]
      %v345 = vld [vmem:[%s299 + $0x9c] sm:$0xf]
      %v346 = vld [vmem:[%s299 + $0xa0] sm:$0xf]
      %v347 = vld [vmem:[%s299 + $0xa4] sm:$0xf]
      %v348 = vld [vmem:[%s299 + $0xa8] sm:$0xf]
      %v349 = vld [vmem:[%s299 + $0xac] sm:$0xf]
      %v350 = vld [vmem:[%s299 + $0xb0] sm:$0xf]
      %v351 = vld [vmem:[%s299 + $0xb4] sm:$0xf]
      %v352 = vld [vmem:[%s299 + $0xb8] sm:$0xf]
      %v353 = vld [vmem:[%s299 + $0xbc] sm:$0xf]
      %v354 = vld [vmem:[%s299 + $0xc0] sm:$0xf]
      %v355 = vld [vmem:[%s299 + $0xc4] sm:$0xf]
      %v356 = vld [vmem:[%s299 + $0xc8] sm:$0xf]
      %v357 = vld [vmem:[%s299 + $0xcc] sm:$0xf]
      %v358 = vld [vmem:[%s299 + $0xd0] sm:$0xf]
      %v359 = vld [vmem:[%s299 + $0xd4] sm:$0xf]
      %v360 = vld [vmem:[%s299 + $0xd8] sm:$0xf]
      %v361 = vld [vmem:[%s299 + $0xdc] sm:$0xf]
      %v362 = vld [vmem:[%s299 + $0xe0] sm:$0xf]
      %v363 = vld [vmem:[%s299 + $0xe4] sm:$0xf]
      %v364 = vld [vmem:[%s299 + $0xe8] sm:$0xf]
      %v365 = vld [vmem:[%s299 + $0xec] sm:$0xf]
      %v366 = vld [vmem:[%s299 + $0xf0] sm:$0xf]
      %v367 = vld [vmem:[%s299 + $0xf4] sm:$0xf]
      %v368 = vld [vmem:[%s299 + $0xf8] sm:$0xf]
      %v369 = vld [vmem:[%s299 + $0xfc] sm:$0xf]
      %v370 = vld [vmem:[%s299 + $0x100] sm:$0xf]
      %v371 = vld [vmem:[%s299 + $0x104] sm:$0xf]
      %v372 = vld [vmem:[%s299 + $0x108] sm:$0xf]
      %v373 = vld [vmem:[%s299 + $0x10c] sm:$0xf]
      %v374 = vld [vmem:[%s299 + $0x110] sm:$0xf]
      %v375 = vld [vmem:[%s299 + $0x114] sm:$0xf]
      %v376 = vld [vmem:[%s299 + $0x118] sm:$0xf]
      %v377 = vld [vmem:[%s299 + $0x11c] sm:$0xf]
      %v378 = vld [vmem:[%s299 + $0x120] sm:$0xf]
      %v379 = vld [vmem:[%s299 + $0x124] sm:$0xf]
      %v380 = vld [vmem:[%s299 + $0x128] sm:$0xf]
      %v381 = vld [vmem:[%s299 + $0x12c] sm:$0xf]
      %v382 = vld [vmem:[%s299 + $0x130] sm:$0xf]
      %v383 = vld [vmem:[%s299 + $0x134] sm:$0xf]
      %v384 = vld [vmem:[%s299 + $0x138] sm:$0xf]
      %v385 = vld [vmem:[%s299 + $0x13c] sm:$0xf]
      %v386 = vld [vmem:[%s299 + $0x140] sm:$0xf]
      %v387 = vld [vmem:[%s299 + $0x144] sm:$0xf]
      %v388 = vld [vmem:[%s299 + $0x148] sm:$0xf]
      %v389 = vld [vmem:[%s299 + $0x14c] sm:$0xf]
      %v390 = vld [vmem:[%s299 + $0x150] sm:$0xf]
      %v391 = vld [vmem:[%s299 + $0x154] sm:$0xf]
      %v392 = vld [vmem:[%s299 + $0x158] sm:$0xf]
      %v393 = vld [vmem:[%s299 + $0x15c] sm:$0xf]
      %v394 = vld [vmem:[%s299 + $0x160] sm:$0xf]
      %v395 = vld [vmem:[%s299 + $0x164] sm:$0xf]
      %v396 = vld [vmem:[%s299 + $0x168] sm:$0xf]
      %v397 = vld [vmem:[%s299 + $0x16c] sm:$0xf]
      %v398 = vld [vmem:[%s299 + $0x170] sm:$0xf]
      %v399 = vld [vmem:[%s299 + $0x174] sm:$0xf]
      %v400 = vld [vmem:[%s299 + $0x178] sm:$0xf]
      %v401 = vld [vmem:[%s299 + $0x17c] sm:$0xf]
      %v402 = vld [vmem:[%s299 + $0x180] sm:$0xf]
      %v403 = vld [vmem:[%s299 + $0x184] sm:$0xf]
      %v404 = vld [vmem:[%s299 + $0x188] sm:$0xf]
      %v405 = vld [vmem:[%s299 + $0x18c] sm:$0xf]
      %v406 = vld [vmem:[%s299 + $0x190] sm:$0xf]
      %v407 = vld [vmem:[%s299 + $0x194] sm:$0xf]
      %v408 = vld [vmem:[%s299 + $0x198] sm:$0xf]
      %v409 = vld [vmem:[%s299 + $0x19c] sm:$0xf]
      %v410 = vld [vmem:[%s299 + $0x1a0] sm:$0xf]
      %v411 = vld [vmem:[%s299 + $0x1a4] sm:$0xf]
      %v412 = vld [vmem:[%s299 + $0x1a8] sm:$0xf]
      %v413 = vld [vmem:[%s299 + $0x1ac] sm:$0xf]
      %v414 = vld [vmem:[%s299 + $0x1b0] sm:$0xf]
      %v415 = vld [vmem:[%s299 + $0x1b4] sm:$0xf]
      %v416 = vld [vmem:[%s299 + $0x1b8] sm:$0xf]
      %v417 = vld [vmem:[%s299 + $0x1bc] sm:$0xf]
      %v418 = vld [vmem:[%s299 + $0x1c0] sm:$0xf]
      %v419 = vld [vmem:[%s299 + $0x1c4] sm:$0xf]
      %v420 = vld [vmem:[%s299 + $0x1c8] sm:$0xf]
      %v421 = vld [vmem:[%s299 + $0x1cc] sm:$0xf]
      %v422 = vld [vmem:[%s299 + $0x1d0] sm:$0xf]
      %v423 = vld [vmem:[%s299 + $0x1d4] sm:$0xf]
      %v424 = vld [vmem:[%s299 + $0x1d8] sm:$0xf]
      %v425 = vld [vmem:[%s299 + $0x1dc] sm:$0xf]
      %v426 = vld [vmem:[%s299 + $0x1e0] sm:$0xf]
      %v427 = vld [vmem:[%s299 + $0x1e4] sm:$0xf]
      %v428 = vld [vmem:[%s299 + $0x1e8] sm:$0xf]
      %v429 = vld [vmem:[%s299 + $0x1ec] sm:$0xf]
      %v430 = vld [vmem:[%s299 + $0x1f0] sm:$0xf]
      %v431 = vld [vmem:[%s299 + $0x1f4] sm:$0xf]
      %v432 = vld [vmem:[%s299 + $0x1f8] sm:$0xf]
      %v433 = vld [vmem:[%s299 + $0x1fc] sm:$0xf]
      %v434 = vld [vmem:[%s1] sm:$0xf]
      %v435 = vld [vmem:[%s2] sm:$0x1]
      %v437 = vlaneseq
      %v438 = vshrl.u32 %v437, 7
      %v439 = vsub.s32 0, %v438
      %v440 = vrot.slane %v435, %v439
      %v570 = vunpack.c.l.b16 %v306
      %v571 = vunpack.c.l.b16 %v307
      %v572 = vunpack.c.l.b16 %v308
      %v573 = vunpack.c.l.b16 %v309
      %v574 = vunpack.c.l.b16 %v310
      %v575 = vunpack.c.l.b16 %v311
      %v576 = vunpack.c.l.b16 %v312
      %v577 = vunpack.c.l.b16 %v313
      %v578 = vunpack.c.l.b16 %v314
      %v579 = vunpack.c.l.b16 %v315
      %v580 = vunpack.c.l.b16 %v316
      %v581 = vunpack.c.l.b16 %v317
      %v582 = vunpack.c.l.b16 %v318
      %v583 = vunpack.c.l.b16 %v319
      %v584 = vunpack.c.l.b16 %v320
      %v585 = vunpack.c.l.b16 %v321
      %v586 = vunpack.c.l.b16 %v322
      %v587 = vunpack.c.l.b16 %v323
      %v588 = vunpack.c.l.b16 %v324
      %v589 = vunpack.c.l.b16 %v325
      %v590 = vunpack.c.l.b16 %v326
      %v591 = vunpack.c.l.b16 %v327
      %v592 = vunpack.c.l.b16 %v328
      %v593 = vunpack.c.l.b16 %v329
      %v594 = vunpack.c.l.b16 %v330
      %v595 = vunpack.c.l.b16 %v331
      %v596 = vunpack.c.l.b16 %v332
      %v597 = vunpack.c.l.b16 %v333
      %v598 = vunpack.c.l.b16 %v334
      %v599 = vunpack.c.l.b16 %v335
      %v600 = vunpack.c.l.b16 %v336
      %v601 = vunpack.c.l.b16 %v337
      %v602 = vunpack.c.l.b16 %v338
      %v603 = vunpack.c.l.b16 %v339
      %v604 = vunpack.c.l.b16 %v340
      %v605 = vunpack.c.l.b16 %v341
      %v606 = vunpack.c.l.b16 %v342
      %v607 = vunpack.c.l.b16 %v343
      %v608 = vunpack.c.l.b16 %v344
      %v609 = vunpack.c.l.b16 %v345
      %v610 = vunpack.c.l.b16 %v346
      %v611 = vunpack.c.l.b16 %v347
      %v612 = vunpack.c.l.b16 %v348
      %v613 = vunpack.c.l.b16 %v349
      %v614 = vunpack.c.l.b16 %v350
      %v615 = vunpack.c.l.b16 %v351
      %v616 = vunpack.c.l.b16 %v352
      %v617 = vunpack.c.l.b16 %v353
      %v618 = vunpack.c.l.b16 %v354
      %v619 = vunpack.c.l.b16 %v355
      %v620 = vunpack.c.l.b16 %v356
      %v621 = vunpack.c.l.b16 %v357
      %v622 = vunpack.c.l.b16 %v358
      %v623 = vunpack.c.l.b16 %v359
      %v624 = vunpack.c.l.b16 %v360
      %v625 = vunpack.c.l.b16 %v361
      %v626 = vunpack.c.l.b16 %v362
      %v627 = vunpack.c.l.b16 %v363
      %v628 = vunpack.c.l.b16 %v364
      %v629 = vunpack.c.l.b16 %v365
      %v630 = vunpack.c.l.b16 %v366
      %v631 = vunpack.c.l.b16 %v367
      %v632 = vunpack.c.l.b16 %v368
      %v633 = vunpack.c.l.b16 %v369
      %v634 = vunpack.c.l.b16 %v370
      %v635 = vunpack.c.l.b16 %v371
      %v636 = vunpack.c.l.b16 %v372
      %v637 = vunpack.c.l.b16 %v373
      %v638 = vunpack.c.l.b16 %v374
      %v639 = vunpack.c.l.b16 %v375
      %v640 = vunpack.c.l.b16 %v376
      %v641 = vunpack.c.l.b16 %v377
      %v642 = vunpack.c.l.b16 %v378
      %v643 = vunpack.c.l.b16 %v379
      %v644 = vunpack.c.l.b16 %v380
      %v645 = vunpack.c.l.b16 %v381
      %v646 = vunpack.c.l.b16 %v382
      %v647 = vunpack.c.l.b16 %v383
      %v648 = vunpack.c.l.b16 %v384
      %v649 = vunpack.c.l.b16 %v385
      %v650 = vunpack.c.l.b16 %v386
      %v651 = vunpack.c.l.b16 %v387
      %v652 = vunpack.c.l.b16 %v388
      %v653 = vunpack.c.l.b16 %v389
      %v654 = vunpack.c.l.b16 %v390
      %v655 = vunpack.c.l.b16 %v391
      %v656 = vunpack.c.l.b16 %v392
      %v657 = vunpack.c.l.b16 %v393
      %v658 = vunpack.c.l.b16 %v394
      %v659 = vunpack.c.l.b16 %v395
      %v660 = vunpack.c.l.b16 %v396
      %v661 = vunpack.c.l.b16 %v397
      %v662 = vunpack.c.l.b16 %v398
      %v663 = vunpack.c.l.b16 %v399
      %v664 = vunpack.c.l.b16 %v400
      %v665 = vunpack.c.l.b16 %v401
      %v666 = vunpack.c.l.b16 %v402
      %v667 = vunpack.c.l.b16 %v403
      %v668 = vunpack.c.l.b16 %v404
      %v669 = vunpack.c.l.b16 %v405
      %v670 = vunpack.c.l.b16 %v406
      %v671 = vunpack.c.l.b16 %v407
      %v672 = vunpack.c.l.b16 %v408
      %v673 = vunpack.c.l.b16 %v409
      %v674 = vunpack.c.l.b16 %v410
      %v675 = vunpack.c.l.b16 %v411
      %v676 = vunpack.c.l.b16 %v412
      %v677 = vunpack.c.l.b16 %v413
      %v678 = vunpack.c.l.b16 %v414
      %v679 = vunpack.c.l.b16 %v415
      %v680 = vunpack.c.l.b16 %v416
      %v681 = vunpack.c.l.b16 %v417
      %v682 = vunpack.c.l.b16 %v418
      %v683 = vunpack.c.l.b16 %v419
      %v684 = vunpack.c.l.b16 %v420
      %v685 = vunpack.c.l.b16 %v421
      %v686 = vunpack.c.l.b16 %v422
      %v687 = vunpack.c.l.b16 %v423
      %v688 = vunpack.c.l.b16 %v424
      %v689 = vunpack.c.l.b16 %v425
      %v690 = vunpack.c.l.b16 %v426
      %v691 = vunpack.c.l.b16 %v427
      %v692 = vunpack.c.l.b16 %v428
      %v693 = vunpack.c.l.b16 %v429
      %v694 = vunpack.c.l.b16 %v430
      %v695 = vunpack.c.l.b16 %v431
      %v696 = vunpack.c.l.b16 %v432
      %v697 = vunpack.c.l.b16 %v433
      %v698 = vpack.c.b16 %v571, %v570
      %v699 = vpack.c.b16 %v573, %v572
      %v700 = vpack.c.b16 %v575, %v574
      %v701 = vpack.c.b16 %v577, %v576
      %v702 = vpack.c.b16 %v579, %v578
      %v703 = vpack.c.b16 %v581, %v580
      %v704 = vpack.c.b16 %v583, %v582
      %v705 = vpack.c.b16 %v585, %v584
      %v706 = vpack.c.b16 %v587, %v586
      %v707 = vpack.c.b16 %v589, %v588
      %v708 = vpack.c.b16 %v591, %v590
      %v709 = vpack.c.b16 %v593, %v592
      %v710 = vpack.c.b16 %v595, %v594
      %v711 = vpack.c.b16 %v597, %v596
      %v712 = vpack.c.b16 %v599, %v598
      %v713 = vpack.c.b16 %v601, %v600
      %v714 = vpack.c.b16 %v603, %v602
      %v715 = vpack.c.b16 %v605, %v604
      %v716 = vpack.c.b16 %v607, %v606
      %v717 = vpack.c.b16 %v609, %v608
      %v718 = vpack.c.b16 %v611, %v610
      %v719 = vpack.c.b16 %v613, %v612
      %v720 = vpack.c.b16 %v615, %v614
      %v721 = vpack.c.b16 %v617, %v616
      %v722 = vpack.c.b16 %v619, %v618
      %v723 = vpack.c.b16 %v621, %v620
      %v724 = vpack.c.b16 %v623, %v622
      %v725 = vpack.c.b16 %v625, %v624
      %v726 = vpack.c.b16 %v627, %v626
      %v727 = vpack.c.b16 %v629, %v628
      %v728 = vpack.c.b16 %v631, %v630
      %v729 = vpack.c.b16 %v633, %v632
      %v730 = vpack.c.b16 %v635, %v634
      %v731 = vpack.c.b16 %v637, %v636
      %v732 = vpack.c.b16 %v639, %v638
      %v733 = vpack.c.b16 %v641, %v640
      %v734 = vpack.c.b16 %v643, %v642
      %v735 = vpack.c.b16 %v645, %v644
      %v736 = vpack.c.b16 %v647, %v646
      %v737 = vpack.c.b16 %v649, %v648
      %v738 = vpack.c.b16 %v651, %v650
      %v739 = vpack.c.b16 %v653, %v652
      %v740 = vpack.c.b16 %v655, %v654
      %v741 = vpack.c.b16 %v657, %v656
      %v742 = vpack.c.b16 %v659, %v658
      %v743 = vpack.c.b16 %v661, %v660
      %v744 = vpack.c.b16 %v663, %v662
      %v745 = vpack.c.b16 %v665, %v664
      %v746 = vpack.c.b16 %v667, %v666
      %v747 = vpack.c.b16 %v669, %v668
      %v748 = vpack.c.b16 %v671, %v670
      %v749 = vpack.c.b16 %v673, %v672
      %v750 = vpack.c.b16 %v675, %v674
      %v751 = vpack.c.b16 %v677, %v676
      %v752 = vpack.c.b16 %v679, %v678
      %v753 = vpack.c.b16 %v681, %v680
      %v754 = vpack.c.b16 %v683, %v682
      %v755 = vpack.c.b16 %v685, %v684
      %v756 = vpack.c.b16 %v687, %v686
      %v757 = vpack.c.b16 %v689, %v688
      %v758 = vpack.c.b16 %v691, %v690
      %v759 = vpack.c.b16 %v693, %v692
      %v760 = vpack.c.b16 %v695, %v694
      %v761 = vpack.c.b16 %v697, %v696
      %vm762 = vcmask 64512
      %v764 = vsel %vm762, %v698, 0
      %v767 = vsel %vm762, %v699, 0
      %v770 = vsel %vm762, %v700, 0
      %v773 = vsel %vm762, %v701, 0
      %v776 = vsel %vm762, %v702, 0
      %v779 = vsel %vm762, %v703, 0
      %v782 = vsel %vm762, %v704, 0
      %v785 = vsel %vm762, %v705, 0
      %v788 = vsel %vm762, %v706, 0
      %v791 = vsel %vm762, %v707, 0
      %v794 = vsel %vm762, %v708, 0
      %v797 = vsel %vm762, %v709, 0
      %v800 = vsel %vm762, %v710, 0
      %v803 = vsel %vm762, %v711, 0
      %v806 = vsel %vm762, %v712, 0
      %v809 = vsel %vm762, %v713, 0
      %v812 = vsel %vm762, %v714, 0
      %v815 = vsel %vm762, %v715, 0
      %v818 = vsel %vm762, %v716, 0
      %v821 = vsel %vm762, %v717, 0
      %v824 = vsel %vm762, %v718, 0
      %v827 = vsel %vm762, %v719, 0
      %v830 = vsel %vm762, %v720, 0
      %v833 = vsel %vm762, %v721, 0
      %v836 = vsel %vm762, %v722, 0
      %v839 = vsel %vm762, %v723, 0
      %v842 = vsel %vm762, %v724, 0
      %v845 = vsel %vm762, %v725, 0
      %v848 = vsel %vm762, %v726, 0
      %v851 = vsel %vm762, %v727, 0
      %v854 = vsel %vm762, %v728, 0
      %v857 = vsel %vm762, %v729, 0
      %v860 = vsel %vm762, %v730, 0
      %v863 = vsel %vm762, %v731, 0
      %v866 = vsel %vm762, %v732, 0
      %v869 = vsel %vm762, %v733, 0
      %v872 = vsel %vm762, %v734, 0
      %v875 = vsel %vm762, %v735, 0
      %v878 = vsel %vm762, %v736, 0
      %v881 = vsel %vm762, %v737, 0
      %v884 = vsel %vm762, %v738, 0
      %v887 = vsel %vm762, %v739, 0
      %v890 = vsel %vm762, %v740, 0
      %v893 = vsel %vm762, %v741, 0
      %v896 = vsel %vm762, %v742, 0
      %v899 = vsel %vm762, %v743, 0
      %v902 = vsel %vm762, %v744, 0
      %v905 = vsel %vm762, %v745, 0
      %v908 = vsel %vm762, %v746, 0
      %v911 = vsel %vm762, %v747, 0
      %v914 = vsel %vm762, %v748, 0
      %v917 = vsel %vm762, %v749, 0
      %v920 = vsel %vm762, %v750, 0
      %v923 = vsel %vm762, %v751, 0
      %v926 = vsel %vm762, %v752, 0
      %v929 = vsel %vm762, %v753, 0
      %v932 = vsel %vm762, %v754, 0
      %v935 = vsel %vm762, %v755, 0
      %v938 = vsel %vm762, %v756, 0
      %v941 = vsel %vm762, %v757, 0
      %v944 = vsel %vm762, %v758, 0
      %v947 = vsel %vm762, %v759, 0
      %v950 = vsel %vm762, %v760, 0
      %v953 = vsel %vm762, %v761, 0
      %vm955 = vcmask 1043456
      %v957 = vsel %vm955, %v434, 0
      %959 = vmatprep.subr.bf16.mxu0 0
      %960 = vmatpush1.bf16.msra.mxu0 0
      %961 = vmatprep.subr.bf16.mxu0 0
      %962 = vmatpush1.bf16.msra.mxu0 0
      %963 = vmatprep.subr.bf16.mxu0 0
      %964 = vmatpush1.bf16.msra.mxu0 0
      %965 = vmatprep.subr.bf16.mxu0 0
      %966 = vmatpush1.bf16.msra.mxu0 0
      %967 = vmatprep.subr.bf16.mxu0 0
      %968 = vmatpush1.bf16.msra.mxu0 0
      %969 = vmatprep.subr.bf16.mxu0 0
      %970 = vmatpush1.bf16.msra.mxu0 0
      %971 = vmatprep.subr.bf16.mxu0 0
      %972 = vmatpush1.bf16.msra.mxu0 0
      %973 = vmatprep.subr.bf16.mxu0 0
      %974 = vmatpush1.bf16.msra.mxu0 %v957
      %975 = vmatprep.subr.bf16.mxu0 0
      %976 = vmatpush2.bf16.msra.mxu0 0
      %977 = vmatprep.subr.bf16.mxu0 0
      %978 = vmatpush2.bf16.msra.mxu0 0
      %979 = vmatprep.subr.bf16.mxu0 0
      %980 = vmatpush2.bf16.msra.mxu0 0
      %981 = vmatprep.subr.bf16.mxu0 0
      %982 = vmatpush2.bf16.msra.mxu0 0
      %983 = vmatprep.subr.bf16.mxu0 0
      %984 = vmatpush2.bf16.msra.mxu0 0
      %985 = vmatprep.subr.bf16.mxu0 0
      %986 = vmatpush2.bf16.msra.mxu0 0
      %987 = vmatprep.subr.bf16.mxu0 0
      %988 = vmatpush2.bf16.msra.mxu0 0
      %989 = vmatprep.subr.bf16.mxu0 0
      %990 = vmatpush2.bf16.msra.mxu0 0
      %991 = vmatprep.mubr.bf16.mxu0 0
      %992 = vmatmul.mubr.bf16.gmra.mxu0 %v764
      %v993 = vpop.f32.mrf.mxu0
      %v994 = vadd.f32 %v440, %v993
      %v995 = vpop.f32.mrf.mxu0
      %v996 = vpop.f32.mrf.mxu0
      %v997 = vadd.f32 %v440, %v996
      %v998 = vpop.f32.mrf.mxu0
      %999 = vmatprep.mubr.bf16.mxu0 0
      %1000 = vmatmul.mubr.bf16.gmra.mxu0 %v767
      %v1001 = vpop.f32.mrf.mxu0
      %v1002 = vadd.f32 %v440, %v1001
      %v1003 = vpop.f32.mrf.mxu0
      %v1004 = vpop.f32.mrf.mxu0
      %v1005 = vadd.f32 %v440, %v1004
      %v1006 = vpop.f32.mrf.mxu0
      %1007 = vmatprep.mubr.bf16.mxu0 0
      %1008 = vmatmul.mubr.bf16.gmra.mxu0 %v770
      %v1009 = vpop.f32.mrf.mxu0
      %v1010 = vadd.f32 %v440, %v1009
      %v1011 = vpop.f32.mrf.mxu0
      %v1012 = vpop.f32.mrf.mxu0
      %v1013 = vadd.f32 %v440, %v1012
      %v1014 = vpop.f32.mrf.mxu0
      %1015 = vmatprep.mubr.bf16.mxu0 0
      %1016 = vmatmul.mubr.bf16.gmra.mxu0 %v773
      %v1017 = vpop.f32.mrf.mxu0
      %v1018 = vadd.f32 %v440, %v1017
      %v1019 = vpop.f32.mrf.mxu0
      %v1020 = vpop.f32.mrf.mxu0
      %v1021 = vadd.f32 %v440, %v1020
      %v1022 = vpop.f32.mrf.mxu0
      %1023 = vmatprep.mubr.bf16.mxu0 0
      %1024 = vmatmul.mubr.bf16.gmra.mxu0 %v776
      %v1025 = vpop.f32.mrf.mxu0
      %v1026 = vadd.f32 %v440, %v1025
      %v1027 = vpop.f32.mrf.mxu0
      %v1028 = vpop.f32.mrf.mxu0
      %v1029 = vadd.f32 %v440, %v1028
      %v1030 = vpop.f32.mrf.mxu0
      %1031 = vmatprep.mubr.bf16.mxu0 0
      %1032 = vmatmul.mubr.bf16.gmra.mxu0 %v779
      %v1033 = vpop.f32.mrf.mxu0
      %v1034 = vadd.f32 %v440, %v1033
      %v1035 = vpop.f32.mrf.mxu0
      %v1036 = vpop.f32.mrf.mxu0
      %v1037 = vadd.f32 %v440, %v1036
      %v1038 = vpop.f32.mrf.mxu0
      %1039 = vmatprep.mubr.bf16.mxu0 0
      %1040 = vmatmul.mubr.bf16.gmra.mxu0 %v782
      %v1041 = vpop.f32.mrf.mxu0
      %v1042 = vadd.f32 %v440, %v1041
      %v1043 = vpop.f32.mrf.mxu0
      %v1044 = vpop.f32.mrf.mxu0
      %v1045 = vadd.f32 %v440, %v1044
      %v1046 = vpop.f32.mrf.mxu0
      %1047 = vmatprep.mubr.bf16.mxu0 0
      %1048 = vmatmul.mubr.bf16.gmra.mxu0 %v785
      %v1049 = vpop.f32.mrf.mxu0
      %v1050 = vadd.f32 %v440, %v1049
      %v1051 = vpop.f32.mrf.mxu0
      %v1052 = vpop.f32.mrf.mxu0
      %v1053 = vadd.f32 %v440, %v1052
      %v1054 = vpop.f32.mrf.mxu0
      %1055 = vmatprep.mubr.bf16.mxu0 0
      %1056 = vmatmul.mubr.bf16.gmra.mxu0 %v788
      %v1057 = vpop.f32.mrf.mxu0
      %v1058 = vadd.f32 %v440, %v1057
      %v1059 = vpop.f32.mrf.mxu0
      %v1060 = vpop.f32.mrf.mxu0
      %v1061 = vadd.f32 %v440, %v1060
      %v1062 = vpop.f32.mrf.mxu0
      %1063 = vmatprep.mubr.bf16.mxu0 0
      %1064 = vmatmul.mubr.bf16.gmra.mxu0 %v791
      %v1065 = vpop.f32.mrf.mxu0
      %v1066 = vadd.f32 %v440, %v1065
      %v1067 = vpop.f32.mrf.mxu0
      %v1068 = vpop.f32.mrf.mxu0
      %v1069 = vadd.f32 %v440, %v1068
      %v1070 = vpop.f32.mrf.mxu0
      %1071 = vmatprep.mubr.bf16.mxu0 0
      %1072 = vmatmul.mubr.bf16.gmra.mxu0 %v794
      %v1073 = vpop.f32.mrf.mxu0
      %v1074 = vadd.f32 %v440, %v1073
      %v1075 = vpop.f32.mrf.mxu0
      %v1076 = vpop.f32.mrf.mxu0
      %v1077 = vadd.f32 %v440, %v1076
      %v1078 = vpop.f32.mrf.mxu0
      %1079 = vmatprep.mubr.bf16.mxu0 0
      %1080 = vmatmul.mubr.bf16.gmra.mxu0 %v797
      %v1081 = vpop.f32.mrf.mxu0
      %v1082 = vadd.f32 %v440, %v1081
      %v1083 = vpop.f32.mrf.mxu0
      %v1084 = vpop.f32.mrf.mxu0
      %v1085 = vadd.f32 %v440, %v1084
      %v1086 = vpop.f32.mrf.mxu0
      %1087 = vmatprep.mubr.bf16.mxu0 0
      %1088 = vmatmul.mubr.bf16.gmra.mxu0 %v800
      %v1089 = vpop.f32.mrf.mxu0
      %v1090 = vadd.f32 %v440, %v1089
      %v1091 = vpop.f32.mrf.mxu0
      %v1092 = vpop.f32.mrf.mxu0
      %v1093 = vadd.f32 %v440, %v1092
      %v1094 = vpop.f32.mrf.mxu0
      %1095 = vmatprep.mubr.bf16.mxu0 0
      %1096 = vmatmul.mubr.bf16.gmra.mxu0 %v803
      %v1097 = vpop.f32.mrf.mxu0
      %v1098 = vadd.f32 %v440, %v1097
      %v1099 = vpop.f32.mrf.mxu0
      %v1100 = vpop.f32.mrf.mxu0
      %v1101 = vadd.f32 %v440, %v1100
      %v1102 = vpop.f32.mrf.mxu0
      %1103 = vmatprep.mubr.bf16.mxu0 0
      %1104 = vmatmul.mubr.bf16.gmra.mxu0 %v806
      %v1105 = vpop.f32.mrf.mxu0
      %v1106 = vadd.f32 %v440, %v1105
      %v1107 = vpop.f32.mrf.mxu0
      %v1108 = vpop.f32.mrf.mxu0
      %v1109 = vadd.f32 %v440, %v1108
      %v1110 = vpop.f32.mrf.mxu0
      %1111 = vmatprep.mubr.bf16.mxu0 0
      %1112 = vmatmul.mubr.bf16.gmra.mxu0 %v809
      %v1113 = vpop.f32.mrf.mxu0
      %v1114 = vadd.f32 %v440, %v1113
      %v1115 = vpop.f32.mrf.mxu0
      %v1116 = vpop.f32.mrf.mxu0
      %v1117 = vadd.f32 %v440, %v1116
      %v1118 = vpop.f32.mrf.mxu0
      %1119 = vmatprep.mubr.bf16.mxu0 0
      %1120 = vmatmul.mubr.bf16.gmra.mxu0 %v812
      %v1121 = vpop.f32.mrf.mxu0
      %v1122 = vadd.f32 %v440, %v1121
      %v1123 = vpop.f32.mrf.mxu0
      %v1124 = vpop.f32.mrf.mxu0
      %v1125 = vadd.f32 %v440, %v1124
      %v1126 = vpop.f32.mrf.mxu0
      %1127 = vmatprep.mubr.bf16.mxu0 0
      %1128 = vmatmul.mubr.bf16.gmra.mxu0 %v815
      %v1129 = vpop.f32.mrf.mxu0
      %v1130 = vadd.f32 %v440, %v1129
      %v1131 = vpop.f32.mrf.mxu0
      %v1132 = vpop.f32.mrf.mxu0
      %v1133 = vadd.f32 %v440, %v1132
      %v1134 = vpop.f32.mrf.mxu0
      %1135 = vmatprep.mubr.bf16.mxu0 0
      %1136 = vmatmul.mubr.bf16.gmra.mxu0 %v818
      %v1137 = vpop.f32.mrf.mxu0
      %v1138 = vadd.f32 %v440, %v1137
      %v1139 = vpop.f32.mrf.mxu0
      %v1140 = vpop.f32.mrf.mxu0
      %v1141 = vadd.f32 %v440, %v1140
      %v1142 = vpop.f32.mrf.mxu0
      %1143 = vmatprep.mubr.bf16.mxu0 0
      %1144 = vmatmul.mubr.bf16.gmra.mxu0 %v821
      %v1145 = vpop.f32.mrf.mxu0
      %v1146 = vadd.f32 %v440, %v1145
      %v1147 = vpop.f32.mrf.mxu0
      %v1148 = vpop.f32.mrf.mxu0
      %v1149 = vadd.f32 %v440, %v1148
      %v1150 = vpop.f32.mrf.mxu0
      %1151 = vmatprep.mubr.bf16.mxu0 0
      %1152 = vmatmul.mubr.bf16.gmra.mxu0 %v824
      %v1153 = vpop.f32.mrf.mxu0
      %v1154 = vadd.f32 %v440, %v1153
      %v1155 = vpop.f32.mrf.mxu0
      %v1156 = vpop.f32.mrf.mxu0
      %v1157 = vadd.f32 %v440, %v1156
      %v1158 = vpop.f32.mrf.mxu0
      %1159 = vmatprep.mubr.bf16.mxu0 0
      %1160 = vmatmul.mubr.bf16.gmra.mxu0 %v827
      %v1161 = vpop.f32.mrf.mxu0
      %v1162 = vadd.f32 %v440, %v1161
      %v1163 = vpop.f32.mrf.mxu0
      %v1164 = vpop.f32.mrf.mxu0
      %v1165 = vadd.f32 %v440, %v1164
      %v1166 = vpop.f32.mrf.mxu0
      %1167 = vmatprep.mubr.bf16.mxu0 0
      %1168 = vmatmul.mubr.bf16.gmra.mxu0 %v830
      %v1169 = vpop.f32.mrf.mxu0
      %v1170 = vadd.f32 %v440, %v1169
      %v1171 = vpop.f32.mrf.mxu0
      %v1172 = vpop.f32.mrf.mxu0
      %v1173 = vadd.f32 %v440, %v1172
      %v1174 = vpop.f32.mrf.mxu0
      %1175 = vmatprep.mubr.bf16.mxu0 0
      %1176 = vmatmul.mubr.bf16.gmra.mxu0 %v833
      %v1177 = vpop.f32.mrf.mxu0
      %v1178 = vadd.f32 %v440, %v1177
      %v1179 = vpop.f32.mrf.mxu0
      %v1180 = vpop.f32.mrf.mxu0
      %v1181 = vadd.f32 %v440, %v1180
      %v1182 = vpop.f32.mrf.mxu0
      %1183 = vmatprep.mubr.bf16.mxu0 0
      %1184 = vmatmul.mubr.bf16.gmra.mxu0 %v836
      %v1185 = vpop.f32.mrf.mxu0
      %v1186 = vadd.f32 %v440, %v1185
      %v1187 = vpop.f32.mrf.mxu0
      %v1188 = vpop.f32.mrf.mxu0
      %v1189 = vadd.f32 %v440, %v1188
      %v1190 = vpop.f32.mrf.mxu0
      %1191 = vmatprep.mubr.bf16.mxu0 0
      %1192 = vmatmul.mubr.bf16.gmra.mxu0 %v839
      %v1193 = vpop.f32.mrf.mxu0
      %v1194 = vadd.f32 %v440, %v1193
      %v1195 = vpop.f32.mrf.mxu0
      %v1196 = vpop.f32.mrf.mxu0
      %v1197 = vadd.f32 %v440, %v1196
      %v1198 = vpop.f32.mrf.mxu0
      %1199 = vmatprep.mubr.bf16.mxu0 0
      %1200 = vmatmul.mubr.bf16.gmra.mxu0 %v842
      %v1201 = vpop.f32.mrf.mxu0
      %v1202 = vadd.f32 %v440, %v1201
      %v1203 = vpop.f32.mrf.mxu0
      %v1204 = vpop.f32.mrf.mxu0
      %v1205 = vadd.f32 %v440, %v1204
      %v1206 = vpop.f32.mrf.mxu0
      %1207 = vmatprep.mubr.bf16.mxu0 0
      %1208 = vmatmul.mubr.bf16.gmra.mxu0 %v845
      %v1209 = vpop.f32.mrf.mxu0
      %v1210 = vadd.f32 %v440, %v1209
      %v1211 = vpop.f32.mrf.mxu0
      %v1212 = vpop.f32.mrf.mxu0
      %v1213 = vadd.f32 %v440, %v1212
      %v1214 = vpop.f32.mrf.mxu0
      %1215 = vmatprep.mubr.bf16.mxu0 0
      %1216 = vmatmul.mubr.bf16.gmra.mxu0 %v848
      %v1217 = vpop.f32.mrf.mxu0
      %v1218 = vadd.f32 %v440, %v1217
      %v1219 = vpop.f32.mrf.mxu0
      %v1220 = vpop.f32.mrf.mxu0
      %v1221 = vadd.f32 %v440, %v1220
      %v1222 = vpop.f32.mrf.mxu0
      %1223 = vmatprep.mubr.bf16.mxu0 0
      %1224 = vmatmul.mubr.bf16.gmra.mxu0 %v851
      %v1225 = vpop.f32.mrf.mxu0
      %v1226 = vadd.f32 %v440, %v1225
      %v1227 = vpop.f32.mrf.mxu0
      %v1228 = vpop.f32.mrf.mxu0
      %v1229 = vadd.f32 %v440, %v1228
      %v1230 = vpop.f32.mrf.mxu0
      %1231 = vmatprep.mubr.bf16.mxu0 0
      %1232 = vmatmul.mubr.bf16.gmra.mxu0 %v854
      %v1233 = vpop.f32.mrf.mxu0
      %v1234 = vadd.f32 %v440, %v1233
      %v1235 = vpop.f32.mrf.mxu0
      %v1236 = vpop.f32.mrf.mxu0
      %v1237 = vadd.f32 %v440, %v1236
      %v1238 = vpop.f32.mrf.mxu0
      %1239 = vmatprep.mubr.bf16.mxu0 0
      %1240 = vmatmul.mubr.bf16.gmra.mxu0 %v857
      %v1241 = vpop.f32.mrf.mxu0
      %v1242 = vadd.f32 %v440, %v1241
      %v1243 = vpop.f32.mrf.mxu0
      %v1244 = vpop.f32.mrf.mxu0
      %v1245 = vadd.f32 %v440, %v1244
      %v1246 = vpop.f32.mrf.mxu0
      %1247 = vmatprep.mubr.bf16.mxu0 0
      %1248 = vmatmul.mubr.bf16.gmra.mxu0 %v860
      %v1249 = vpop.f32.mrf.mxu0
      %v1250 = vadd.f32 %v440, %v1249
      %v1251 = vpop.f32.mrf.mxu0
      %v1252 = vpop.f32.mrf.mxu0
      %v1253 = vadd.f32 %v440, %v1252
      %v1254 = vpop.f32.mrf.mxu0
      %1255 = vmatprep.mubr.bf16.mxu0 0
      %1256 = vmatmul.mubr.bf16.gmra.mxu0 %v863
      %v1257 = vpop.f32.mrf.mxu0
      %v1258 = vadd.f32 %v440, %v1257
      %v1259 = vpop.f32.mrf.mxu0
      %v1260 = vpop.f32.mrf.mxu0
      %v1261 = vadd.f32 %v440, %v1260
      %v1262 = vpop.f32.mrf.mxu0
      %1263 = vmatprep.mubr.bf16.mxu0 0
      %1264 = vmatmul.mubr.bf16.gmra.mxu0 %v866
      %v1265 = vpop.f32.mrf.mxu0
      %v1266 = vadd.f32 %v440, %v1265
      %v1267 = vpop.f32.mrf.mxu0
      %v1268 = vpop.f32.mrf.mxu0
      %v1269 = vadd.f32 %v440, %v1268
      %v1270 = vpop.f32.mrf.mxu0
      %1271 = vmatprep.mubr.bf16.mxu0 0
      %1272 = vmatmul.mubr.bf16.gmra.mxu0 %v869
      %v1273 = vpop.f32.mrf.mxu0
      %v1274 = vadd.f32 %v440, %v1273
      %v1275 = vpop.f32.mrf.mxu0
      %v1276 = vpop.f32.mrf.mxu0
      %v1277 = vadd.f32 %v440, %v1276
      %v1278 = vpop.f32.mrf.mxu0
      %1279 = vmatprep.mubr.bf16.mxu0 0
      %1280 = vmatmul.mubr.bf16.gmra.mxu0 %v872
      %v1281 = vpop.f32.mrf.mxu0
      %v1282 = vadd.f32 %v440, %v1281
      %v1283 = vpop.f32.mrf.mxu0
      %v1284 = vpop.f32.mrf.mxu0
      %v1285 = vadd.f32 %v440, %v1284
      %v1286 = vpop.f32.mrf.mxu0
      %1287 = vmatprep.mubr.bf16.mxu0 0
      %1288 = vmatmul.mubr.bf16.gmra.mxu0 %v875
      %v1289 = vpop.f32.mrf.mxu0
      %v1290 = vadd.f32 %v440, %v1289
      %v1291 = vpop.f32.mrf.mxu0
      %v1292 = vpop.f32.mrf.mxu0
      %v1293 = vadd.f32 %v440, %v1292
      %v1294 = vpop.f32.mrf.mxu0
      %1295 = vmatprep.mubr.bf16.mxu0 0
      %1296 = vmatmul.mubr.bf16.gmra.mxu0 %v878
      %v1297 = vpop.f32.mrf.mxu0
      %v1298 = vadd.f32 %v440, %v1297
      %v1299 = vpop.f32.mrf.mxu0
      %v1300 = vpop.f32.mrf.mxu0
      %v1301 = vadd.f32 %v440, %v1300
      %v1302 = vpop.f32.mrf.mxu0
      %1303 = vmatprep.mubr.bf16.mxu0 0
      %1304 = vmatmul.mubr.bf16.gmra.mxu0 %v881
      %v1305 = vpop.f32.mrf.mxu0
      %v1306 = vadd.f32 %v440, %v1305
      %v1307 = vpop.f32.mrf.mxu0
      %v1308 = vpop.f32.mrf.mxu0
      %v1309 = vadd.f32 %v440, %v1308
      %v1310 = vpop.f32.mrf.mxu0
      %1311 = vmatprep.mubr.bf16.mxu0 0
      %1312 = vmatmul.mubr.bf16.gmra.mxu0 %v884
      %v1313 = vpop.f32.mrf.mxu0
      %v1314 = vadd.f32 %v440, %v1313
      %v1315 = vpop.f32.mrf.mxu0
      %v1316 = vpop.f32.mrf.mxu0
      %v1317 = vadd.f32 %v440, %v1316
      %v1318 = vpop.f32.mrf.mxu0
      %1319 = vmatprep.mubr.bf16.mxu0 0
      %1320 = vmatmul.mubr.bf16.gmra.mxu0 %v887
      %v1321 = vpop.f32.mrf.mxu0
      %v1322 = vadd.f32 %v440, %v1321
      %v1323 = vpop.f32.mrf.mxu0
      %v1324 = vpop.f32.mrf.mxu0
      %v1325 = vadd.f32 %v440, %v1324
      %v1326 = vpop.f32.mrf.mxu0
      %1327 = vmatprep.mubr.bf16.mxu0 0
      %1328 = vmatmul.mubr.bf16.gmra.mxu0 %v890
      %v1329 = vpop.f32.mrf.mxu0
      %v1330 = vadd.f32 %v440, %v1329
      %v1331 = vpop.f32.mrf.mxu0
      %v1332 = vpop.f32.mrf.mxu0
      %v1333 = vadd.f32 %v440, %v1332
      %v1334 = vpop.f32.mrf.mxu0
      %1335 = vmatprep.mubr.bf16.mxu0 0
      %1336 = vmatmul.mubr.bf16.gmra.mxu0 %v893
      %v1337 = vpop.f32.mrf.mxu0
      %v1338 = vadd.f32 %v440, %v1337
      %v1339 = vpop.f32.mrf.mxu0
      %v1340 = vpop.f32.mrf.mxu0
      %v1341 = vadd.f32 %v440, %v1340
      %v1342 = vpop.f32.mrf.mxu0
      %1343 = vmatprep.mubr.bf16.mxu0 0
      %1344 = vmatmul.mubr.bf16.gmra.mxu0 %v896
      %v1345 = vpop.f32.mrf.mxu0
      %v1346 = vadd.f32 %v440, %v1345
      %v1347 = vpop.f32.mrf.mxu0
      %v1348 = vpop.f32.mrf.mxu0
      %v1349 = vadd.f32 %v440, %v1348
      %v1350 = vpop.f32.mrf.mxu0
      %1351 = vmatprep.mubr.bf16.mxu0 0
      %1352 = vmatmul.mubr.bf16.gmra.mxu0 %v899
      %v1353 = vpop.f32.mrf.mxu0
      %v1354 = vadd.f32 %v440, %v1353
      %v1355 = vpop.f32.mrf.mxu0
      %v1356 = vpop.f32.mrf.mxu0
      %v1357 = vadd.f32 %v440, %v1356
      %v1358 = vpop.f32.mrf.mxu0
      %1359 = vmatprep.mubr.bf16.mxu0 0
      %1360 = vmatmul.mubr.bf16.gmra.mxu0 %v902
      %v1361 = vpop.f32.mrf.mxu0
      %v1362 = vadd.f32 %v440, %v1361
      %v1363 = vpop.f32.mrf.mxu0
      %v1364 = vpop.f32.mrf.mxu0
      %v1365 = vadd.f32 %v440, %v1364
      %v1366 = vpop.f32.mrf.mxu0
      %1367 = vmatprep.mubr.bf16.mxu0 0
      %1368 = vmatmul.mubr.bf16.gmra.mxu0 %v905
      %v1369 = vpop.f32.mrf.mxu0
      %v1370 = vadd.f32 %v440, %v1369
      %v1371 = vpop.f32.mrf.mxu0
      %v1372 = vpop.f32.mrf.mxu0
      %v1373 = vadd.f32 %v440, %v1372
      %v1374 = vpop.f32.mrf.mxu0
      %1375 = vmatprep.mubr.bf16.mxu0 0
      %1376 = vmatmul.mubr.bf16.gmra.mxu0 %v908
      %v1377 = vpop.f32.mrf.mxu0
      %v1378 = vadd.f32 %v440, %v1377
      %v1379 = vpop.f32.mrf.mxu0
      %v1380 = vpop.f32.mrf.mxu0
      %v1381 = vadd.f32 %v440, %v1380
      %v1382 = vpop.f32.mrf.mxu0
      %1383 = vmatprep.mubr.bf16.mxu0 0
      %1384 = vmatmul.mubr.bf16.gmra.mxu0 %v911
      %v1385 = vpop.f32.mrf.mxu0
      %v1386 = vadd.f32 %v440, %v1385
      %v1387 = vpop.f32.mrf.mxu0
      %v1388 = vpop.f32.mrf.mxu0
      %v1389 = vadd.f32 %v440, %v1388
      %v1390 = vpop.f32.mrf.mxu0
      %1391 = vmatprep.mubr.bf16.mxu0 0
      %1392 = vmatmul.mubr.bf16.gmra.mxu0 %v914
      %v1393 = vpop.f32.mrf.mxu0
      %v1394 = vadd.f32 %v440, %v1393
      %v1395 = vpop.f32.mrf.mxu0
      %v1396 = vpop.f32.mrf.mxu0
      %v1397 = vadd.f32 %v440, %v1396
      %v1398 = vpop.f32.mrf.mxu0
      %1399 = vmatprep.mubr.bf16.mxu0 0
      %1400 = vmatmul.mubr.bf16.gmra.mxu0 %v917
      %v1401 = vpop.f32.mrf.mxu0
      %v1402 = vadd.f32 %v440, %v1401
      %v1403 = vpop.f32.mrf.mxu0
      %v1404 = vpop.f32.mrf.mxu0
      %v1405 = vadd.f32 %v440, %v1404
      %v1406 = vpop.f32.mrf.mxu0
      %1407 = vmatprep.mubr.bf16.mxu0 0
      %1408 = vmatmul.mubr.bf16.gmra.mxu0 %v920
      %v1409 = vpop.f32.mrf.mxu0
      %v1410 = vadd.f32 %v440, %v1409
      %v1411 = vpop.f32.mrf.mxu0
      %v1412 = vpop.f32.mrf.mxu0
      %v1413 = vadd.f32 %v440, %v1412
      %v1414 = vpop.f32.mrf.mxu0
      %1415 = vmatprep.mubr.bf16.mxu0 0
      %1416 = vmatmul.mubr.bf16.gmra.mxu0 %v923
      %v1417 = vpop.f32.mrf.mxu0
      %v1418 = vadd.f32 %v440, %v1417
      %v1419 = vpop.f32.mrf.mxu0
      %v1420 = vpop.f32.mrf.mxu0
      %v1421 = vadd.f32 %v440, %v1420
      %v1422 = vpop.f32.mrf.mxu0
      %1423 = vmatprep.mubr.bf16.mxu0 0
      %1424 = vmatmul.mubr.bf16.gmra.mxu0 %v926
      %v1425 = vpop.f32.mrf.mxu0
      %v1426 = vadd.f32 %v440, %v1425
      %v1427 = vpop.f32.mrf.mxu0
      %v1428 = vpop.f32.mrf.mxu0
      %v1429 = vadd.f32 %v440, %v1428
      %v1430 = vpop.f32.mrf.mxu0
      %1431 = vmatprep.mubr.bf16.mxu0 0
      %1432 = vmatmul.mubr.bf16.gmra.mxu0 %v929
      %v1433 = vpop.f32.mrf.mxu0
      %v1434 = vadd.f32 %v440, %v1433
      %v1435 = vpop.f32.mrf.mxu0
      %v1436 = vpop.f32.mrf.mxu0
      %v1437 = vadd.f32 %v440, %v1436
      %v1438 = vpop.f32.mrf.mxu0
      %1439 = vmatprep.mubr.bf16.mxu0 0
      %1440 = vmatmul.mubr.bf16.gmra.mxu0 %v932
      %v1441 = vpop.f32.mrf.mxu0
      %v1442 = vadd.f32 %v440, %v1441
      %v1443 = vpop.f32.mrf.mxu0
      %v1444 = vpop.f32.mrf.mxu0
      %v1445 = vadd.f32 %v440, %v1444
      %v1446 = vpop.f32.mrf.mxu0
      %1447 = vmatprep.mubr.bf16.mxu0 0
      %1448 = vmatmul.mubr.bf16.gmra.mxu0 %v935
      %v1449 = vpop.f32.mrf.mxu0
      %v1450 = vadd.f32 %v440, %v1449
      %v1451 = vpop.f32.mrf.mxu0
      %v1452 = vpop.f32.mrf.mxu0
      %v1453 = vadd.f32 %v440, %v1452
      %v1454 = vpop.f32.mrf.mxu0
      %1455 = vmatprep.mubr.bf16.mxu0 0
      %1456 = vmatmul.mubr.bf16.gmra.mxu0 %v938
      %v1457 = vpop.f32.mrf.mxu0
      %v1458 = vadd.f32 %v440, %v1457
      %v1459 = vpop.f32.mrf.mxu0
      %v1460 = vpop.f32.mrf.mxu0
      %v1461 = vadd.f32 %v440, %v1460
      %v1462 = vpop.f32.mrf.mxu0
      %1463 = vmatprep.mubr.bf16.mxu0 0
      %1464 = vmatmul.mubr.bf16.gmra.mxu0 %v941
      %v1465 = vpop.f32.mrf.mxu0
      %v1466 = vadd.f32 %v440, %v1465
      %v1467 = vpop.f32.mrf.mxu0
      %v1468 = vpop.f32.mrf.mxu0
      %v1469 = vadd.f32 %v440, %v1468
      %v1470 = vpop.f32.mrf.mxu0
      %1471 = vmatprep.mubr.bf16.mxu0 0
      %1472 = vmatmul.mubr.bf16.gmra.mxu0 %v944
      %v1473 = vpop.f32.mrf.mxu0
      %v1474 = vadd.f32 %v440, %v1473
      %v1475 = vpop.f32.mrf.mxu0
      %v1476 = vpop.f32.mrf.mxu0
      %v1477 = vadd.f32 %v440, %v1476
      %v1478 = vpop.f32.mrf.mxu0
      %1479 = vmatprep.mubr.bf16.mxu0 0
      %1480 = vmatmul.mubr.bf16.gmra.mxu0 %v947
      %v1481 = vpop.f32.mrf.mxu0
      %v1482 = vadd.f32 %v440, %v1481
      %v1483 = vpop.f32.mrf.mxu0
      %v1484 = vpop.f32.mrf.mxu0
      %v1485 = vadd.f32 %v440, %v1484
      %v1486 = vpop.f32.mrf.mxu0
      %1487 = vmatprep.mubr.bf16.mxu0 0
      %1488 = vmatmul.mubr.bf16.gmra.mxu0 %v950
      %v1489 = vpop.f32.mrf.mxu0
      %v1490 = vadd.f32 %v440, %v1489
      %v1491 = vpop.f32.mrf.mxu0
      %v1492 = vpop.f32.mrf.mxu0
      %v1493 = vadd.f32 %v440, %v1492
      %v1494 = vpop.f32.mrf.mxu0
      %1495 = vmatprep.mubr.bf16.mxu0 0
      %1496 = vmatmul.mubr.bf16.gmra.mxu0 %v953
      %v1497 = vpop.f32.mrf.mxu0
      %v1498 = vadd.f32 %v440, %v1497
      %v1499 = vpop.f32.mrf.mxu0
      %v1500 = vpop.f32.mrf.mxu0
      %v1501 = vadd.f32 %v440, %v1500
      %v1502 = vpop.f32.mrf.mxu0
      %1503 = vdwg.mxu0
      %v1504 = vmax.f32 %v994, 0.0
      %v1505 = vmax.f32 %v997, 0.0
      %v1506 = vmax.f32 %v1002, 0.0
      %v1507 = vmax.f32 %v1005, 0.0
      %v1508 = vmax.f32 %v1010, 0.0
      %v1509 = vmax.f32 %v1013, 0.0
      %v1510 = vmax.f32 %v1018, 0.0
      %v1511 = vmax.f32 %v1021, 0.0
      %v1512 = vmax.f32 %v1026, 0.0
      %v1513 = vmax.f32 %v1029, 0.0
      %v1514 = vmax.f32 %v1034, 0.0
      %v1515 = vmax.f32 %v1037, 0.0
      %v1516 = vmax.f32 %v1042, 0.0
      %v1517 = vmax.f32 %v1045, 0.0
      %v1518 = vmax.f32 %v1050, 0.0
      %v1519 = vmax.f32 %v1053, 0.0
      %v1520 = vmax.f32 %v1058, 0.0
      %v1521 = vmax.f32 %v1061, 0.0
      %v1522 = vmax.f32 %v1066, 0.0
      %v1523 = vmax.f32 %v1069, 0.0
      %v1524 = vmax.f32 %v1074, 0.0
      %v1525 = vmax.f32 %v1077, 0.0
      %v1526 = vmax.f32 %v1082, 0.0
      %v1527 = vmax.f32 %v1085, 0.0
      %v1528 = vmax.f32 %v1090, 0.0
      %v1529 = vmax.f32 %v1093, 0.0
      %v1530 = vmax.f32 %v1098, 0.0
      %v1531 = vmax.f32 %v1101, 0.0
      %v1532 = vmax.f32 %v1106, 0.0
      %v1533 = vmax.f32 %v1109, 0.0
      %v1534 = vmax.f32 %v1114, 0.0
      %v1535 = vmax.f32 %v1117, 0.0
      %v1536 = vmax.f32 %v1122, 0.0
      %v1537 = vmax.f32 %v1125, 0.0
      %v1538 = vmax.f32 %v1130, 0.0
      %v1539 = vmax.f32 %v1133, 0.0
      %v1540 = vmax.f32 %v1138, 0.0
      %v1541 = vmax.f32 %v1141, 0.0
      %v1542 = vmax.f32 %v1146, 0.0
      %v1543 = vmax.f32 %v1149, 0.0
      %v1544 = vmax.f32 %v1154, 0.0
      %v1545 = vmax.f32 %v1157, 0.0
      %v1546 = vmax.f32 %v1162, 0.0
      %v1547 = vmax.f32 %v1165, 0.0
      %v1548 = vmax.f32 %v1170, 0.0
      %v1549 = vmax.f32 %v1173, 0.0
      %v1550 = vmax.f32 %v1178, 0.0
      %v1551 = vmax.f32 %v1181, 0.0
      %v1552 = vmax.f32 %v1186, 0.0
      %v1553 = vmax.f32 %v1189, 0.0
      %v1554 = vmax.f32 %v1194, 0.0
      %v1555 = vmax.f32 %v1197, 0.0
      %v1556 = vmax.f32 %v1202, 0.0
      %v1557 = vmax.f32 %v1205, 0.0
      %v1558 = vmax.f32 %v1210, 0.0
      %v1559 = vmax.f32 %v1213, 0.0
      %v1560 = vmax.f32 %v1218, 0.0
      %v1561 = vmax.f32 %v1221, 0.0
      %v1562 = vmax.f32 %v1226, 0.0
      %v1563 = vmax.f32 %v1229, 0.0
      %v1564 = vmax.f32 %v1234, 0.0
      %v1565 = vmax.f32 %v1237, 0.0
      %v1566 = vmax.f32 %v1242, 0.0
      %v1567 = vmax.f32 %v1245, 0.0
      %v1568 = vmax.f32 %v1250, 0.0
      %v1569 = vmax.f32 %v1253, 0.0
      %v1570 = vmax.f32 %v1258, 0.0
      %v1571 = vmax.f32 %v1261, 0.0
      %v1572 = vmax.f32 %v1266, 0.0
      %v1573 = vmax.f32 %v1269, 0.0
      %v1574 = vmax.f32 %v1274, 0.0
      %v1575 = vmax.f32 %v1277, 0.0
      %v1576 = vmax.f32 %v1282, 0.0
      %v1577 = vmax.f32 %v1285, 0.0
      %v1578 = vmax.f32 %v1290, 0.0
      %v1579 = vmax.f32 %v1293, 0.0
      %v1580 = vmax.f32 %v1298, 0.0
      %v1581 = vmax.f32 %v1301, 0.0
      %v1582 = vmax.f32 %v1306, 0.0
      %v1583 = vmax.f32 %v1309, 0.0
      %v1584 = vmax.f32 %v1314, 0.0
      %v1585 = vmax.f32 %v1317, 0.0
      %v1586 = vmax.f32 %v1322, 0.0
      %v1587 = vmax.f32 %v1325, 0.0
      %v1588 = vmax.f32 %v1330, 0.0
      %v1589 = vmax.f32 %v1333, 0.0
      %v1590 = vmax.f32 %v1338, 0.0
      %v1591 = vmax.f32 %v1341, 0.0
      %v1592 = vmax.f32 %v1346, 0.0
      %v1593 = vmax.f32 %v1349, 0.0
      %v1594 = vmax.f32 %v1354, 0.0
      %v1595 = vmax.f32 %v1357, 0.0
      %v1596 = vmax.f32 %v1362, 0.0
      %v1597 = vmax.f32 %v1365, 0.0
      %v1598 = vmax.f32 %v1370, 0.0
      %v1599 = vmax.f32 %v1373, 0.0
      %v1600 = vmax.f32 %v1378, 0.0
      %v1601 = vmax.f32 %v1381, 0.0
      %v1602 = vmax.f32 %v1386, 0.0
      %v1603 = vmax.f32 %v1389, 0.0
      %v1604 = vmax.f32 %v1394, 0.0
      %v1605 = vmax.f32 %v1397, 0.0
      %v1606 = vmax.f32 %v1402, 0.0
      %v1607 = vmax.f32 %v1405, 0.0
      %v1608 = vmax.f32 %v1410, 0.0
      %v1609 = vmax.f32 %v1413, 0.0
      %v1610 = vmax.f32 %v1418, 0.0
      %v1611 = vmax.f32 %v1421, 0.0
      %v1612 = vmax.f32 %v1426, 0.0
      %v1613 = vmax.f32 %v1429, 0.0
      %v1614 = vmax.f32 %v1434, 0.0
      %v1615 = vmax.f32 %v1437, 0.0
      %v1616 = vmax.f32 %v1442, 0.0
      %v1617 = vmax.f32 %v1445, 0.0
      %v1618 = vmax.f32 %v1450, 0.0
      %v1619 = vmax.f32 %v1453, 0.0
      %v1620 = vmax.f32 %v1458, 0.0
      %v1621 = vmax.f32 %v1461, 0.0
      %v1622 = vmax.f32 %v1466, 0.0
      %v1623 = vmax.f32 %v1469, 0.0
      %v1624 = vmax.f32 %v1474, 0.0
      %v1625 = vmax.f32 %v1477, 0.0
      %v1626 = vmax.f32 %v1482, 0.0
      %v1627 = vmax.f32 %v1485, 0.0
      %v1628 = vmax.f32 %v1490, 0.0
      %v1629 = vmax.f32 %v1493, 0.0
      %v1630 = vmax.f32 %v1498, 0.0
      %v1631 = vmax.f32 %v1501, 0.0
      %v1632 = vpack.c.bf16 %v1505, %v1504
      %v1633 = vpack.c.bf16 %v1507, %v1506
      %v1634 = vpack.c.bf16 %v1509, %v1508
      %v1635 = vpack.c.bf16 %v1511, %v1510
      %v1636 = vpack.c.bf16 %v1513, %v1512
      %v1637 = vpack.c.bf16 %v1515, %v1514
      %v1638 = vpack.c.bf16 %v1517, %v1516
      %v1639 = vpack.c.bf16 %v1519, %v1518
      %v1640 = vpack.c.bf16 %v1521, %v1520
      %v1641 = vpack.c.bf16 %v1523, %v1522
      %v1642 = vpack.c.bf16 %v1525, %v1524
      %v1643 = vpack.c.bf16 %v1527, %v1526
      %v1644 = vpack.c.bf16 %v1529, %v1528
      %v1645 = vpack.c.bf16 %v1531, %v1530
      %v1646 = vpack.c.bf16 %v1533, %v1532
      %v1647 = vpack.c.bf16 %v1535, %v1534
      %v1648 = vpack.c.bf16 %v1537, %v1536
      %v1649 = vpack.c.bf16 %v1539, %v1538
      %v1650 = vpack.c.bf16 %v1541, %v1540
      %v1651 = vpack.c.bf16 %v1543, %v1542
      %v1652 = vpack.c.bf16 %v1545, %v1544
      %v1653 = vpack.c.bf16 %v1547, %v1546
      %v1654 = vpack.c.bf16 %v1549, %v1548
      %v1655 = vpack.c.bf16 %v1551, %v1550
      %v1656 = vpack.c.bf16 %v1553, %v1552
      %v1657 = vpack.c.bf16 %v1555, %v1554
      %v1658 = vpack.c.bf16 %v1557, %v1556
      %v1659 = vpack.c.bf16 %v1559, %v1558
      %v1660 = vpack.c.bf16 %v1561, %v1560
      %v1661 = vpack.c.bf16 %v1563, %v1562
      %v1662 = vpack.c.bf16 %v1565, %v1564
      %v1663 = vpack.c.bf16 %v1567, %v1566
      %v1664 = vpack.c.bf16 %v1569, %v1568
      %v1665 = vpack.c.bf16 %v1571, %v1570
      %v1666 = vpack.c.bf16 %v1573, %v1572
      %v1667 = vpack.c.bf16 %v1575, %v1574
      %v1668 = vpack.c.bf16 %v1577, %v1576
      %v1669 = vpack.c.bf16 %v1579, %v1578
      %v1670 = vpack.c.bf16 %v1581, %v1580
      %v1671 = vpack.c.bf16 %v1583, %v1582
      %v1672 = vpack.c.bf16 %v1585, %v1584
      %v1673 = vpack.c.bf16 %v1587, %v1586
      %v1674 = vpack.c.bf16 %v1589, %v1588
      %v1675 = vpack.c.bf16 %v1591, %v1590
      %v1676 = vpack.c.bf16 %v1593, %v1592
      %v1677 = vpack.c.bf16 %v1595, %v1594
      %v1678 = vpack.c.bf16 %v1597, %v1596
      %v1679 = vpack.c.bf16 %v1599, %v1598
      %v1680 = vpack.c.bf16 %v1601, %v1600
      %v1681 = vpack.c.bf16 %v1603, %v1602
      %v1682 = vpack.c.bf16 %v1605, %v1604
      %v1683 = vpack.c.bf16 %v1607, %v1606
      %v1684 = vpack.c.bf16 %v1609, %v1608
      %v1685 = vpack.c.bf16 %v1611, %v1610
      %v1686 = vpack.c.bf16 %v1613, %v1612
      %v1687 = vpack.c.bf16 %v1615, %v1614
      %v1688 = vpack.c.bf16 %v1617, %v1616
      %v1689 = vpack.c.bf16 %v1619, %v1618
      %v1690 = vpack.c.bf16 %v1621, %v1620
      %v1691 = vpack.c.bf16 %v1623, %v1622
      %v1692 = vpack.c.bf16 %v1625, %v1624
      %v1693 = vpack.c.bf16 %v1627, %v1626
      %v1694 = vpack.c.bf16 %v1629, %v1628
      %v1695 = vpack.c.bf16 %v1631, %v1630
      %v1696 = vld [vmem:[%s3] sm:$0xf]
      %v1697 = vld [vmem:[%s3 + $0x4] sm:$0xf]
      %v1698 = vld [vmem:[%s3 + $0x8] sm:$0xf]
      %v1699 = vld [vmem:[%s3 + $0xc] sm:$0xf]
      %v1700 = vld [vmem:[%s3 + $0x10] sm:$0xf]
      %v1701 = vld [vmem:[%s3 + $0x14] sm:$0xf]
      %v1702 = vld [vmem:[%s3 + $0x18] sm:$0xf]
      %v1703 = vld [vmem:[%s3 + $0x1c] sm:$0xf]
      %v1704 = vld [vmem:[%s4] sm:$0x1]
      %v1706 = vlaneseq
      %v1707 = vshrl.u32 %v1706, 7
      %v1708 = vsub.s32 0, %v1707
      %v1709 = vrot.slane %v1704, %v1708
      %v1719 = vunpack.c.l.b16 %v1696
      %v1720 = vunpack.c.l.b16 %v1697
      %v1721 = vunpack.c.l.b16 %v1698
      %v1722 = vunpack.c.l.b16 %v1699
      %v1723 = vunpack.c.l.b16 %v1700
      %v1724 = vunpack.c.l.b16 %v1701
      %v1725 = vunpack.c.l.b16 %v1702
      %v1726 = vunpack.c.l.b16 %v1703
      %v1727 = vpack.c.b16 %v1720, %v1719
      %v1728 = vpack.c.b16 %v1722, %v1721
      %v1729 = vpack.c.b16 %v1724, %v1723
      %v1730 = vpack.c.b16 %v1726, %v1725
      %vm1735 = vcmask 523264
      %v1737 = vsel %vm1735, %v1632, 0
      %v1740 = vsel %vm1735, %v1633, 0
      %v1743 = vsel %vm1735, %v1634, 0
      %v1746 = vsel %vm1735, %v1635, 0
      %v1749 = vsel %vm1735, %v1636, 0
      %v1752 = vsel %vm1735, %v1637, 0
      %v1755 = vsel %vm1735, %v1638, 0
      %v1758 = vsel %vm1735, %v1639, 0
      %v1761 = vsel %vm1735, %v1640, 0
      %v1764 = vsel %vm1735, %v1641, 0
      %v1767 = vsel %vm1735, %v1642, 0
      %v1770 = vsel %vm1735, %v1643, 0
      %v1773 = vsel %vm1735, %v1644, 0
      %v1776 = vsel %vm1735, %v1645, 0
      %v1779 = vsel %vm1735, %v1646, 0
      %v1782 = vsel %vm1735, %v1647, 0
      %v1785 = vsel %vm1735, %v1648, 0
      %v1788 = vsel %vm1735, %v1649, 0
      %v1791 = vsel %vm1735, %v1650, 0
      %v1794 = vsel %vm1735, %v1651, 0
      %v1797 = vsel %vm1735, %v1652, 0
      %v1800 = vsel %vm1735, %v1653, 0
      %v1803 = vsel %vm1735, %v1654, 0
      %v1806 = vsel %vm1735, %v1655, 0
      %v1809 = vsel %vm1735, %v1656, 0
      %v1812 = vsel %vm1735, %v1657, 0
      %v1815 = vsel %vm1735, %v1658, 0
      %v1818 = vsel %vm1735, %v1659, 0
      %v1821 = vsel %vm1735, %v1660, 0
      %v1824 = vsel %vm1735, %v1661, 0
      %v1827 = vsel %vm1735, %v1662, 0
      %v1830 = vsel %vm1735, %v1663, 0
      %v1833 = vsel %vm1735, %v1664, 0
      %v1836 = vsel %vm1735, %v1665, 0
      %v1839 = vsel %vm1735, %v1666, 0
      %v1842 = vsel %vm1735, %v1667, 0
      %v1845 = vsel %vm1735, %v1668, 0
      %v1848 = vsel %vm1735, %v1669, 0
      %v1851 = vsel %vm1735, %v1670, 0
      %v1854 = vsel %vm1735, %v1671, 0
      %v1857 = vsel %vm1735, %v1672, 0
      %v1860 = vsel %vm1735, %v1673, 0
      %v1863 = vsel %vm1735, %v1674, 0
      %v1866 = vsel %vm1735, %v1675, 0
      %v1869 = vsel %vm1735, %v1676, 0
      %v1872 = vsel %vm1735, %v1677, 0
      %v1875 = vsel %vm1735, %v1678, 0
      %v1878 = vsel %vm1735, %v1679, 0
      %v1881 = vsel %vm1735, %v1680, 0
      %v1884 = vsel %vm1735, %v1681, 0
      %v1887 = vsel %vm1735, %v1682, 0
      %v1890 = vsel %vm1735, %v1683, 0
      %v1893 = vsel %vm1735, %v1684, 0
      %v1896 = vsel %vm1735, %v1685, 0
      %v1899 = vsel %vm1735, %v1686, 0
      %v1902 = vsel %vm1735, %v1687, 0
      %v1905 = vsel %vm1735, %v1688, 0
      %v1908 = vsel %vm1735, %v1689, 0
      %v1911 = vsel %vm1735, %v1690, 0
      %v1914 = vsel %vm1735, %v1691, 0
      %v1917 = vsel %vm1735, %v1692, 0
      %v1920 = vsel %vm1735, %v1693, 0
      %v1923 = vsel %vm1735, %v1694, 0
      %v1926 = vsel %vm1735, %v1695, 0
      %1928 = vmatprep.subr.bf16.mxu0 0
      %1929 = vmatpush1.bf16.msra.mxu0 0
      %1930 = vmatprep.subr.bf16.mxu0 0
      %1931 = vmatpush1.bf16.msra.mxu0 0
      %1932 = vmatprep.subr.bf16.mxu0 0
      %1933 = vmatpush1.bf16.msra.mxu0 0
      %1934 = vmatprep.subr.bf16.mxu0 0
      %1935 = vmatpush1.bf16.msra.mxu0 0
      %1936 = vmatprep.subr.bf16.mxu0 0
      %1937 = vmatpush1.bf16.msra.mxu0 %v1730
      %1938 = vmatprep.subr.bf16.mxu0 0
      %1939 = vmatpush1.bf16.msra.mxu0 %v1729
      %1940 = vmatprep.subr.bf16.mxu0 0
      %1941 = vmatpush1.bf16.msra.mxu0 %v1728
      %1942 = vmatprep.subr.bf16.mxu0 0
      %1943 = vmatpush1.bf16.msra.mxu0 %v1727
      %1944 = vmatprep.subr.bf16.mxu0 0
      %1945 = vmatpush2.bf16.msra.mxu0 0
      %1946 = vmatprep.subr.bf16.mxu0 0
      %1947 = vmatpush2.bf16.msra.mxu0 0
      %1948 = vmatprep.subr.bf16.mxu0 0
      %1949 = vmatpush2.bf16.msra.mxu0 0
      %1950 = vmatprep.subr.bf16.mxu0 0
      %1951 = vmatpush2.bf16.msra.mxu0 0
      %1952 = vmatprep.subr.bf16.mxu0 0
      %1953 = vmatpush2.bf16.msra.mxu0 0
      %1954 = vmatprep.subr.bf16.mxu0 0
      %1955 = vmatpush2.bf16.msra.mxu0 0
      %1956 = vmatprep.subr.bf16.mxu0 0
      %1957 = vmatpush2.bf16.msra.mxu0 0
      %1958 = vmatprep.subr.bf16.mxu0 0
      %1959 = vmatpush2.bf16.msra.mxu0 0
      %1960 = vmatprep.mubr.bf16.mxu0 0
      %1961 = vmatmul.mubr.bf16.gmra.mxu0 %v1737
      %v1962 = vpop.f32.mrf.mxu0
      %v1963 = vadd.f32 %v1709, %v1962
      %v1964 = vpop.f32.mrf.mxu0
      %v1965 = vpop.f32.mrf.mxu0
      %v1966 = vadd.f32 %v1709, %v1965
      %v1967 = vpop.f32.mrf.mxu0
      %1968 = vmatprep.mubr.bf16.mxu0 0
      %1969 = vmatmul.mubr.bf16.gmra.mxu0 %v1740
      %v1970 = vpop.f32.mrf.mxu0
      %v1971 = vadd.f32 %v1709, %v1970
      %v1972 = vpop.f32.mrf.mxu0
      %v1973 = vpop.f32.mrf.mxu0
      %v1974 = vadd.f32 %v1709, %v1973
      %v1975 = vpop.f32.mrf.mxu0
      %1976 = vmatprep.mubr.bf16.mxu0 0
      %1977 = vmatmul.mubr.bf16.gmra.mxu0 %v1743
      %v1978 = vpop.f32.mrf.mxu0
      %v1979 = vadd.f32 %v1709, %v1978
      %v1980 = vpop.f32.mrf.mxu0
      %v1981 = vpop.f32.mrf.mxu0
      %v1982 = vadd.f32 %v1709, %v1981
      %v1983 = vpop.f32.mrf.mxu0
      %1984 = vmatprep.mubr.bf16.mxu0 0
      %1985 = vmatmul.mubr.bf16.gmra.mxu0 %v1746
      %v1986 = vpop.f32.mrf.mxu0
      %v1987 = vadd.f32 %v1709, %v1986
      %v1988 = vpop.f32.mrf.mxu0
      %v1989 = vpop.f32.mrf.mxu0
      %v1990 = vadd.f32 %v1709, %v1989
      %v1991 = vpop.f32.mrf.mxu0
      %1992 = vmatprep.mubr.bf16.mxu0 0
      %1993 = vmatmul.mubr.bf16.gmra.mxu0 %v1749
      %v1994 = vpop.f32.mrf.mxu0
      %v1995 = vadd.f32 %v1709, %v1994
      %v1996 = vpop.f32.mrf.mxu0
      %v1997 = vpop.f32.mrf.mxu0
      %v1998 = vadd.f32 %v1709, %v1997
      %v1999 = vpop.f32.mrf.mxu0
      %2000 = vmatprep.mubr.bf16.mxu0 0
      %2001 = vmatmul.mubr.bf16.gmra.mxu0 %v1752
      %v2002 = vpop.f32.mrf.mxu0
      %v2003 = vadd.f32 %v1709, %v2002
      %v2004 = vpop.f32.mrf.mxu0
      %v2005 = vpop.f32.mrf.mxu0
      %v2006 = vadd.f32 %v1709, %v2005
      %v2007 = vpop.f32.mrf.mxu0
      %2008 = vmatprep.mubr.bf16.mxu0 0
      %2009 = vmatmul.mubr.bf16.gmra.mxu0 %v1755
      %v2010 = vpop.f32.mrf.mxu0
      %v2011 = vadd.f32 %v1709, %v2010
      %v2012 = vpop.f32.mrf.mxu0
      %v2013 = vpop.f32.mrf.mxu0
      %v2014 = vadd.f32 %v1709, %v2013
      %v2015 = vpop.f32.mrf.mxu0
      %2016 = vmatprep.mubr.bf16.mxu0 0
      %2017 = vmatmul.mubr.bf16.gmra.mxu0 %v1758
      %v2018 = vpop.f32.mrf.mxu0
      %v2019 = vadd.f32 %v1709, %v2018
      %v2020 = vpop.f32.mrf.mxu0
      %v2021 = vpop.f32.mrf.mxu0
      %v2022 = vadd.f32 %v1709, %v2021
      %v2023 = vpop.f32.mrf.mxu0
      %2024 = vmatprep.mubr.bf16.mxu0 0
      %2025 = vmatmul.mubr.bf16.gmra.mxu0 %v1761
      %v2026 = vpop.f32.mrf.mxu0
      %v2027 = vadd.f32 %v1709, %v2026
      %v2028 = vpop.f32.mrf.mxu0
      %v2029 = vpop.f32.mrf.mxu0
      %v2030 = vadd.f32 %v1709, %v2029
      %v2031 = vpop.f32.mrf.mxu0
      %2032 = vmatprep.mubr.bf16.mxu0 0
      %2033 = vmatmul.mubr.bf16.gmra.mxu0 %v1764
      %v2034 = vpop.f32.mrf.mxu0
      %v2035 = vadd.f32 %v1709, %v2034
      %v2036 = vpop.f32.mrf.mxu0
      %v2037 = vpop.f32.mrf.mxu0
      %v2038 = vadd.f32 %v1709, %v2037
      %v2039 = vpop.f32.mrf.mxu0
      %2040 = vmatprep.mubr.bf16.mxu0 0
      %2041 = vmatmul.mubr.bf16.gmra.mxu0 %v1767
      %v2042 = vpop.f32.mrf.mxu0
      %v2043 = vadd.f32 %v1709, %v2042
      %v2044 = vpop.f32.mrf.mxu0
      %v2045 = vpop.f32.mrf.mxu0
      %v2046 = vadd.f32 %v1709, %v2045
      %v2047 = vpop.f32.mrf.mxu0
      %2048 = vmatprep.mubr.bf16.mxu0 0
      %2049 = vmatmul.mubr.bf16.gmra.mxu0 %v1770
      %v2050 = vpop.f32.mrf.mxu0
      %v2051 = vadd.f32 %v1709, %v2050
      %v2052 = vpop.f32.mrf.mxu0
      %v2053 = vpop.f32.mrf.mxu0
      %v2054 = vadd.f32 %v1709, %v2053
      %v2055 = vpop.f32.mrf.mxu0
      %2056 = vmatprep.mubr.bf16.mxu0 0
      %2057 = vmatmul.mubr.bf16.gmra.mxu0 %v1773
      %v2058 = vpop.f32.mrf.mxu0
      %v2059 = vadd.f32 %v1709, %v2058
      %v2060 = vpop.f32.mrf.mxu0
      %v2061 = vpop.f32.mrf.mxu0
      %v2062 = vadd.f32 %v1709, %v2061
      %v2063 = vpop.f32.mrf.mxu0
      %2064 = vmatprep.mubr.bf16.mxu0 0
      %2065 = vmatmul.mubr.bf16.gmra.mxu0 %v1776
      %v2066 = vpop.f32.mrf.mxu0
      %v2067 = vadd.f32 %v1709, %v2066
      %v2068 = vpop.f32.mrf.mxu0
      %v2069 = vpop.f32.mrf.mxu0
      %v2070 = vadd.f32 %v1709, %v2069
      %v2071 = vpop.f32.mrf.mxu0
      %2072 = vmatprep.mubr.bf16.mxu0 0
      %2073 = vmatmul.mubr.bf16.gmra.mxu0 %v1779
      %v2074 = vpop.f32.mrf.mxu0
      %v2075 = vadd.f32 %v1709, %v2074
      %v2076 = vpop.f32.mrf.mxu0
      %v2077 = vpop.f32.mrf.mxu0
      %v2078 = vadd.f32 %v1709, %v2077
      %v2079 = vpop.f32.mrf.mxu0
      %2080 = vmatprep.mubr.bf16.mxu0 0
      %2081 = vmatmul.mubr.bf16.gmra.mxu0 %v1782
      %v2082 = vpop.f32.mrf.mxu0
      %v2083 = vadd.f32 %v1709, %v2082
      %v2084 = vpop.f32.mrf.mxu0
      %v2085 = vpop.f32.mrf.mxu0
      %v2086 = vadd.f32 %v1709, %v2085
      %v2087 = vpop.f32.mrf.mxu0
      %2088 = vmatprep.mubr.bf16.mxu0 0
      %2089 = vmatmul.mubr.bf16.gmra.mxu0 %v1785
      %v2090 = vpop.f32.mrf.mxu0
      %v2091 = vadd.f32 %v1709, %v2090
      %v2092 = vpop.f32.mrf.mxu0
      %v2093 = vpop.f32.mrf.mxu0
      %v2094 = vadd.f32 %v1709, %v2093
      %v2095 = vpop.f32.mrf.mxu0
      %2096 = vmatprep.mubr.bf16.mxu0 0
      %2097 = vmatmul.mubr.bf16.gmra.mxu0 %v1788
      %v2098 = vpop.f32.mrf.mxu0
      %v2099 = vadd.f32 %v1709, %v2098
      %v2100 = vpop.f32.mrf.mxu0
      %v2101 = vpop.f32.mrf.mxu0
      %v2102 = vadd.f32 %v1709, %v2101
      %v2103 = vpop.f32.mrf.mxu0
      %2104 = vmatprep.mubr.bf16.mxu0 0
      %2105 = vmatmul.mubr.bf16.gmra.mxu0 %v1791
      %v2106 = vpop.f32.mrf.mxu0
      %v2107 = vadd.f32 %v1709, %v2106
      %v2108 = vpop.f32.mrf.mxu0
      %v2109 = vpop.f32.mrf.mxu0
      %v2110 = vadd.f32 %v1709, %v2109
      %v2111 = vpop.f32.mrf.mxu0
      %2112 = vmatprep.mubr.bf16.mxu0 0
      %2113 = vmatmul.mubr.bf16.gmra.mxu0 %v1794
      %v2114 = vpop.f32.mrf.mxu0
      %v2115 = vadd.f32 %v1709, %v2114
      %v2116 = vpop.f32.mrf.mxu0
      %v2117 = vpop.f32.mrf.mxu0
      %v2118 = vadd.f32 %v1709, %v2117
      %v2119 = vpop.f32.mrf.mxu0
      %2120 = vmatprep.mubr.bf16.mxu0 0
      %2121 = vmatmul.mubr.bf16.gmra.mxu0 %v1797
      %v2122 = vpop.f32.mrf.mxu0
      %v2123 = vadd.f32 %v1709, %v2122
      %v2124 = vpop.f32.mrf.mxu0
      %v2125 = vpop.f32.mrf.mxu0
      %v2126 = vadd.f32 %v1709, %v2125
      %v2127 = vpop.f32.mrf.mxu0
      %2128 = vmatprep.mubr.bf16.mxu0 0
      %2129 = vmatmul.mubr.bf16.gmra.mxu0 %v1800
      %v2130 = vpop.f32.mrf.mxu0
      %v2131 = vadd.f32 %v1709, %v2130
      %v2132 = vpop.f32.mrf.mxu0
      %v2133 = vpop.f32.mrf.mxu0
      %v2134 = vadd.f32 %v1709, %v2133
      %v2135 = vpop.f32.mrf.mxu0
      %2136 = vmatprep.mubr.bf16.mxu0 0
      %2137 = vmatmul.mubr.bf16.gmra.mxu0 %v1803
      %v2138 = vpop.f32.mrf.mxu0
      %v2139 = vadd.f32 %v1709, %v2138
      %v2140 = vpop.f32.mrf.mxu0
      %v2141 = vpop.f32.mrf.mxu0
      %v2142 = vadd.f32 %v1709, %v2141
      %v2143 = vpop.f32.mrf.mxu0
      %2144 = vmatprep.mubr.bf16.mxu0 0
      %2145 = vmatmul.mubr.bf16.gmra.mxu0 %v1806
      %v2146 = vpop.f32.mrf.mxu0
      %v2147 = vadd.f32 %v1709, %v2146
      %v2148 = vpop.f32.mrf.mxu0
      %v2149 = vpop.f32.mrf.mxu0
      %v2150 = vadd.f32 %v1709, %v2149
      %v2151 = vpop.f32.mrf.mxu0
      %2152 = vmatprep.mubr.bf16.mxu0 0
      %2153 = vmatmul.mubr.bf16.gmra.mxu0 %v1809
      %v2154 = vpop.f32.mrf.mxu0
      %v2155 = vadd.f32 %v1709, %v2154
      %v2156 = vpop.f32.mrf.mxu0
      %v2157 = vpop.f32.mrf.mxu0
      %v2158 = vadd.f32 %v1709, %v2157
      %v2159 = vpop.f32.mrf.mxu0
      %2160 = vmatprep.mubr.bf16.mxu0 0
      %2161 = vmatmul.mubr.bf16.gmra.mxu0 %v1812
      %v2162 = vpop.f32.mrf.mxu0
      %v2163 = vadd.f32 %v1709, %v2162
      %v2164 = vpop.f32.mrf.mxu0
      %v2165 = vpop.f32.mrf.mxu0
      %v2166 = vadd.f32 %v1709, %v2165
      %v2167 = vpop.f32.mrf.mxu0
      %2168 = vmatprep.mubr.bf16.mxu0 0
      %2169 = vmatmul.mubr.bf16.gmra.mxu0 %v1815
      %v2170 = vpop.f32.mrf.mxu0
      %v2171 = vadd.f32 %v1709, %v2170
      %v2172 = vpop.f32.mrf.mxu0
      %v2173 = vpop.f32.mrf.mxu0
      %v2174 = vadd.f32 %v1709, %v2173
      %v2175 = vpop.f32.mrf.mxu0
      %2176 = vmatprep.mubr.bf16.mxu0 0
      %2177 = vmatmul.mubr.bf16.gmra.mxu0 %v1818
      %v2178 = vpop.f32.mrf.mxu0
      %v2179 = vadd.f32 %v1709, %v2178
      %v2180 = vpop.f32.mrf.mxu0
      %v2181 = vpop.f32.mrf.mxu0
      %v2182 = vadd.f32 %v1709, %v2181
      %v2183 = vpop.f32.mrf.mxu0
      %2184 = vmatprep.mubr.bf16.mxu0 0
      %2185 = vmatmul.mubr.bf16.gmra.mxu0 %v1821
      %v2186 = vpop.f32.mrf.mxu0
      %v2187 = vadd.f32 %v1709, %v2186
      %v2188 = vpop.f32.mrf.mxu0
      %v2189 = vpop.f32.mrf.mxu0
      %v2190 = vadd.f32 %v1709, %v2189
      %v2191 = vpop.f32.mrf.mxu0
      %2192 = vmatprep.mubr.bf16.mxu0 0
      %2193 = vmatmul.mubr.bf16.gmra.mxu0 %v1824
      %v2194 = vpop.f32.mrf.mxu0
      %v2195 = vadd.f32 %v1709, %v2194
      %v2196 = vpop.f32.mrf.mxu0
      %v2197 = vpop.f32.mrf.mxu0
      %v2198 = vadd.f32 %v1709, %v2197
      %v2199 = vpop.f32.mrf.mxu0
      %2200 = vmatprep.mubr.bf16.mxu0 0
      %2201 = vmatmul.mubr.bf16.gmra.mxu0 %v1827
      %v2202 = vpop.f32.mrf.mxu0
      %v2203 = vadd.f32 %v1709, %v2202
      %v2204 = vpop.f32.mrf.mxu0
      %v2205 = vpop.f32.mrf.mxu0
      %v2206 = vadd.f32 %v1709, %v2205
      %v2207 = vpop.f32.mrf.mxu0
      %2208 = vmatprep.mubr.bf16.mxu0 0
      %2209 = vmatmul.mubr.bf16.gmra.mxu0 %v1830
      %v2210 = vpop.f32.mrf.mxu0
      %v2211 = vadd.f32 %v1709, %v2210
      %v2212 = vpop.f32.mrf.mxu0
      %v2213 = vpop.f32.mrf.mxu0
      %v2214 = vadd.f32 %v1709, %v2213
      %v2215 = vpop.f32.mrf.mxu0
      %2216 = vmatprep.mubr.bf16.mxu0 0
      %2217 = vmatmul.mubr.bf16.gmra.mxu0 %v1833
      %v2218 = vpop.f32.mrf.mxu0
      %v2219 = vadd.f32 %v1709, %v2218
      %v2220 = vpop.f32.mrf.mxu0
      %v2221 = vpop.f32.mrf.mxu0
      %v2222 = vadd.f32 %v1709, %v2221
      %v2223 = vpop.f32.mrf.mxu0
      %2224 = vmatprep.mubr.bf16.mxu0 0
      %2225 = vmatmul.mubr.bf16.gmra.mxu0 %v1836
      %v2226 = vpop.f32.mrf.mxu0
      %v2227 = vadd.f32 %v1709, %v2226
      %v2228 = vpop.f32.mrf.mxu0
      %v2229 = vpop.f32.mrf.mxu0
      %v2230 = vadd.f32 %v1709, %v2229
      %v2231 = vpop.f32.mrf.mxu0
      %2232 = vmatprep.mubr.bf16.mxu0 0
      %2233 = vmatmul.mubr.bf16.gmra.mxu0 %v1839
      %v2234 = vpop.f32.mrf.mxu0
      %v2235 = vadd.f32 %v1709, %v2234
      %v2236 = vpop.f32.mrf.mxu0
      %v2237 = vpop.f32.mrf.mxu0
      %v2238 = vadd.f32 %v1709, %v2237
      %v2239 = vpop.f32.mrf.mxu0
      %2240 = vmatprep.mubr.bf16.mxu0 0
      %2241 = vmatmul.mubr.bf16.gmra.mxu0 %v1842
      %v2242 = vpop.f32.mrf.mxu0
      %v2243 = vadd.f32 %v1709, %v2242
      %v2244 = vpop.f32.mrf.mxu0
      %v2245 = vpop.f32.mrf.mxu0
      %v2246 = vadd.f32 %v1709, %v2245
      %v2247 = vpop.f32.mrf.mxu0
      %2248 = vmatprep.mubr.bf16.mxu0 0
      %2249 = vmatmul.mubr.bf16.gmra.mxu0 %v1845
      %v2250 = vpop.f32.mrf.mxu0
      %v2251 = vadd.f32 %v1709, %v2250
      %v2252 = vpop.f32.mrf.mxu0
      %v2253 = vpop.f32.mrf.mxu0
      %v2254 = vadd.f32 %v1709, %v2253
      %v2255 = vpop.f32.mrf.mxu0
      %2256 = vmatprep.mubr.bf16.mxu0 0
      %2257 = vmatmul.mubr.bf16.gmra.mxu0 %v1848
      %v2258 = vpop.f32.mrf.mxu0
      %v2259 = vadd.f32 %v1709, %v2258
      %v2260 = vpop.f32.mrf.mxu0
      %v2261 = vpop.f32.mrf.mxu0
      %v2262 = vadd.f32 %v1709, %v2261
      %v2263 = vpop.f32.mrf.mxu0
      %2264 = vmatprep.mubr.bf16.mxu0 0
      %2265 = vmatmul.mubr.bf16.gmra.mxu0 %v1851
      %v2266 = vpop.f32.mrf.mxu0
      %v2267 = vadd.f32 %v1709, %v2266
      %v2268 = vpop.f32.mrf.mxu0
      %v2269 = vpop.f32.mrf.mxu0
      %v2270 = vadd.f32 %v1709, %v2269
      %v2271 = vpop.f32.mrf.mxu0
      %2272 = vmatprep.mubr.bf16.mxu0 0
      %2273 = vmatmul.mubr.bf16.gmra.mxu0 %v1854
      %v2274 = vpop.f32.mrf.mxu0
      %v2275 = vadd.f32 %v1709, %v2274
      %v2276 = vpop.f32.mrf.mxu0
      %v2277 = vpop.f32.mrf.mxu0
      %v2278 = vadd.f32 %v1709, %v2277
      %v2279 = vpop.f32.mrf.mxu0
      %2280 = vmatprep.mubr.bf16.mxu0 0
      %2281 = vmatmul.mubr.bf16.gmra.mxu0 %v1857
      %v2282 = vpop.f32.mrf.mxu0
      %v2283 = vadd.f32 %v1709, %v2282
      %v2284 = vpop.f32.mrf.mxu0
      %v2285 = vpop.f32.mrf.mxu0
      %v2286 = vadd.f32 %v1709, %v2285
      %v2287 = vpop.f32.mrf.mxu0
      %2288 = vmatprep.mubr.bf16.mxu0 0
      %2289 = vmatmul.mubr.bf16.gmra.mxu0 %v1860
      %v2290 = vpop.f32.mrf.mxu0
      %v2291 = vadd.f32 %v1709, %v2290
      %v2292 = vpop.f32.mrf.mxu0
      %v2293 = vpop.f32.mrf.mxu0
      %v2294 = vadd.f32 %v1709, %v2293
      %v2295 = vpop.f32.mrf.mxu0
      %2296 = vmatprep.mubr.bf16.mxu0 0
      %2297 = vmatmul.mubr.bf16.gmra.mxu0 %v1863
      %v2298 = vpop.f32.mrf.mxu0
      %v2299 = vadd.f32 %v1709, %v2298
      %v2300 = vpop.f32.mrf.mxu0
      %v2301 = vpop.f32.mrf.mxu0
      %v2302 = vadd.f32 %v1709, %v2301
      %v2303 = vpop.f32.mrf.mxu0
      %2304 = vmatprep.mubr.bf16.mxu0 0
      %2305 = vmatmul.mubr.bf16.gmra.mxu0 %v1866
      %v2306 = vpop.f32.mrf.mxu0
      %v2307 = vadd.f32 %v1709, %v2306
      %v2308 = vpop.f32.mrf.mxu0
      %v2309 = vpop.f32.mrf.mxu0
      %v2310 = vadd.f32 %v1709, %v2309
      %v2311 = vpop.f32.mrf.mxu0
      %2312 = vmatprep.mubr.bf16.mxu0 0
      %2313 = vmatmul.mubr.bf16.gmra.mxu0 %v1869
      %v2314 = vpop.f32.mrf.mxu0
      %v2315 = vadd.f32 %v1709, %v2314
      %v2316 = vpop.f32.mrf.mxu0
      %v2317 = vpop.f32.mrf.mxu0
      %v2318 = vadd.f32 %v1709, %v2317
      %v2319 = vpop.f32.mrf.mxu0
      %2320 = vmatprep.mubr.bf16.mxu0 0
      %2321 = vmatmul.mubr.bf16.gmra.mxu0 %v1872
      %v2322 = vpop.f32.mrf.mxu0
      %v2323 = vadd.f32 %v1709, %v2322
      %v2324 = vpop.f32.mrf.mxu0
      %v2325 = vpop.f32.mrf.mxu0
      %v2326 = vadd.f32 %v1709, %v2325
      %v2327 = vpop.f32.mrf.mxu0
      %2328 = vmatprep.mubr.bf16.mxu0 0
      %2329 = vmatmul.mubr.bf16.gmra.mxu0 %v1875
      %v2330 = vpop.f32.mrf.mxu0
      %v2331 = vadd.f32 %v1709, %v2330
      %v2332 = vpop.f32.mrf.mxu0
      %v2333 = vpop.f32.mrf.mxu0
      %v2334 = vadd.f32 %v1709, %v2333
      %v2335 = vpop.f32.mrf.mxu0
      %2336 = vmatprep.mubr.bf16.mxu0 0
      %2337 = vmatmul.mubr.bf16.gmra.mxu0 %v1878
      %v2338 = vpop.f32.mrf.mxu0
      %v2339 = vadd.f32 %v1709, %v2338
      %v2340 = vpop.f32.mrf.mxu0
      %v2341 = vpop.f32.mrf.mxu0
      %v2342 = vadd.f32 %v1709, %v2341
      %v2343 = vpop.f32.mrf.mxu0
      %2344 = vmatprep.mubr.bf16.mxu0 0
      %2345 = vmatmul.mubr.bf16.gmra.mxu0 %v1881
      %v2346 = vpop.f32.mrf.mxu0
      %v2347 = vadd.f32 %v1709, %v2346
      %v2348 = vpop.f32.mrf.mxu0
      %v2349 = vpop.f32.mrf.mxu0
      %v2350 = vadd.f32 %v1709, %v2349
      %v2351 = vpop.f32.mrf.mxu0
      %2352 = vmatprep.mubr.bf16.mxu0 0
      %2353 = vmatmul.mubr.bf16.gmra.mxu0 %v1884
      %v2354 = vpop.f32.mrf.mxu0
      %v2355 = vadd.f32 %v1709, %v2354
      %v2356 = vpop.f32.mrf.mxu0
      %v2357 = vpop.f32.mrf.mxu0
      %v2358 = vadd.f32 %v1709, %v2357
      %v2359 = vpop.f32.mrf.mxu0
      %2360 = vmatprep.mubr.bf16.mxu0 0
      %2361 = vmatmul.mubr.bf16.gmra.mxu0 %v1887
      %v2362 = vpop.f32.mrf.mxu0
      %v2363 = vadd.f32 %v1709, %v2362
      %v2364 = vpop.f32.mrf.mxu0
      %v2365 = vpop.f32.mrf.mxu0
      %v2366 = vadd.f32 %v1709, %v2365
      %v2367 = vpop.f32.mrf.mxu0
      %2368 = vmatprep.mubr.bf16.mxu0 0
      %2369 = vmatmul.mubr.bf16.gmra.mxu0 %v1890
      %v2370 = vpop.f32.mrf.mxu0
      %v2371 = vadd.f32 %v1709, %v2370
      %v2372 = vpop.f32.mrf.mxu0
      %v2373 = vpop.f32.mrf.mxu0
      %v2374 = vadd.f32 %v1709, %v2373
      %v2375 = vpop.f32.mrf.mxu0
      %2376 = vmatprep.mubr.bf16.mxu0 0
      %2377 = vmatmul.mubr.bf16.gmra.mxu0 %v1893
      %v2378 = vpop.f32.mrf.mxu0
      %v2379 = vadd.f32 %v1709, %v2378
      %v2380 = vpop.f32.mrf.mxu0
      %v2381 = vpop.f32.mrf.mxu0
      %v2382 = vadd.f32 %v1709, %v2381
      %v2383 = vpop.f32.mrf.mxu0
      %2384 = vmatprep.mubr.bf16.mxu0 0
      %2385 = vmatmul.mubr.bf16.gmra.mxu0 %v1896
      %v2386 = vpop.f32.mrf.mxu0
      %v2387 = vadd.f32 %v1709, %v2386
      %v2388 = vpop.f32.mrf.mxu0
      %v2389 = vpop.f32.mrf.mxu0
      %v2390 = vadd.f32 %v1709, %v2389
      %v2391 = vpop.f32.mrf.mxu0
      %2392 = vmatprep.mubr.bf16.mxu0 0
      %2393 = vmatmul.mubr.bf16.gmra.mxu0 %v1899
      %v2394 = vpop.f32.mrf.mxu0
      %v2395 = vadd.f32 %v1709, %v2394
      %v2396 = vpop.f32.mrf.mxu0
      %v2397 = vpop.f32.mrf.mxu0
      %v2398 = vadd.f32 %v1709, %v2397
      %v2399 = vpop.f32.mrf.mxu0
      %2400 = vmatprep.mubr.bf16.mxu0 0
      %2401 = vmatmul.mubr.bf16.gmra.mxu0 %v1902
      %v2402 = vpop.f32.mrf.mxu0
      %v2403 = vadd.f32 %v1709, %v2402
      %v2404 = vpop.f32.mrf.mxu0
      %v2405 = vpop.f32.mrf.mxu0
      %v2406 = vadd.f32 %v1709, %v2405
      %v2407 = vpop.f32.mrf.mxu0
      %2408 = vmatprep.mubr.bf16.mxu0 0
      %2409 = vmatmul.mubr.bf16.gmra.mxu0 %v1905
      %v2410 = vpop.f32.mrf.mxu0
      %v2411 = vadd.f32 %v1709, %v2410
      %v2412 = vpop.f32.mrf.mxu0
      %v2413 = vpop.f32.mrf.mxu0
      %v2414 = vadd.f32 %v1709, %v2413
      %v2415 = vpop.f32.mrf.mxu0
      %2416 = vmatprep.mubr.bf16.mxu0 0
      %2417 = vmatmul.mubr.bf16.gmra.mxu0 %v1908
      %v2418 = vpop.f32.mrf.mxu0
      %v2419 = vadd.f32 %v1709, %v2418
      %v2420 = vpop.f32.mrf.mxu0
      %v2421 = vpop.f32.mrf.mxu0
      %v2422 = vadd.f32 %v1709, %v2421
      %v2423 = vpop.f32.mrf.mxu0
      %2424 = vmatprep.mubr.bf16.mxu0 0
      %2425 = vmatmul.mubr.bf16.gmra.mxu0 %v1911
      %v2426 = vpop.f32.mrf.mxu0
      %v2427 = vadd.f32 %v1709, %v2426
      %v2428 = vpop.f32.mrf.mxu0
      %v2429 = vpop.f32.mrf.mxu0
      %v2430 = vadd.f32 %v1709, %v2429
      %v2431 = vpop.f32.mrf.mxu0
      %2432 = vmatprep.mubr.bf16.mxu0 0
      %2433 = vmatmul.mubr.bf16.gmra.mxu0 %v1914
      %v2434 = vpop.f32.mrf.mxu0
      %v2435 = vadd.f32 %v1709, %v2434
      %v2436 = vpop.f32.mrf.mxu0
      %v2437 = vpop.f32.mrf.mxu0
      %v2438 = vadd.f32 %v1709, %v2437
      %v2439 = vpop.f32.mrf.mxu0
      %2440 = vmatprep.mubr.bf16.mxu0 0
      %2441 = vmatmul.mubr.bf16.gmra.mxu0 %v1917
      %v2442 = vpop.f32.mrf.mxu0
      %v2443 = vadd.f32 %v1709, %v2442
      %v2444 = vpop.f32.mrf.mxu0
      %v2445 = vpop.f32.mrf.mxu0
      %v2446 = vadd.f32 %v1709, %v2445
      %v2447 = vpop.f32.mrf.mxu0
      %2448 = vmatprep.mubr.bf16.mxu0 0
      %2449 = vmatmul.mubr.bf16.gmra.mxu0 %v1920
      %v2450 = vpop.f32.mrf.mxu0
      %v2451 = vadd.f32 %v1709, %v2450
      %v2452 = vpop.f32.mrf.mxu0
      %v2453 = vpop.f32.mrf.mxu0
      %v2454 = vadd.f32 %v1709, %v2453
      %v2455 = vpop.f32.mrf.mxu0
      %2456 = vmatprep.mubr.bf16.mxu0 0
      %2457 = vmatmul.mubr.bf16.gmra.mxu0 %v1923
      %v2458 = vpop.f32.mrf.mxu0
      %v2459 = vadd.f32 %v1709, %v2458
      %v2460 = vpop.f32.mrf.mxu0
      %v2461 = vpop.f32.mrf.mxu0
      %v2462 = vadd.f32 %v1709, %v2461
      %v2463 = vpop.f32.mrf.mxu0
      %2464 = vmatprep.mubr.bf16.mxu0 0
      %2465 = vmatmul.mubr.bf16.gmra.mxu0 %v1926
      %v2466 = vpop.f32.mrf.mxu0
      %v2467 = vadd.f32 %v1709, %v2466
      %v2468 = vpop.f32.mrf.mxu0
      %v2469 = vpop.f32.mrf.mxu0
      %v2470 = vadd.f32 %v1709, %v2469
      %v2471 = vpop.f32.mrf.mxu0
      %2472 = vdwg.mxu0
      %v2473 = vmax.f32 %v1963, 0.0
      %v2474 = vmax.f32 %v1966, 0.0
      %v2475 = vmax.f32 %v1971, 0.0
      %v2476 = vmax.f32 %v1974, 0.0
      %v2477 = vmax.f32 %v1979, 0.0
      %v2478 = vmax.f32 %v1982, 0.0
      %v2479 = vmax.f32 %v1987, 0.0
      %v2480 = vmax.f32 %v1990, 0.0
      %v2481 = vmax.f32 %v1995, 0.0
      %v2482 = vmax.f32 %v1998, 0.0
      %v2483 = vmax.f32 %v2003, 0.0
      %v2484 = vmax.f32 %v2006, 0.0
      %v2485 = vmax.f32 %v2011, 0.0
      %v2486 = vmax.f32 %v2014, 0.0
      %v2487 = vmax.f32 %v2019, 0.0
      %v2488 = vmax.f32 %v2022, 0.0
      %v2489 = vmax.f32 %v2027, 0.0
      %v2490 = vmax.f32 %v2030, 0.0
      %v2491 = vmax.f32 %v2035, 0.0
      %v2492 = vmax.f32 %v2038, 0.0
      %v2493 = vmax.f32 %v2043, 0.0
      %v2494 = vmax.f32 %v2046, 0.0
      %v2495 = vmax.f32 %v2051, 0.0
      %v2496 = vmax.f32 %v2054, 0.0
      %v2497 = vmax.f32 %v2059, 0.0
      %v2498 = vmax.f32 %v2062, 0.0
      %v2499 = vmax.f32 %v2067, 0.0
      %v2500 = vmax.f32 %v2070, 0.0
      %v2501 = vmax.f32 %v2075, 0.0
      %v2502 = vmax.f32 %v2078, 0.0
      %v2503 = vmax.f32 %v2083, 0.0
      %v2504 = vmax.f32 %v2086, 0.0
      %v2505 = vmax.f32 %v2091, 0.0
      %v2506 = vmax.f32 %v2094, 0.0
      %v2507 = vmax.f32 %v2099, 0.0
      %v2508 = vmax.f32 %v2102, 0.0
      %v2509 = vmax.f32 %v2107, 0.0
      %v2510 = vmax.f32 %v2110, 0.0
      %v2511 = vmax.f32 %v2115, 0.0
      %v2512 = vmax.f32 %v2118, 0.0
      %v2513 = vmax.f32 %v2123, 0.0
      %v2514 = vmax.f32 %v2126, 0.0
      %v2515 = vmax.f32 %v2131, 0.0
      %v2516 = vmax.f32 %v2134, 0.0
      %v2517 = vmax.f32 %v2139, 0.0
      %v2518 = vmax.f32 %v2142, 0.0
      %v2519 = vmax.f32 %v2147, 0.0
      %v2520 = vmax.f32 %v2150, 0.0
      %v2521 = vmax.f32 %v2155, 0.0
      %v2522 = vmax.f32 %v2158, 0.0
      %v2523 = vmax.f32 %v2163, 0.0
      %v2524 = vmax.f32 %v2166, 0.0
      %v2525 = vmax.f32 %v2171, 0.0
      %v2526 = vmax.f32 %v2174, 0.0
      %v2527 = vmax.f32 %v2179, 0.0
      %v2528 = vmax.f32 %v2182, 0.0
      %v2529 = vmax.f32 %v2187, 0.0
      %v2530 = vmax.f32 %v2190, 0.0
      %v2531 = vmax.f32 %v2195, 0.0
      %v2532 = vmax.f32 %v2198, 0.0
      %v2533 = vmax.f32 %v2203, 0.0
      %v2534 = vmax.f32 %v2206, 0.0
      %v2535 = vmax.f32 %v2211, 0.0
      %v2536 = vmax.f32 %v2214, 0.0
      %v2537 = vmax.f32 %v2219, 0.0
      %v2538 = vmax.f32 %v2222, 0.0
      %v2539 = vmax.f32 %v2227, 0.0
      %v2540 = vmax.f32 %v2230, 0.0
      %v2541 = vmax.f32 %v2235, 0.0
      %v2542 = vmax.f32 %v2238, 0.0
      %v2543 = vmax.f32 %v2243, 0.0
      %v2544 = vmax.f32 %v2246, 0.0
      %v2545 = vmax.f32 %v2251, 0.0
      %v2546 = vmax.f32 %v2254, 0.0
      %v2547 = vmax.f32 %v2259, 0.0
      %v2548 = vmax.f32 %v2262, 0.0
      %v2549 = vmax.f32 %v2267, 0.0
      %v2550 = vmax.f32 %v2270, 0.0
      %v2551 = vmax.f32 %v2275, 0.0
      %v2552 = vmax.f32 %v2278, 0.0
      %v2553 = vmax.f32 %v2283, 0.0
      %v2554 = vmax.f32 %v2286, 0.0
      %v2555 = vmax.f32 %v2291, 0.0
      %v2556 = vmax.f32 %v2294, 0.0
      %v2557 = vmax.f32 %v2299, 0.0
      %v2558 = vmax.f32 %v2302, 0.0
      %v2559 = vmax.f32 %v2307, 0.0
      %v2560 = vmax.f32 %v2310, 0.0
      %v2561 = vmax.f32 %v2315, 0.0
      %v2562 = vmax.f32 %v2318, 0.0
      %v2563 = vmax.f32 %v2323, 0.0
      %v2564 = vmax.f32 %v2326, 0.0
      %v2565 = vmax.f32 %v2331, 0.0
      %v2566 = vmax.f32 %v2334, 0.0
      %v2567 = vmax.f32 %v2339, 0.0
      %v2568 = vmax.f32 %v2342, 0.0
      %v2569 = vmax.f32 %v2347, 0.0
      %v2570 = vmax.f32 %v2350, 0.0
      %v2571 = vmax.f32 %v2355, 0.0
      %v2572 = vmax.f32 %v2358, 0.0
      %v2573 = vmax.f32 %v2363, 0.0
      %v2574 = vmax.f32 %v2366, 0.0
      %v2575 = vmax.f32 %v2371, 0.0
      %v2576 = vmax.f32 %v2374, 0.0
      %v2577 = vmax.f32 %v2379, 0.0
      %v2578 = vmax.f32 %v2382, 0.0
      %v2579 = vmax.f32 %v2387, 0.0
      %v2580 = vmax.f32 %v2390, 0.0
      %v2581 = vmax.f32 %v2395, 0.0
      %v2582 = vmax.f32 %v2398, 0.0
      %v2583 = vmax.f32 %v2403, 0.0
      %v2584 = vmax.f32 %v2406, 0.0
      %v2585 = vmax.f32 %v2411, 0.0
      %v2586 = vmax.f32 %v2414, 0.0
      %v2587 = vmax.f32 %v2419, 0.0
      %v2588 = vmax.f32 %v2422, 0.0
      %v2589 = vmax.f32 %v2427, 0.0
      %v2590 = vmax.f32 %v2430, 0.0
      %v2591 = vmax.f32 %v2435, 0.0
      %v2592 = vmax.f32 %v2438, 0.0
      %v2593 = vmax.f32 %v2443, 0.0
      %v2594 = vmax.f32 %v2446, 0.0
      %v2595 = vmax.f32 %v2451, 0.0
      %v2596 = vmax.f32 %v2454, 0.0
      %v2597 = vmax.f32 %v2459, 0.0
      %v2598 = vmax.f32 %v2462, 0.0
      %v2599 = vmax.f32 %v2467, 0.0
      %v2600 = vmax.f32 %v2470, 0.0
      %v2601 = vpack.c.bf16 %v2474, %v2473
      %v2602 = vpack.c.bf16 %v2476, %v2475
      %v2603 = vpack.c.bf16 %v2478, %v2477
      %v2604 = vpack.c.bf16 %v2480, %v2479
      %v2605 = vpack.c.bf16 %v2482, %v2481
      %v2606 = vpack.c.bf16 %v2484, %v2483
      %v2607 = vpack.c.bf16 %v2486, %v2485
      %v2608 = vpack.c.bf16 %v2488, %v2487
      %v2609 = vpack.c.bf16 %v2490, %v2489
      %v2610 = vpack.c.bf16 %v2492, %v2491
      %v2611 = vpack.c.bf16 %v2494, %v2493
      %v2612 = vpack.c.bf16 %v2496, %v2495
      %v2613 = vpack.c.bf16 %v2498, %v2497
      %v2614 = vpack.c.bf16 %v2500, %v2499
      %v2615 = vpack.c.bf16 %v2502, %v2501
      %v2616 = vpack.c.bf16 %v2504, %v2503
      %v2617 = vpack.c.bf16 %v2506, %v2505
      %v2618 = vpack.c.bf16 %v2508, %v2507
      %v2619 = vpack.c.bf16 %v2510, %v2509
      %v2620 = vpack.c.bf16 %v2512, %v2511
      %v2621 = vpack.c.bf16 %v2514, %v2513
      %v2622 = vpack.c.bf16 %v2516, %v2515
      %v2623 = vpack.c.bf16 %v2518, %v2517
      %v2624 = vpack.c.bf16 %v2520, %v2519
      %v2625 = vpack.c.bf16 %v2522, %v2521
      %v2626 = vpack.c.bf16 %v2524, %v2523
      %v2627 = vpack.c.bf16 %v2526, %v2525
      %v2628 = vpack.c.bf16 %v2528, %v2527
      %v2629 = vpack.c.bf16 %v2530, %v2529
      %v2630 = vpack.c.bf16 %v2532, %v2531
      %v2631 = vpack.c.bf16 %v2534, %v2533
      %v2632 = vpack.c.bf16 %v2536, %v2535
      %v2633 = vpack.c.bf16 %v2538, %v2537
      %v2634 = vpack.c.bf16 %v2540, %v2539
      %v2635 = vpack.c.bf16 %v2542, %v2541
      %v2636 = vpack.c.bf16 %v2544, %v2543
      %v2637 = vpack.c.bf16 %v2546, %v2545
      %v2638 = vpack.c.bf16 %v2548, %v2547
      %v2639 = vpack.c.bf16 %v2550, %v2549
      %v2640 = vpack.c.bf16 %v2552, %v2551
      %v2641 = vpack.c.bf16 %v2554, %v2553
      %v2642 = vpack.c.bf16 %v2556, %v2555
      %v2643 = vpack.c.bf16 %v2558, %v2557
      %v2644 = vpack.c.bf16 %v2560, %v2559
      %v2645 = vpack.c.bf16 %v2562, %v2561
      %v2646 = vpack.c.bf16 %v2564, %v2563
      %v2647 = vpack.c.bf16 %v2566, %v2565
      %v2648 = vpack.c.bf16 %v2568, %v2567
      %v2649 = vpack.c.bf16 %v2570, %v2569
      %v2650 = vpack.c.bf16 %v2572, %v2571
      %v2651 = vpack.c.bf16 %v2574, %v2573
      %v2652 = vpack.c.bf16 %v2576, %v2575
      %v2653 = vpack.c.bf16 %v2578, %v2577
      %v2654 = vpack.c.bf16 %v2580, %v2579
      %v2655 = vpack.c.bf16 %v2582, %v2581
      %v2656 = vpack.c.bf16 %v2584, %v2583
      %v2657 = vpack.c.bf16 %v2586, %v2585
      %v2658 = vpack.c.bf16 %v2588, %v2587
      %v2659 = vpack.c.bf16 %v2590, %v2589
      %v2660 = vpack.c.bf16 %v2592, %v2591
      %v2661 = vpack.c.bf16 %v2594, %v2593
      %v2662 = vpack.c.bf16 %v2596, %v2595
      %v2663 = vpack.c.bf16 %v2598, %v2597
      %v2664 = vpack.c.bf16 %v2600, %v2599
      %v2665 = vld [vmem:[%s5] sm:$0xff]
      %v2666 = vld [vmem:[%s5 + $0x8] sm:$0xff]
      %v2667 = vld [vmem:[%s5 + $0x10] sm:$0xff]
      %v2668 = vld [vmem:[%s5 + $0x18] sm:$0xff]
      %v2669 = vld [vmem:[%s5 + $0x20] sm:$0xff]
      %v2670 = vld [vmem:[%s5 + $0x28] sm:$0xff]
      %v2671 = vld [vmem:[%s5 + $0x30] sm:$0xff]
      %v2672 = vld [vmem:[%s5 + $0x38] sm:$0xff]
      %v2673 = vld [vmem:[%s5 + $0x40] sm:$0xff]
      %v2674 = vld [vmem:[%s5 + $0x48] sm:$0xff]
      %v2675 = vld [vmem:[%s5 + $0x50] sm:$0xff]
      %v2676 = vld [vmem:[%s5 + $0x58] sm:$0xff]
      %v2677 = vld [vmem:[%s5 + $0x60] sm:$0xff]
      %v2678 = vld [vmem:[%s5 + $0x68] sm:$0xff]
      %v2679 = vld [vmem:[%s5 + $0x70] sm:$0xff]
      %v2680 = vld [vmem:[%s5 + $0x78] sm:$0xff]
      %v2681 = vld [vmem:[%s5 + $0x80] sm:$0xff]
      %v2682 = vld [vmem:[%s5 + $0x88] sm:$0xff]
      %v2683 = vld [vmem:[%s5 + $0x90] sm:$0xff]
      %v2684 = vld [vmem:[%s5 + $0x98] sm:$0xff]
      %v2685 = vld [vmem:[%s5 + $0xa0] sm:$0xff]
      %v2686 = vld [vmem:[%s5 + $0xa8] sm:$0xff]
      %v2687 = vld [vmem:[%s5 + $0xb0] sm:$0xff]
      %v2688 = vld [vmem:[%s5 + $0xb8] sm:$0xff]
      %v2689 = vld [vmem:[%s5 + $0xc0] sm:$0xff]
      %v2690 = vld [vmem:[%s5 + $0xc8] sm:$0xff]
      %v2691 = vld [vmem:[%s5 + $0xd0] sm:$0xff]
      %v2692 = vld [vmem:[%s5 + $0xd8] sm:$0xff]
      %v2693 = vld [vmem:[%s5 + $0xe0] sm:$0xff]
      %v2694 = vld [vmem:[%s5 + $0xe8] sm:$0xff]
      %v2695 = vld [vmem:[%s5 + $0xf0] sm:$0xff]
      %v2696 = vld [vmem:[%s5 + $0xf8] sm:$0xff]
      %v2697 = vld [vmem:[%s5 + $0x100] sm:$0xff]
      %v2698 = vld [vmem:[%s5 + $0x108] sm:$0xff]
      %v2699 = vld [vmem:[%s5 + $0x110] sm:$0xff]
      %v2700 = vld [vmem:[%s5 + $0x118] sm:$0xff]
      %v2701 = vld [vmem:[%s5 + $0x120] sm:$0xff]
      %v2702 = vld [vmem:[%s5 + $0x128] sm:$0xff]
      %v2703 = vld [vmem:[%s5 + $0x130] sm:$0xff]
      %v2704 = vld [vmem:[%s5 + $0x138] sm:$0xff]
      %v2705 = vld [vmem:[%s5 + $0x140] sm:$0xff]
      %v2706 = vld [vmem:[%s5 + $0x148] sm:$0xff]
      %v2707 = vld [vmem:[%s5 + $0x150] sm:$0xff]
      %v2708 = vld [vmem:[%s5 + $0x158] sm:$0xff]
      %v2709 = vld [vmem:[%s5 + $0x160] sm:$0xff]
      %v2710 = vld [vmem:[%s5 + $0x168] sm:$0xff]
      %v2711 = vld [vmem:[%s5 + $0x170] sm:$0xff]
      %v2712 = vld [vmem:[%s5 + $0x178] sm:$0xff]
      %v2713 = vld [vmem:[%s5 + $0x180] sm:$0xff]
      %v2714 = vld [vmem:[%s5 + $0x188] sm:$0xff]
      %v2715 = vld [vmem:[%s5 + $0x190] sm:$0xff]
      %v2716 = vld [vmem:[%s5 + $0x198] sm:$0xff]
      %v2717 = vld [vmem:[%s5 + $0x1a0] sm:$0xff]
      %v2718 = vld [vmem:[%s5 + $0x1a8] sm:$0xff]
      %v2719 = vld [vmem:[%s5 + $0x1b0] sm:$0xff]
      %v2720 = vld [vmem:[%s5 + $0x1b8] sm:$0xff]
      %v2721 = vld [vmem:[%s5 + $0x1c0] sm:$0xff]
      %v2722 = vld [vmem:[%s5 + $0x1c8] sm:$0xff]
      %v2723 = vld [vmem:[%s5 + $0x1d0] sm:$0xff]
      %v2724 = vld [vmem:[%s5 + $0x1d8] sm:$0xff]
      %v2725 = vld [vmem:[%s5 + $0x1e0] sm:$0xff]
      %v2726 = vld [vmem:[%s5 + $0x1e8] sm:$0xff]
      %v2727 = vld [vmem:[%s5 + $0x1f0] sm:$0xff]
      %v2728 = vld [vmem:[%s5 + $0x1f8] sm:$0xff]
      %v2729 = vld [vmem:[%s6] sm:$0xff]
      %v2731 = vlaneseq
      %v2732 = vshrl.u32 %v2731, 7
      %v2733 = vsub.s32 0, %v2732
      %v2734 = vrot.slane %v2729, %v2733
      %v2735 = vlaneseq
      %v2736 = vshrl.u32 %v2735, 7
      %v2737 = vsub.s32 1, %v2736
      %v2738 = vrot.slane %v2729, %v2737
      %v2739 = vlaneseq
      %v2740 = vshrl.u32 %v2739, 7
      %v2741 = vsub.s32 2, %v2740
      %v2742 = vrot.slane %v2729, %v2741
      %v2743 = vlaneseq
      %v2744 = vshrl.u32 %v2743, 7
      %v2745 = vsub.s32 3, %v2744
      %v2746 = vrot.slane %v2729, %v2745
      %v2747 = vlaneseq
      %v2748 = vshrl.u32 %v2747, 7
      %v2749 = vsub.s32 4, %v2748
      %v2750 = vrot.slane %v2729, %v2749
      %v2751 = vlaneseq
      %v2752 = vshrl.u32 %v2751, 7
      %v2753 = vsub.s32 5, %v2752
      %v2754 = vrot.slane %v2729, %v2753
      %v2755 = vlaneseq
      %v2756 = vshrl.u32 %v2755, 7
      %v2757 = vsub.s32 6, %v2756
      %v2758 = vrot.slane %v2729, %v2757
      %v2759 = vlaneseq
      %v2760 = vshrl.u32 %v2759, 7
      %v2761 = vsub.s32 7, %v2760
      %v2762 = vrot.slane %v2729, %v2761
      %v2835 = vunpack.c.l.b16 %v2665
      %v2836 = vunpack.c.h.b16 %v2665
      %v2837 = vunpack.c.l.b16 %v2666
      %v2838 = vunpack.c.h.b16 %v2666
      %v2839 = vunpack.c.l.b16 %v2667
      %v2840 = vunpack.c.h.b16 %v2667
      %v2841 = vunpack.c.l.b16 %v2668
      %v2842 = vunpack.c.h.b16 %v2668
      %v2843 = vunpack.c.l.b16 %v2669
      %v2844 = vunpack.c.h.b16 %v2669
      %v2845 = vunpack.c.l.b16 %v2670
      %v2846 = vunpack.c.h.b16 %v2670
      %v2847 = vunpack.c.l.b16 %v2671
      %v2848 = vunpack.c.h.b16 %v2671
      %v2849 = vunpack.c.l.b16 %v2672
      %v2850 = vunpack.c.h.b16 %v2672
      %v2851 = vunpack.c.l.b16 %v2673
      %v2852 = vunpack.c.h.b16 %v2673
      %v2853 = vunpack.c.l.b16 %v2674
      %v2854 = vunpack.c.h.b16 %v2674
      %v2855 = vunpack.c.l.b16 %v2675
      %v2856 = vunpack.c.h.b16 %v2675
      %v2857 = vunpack.c.l.b16 %v2676
      %v2858 = vunpack.c.h.b16 %v2676
      %v2859 = vunpack.c.l.b16 %v2677
      %v2860 = vunpack.c.h.b16 %v2677
      %v2861 = vunpack.c.l.b16 %v2678
      %v2862 = vunpack.c.h.b16 %v2678
      %v2863 = vunpack.c.l.b16 %v2679
      %v2864 = vunpack.c.h.b16 %v2679
      %v2865 = vunpack.c.l.b16 %v2680
      %v2866 = vunpack.c.h.b16 %v2680
      %v2867 = vunpack.c.l.b16 %v2681
      %v2868 = vunpack.c.h.b16 %v2681
      %v2869 = vunpack.c.l.b16 %v2682
      %v2870 = vunpack.c.h.b16 %v2682
      %v2871 = vunpack.c.l.b16 %v2683
      %v2872 = vunpack.c.h.b16 %v2683
      %v2873 = vunpack.c.l.b16 %v2684
      %v2874 = vunpack.c.h.b16 %v2684
      %v2875 = vunpack.c.l.b16 %v2685
      %v2876 = vunpack.c.h.b16 %v2685
      %v2877 = vunpack.c.l.b16 %v2686
      %v2878 = vunpack.c.h.b16 %v2686
      %v2879 = vunpack.c.l.b16 %v2687
      %v2880 = vunpack.c.h.b16 %v2687
      %v2881 = vunpack.c.l.b16 %v2688
      %v2882 = vunpack.c.h.b16 %v2688
      %v2883 = vunpack.c.l.b16 %v2689
      %v2884 = vunpack.c.h.b16 %v2689
      %v2885 = vunpack.c.l.b16 %v2690
      %v2886 = vunpack.c.h.b16 %v2690
      %v2887 = vunpack.c.l.b16 %v2691
      %v2888 = vunpack.c.h.b16 %v2691
      %v2889 = vunpack.c.l.b16 %v2692
      %v2890 = vunpack.c.h.b16 %v2692
      %v2891 = vunpack.c.l.b16 %v2693
      %v2892 = vunpack.c.h.b16 %v2693
      %v2893 = vunpack.c.l.b16 %v2694
      %v2894 = vunpack.c.h.b16 %v2694
      %v2895 = vunpack.c.l.b16 %v2695
      %v2896 = vunpack.c.h.b16 %v2695
      %v2897 = vunpack.c.l.b16 %v2696
      %v2898 = vunpack.c.h.b16 %v2696
      %v2899 = vunpack.c.l.b16 %v2697
      %v2900 = vunpack.c.h.b16 %v2697
      %v2901 = vunpack.c.l.b16 %v2698
      %v2902 = vunpack.c.h.b16 %v2698
      %v2903 = vunpack.c.l.b16 %v2699
      %v2904 = vunpack.c.h.b16 %v2699
      %v2905 = vunpack.c.l.b16 %v2700
      %v2906 = vunpack.c.h.b16 %v2700
      %v2907 = vunpack.c.l.b16 %v2701
      %v2908 = vunpack.c.h.b16 %v2701
      %v2909 = vunpack.c.l.b16 %v2702
      %v2910 = vunpack.c.h.b16 %v2702
      %v2911 = vunpack.c.l.b16 %v2703
      %v2912 = vunpack.c.h.b16 %v2703
      %v2913 = vunpack.c.l.b16 %v2704
      %v2914 = vunpack.c.h.b16 %v2704
      %v2915 = vunpack.c.l.b16 %v2705
      %v2916 = vunpack.c.h.b16 %v2705
      %v2917 = vunpack.c.l.b16 %v2706
      %v2918 = vunpack.c.h.b16 %v2706
      %v2919 = vunpack.c.l.b16 %v2707
      %v2920 = vunpack.c.h.b16 %v2707
      %v2921 = vunpack.c.l.b16 %v2708
      %v2922 = vunpack.c.h.b16 %v2708
      %v2923 = vunpack.c.l.b16 %v2709
      %v2924 = vunpack.c.h.b16 %v2709
      %v2925 = vunpack.c.l.b16 %v2710
      %v2926 = vunpack.c.h.b16 %v2710
      %v2927 = vunpack.c.l.b16 %v2711
      %v2928 = vunpack.c.h.b16 %v2711
      %v2929 = vunpack.c.l.b16 %v2712
      %v2930 = vunpack.c.h.b16 %v2712
      %v2931 = vunpack.c.l.b16 %v2713
      %v2932 = vunpack.c.h.b16 %v2713
      %v2933 = vunpack.c.l.b16 %v2714
      %v2934 = vunpack.c.h.b16 %v2714
      %v2935 = vunpack.c.l.b16 %v2715
      %v2936 = vunpack.c.h.b16 %v2715
      %v2937 = vunpack.c.l.b16 %v2716
      %v2938 = vunpack.c.h.b16 %v2716
      %v2939 = vunpack.c.l.b16 %v2717
      %v2940 = vunpack.c.h.b16 %v2717
      %v2941 = vunpack.c.l.b16 %v2718
      %v2942 = vunpack.c.h.b16 %v2718
      %v2943 = vunpack.c.l.b16 %v2719
      %v2944 = vunpack.c.h.b16 %v2719
      %v2945 = vunpack.c.l.b16 %v2720
      %v2946 = vunpack.c.h.b16 %v2720
      %v2947 = vunpack.c.l.b16 %v2721
      %v2948 = vunpack.c.h.b16 %v2721
      %v2949 = vunpack.c.l.b16 %v2722
      %v2950 = vunpack.c.h.b16 %v2722
      %v2951 = vunpack.c.l.b16 %v2723
      %v2952 = vunpack.c.h.b16 %v2723
      %v2953 = vunpack.c.l.b16 %v2724
      %v2954 = vunpack.c.h.b16 %v2724
      %v2955 = vunpack.c.l.b16 %v2725
      %v2956 = vunpack.c.h.b16 %v2725
      %v2957 = vunpack.c.l.b16 %v2726
      %v2958 = vunpack.c.h.b16 %v2726
      %v2959 = vunpack.c.l.b16 %v2727
      %v2960 = vunpack.c.h.b16 %v2727
      %v2961 = vunpack.c.l.b16 %v2728
      %v2962 = vunpack.c.h.b16 %v2728
      %v2963 = vpack.c.b16 %v2843, %v2835
      %v2964 = vpack.c.b16 %v2844, %v2836
      %v2965 = vpack.c.b16 %v2845, %v2837
      %v2966 = vpack.c.b16 %v2846, %v2838
      %v2967 = vpack.c.b16 %v2847, %v2839
      %v2968 = vpack.c.b16 %v2848, %v2840
      %v2969 = vpack.c.b16 %v2849, %v2841
      %v2970 = vpack.c.b16 %v2850, %v2842
      %v2971 = vpack.c.b16 %v2859, %v2851
      %v2972 = vpack.c.b16 %v2860, %v2852
      %v2973 = vpack.c.b16 %v2861, %v2853
      %v2974 = vpack.c.b16 %v2862, %v2854
      %v2975 = vpack.c.b16 %v2863, %v2855
      %v2976 = vpack.c.b16 %v2864, %v2856
      %v2977 = vpack.c.b16 %v2865, %v2857
      %v2978 = vpack.c.b16 %v2866, %v2858
      %v2979 = vpack.c.b16 %v2875, %v2867
      %v2980 = vpack.c.b16 %v2876, %v2868
      %v2981 = vpack.c.b16 %v2877, %v2869
      %v2982 = vpack.c.b16 %v2878, %v2870
      %v2983 = vpack.c.b16 %v2879, %v2871
      %v2984 = vpack.c.b16 %v2880, %v2872
      %v2985 = vpack.c.b16 %v2881, %v2873
      %v2986 = vpack.c.b16 %v2882, %v2874
      %v2987 = vpack.c.b16 %v2891, %v2883
      %v2988 = vpack.c.b16 %v2892, %v2884
      %v2989 = vpack.c.b16 %v2893, %v2885
      %v2990 = vpack.c.b16 %v2894, %v2886
      %v2991 = vpack.c.b16 %v2895, %v2887
      %v2992 = vpack.c.b16 %v2896, %v2888
      %v2993 = vpack.c.b16 %v2897, %v2889
      %v2994 = vpack.c.b16 %v2898, %v2890
      %v2995 = vpack.c.b16 %v2907, %v2899
      %v2996 = vpack.c.b16 %v2908, %v2900
      %v2997 = vpack.c.b16 %v2909, %v2901
      %v2998 = vpack.c.b16 %v2910, %v2902
      %v2999 = vpack.c.b16 %v2911, %v2903
      %v3000 = vpack.c.b16 %v2912, %v2904
      %v3001 = vpack.c.b16 %v2913, %v2905
      %v3002 = vpack.c.b16 %v2914, %v2906
      %v3003 = vpack.c.b16 %v2923, %v2915
      %v3004 = vpack.c.b16 %v2924, %v2916
      %v3005 = vpack.c.b16 %v2925, %v2917
      %v3006 = vpack.c.b16 %v2926, %v2918
      %v3007 = vpack.c.b16 %v2927, %v2919
      %v3008 = vpack.c.b16 %v2928, %v2920
      %v3009 = vpack.c.b16 %v2929, %v2921
      %v3010 = vpack.c.b16 %v2930, %v2922
      %v3011 = vpack.c.b16 %v2939, %v2931
      %v3012 = vpack.c.b16 %v2940, %v2932
      %v3013 = vpack.c.b16 %v2941, %v2933
      %v3014 = vpack.c.b16 %v2942, %v2934
      %v3015 = vpack.c.b16 %v2943, %v2935
      %v3016 = vpack.c.b16 %v2944, %v2936
      %v3017 = vpack.c.b16 %v2945, %v2937
      %v3018 = vpack.c.b16 %v2946, %v2938
      %v3019 = vpack.c.b16 %v2955, %v2947
      %v3020 = vpack.c.b16 %v2956, %v2948
      %v3021 = vpack.c.b16 %v2957, %v2949
      %v3022 = vpack.c.b16 %v2958, %v2950
      %v3023 = vpack.c.b16 %v2959, %v2951
      %v3024 = vpack.c.b16 %v2960, %v2952
      %v3025 = vpack.c.b16 %v2961, %v2953
      %v3026 = vpack.c.b16 %v2962, %v2954
      %3091 = vmatprep.subr.bf16.mxu0 %v3020
      %3092 = vmatpush1.bf16.msra.mxu0 %v3019
      %3093 = vmatprep.subr.bf16.mxu0 %v3012
      %3094 = vmatpush1.bf16.msra.mxu0 %v3011
      %3095 = vmatprep.subr.bf16.mxu0 %v3004
      %3096 = vmatpush1.bf16.msra.mxu0 %v3003
      %3097 = vmatprep.subr.bf16.mxu0 %v2996
      %3098 = vmatpush1.bf16.msra.mxu0 %v2995
      %3099 = vmatprep.subr.bf16.mxu0 %v2988
      %3100 = vmatpush1.bf16.msra.mxu0 %v2987
      %3101 = vmatprep.subr.bf16.mxu0 %v2980
      %3102 = vmatpush1.bf16.msra.mxu0 %v2979
      %3103 = vmatprep.subr.bf16.mxu0 %v2972
      %3104 = vmatpush1.bf16.msra.mxu0 %v2971
      %3105 = vmatprep.subr.bf16.mxu0 %v2964
      %3106 = vmatpush1.bf16.msra.mxu0 %v2963
      %3107 = vmatprep.subr.bf16.mxu0 0
      %3108 = vmatpush2.bf16.msra.mxu0 0
      %3109 = vmatprep.subr.bf16.mxu0 0
      %3110 = vmatpush2.bf16.msra.mxu0 0
      %3111 = vmatprep.subr.bf16.mxu0 0
      %3112 = vmatpush2.bf16.msra.mxu0 0
      %3113 = vmatprep.subr.bf16.mxu0 0
      %3114 = vmatpush2.bf16.msra.mxu0 0
      %3115 = vmatprep.subr.bf16.mxu0 0
      %3116 = vmatpush2.bf16.msra.mxu0 0
      %3117 = vmatprep.subr.bf16.mxu0 0
      %3118 = vmatpush2.bf16.msra.mxu0 0
      %3119 = vmatprep.subr.bf16.mxu0 0
      %3120 = vmatpush2.bf16.msra.mxu0 0
      %3121 = vmatprep.subr.bf16.mxu0 0
      %3122 = vmatpush2.bf16.msra.mxu0 0
      %3123 = vmatprep.mubr.bf16.mxu0 0
      %3124 = vmatmul.mubr.bf16.gmra.mxu0 %v2601
      %v3125 = vpop.f32.mrf.mxu0
      %v3126 = vadd.f32 %v2734, %v3125
      %v3127 = vpop.f32.mrf.mxu0
      %v3128 = vadd.f32 %v2738, %v3127
      %v3129 = vpop.f32.mrf.mxu0
      %v3130 = vadd.f32 %v2734, %v3129
      %v3131 = vpop.f32.mrf.mxu0
      %v3132 = vadd.f32 %v2738, %v3131
      %3133 = vmatprep.mubr.bf16.mxu0 0
      %3134 = vmatmul.mubr.bf16.gmra.mxu0 %v2602
      %v3135 = vpop.f32.mrf.mxu0
      %v3136 = vadd.f32 %v2734, %v3135
      %v3137 = vpop.f32.mrf.mxu0
      %v3138 = vadd.f32 %v2738, %v3137
      %v3139 = vpop.f32.mrf.mxu0
      %v3140 = vadd.f32 %v2734, %v3139
      %v3141 = vpop.f32.mrf.mxu0
      %v3142 = vadd.f32 %v2738, %v3141
      %3143 = vmatprep.mubr.bf16.mxu0 0
      %3144 = vmatmul.mubr.bf16.gmra.mxu0 %v2603
      %v3145 = vpop.f32.mrf.mxu0
      %v3146 = vadd.f32 %v2734, %v3145
      %v3147 = vpop.f32.mrf.mxu0
      %v3148 = vadd.f32 %v2738, %v3147
      %v3149 = vpop.f32.mrf.mxu0
      %v3150 = vadd.f32 %v2734, %v3149
      %v3151 = vpop.f32.mrf.mxu0
      %v3152 = vadd.f32 %v2738, %v3151
      %3153 = vmatprep.mubr.bf16.mxu0 0
      %3154 = vmatmul.mubr.bf16.gmra.mxu0 %v2604
      %v3155 = vpop.f32.mrf.mxu0
      %v3156 = vadd.f32 %v2734, %v3155
      %v3157 = vpop.f32.mrf.mxu0
      %v3158 = vadd.f32 %v2738, %v3157
      %v3159 = vpop.f32.mrf.mxu0
      %v3160 = vadd.f32 %v2734, %v3159
      %v3161 = vpop.f32.mrf.mxu0
      %v3162 = vadd.f32 %v2738, %v3161
      %3163 = vmatprep.mubr.bf16.mxu0 0
      %3164 = vmatmul.mubr.bf16.gmra.mxu0 %v2605
      %v3165 = vpop.f32.mrf.mxu0
      %v3166 = vadd.f32 %v2734, %v3165
      %v3167 = vpop.f32.mrf.mxu0
      %v3168 = vadd.f32 %v2738, %v3167
      %v3169 = vpop.f32.mrf.mxu0
      %v3170 = vadd.f32 %v2734, %v3169
      %v3171 = vpop.f32.mrf.mxu0
      %v3172 = vadd.f32 %v2738, %v3171
      %3173 = vmatprep.mubr.bf16.mxu0 0
      %3174 = vmatmul.mubr.bf16.gmra.mxu0 %v2606
      %v3175 = vpop.f32.mrf.mxu0
      %v3176 = vadd.f32 %v2734, %v3175
      %v3177 = vpop.f32.mrf.mxu0
      %v3178 = vadd.f32 %v2738, %v3177
      %v3179 = vpop.f32.mrf.mxu0
      %v3180 = vadd.f32 %v2734, %v3179
      %v3181 = vpop.f32.mrf.mxu0
      %v3182 = vadd.f32 %v2738, %v3181
      %3183 = vmatprep.mubr.bf16.mxu0 0
      %3184 = vmatmul.mubr.bf16.gmra.mxu0 %v2607
      %v3185 = vpop.f32.mrf.mxu0
      %v3186 = vadd.f32 %v2734, %v3185
      %v3187 = vpop.f32.mrf.mxu0
      %v3188 = vadd.f32 %v2738, %v3187
      %v3189 = vpop.f32.mrf.mxu0
      %v3190 = vadd.f32 %v2734, %v3189
      %v3191 = vpop.f32.mrf.mxu0
      %v3192 = vadd.f32 %v2738, %v3191
      %3193 = vmatprep.mubr.bf16.mxu0 0
      %3194 = vmatmul.mubr.bf16.gmra.mxu0 %v2608
      %v3195 = vpop.f32.mrf.mxu0
      %v3196 = vadd.f32 %v2734, %v3195
      %v3197 = vpop.f32.mrf.mxu0
      %v3198 = vadd.f32 %v2738, %v3197
      %v3199 = vpop.f32.mrf.mxu0
      %v3200 = vadd.f32 %v2734, %v3199
      %v3201 = vpop.f32.mrf.mxu0
      %v3202 = vadd.f32 %v2738, %v3201
      %3203 = vmatprep.mubr.bf16.mxu0 0
      %3204 = vmatmul.mubr.bf16.gmra.mxu0 %v2609
      %v3205 = vpop.f32.mrf.mxu0
      %v3206 = vadd.f32 %v2734, %v3205
      %v3207 = vpop.f32.mrf.mxu0
      %v3208 = vadd.f32 %v2738, %v3207
      %v3209 = vpop.f32.mrf.mxu0
      %v3210 = vadd.f32 %v2734, %v3209
      %v3211 = vpop.f32.mrf.mxu0
      %v3212 = vadd.f32 %v2738, %v3211
      %3213 = vmatprep.mubr.bf16.mxu0 0
      %3214 = vmatmul.mubr.bf16.gmra.mxu0 %v2610
      %v3215 = vpop.f32.mrf.mxu0
      %v3216 = vadd.f32 %v2734, %v3215
      %v3217 = vpop.f32.mrf.mxu0
      %v3218 = vadd.f32 %v2738, %v3217
      %v3219 = vpop.f32.mrf.mxu0
      %v3220 = vadd.f32 %v2734, %v3219
      %v3221 = vpop.f32.mrf.mxu0
      %v3222 = vadd.f32 %v2738, %v3221
      %3223 = vmatprep.mubr.bf16.mxu0 0
      %3224 = vmatmul.mubr.bf16.gmra.mxu0 %v2611
      %v3225 = vpop.f32.mrf.mxu0
      %v3226 = vadd.f32 %v2734, %v3225
      %v3227 = vpop.f32.mrf.mxu0
      %v3228 = vadd.f32 %v2738, %v3227
      %v3229 = vpop.f32.mrf.mxu0
      %v3230 = vadd.f32 %v2734, %v3229
      %v3231 = vpop.f32.mrf.mxu0
      %v3232 = vadd.f32 %v2738, %v3231
      %3233 = vmatprep.mubr.bf16.mxu0 0
      %3234 = vmatmul.mubr.bf16.gmra.mxu0 %v2612
      %v3235 = vpop.f32.mrf.mxu0
      %v3236 = vadd.f32 %v2734, %v3235
      %v3237 = vpop.f32.mrf.mxu0
      %v3238 = vadd.f32 %v2738, %v3237
      %v3239 = vpop.f32.mrf.mxu0
      %v3240 = vadd.f32 %v2734, %v3239
      %v3241 = vpop.f32.mrf.mxu0
      %v3242 = vadd.f32 %v2738, %v3241
      %3243 = vmatprep.mubr.bf16.mxu0 0
      %3244 = vmatmul.mubr.bf16.gmra.mxu0 %v2613
      %v3245 = vpop.f32.mrf.mxu0
      %v3246 = vadd.f32 %v2734, %v3245
      %v3247 = vpop.f32.mrf.mxu0
      %v3248 = vadd.f32 %v2738, %v3247
      %v3249 = vpop.f32.mrf.mxu0
      %v3250 = vadd.f32 %v2734, %v3249
      %v3251 = vpop.f32.mrf.mxu0
      %v3252 = vadd.f32 %v2738, %v3251
      %3253 = vmatprep.mubr.bf16.mxu0 0
      %3254 = vmatmul.mubr.bf16.gmra.mxu0 %v2614
      %v3255 = vpop.f32.mrf.mxu0
      %v3256 = vadd.f32 %v2734, %v3255
      %v3257 = vpop.f32.mrf.mxu0
      %v3258 = vadd.f32 %v2738, %v3257
      %v3259 = vpop.f32.mrf.mxu0
      %v3260 = vadd.f32 %v2734, %v3259
      %v3261 = vpop.f32.mrf.mxu0
      %v3262 = vadd.f32 %v2738, %v3261
      %3263 = vmatprep.mubr.bf16.mxu0 0
      %3264 = vmatmul.mubr.bf16.gmra.mxu0 %v2615
      %v3265 = vpop.f32.mrf.mxu0
      %v3266 = vadd.f32 %v2734, %v3265
      %v3267 = vpop.f32.mrf.mxu0
      %v3268 = vadd.f32 %v2738, %v3267
      %v3269 = vpop.f32.mrf.mxu0
      %v3270 = vadd.f32 %v2734, %v3269
      %v3271 = vpop.f32.mrf.mxu0
      %v3272 = vadd.f32 %v2738, %v3271
      %3273 = vmatprep.mubr.bf16.mxu0 0
      %3274 = vmatmul.mubr.bf16.gmra.mxu0 %v2616
      %v3275 = vpop.f32.mrf.mxu0
      %v3276 = vadd.f32 %v2734, %v3275
      %v3277 = vpop.f32.mrf.mxu0
      %v3278 = vadd.f32 %v2738, %v3277
      %v3279 = vpop.f32.mrf.mxu0
      %v3280 = vadd.f32 %v2734, %v3279
      %v3281 = vpop.f32.mrf.mxu0
      %v3282 = vadd.f32 %v2738, %v3281
      %3283 = vdwg.mxu0
      %3284 = vmatprep.subr.bf16.mxu0 %v3022
      %3285 = vmatpush1.bf16.msra.mxu0 %v3021
      %3286 = vmatprep.subr.bf16.mxu0 %v3014
      %3287 = vmatpush1.bf16.msra.mxu0 %v3013
      %3288 = vmatprep.subr.bf16.mxu0 %v3006
      %3289 = vmatpush1.bf16.msra.mxu0 %v3005
      %3290 = vmatprep.subr.bf16.mxu0 %v2998
      %3291 = vmatpush1.bf16.msra.mxu0 %v2997
      %3292 = vmatprep.subr.bf16.mxu0 %v2990
      %3293 = vmatpush1.bf16.msra.mxu0 %v2989
      %3294 = vmatprep.subr.bf16.mxu0 %v2982
      %3295 = vmatpush1.bf16.msra.mxu0 %v2981
      %3296 = vmatprep.subr.bf16.mxu0 %v2974
      %3297 = vmatpush1.bf16.msra.mxu0 %v2973
      %3298 = vmatprep.subr.bf16.mxu0 %v2966
      %3299 = vmatpush1.bf16.msra.mxu0 %v2965
      %3300 = vmatprep.subr.bf16.mxu0 0
      %3301 = vmatpush2.bf16.msra.mxu0 0
      %3302 = vmatprep.subr.bf16.mxu0 0
      %3303 = vmatpush2.bf16.msra.mxu0 0
      %3304 = vmatprep.subr.bf16.mxu0 0
      %3305 = vmatpush2.bf16.msra.mxu0 0
      %3306 = vmatprep.subr.bf16.mxu0 0
      %3307 = vmatpush2.bf16.msra.mxu0 0
      %3308 = vmatprep.subr.bf16.mxu0 0
      %3309 = vmatpush2.bf16.msra.mxu0 0
      %3310 = vmatprep.subr.bf16.mxu0 0
      %3311 = vmatpush2.bf16.msra.mxu0 0
      %3312 = vmatprep.subr.bf16.mxu0 0
      %3313 = vmatpush2.bf16.msra.mxu0 0
      %3314 = vmatprep.subr.bf16.mxu0 0
      %3315 = vmatpush2.bf16.msra.mxu0 0
      %3316 = vmatprep.mubr.bf16.mxu0 0
      %3317 = vmatmul.mubr.bf16.gmra.mxu0 %v2601
      %v3318 = vpop.f32.mrf.mxu0
      %v3319 = vadd.f32 %v2742, %v3318
      %v3320 = vpop.f32.mrf.mxu0
      %v3321 = vadd.f32 %v2746, %v3320
      %v3322 = vpop.f32.mrf.mxu0
      %v3323 = vadd.f32 %v2742, %v3322
      %v3324 = vpop.f32.mrf.mxu0
      %v3325 = vadd.f32 %v2746, %v3324
      %3326 = vmatprep.mubr.bf16.mxu0 0
      %3327 = vmatmul.mubr.bf16.gmra.mxu0 %v2602
      %v3328 = vpop.f32.mrf.mxu0
      %v3329 = vadd.f32 %v2742, %v3328
      %v3330 = vpop.f32.mrf.mxu0
      %v3331 = vadd.f32 %v2746, %v3330
      %v3332 = vpop.f32.mrf.mxu0
      %v3333 = vadd.f32 %v2742, %v3332
      %v3334 = vpop.f32.mrf.mxu0
      %v3335 = vadd.f32 %v2746, %v3334
      %3336 = vmatprep.mubr.bf16.mxu0 0
      %3337 = vmatmul.mubr.bf16.gmra.mxu0 %v2603
      %v3338 = vpop.f32.mrf.mxu0
      %v3339 = vadd.f32 %v2742, %v3338
      %v3340 = vpop.f32.mrf.mxu0
      %v3341 = vadd.f32 %v2746, %v3340
      %v3342 = vpop.f32.mrf.mxu0
      %v3343 = vadd.f32 %v2742, %v3342
      %v3344 = vpop.f32.mrf.mxu0
      %v3345 = vadd.f32 %v2746, %v3344
      %3346 = vmatprep.mubr.bf16.mxu0 0
      %3347 = vmatmul.mubr.bf16.gmra.mxu0 %v2604
      %v3348 = vpop.f32.mrf.mxu0
      %v3349 = vadd.f32 %v2742, %v3348
      %v3350 = vpop.f32.mrf.mxu0
      %v3351 = vadd.f32 %v2746, %v3350
      %v3352 = vpop.f32.mrf.mxu0
      %v3353 = vadd.f32 %v2742, %v3352
      %v3354 = vpop.f32.mrf.mxu0
      %v3355 = vadd.f32 %v2746, %v3354
      %3356 = vmatprep.mubr.bf16.mxu0 0
      %3357 = vmatmul.mubr.bf16.gmra.mxu0 %v2605
      %v3358 = vpop.f32.mrf.mxu0
      %v3359 = vadd.f32 %v2742, %v3358
      %v3360 = vpop.f32.mrf.mxu0
      %v3361 = vadd.f32 %v2746, %v3360
      %v3362 = vpop.f32.mrf.mxu0
      %v3363 = vadd.f32 %v2742, %v3362
      %v3364 = vpop.f32.mrf.mxu0
      %v3365 = vadd.f32 %v2746, %v3364
      %3366 = vmatprep.mubr.bf16.mxu0 0
      %3367 = vmatmul.mubr.bf16.gmra.mxu0 %v2606
      %v3368 = vpop.f32.mrf.mxu0
      %v3369 = vadd.f32 %v2742, %v3368
      %v3370 = vpop.f32.mrf.mxu0
      %v3371 = vadd.f32 %v2746, %v3370
      %v3372 = vpop.f32.mrf.mxu0
      %v3373 = vadd.f32 %v2742, %v3372
      %v3374 = vpop.f32.mrf.mxu0
      %v3375 = vadd.f32 %v2746, %v3374
      %3376 = vmatprep.mubr.bf16.mxu0 0
      %3377 = vmatmul.mubr.bf16.gmra.mxu0 %v2607
      %v3378 = vpop.f32.mrf.mxu0
      %v3379 = vadd.f32 %v2742, %v3378
      %v3380 = vpop.f32.mrf.mxu0
      %v3381 = vadd.f32 %v2746, %v3380
      %v3382 = vpop.f32.mrf.mxu0
      %v3383 = vadd.f32 %v2742, %v3382
      %v3384 = vpop.f32.mrf.mxu0
      %v3385 = vadd.f32 %v2746, %v3384
      %3386 = vmatprep.mubr.bf16.mxu0 0
      %3387 = vmatmul.mubr.bf16.gmra.mxu0 %v2608
      %v3388 = vpop.f32.mrf.mxu0
      %v3389 = vadd.f32 %v2742, %v3388
      %v3390 = vpop.f32.mrf.mxu0
      %v3391 = vadd.f32 %v2746, %v3390
      %v3392 = vpop.f32.mrf.mxu0
      %v3393 = vadd.f32 %v2742, %v3392
      %v3394 = vpop.f32.mrf.mxu0
      %v3395 = vadd.f32 %v2746, %v3394
      %3396 = vmatprep.mubr.bf16.mxu0 0
      %3397 = vmatmul.mubr.bf16.gmra.mxu0 %v2609
      %v3398 = vpop.f32.mrf.mxu0
      %v3399 = vadd.f32 %v2742, %v3398
      %v3400 = vpop.f32.mrf.mxu0
      %v3401 = vadd.f32 %v2746, %v3400
      %v3402 = vpop.f32.mrf.mxu0
      %v3403 = vadd.f32 %v2742, %v3402
      %v3404 = vpop.f32.mrf.mxu0
      %v3405 = vadd.f32 %v2746, %v3404
      %3406 = vmatprep.mubr.bf16.mxu0 0
      %3407 = vmatmul.mubr.bf16.gmra.mxu0 %v2610
      %v3408 = vpop.f32.mrf.mxu0
      %v3409 = vadd.f32 %v2742, %v3408
      %v3410 = vpop.f32.mrf.mxu0
      %v3411 = vadd.f32 %v2746, %v3410
      %v3412 = vpop.f32.mrf.mxu0
      %v3413 = vadd.f32 %v2742, %v3412
      %v3414 = vpop.f32.mrf.mxu0
      %v3415 = vadd.f32 %v2746, %v3414
      %3416 = vmatprep.mubr.bf16.mxu0 0
      %3417 = vmatmul.mubr.bf16.gmra.mxu0 %v2611
      %v3418 = vpop.f32.mrf.mxu0
      %v3419 = vadd.f32 %v2742, %v3418
      %v3420 = vpop.f32.mrf.mxu0
      %v3421 = vadd.f32 %v2746, %v3420
      %v3422 = vpop.f32.mrf.mxu0
      %v3423 = vadd.f32 %v2742, %v3422
      %v3424 = vpop.f32.mrf.mxu0
      %v3425 = vadd.f32 %v2746, %v3424
      %3426 = vmatprep.mubr.bf16.mxu0 0
      %3427 = vmatmul.mubr.bf16.gmra.mxu0 %v2612
      %v3428 = vpop.f32.mrf.mxu0
      %v3429 = vadd.f32 %v2742, %v3428
      %v3430 = vpop.f32.mrf.mxu0
      %v3431 = vadd.f32 %v2746, %v3430
      %v3432 = vpop.f32.mrf.mxu0
      %v3433 = vadd.f32 %v2742, %v3432
      %v3434 = vpop.f32.mrf.mxu0
      %v3435 = vadd.f32 %v2746, %v3434
      %3436 = vmatprep.mubr.bf16.mxu0 0
      %3437 = vmatmul.mubr.bf16.gmra.mxu0 %v2613
      %v3438 = vpop.f32.mrf.mxu0
      %v3439 = vadd.f32 %v2742, %v3438
      %v3440 = vpop.f32.mrf.mxu0
      %v3441 = vadd.f32 %v2746, %v3440
      %v3442 = vpop.f32.mrf.mxu0
      %v3443 = vadd.f32 %v2742, %v3442
      %v3444 = vpop.f32.mrf.mxu0
      %v3445 = vadd.f32 %v2746, %v3444
      %3446 = vmatprep.mubr.bf16.mxu0 0
      %3447 = vmatmul.mubr.bf16.gmra.mxu0 %v2614
      %v3448 = vpop.f32.mrf.mxu0
      %v3449 = vadd.f32 %v2742, %v3448
      %v3450 = vpop.f32.mrf.mxu0
      %v3451 = vadd.f32 %v2746, %v3450
      %v3452 = vpop.f32.mrf.mxu0
      %v3453 = vadd.f32 %v2742, %v3452
      %v3454 = vpop.f32.mrf.mxu0
      %v3455 = vadd.f32 %v2746, %v3454
      %3456 = vmatprep.mubr.bf16.mxu0 0
      %3457 = vmatmul.mubr.bf16.gmra.mxu0 %v2615
      %v3458 = vpop.f32.mrf.mxu0
      %v3459 = vadd.f32 %v2742, %v3458
      %v3460 = vpop.f32.mrf.mxu0
      %v3461 = vadd.f32 %v2746, %v3460
      %v3462 = vpop.f32.mrf.mxu0
      %v3463 = vadd.f32 %v2742, %v3462
      %v3464 = vpop.f32.mrf.mxu0
      %v3465 = vadd.f32 %v2746, %v3464
      %3466 = vmatprep.mubr.bf16.mxu0 0
      %3467 = vmatmul.mubr.bf16.gmra.mxu0 %v2616
      %v3468 = vpop.f32.mrf.mxu0
      %v3469 = vadd.f32 %v2742, %v3468
      %v3470 = vpop.f32.mrf.mxu0
      %v3471 = vadd.f32 %v2746, %v3470
      %v3472 = vpop.f32.mrf.mxu0
      %v3473 = vadd.f32 %v2742, %v3472
      %v3474 = vpop.f32.mrf.mxu0
      %v3475 = vadd.f32 %v2746, %v3474
      %3476 = vdwg.mxu0
      %3477 = vmatprep.subr.bf16.mxu0 %v3024
      %3478 = vmatpush1.bf16.msra.mxu0 %v3023
      %3479 = vmatprep.subr.bf16.mxu0 %v3016
      %3480 = vmatpush1.bf16.msra.mxu0 %v3015
      %3481 = vmatprep.subr.bf16.mxu0 %v3008
      %3482 = vmatpush1.bf16.msra.mxu0 %v3007
      %3483 = vmatprep.subr.bf16.mxu0 %v3000
      %3484 = vmatpush1.bf16.msra.mxu0 %v2999
      %3485 = vmatprep.subr.bf16.mxu0 %v2992
      %3486 = vmatpush1.bf16.msra.mxu0 %v2991
      %3487 = vmatprep.subr.bf16.mxu0 %v2984
      %3488 = vmatpush1.bf16.msra.mxu0 %v2983
      %3489 = vmatprep.subr.bf16.mxu0 %v2976
      %3490 = vmatpush1.bf16.msra.mxu0 %v2975
      %3491 = vmatprep.subr.bf16.mxu0 %v2968
      %3492 = vmatpush1.bf16.msra.mxu0 %v2967
      %3493 = vmatprep.subr.bf16.mxu0 0
      %3494 = vmatpush2.bf16.msra.mxu0 0
      %3495 = vmatprep.subr.bf16.mxu0 0
      %3496 = vmatpush2.bf16.msra.mxu0 0
      %3497 = vmatprep.subr.bf16.mxu0 0
      %3498 = vmatpush2.bf16.msra.mxu0 0
      %3499 = vmatprep.subr.bf16.mxu0 0
      %3500 = vmatpush2.bf16.msra.mxu0 0
      %3501 = vmatprep.subr.bf16.mxu0 0
      %3502 = vmatpush2.bf16.msra.mxu0 0
      %3503 = vmatprep.subr.bf16.mxu0 0
      %3504 = vmatpush2.bf16.msra.mxu0 0
      %3505 = vmatprep.subr.bf16.mxu0 0
      %3506 = vmatpush2.bf16.msra.mxu0 0
      %3507 = vmatprep.subr.bf16.mxu0 0
      %3508 = vmatpush2.bf16.msra.mxu0 0
      %3509 = vmatprep.mubr.bf16.mxu0 0
      %3510 = vmatmul.mubr.bf16.gmra.mxu0 %v2601
      %v3511 = vpop.f32.mrf.mxu0
      %v3512 = vadd.f32 %v2750, %v3511
      %v3513 = vpop.f32.mrf.mxu0
      %v3514 = vadd.f32 %v2754, %v3513
      %v3515 = vpop.f32.mrf.mxu0
      %v3516 = vadd.f32 %v2750, %v3515
      %v3517 = vpop.f32.mrf.mxu0
      %v3518 = vadd.f32 %v2754, %v3517
      %3519 = vmatprep.mubr.bf16.mxu0 0
      %3520 = vmatmul.mubr.bf16.gmra.mxu0 %v2602
      %v3521 = vpop.f32.mrf.mxu0
      %v3522 = vadd.f32 %v2750, %v3521
      %v3523 = vpop.f32.mrf.mxu0
      %v3524 = vadd.f32 %v2754, %v3523
      %v3525 = vpop.f32.mrf.mxu0
      %v3526 = vadd.f32 %v2750, %v3525
      %v3527 = vpop.f32.mrf.mxu0
      %v3528 = vadd.f32 %v2754, %v3527
      %3529 = vmatprep.mubr.bf16.mxu0 0
      %3530 = vmatmul.mubr.bf16.gmra.mxu0 %v2603
      %v3531 = vpop.f32.mrf.mxu0
      %v3532 = vadd.f32 %v2750, %v3531
      %v3533 = vpop.f32.mrf.mxu0
      %v3534 = vadd.f32 %v2754, %v3533
      %v3535 = vpop.f32.mrf.mxu0
      %v3536 = vadd.f32 %v2750, %v3535
      %v3537 = vpop.f32.mrf.mxu0
      %v3538 = vadd.f32 %v2754, %v3537
      %3539 = vmatprep.mubr.bf16.mxu0 0
      %3540 = vmatmul.mubr.bf16.gmra.mxu0 %v2604
      %v3541 = vpop.f32.mrf.mxu0
      %v3542 = vadd.f32 %v2750, %v3541
      %v3543 = vpop.f32.mrf.mxu0
      %v3544 = vadd.f32 %v2754, %v3543
      %v3545 = vpop.f32.mrf.mxu0
      %v3546 = vadd.f32 %v2750, %v3545
      %v3547 = vpop.f32.mrf.mxu0
      %v3548 = vadd.f32 %v2754, %v3547
      %3549 = vmatprep.mubr.bf16.mxu0 0
      %3550 = vmatmul.mubr.bf16.gmra.mxu0 %v2605
      %v3551 = vpop.f32.mrf.mxu0
      %v3552 = vadd.f32 %v2750, %v3551
      %v3553 = vpop.f32.mrf.mxu0
      %v3554 = vadd.f32 %v2754, %v3553
      %v3555 = vpop.f32.mrf.mxu0
      %v3556 = vadd.f32 %v2750, %v3555
      %v3557 = vpop.f32.mrf.mxu0
      %v3558 = vadd.f32 %v2754, %v3557
      %3559 = vmatprep.mubr.bf16.mxu0 0
      %3560 = vmatmul.mubr.bf16.gmra.mxu0 %v2606
      %v3561 = vpop.f32.mrf.mxu0
      %v3562 = vadd.f32 %v2750, %v3561
      %v3563 = vpop.f32.mrf.mxu0
      %v3564 = vadd.f32 %v2754, %v3563
      %v3565 = vpop.f32.mrf.mxu0
      %v3566 = vadd.f32 %v2750, %v3565
      %v3567 = vpop.f32.mrf.mxu0
      %v3568 = vadd.f32 %v2754, %v3567
      %3569 = vmatprep.mubr.bf16.mxu0 0
      %3570 = vmatmul.mubr.bf16.gmra.mxu0 %v2607
      %v3571 = vpop.f32.mrf.mxu0
      %v3572 = vadd.f32 %v2750, %v3571
      %v3573 = vpop.f32.mrf.mxu0
      %v3574 = vadd.f32 %v2754, %v3573
      %v3575 = vpop.f32.mrf.mxu0
      %v3576 = vadd.f32 %v2750, %v3575
      %v3577 = vpop.f32.mrf.mxu0
      %v3578 = vadd.f32 %v2754, %v3577
      %3579 = vmatprep.mubr.bf16.mxu0 0
      %3580 = vmatmul.mubr.bf16.gmra.mxu0 %v2608
      %v3581 = vpop.f32.mrf.mxu0
      %v3582 = vadd.f32 %v2750, %v3581
      %v3583 = vpop.f32.mrf.mxu0
      %v3584 = vadd.f32 %v2754, %v3583
      %v3585 = vpop.f32.mrf.mxu0
      %v3586 = vadd.f32 %v2750, %v3585
      %v3587 = vpop.f32.mrf.mxu0
      %v3588 = vadd.f32 %v2754, %v3587
      %3589 = vmatprep.mubr.bf16.mxu0 0
      %3590 = vmatmul.mubr.bf16.gmra.mxu0 %v2609
      %v3591 = vpop.f32.mrf.mxu0
      %v3592 = vadd.f32 %v2750, %v3591
      %v3593 = vpop.f32.mrf.mxu0
      %v3594 = vadd.f32 %v2754, %v3593
      %v3595 = vpop.f32.mrf.mxu0
      %v3596 = vadd.f32 %v2750, %v3595
      %v3597 = vpop.f32.mrf.mxu0
      %v3598 = vadd.f32 %v2754, %v3597
      %3599 = vmatprep.mubr.bf16.mxu0 0
      %3600 = vmatmul.mubr.bf16.gmra.mxu0 %v2610
      %v3601 = vpop.f32.mrf.mxu0
      %v3602 = vadd.f32 %v2750, %v3601
      %v3603 = vpop.f32.mrf.mxu0
      %v3604 = vadd.f32 %v2754, %v3603
      %v3605 = vpop.f32.mrf.mxu0
      %v3606 = vadd.f32 %v2750, %v3605
      %v3607 = vpop.f32.mrf.mxu0
      %v3608 = vadd.f32 %v2754, %v3607
      %3609 = vmatprep.mubr.bf16.mxu0 0
      %3610 = vmatmul.mubr.bf16.gmra.mxu0 %v2611
      %v3611 = vpop.f32.mrf.mxu0
      %v3612 = vadd.f32 %v2750, %v3611
      %v3613 = vpop.f32.mrf.mxu0
      %v3614 = vadd.f32 %v2754, %v3613
      %v3615 = vpop.f32.mrf.mxu0
      %v3616 = vadd.f32 %v2750, %v3615
      %v3617 = vpop.f32.mrf.mxu0
      %v3618 = vadd.f32 %v2754, %v3617
      %3619 = vmatprep.mubr.bf16.mxu0 0
      %3620 = vmatmul.mubr.bf16.gmra.mxu0 %v2612
      %v3621 = vpop.f32.mrf.mxu0
      %v3622 = vadd.f32 %v2750, %v3621
      %v3623 = vpop.f32.mrf.mxu0
      %v3624 = vadd.f32 %v2754, %v3623
      %v3625 = vpop.f32.mrf.mxu0
      %v3626 = vadd.f32 %v2750, %v3625
      %v3627 = vpop.f32.mrf.mxu0
      %v3628 = vadd.f32 %v2754, %v3627
      %3629 = vmatprep.mubr.bf16.mxu0 0
      %3630 = vmatmul.mubr.bf16.gmra.mxu0 %v2613
      %v3631 = vpop.f32.mrf.mxu0
      %v3632 = vadd.f32 %v2750, %v3631
      %v3633 = vpop.f32.mrf.mxu0
      %v3634 = vadd.f32 %v2754, %v3633
      %v3635 = vpop.f32.mrf.mxu0
      %v3636 = vadd.f32 %v2750, %v3635
      %v3637 = vpop.f32.mrf.mxu0
      %v3638 = vadd.f32 %v2754, %v3637
      %3639 = vmatprep.mubr.bf16.mxu0 0
      %3640 = vmatmul.mubr.bf16.gmra.mxu0 %v2614
      %v3641 = vpop.f32.mrf.mxu0
      %v3642 = vadd.f32 %v2750, %v3641
      %v3643 = vpop.f32.mrf.mxu0
      %v3644 = vadd.f32 %v2754, %v3643
      %v3645 = vpop.f32.mrf.mxu0
      %v3646 = vadd.f32 %v2750, %v3645
      %v3647 = vpop.f32.mrf.mxu0
      %v3648 = vadd.f32 %v2754, %v3647
      %3649 = vmatprep.mubr.bf16.mxu0 0
      %3650 = vmatmul.mubr.bf16.gmra.mxu0 %v2615
      %v3651 = vpop.f32.mrf.mxu0
      %v3652 = vadd.f32 %v2750, %v3651
      %v3653 = vpop.f32.mrf.mxu0
      %v3654 = vadd.f32 %v2754, %v3653
      %v3655 = vpop.f32.mrf.mxu0
      %v3656 = vadd.f32 %v2750, %v3655
      %v3657 = vpop.f32.mrf.mxu0
      %v3658 = vadd.f32 %v2754, %v3657
      %3659 = vmatprep.mubr.bf16.mxu0 0
      %3660 = vmatmul.mubr.bf16.gmra.mxu0 %v2616
      %v3661 = vpop.f32.mrf.mxu0
      %v3662 = vadd.f32 %v2750, %v3661
      %v3663 = vpop.f32.mrf.mxu0
      %v3664 = vadd.f32 %v2754, %v3663
      %v3665 = vpop.f32.mrf.mxu0
      %v3666 = vadd.f32 %v2750, %v3665
      %v3667 = vpop.f32.mrf.mxu0
      %v3668 = vadd.f32 %v2754, %v3667
      %3669 = vdwg.mxu0
      %3670 = vmatprep.subr.bf16.mxu0 %v3026
      %3671 = vmatpush1.bf16.msra.mxu0 %v3025
      %3672 = vmatprep.subr.bf16.mxu0 %v3018
      %3673 = vmatpush1.bf16.msra.mxu0 %v3017
      %3674 = vmatprep.subr.bf16.mxu0 %v3010
      %3675 = vmatpush1.bf16.msra.mxu0 %v3009
      %3676 = vmatprep.subr.bf16.mxu0 %v3002
      %3677 = vmatpush1.bf16.msra.mxu0 %v3001
      %3678 = vmatprep.subr.bf16.mxu0 %v2994
      %3679 = vmatpush1.bf16.msra.mxu0 %v2993
      %3680 = vmatprep.subr.bf16.mxu0 %v2986
      %3681 = vmatpush1.bf16.msra.mxu0 %v2985
      %3682 = vmatprep.subr.bf16.mxu0 %v2978
      %3683 = vmatpush1.bf16.msra.mxu0 %v2977
      %3684 = vmatprep.subr.bf16.mxu0 %v2970
      %3685 = vmatpush1.bf16.msra.mxu0 %v2969
      %3686 = vmatprep.subr.bf16.mxu0 0
      %3687 = vmatpush2.bf16.msra.mxu0 0
      %3688 = vmatprep.subr.bf16.mxu0 0
      %3689 = vmatpush2.bf16.msra.mxu0 0
      %3690 = vmatprep.subr.bf16.mxu0 0
      %3691 = vmatpush2.bf16.msra.mxu0 0
      %3692 = vmatprep.subr.bf16.mxu0 0
      %3693 = vmatpush2.bf16.msra.mxu0 0
      %3694 = vmatprep.subr.bf16.mxu0 0
      %3695 = vmatpush2.bf16.msra.mxu0 0
      %3696 = vmatprep.subr.bf16.mxu0 0
      %3697 = vmatpush2.bf16.msra.mxu0 0
      %3698 = vmatprep.subr.bf16.mxu0 0
      %3699 = vmatpush2.bf16.msra.mxu0 0
      %3700 = vmatprep.subr.bf16.mxu0 0
      %3701 = vmatpush2.bf16.msra.mxu0 0
      %3702 = vmatprep.mubr.bf16.mxu0 0
      %3703 = vmatmul.mubr.bf16.gmra.mxu0 %v2601
      %v3704 = vpop.f32.mrf.mxu0
      %v3705 = vadd.f32 %v2758, %v3704
      %v3706 = vpop.f32.mrf.mxu0
      %v3707 = vadd.f32 %v2762, %v3706
      %v3708 = vpop.f32.mrf.mxu0
      %v3709 = vadd.f32 %v2758, %v3708
      %v3710 = vpop.f32.mrf.mxu0
      %v3711 = vadd.f32 %v2762, %v3710
      %3712 = vmatprep.mubr.bf16.mxu0 0
      %3713 = vmatmul.mubr.bf16.gmra.mxu0 %v2602
      %v3714 = vpop.f32.mrf.mxu0
      %v3715 = vadd.f32 %v2758, %v3714
      %v3716 = vpop.f32.mrf.mxu0
      %v3717 = vadd.f32 %v2762, %v3716
      %v3718 = vpop.f32.mrf.mxu0
      %v3719 = vadd.f32 %v2758, %v3718
      %v3720 = vpop.f32.mrf.mxu0
      %v3721 = vadd.f32 %v2762, %v3720
      %3722 = vmatprep.mubr.bf16.mxu0 0
      %3723 = vmatmul.mubr.bf16.gmra.mxu0 %v2603
      %v3724 = vpop.f32.mrf.mxu0
      %v3725 = vadd.f32 %v2758, %v3724
      %v3726 = vpop.f32.mrf.mxu0
      %v3727 = vadd.f32 %v2762, %v3726
      %v3728 = vpop.f32.mrf.mxu0
      %v3729 = vadd.f32 %v2758, %v3728
      %v3730 = vpop.f32.mrf.mxu0
      %v3731 = vadd.f32 %v2762, %v3730
      %3732 = vmatprep.mubr.bf16.mxu0 0
      %3733 = vmatmul.mubr.bf16.gmra.mxu0 %v2604
      %v3734 = vpop.f32.mrf.mxu0
      %v3735 = vadd.f32 %v2758, %v3734
      %v3736 = vpop.f32.mrf.mxu0
      %v3737 = vadd.f32 %v2762, %v3736
      %v3738 = vpop.f32.mrf.mxu0
      %v3739 = vadd.f32 %v2758, %v3738
      %v3740 = vpop.f32.mrf.mxu0
      %v3741 = vadd.f32 %v2762, %v3740
      %3742 = vmatprep.mubr.bf16.mxu0 0
      %3743 = vmatmul.mubr.bf16.gmra.mxu0 %v2605
      %v3744 = vpop.f32.mrf.mxu0
      %v3745 = vadd.f32 %v2758, %v3744
      %v3746 = vpop.f32.mrf.mxu0
      %v3747 = vadd.f32 %v2762, %v3746
      %v3748 = vpop.f32.mrf.mxu0
      %v3749 = vadd.f32 %v2758, %v3748
      %v3750 = vpop.f32.mrf.mxu0
      %v3751 = vadd.f32 %v2762, %v3750
      %3752 = vmatprep.mubr.bf16.mxu0 0
      %3753 = vmatmul.mubr.bf16.gmra.mxu0 %v2606
      %v3754 = vpop.f32.mrf.mxu0
      %v3755 = vadd.f32 %v2758, %v3754
      %v3756 = vpop.f32.mrf.mxu0
      %v3757 = vadd.f32 %v2762, %v3756
      %v3758 = vpop.f32.mrf.mxu0
      %v3759 = vadd.f32 %v2758, %v3758
      %v3760 = vpop.f32.mrf.mxu0
      %v3761 = vadd.f32 %v2762, %v3760
      %3762 = vmatprep.mubr.bf16.mxu0 0
      %3763 = vmatmul.mubr.bf16.gmra.mxu0 %v2607
      %v3764 = vpop.f32.mrf.mxu0
      %v3765 = vadd.f32 %v2758, %v3764
      %v3766 = vpop.f32.mrf.mxu0
      %v3767 = vadd.f32 %v2762, %v3766
      %v3768 = vpop.f32.mrf.mxu0
      %v3769 = vadd.f32 %v2758, %v3768
      %v3770 = vpop.f32.mrf.mxu0
      %v3771 = vadd.f32 %v2762, %v3770
      %3772 = vmatprep.mubr.bf16.mxu0 0
      %3773 = vmatmul.mubr.bf16.gmra.mxu0 %v2608
      %v3774 = vpop.f32.mrf.mxu0
      %v3775 = vadd.f32 %v2758, %v3774
      %v3776 = vpop.f32.mrf.mxu0
      %v3777 = vadd.f32 %v2762, %v3776
      %v3778 = vpop.f32.mrf.mxu0
      %v3779 = vadd.f32 %v2758, %v3778
      %v3780 = vpop.f32.mrf.mxu0
      %v3781 = vadd.f32 %v2762, %v3780
      %3782 = vmatprep.mubr.bf16.mxu0 0
      %3783 = vmatmul.mubr.bf16.gmra.mxu0 %v2609
      %v3784 = vpop.f32.mrf.mxu0
      %v3785 = vadd.f32 %v2758, %v3784
      %v3786 = vpop.f32.mrf.mxu0
      %v3787 = vadd.f32 %v2762, %v3786
      %v3788 = vpop.f32.mrf.mxu0
      %v3789 = vadd.f32 %v2758, %v3788
      %v3790 = vpop.f32.mrf.mxu0
      %v3791 = vadd.f32 %v2762, %v3790
      %3792 = vmatprep.mubr.bf16.mxu0 0
      %3793 = vmatmul.mubr.bf16.gmra.mxu0 %v2610
      %v3794 = vpop.f32.mrf.mxu0
      %v3795 = vadd.f32 %v2758, %v3794
      %v3796 = vpop.f32.mrf.mxu0
      %v3797 = vadd.f32 %v2762, %v3796
      %v3798 = vpop.f32.mrf.mxu0
      %v3799 = vadd.f32 %v2758, %v3798
      %v3800 = vpop.f32.mrf.mxu0
      %v3801 = vadd.f32 %v2762, %v3800
      %3802 = vmatprep.mubr.bf16.mxu0 0
      %3803 = vmatmul.mubr.bf16.gmra.mxu0 %v2611
      %v3804 = vpop.f32.mrf.mxu0
      %v3805 = vadd.f32 %v2758, %v3804
      %v3806 = vpop.f32.mrf.mxu0
      %v3807 = vadd.f32 %v2762, %v3806
      %v3808 = vpop.f32.mrf.mxu0
      %v3809 = vadd.f32 %v2758, %v3808
      %v3810 = vpop.f32.mrf.mxu0
      %v3811 = vadd.f32 %v2762, %v3810
      %3812 = vmatprep.mubr.bf16.mxu0 0
      %3813 = vmatmul.mubr.bf16.gmra.mxu0 %v2612
      %v3814 = vpop.f32.mrf.mxu0
      %v3815 = vadd.f32 %v2758, %v3814
      %v3816 = vpop.f32.mrf.mxu0
      %v3817 = vadd.f32 %v2762, %v3816
      %v3818 = vpop.f32.mrf.mxu0
      %v3819 = vadd.f32 %v2758, %v3818
      %v3820 = vpop.f32.mrf.mxu0
      %v3821 = vadd.f32 %v2762, %v3820
      %3822 = vmatprep.mubr.bf16.mxu0 0
      %3823 = vmatmul.mubr.bf16.gmra.mxu0 %v2613
      %v3824 = vpop.f32.mrf.mxu0
      %v3825 = vadd.f32 %v2758, %v3824
      %v3826 = vpop.f32.mrf.mxu0
      %v3827 = vadd.f32 %v2762, %v3826
      %v3828 = vpop.f32.mrf.mxu0
      %v3829 = vadd.f32 %v2758, %v3828
      %v3830 = vpop.f32.mrf.mxu0
      %v3831 = vadd.f32 %v2762, %v3830
      %3832 = vmatprep.mubr.bf16.mxu0 0
      %3833 = vmatmul.mubr.bf16.gmra.mxu0 %v2614
      %v3834 = vpop.f32.mrf.mxu0
      %v3835 = vadd.f32 %v2758, %v3834
      %v3836 = vpop.f32.mrf.mxu0
      %v3837 = vadd.f32 %v2762, %v3836
      %v3838 = vpop.f32.mrf.mxu0
      %v3839 = vadd.f32 %v2758, %v3838
      %v3840 = vpop.f32.mrf.mxu0
      %v3841 = vadd.f32 %v2762, %v3840
      %3842 = vmatprep.mubr.bf16.mxu0 0
      %3843 = vmatmul.mubr.bf16.gmra.mxu0 %v2615
      %v3844 = vpop.f32.mrf.mxu0
      %v3845 = vadd.f32 %v2758, %v3844
      %v3846 = vpop.f32.mrf.mxu0
      %v3847 = vadd.f32 %v2762, %v3846
      %v3848 = vpop.f32.mrf.mxu0
      %v3849 = vadd.f32 %v2758, %v3848
      %v3850 = vpop.f32.mrf.mxu0
      %v3851 = vadd.f32 %v2762, %v3850
      %3852 = vmatprep.mubr.bf16.mxu0 0
      %3853 = vmatmul.mubr.bf16.gmra.mxu0 %v2616
      %v3854 = vpop.f32.mrf.mxu0
      %v3855 = vadd.f32 %v2758, %v3854
      %v3856 = vpop.f32.mrf.mxu0
      %v3857 = vadd.f32 %v2762, %v3856
      %v3858 = vpop.f32.mrf.mxu0
      %v3859 = vadd.f32 %v2758, %v3858
      %v3860 = vpop.f32.mrf.mxu0
      %v3861 = vadd.f32 %v2762, %v3860
      %3862 = vdwg.mxu0
      %v3863 = vmax.f32 %v3126, 0.0
      %v3864 = vmax.f32 %v3128, 0.0
      %v3865 = vmax.f32 %v3319, 0.0
      %v3866 = vmax.f32 %v3321, 0.0
      %v3867 = vmax.f32 %v3512, 0.0
      %v3868 = vmax.f32 %v3514, 0.0
      %v3869 = vmax.f32 %v3705, 0.0
      %v3870 = vmax.f32 %v3707, 0.0
      %v3871 = vmax.f32 %v3130, 0.0
      %v3872 = vmax.f32 %v3132, 0.0
      %v3873 = vmax.f32 %v3323, 0.0
      %v3874 = vmax.f32 %v3325, 0.0
      %v3875 = vmax.f32 %v3516, 0.0
      %v3876 = vmax.f32 %v3518, 0.0
      %v3877 = vmax.f32 %v3709, 0.0
      %v3878 = vmax.f32 %v3711, 0.0
      %v3879 = vmax.f32 %v3136, 0.0
      %v3880 = vmax.f32 %v3138, 0.0
      %v3881 = vmax.f32 %v3329, 0.0
      %v3882 = vmax.f32 %v3331, 0.0
      %v3883 = vmax.f32 %v3522, 0.0
      %v3884 = vmax.f32 %v3524, 0.0
      %v3885 = vmax.f32 %v3715, 0.0
      %v3886 = vmax.f32 %v3717, 0.0
      %v3887 = vmax.f32 %v3140, 0.0
      %v3888 = vmax.f32 %v3142, 0.0
      %v3889 = vmax.f32 %v3333, 0.0
      %v3890 = vmax.f32 %v3335, 0.0
      %v3891 = vmax.f32 %v3526, 0.0
      %v3892 = vmax.f32 %v3528, 0.0
      %v3893 = vmax.f32 %v3719, 0.0
      %v3894 = vmax.f32 %v3721, 0.0
      %v3895 = vmax.f32 %v3146, 0.0
      %v3896 = vmax.f32 %v3148, 0.0
      %v3897 = vmax.f32 %v3339, 0.0
      %v3898 = vmax.f32 %v3341, 0.0
      %v3899 = vmax.f32 %v3532, 0.0
      %v3900 = vmax.f32 %v3534, 0.0
      %v3901 = vmax.f32 %v3725, 0.0
      %v3902 = vmax.f32 %v3727, 0.0
      %v3903 = vmax.f32 %v3150, 0.0
      %v3904 = vmax.f32 %v3152, 0.0
      %v3905 = vmax.f32 %v3343, 0.0
      %v3906 = vmax.f32 %v3345, 0.0
      %v3907 = vmax.f32 %v3536, 0.0
      %v3908 = vmax.f32 %v3538, 0.0
      %v3909 = vmax.f32 %v3729, 0.0
      %v3910 = vmax.f32 %v3731, 0.0
      %v3911 = vmax.f32 %v3156, 0.0
      %v3912 = vmax.f32 %v3158, 0.0
      %v3913 = vmax.f32 %v3349, 0.0
      %v3914 = vmax.f32 %v3351, 0.0
      %v3915 = vmax.f32 %v3542, 0.0
      %v3916 = vmax.f32 %v3544, 0.0
      %v3917 = vmax.f32 %v3735, 0.0
      %v3918 = vmax.f32 %v3737, 0.0
      %v3919 = vmax.f32 %v3160, 0.0
      %v3920 = vmax.f32 %v3162, 0.0
      %v3921 = vmax.f32 %v3353, 0.0
      %v3922 = vmax.f32 %v3355, 0.0
      %v3923 = vmax.f32 %v3546, 0.0
      %v3924 = vmax.f32 %v3548, 0.0
      %v3925 = vmax.f32 %v3739, 0.0
      %v3926 = vmax.f32 %v3741, 0.0
      %v3927 = vmax.f32 %v3166, 0.0
      %v3928 = vmax.f32 %v3168, 0.0
      %v3929 = vmax.f32 %v3359, 0.0
      %v3930 = vmax.f32 %v3361, 0.0
      %v3931 = vmax.f32 %v3552, 0.0
      %v3932 = vmax.f32 %v3554, 0.0
      %v3933 = vmax.f32 %v3745, 0.0
      %v3934 = vmax.f32 %v3747, 0.0
      %v3935 = vmax.f32 %v3170, 0.0
      %v3936 = vmax.f32 %v3172, 0.0
      %v3937 = vmax.f32 %v3363, 0.0
      %v3938 = vmax.f32 %v3365, 0.0
      %v3939 = vmax.f32 %v3556, 0.0
      %v3940 = vmax.f32 %v3558, 0.0
      %v3941 = vmax.f32 %v3749, 0.0
      %v3942 = vmax.f32 %v3751, 0.0
      %v3943 = vmax.f32 %v3176, 0.0
      %v3944 = vmax.f32 %v3178, 0.0
      %v3945 = vmax.f32 %v3369, 0.0
      %v3946 = vmax.f32 %v3371, 0.0
      %v3947 = vmax.f32 %v3562, 0.0
      %v3948 = vmax.f32 %v3564, 0.0
      %v3949 = vmax.f32 %v3755, 0.0
      %v3950 = vmax.f32 %v3757, 0.0
      %v3951 = vmax.f32 %v3180, 0.0
      %v3952 = vmax.f32 %v3182, 0.0
      %v3953 = vmax.f32 %v3373, 0.0
      %v3954 = vmax.f32 %v3375, 0.0
      %v3955 = vmax.f32 %v3566, 0.0
      %v3956 = vmax.f32 %v3568, 0.0
      %v3957 = vmax.f32 %v3759, 0.0
      %v3958 = vmax.f32 %v3761, 0.0
      %v3959 = vmax.f32 %v3186, 0.0
      %v3960 = vmax.f32 %v3188, 0.0
      %v3961 = vmax.f32 %v3379, 0.0
      %v3962 = vmax.f32 %v3381, 0.0
      %v3963 = vmax.f32 %v3572, 0.0
      %v3964 = vmax.f32 %v3574, 0.0
      %v3965 = vmax.f32 %v3765, 0.0
      %v3966 = vmax.f32 %v3767, 0.0
      %v3967 = vmax.f32 %v3190, 0.0
      %v3968 = vmax.f32 %v3192, 0.0
      %v3969 = vmax.f32 %v3383, 0.0
      %v3970 = vmax.f32 %v3385, 0.0
      %v3971 = vmax.f32 %v3576, 0.0
      %v3972 = vmax.f32 %v3578, 0.0
      %v3973 = vmax.f32 %v3769, 0.0
      %v3974 = vmax.f32 %v3771, 0.0
      %v3975 = vmax.f32 %v3196, 0.0
      %v3976 = vmax.f32 %v3198, 0.0
      %v3977 = vmax.f32 %v3389, 0.0
      %v3978 = vmax.f32 %v3391, 0.0
      %v3979 = vmax.f32 %v3582, 0.0
      %v3980 = vmax.f32 %v3584, 0.0
      %v3981 = vmax.f32 %v3775, 0.0
      %v3982 = vmax.f32 %v3777, 0.0
      %v3983 = vmax.f32 %v3200, 0.0
      %v3984 = vmax.f32 %v3202, 0.0
      %v3985 = vmax.f32 %v3393, 0.0
      %v3986 = vmax.f32 %v3395, 0.0
      %v3987 = vmax.f32 %v3586, 0.0
      %v3988 = vmax.f32 %v3588, 0.0
      %v3989 = vmax.f32 %v3779, 0.0
      %v3990 = vmax.f32 %v3781, 0.0
      %v3991 = vmax.f32 %v3206, 0.0
      %v3992 = vmax.f32 %v3208, 0.0
      %v3993 = vmax.f32 %v3399, 0.0
      %v3994 = vmax.f32 %v3401, 0.0
      %v3995 = vmax.f32 %v3592, 0.0
      %v3996 = vmax.f32 %v3594, 0.0
      %v3997 = vmax.f32 %v3785, 0.0
      %v3998 = vmax.f32 %v3787, 0.0
      %v3999 = vmax.f32 %v3210, 0.0
      %v4000 = vmax.f32 %v3212, 0.0
      %v4001 = vmax.f32 %v3403, 0.0
      %v4002 = vmax.f32 %v3405, 0.0
      %v4003 = vmax.f32 %v3596, 0.0
      %v4004 = vmax.f32 %v3598, 0.0
      %v4005 = vmax.f32 %v3789, 0.0
      %v4006 = vmax.f32 %v3791, 0.0
      %v4007 = vmax.f32 %v3216, 0.0
      %v4008 = vmax.f32 %v3218, 0.0
      %v4009 = vmax.f32 %v3409, 0.0
      %v4010 = vmax.f32 %v3411, 0.0
      %v4011 = vmax.f32 %v3602, 0.0
      %v4012 = vmax.f32 %v3604, 0.0
      %v4013 = vmax.f32 %v3795, 0.0
      %v4014 = vmax.f32 %v3797, 0.0
      %v4015 = vmax.f32 %v3220, 0.0
      %v4016 = vmax.f32 %v3222, 0.0
      %v4017 = vmax.f32 %v3413, 0.0
      %v4018 = vmax.f32 %v3415, 0.0
      %v4019 = vmax.f32 %v3606, 0.0
      %v4020 = vmax.f32 %v3608, 0.0
      %v4021 = vmax.f32 %v3799, 0.0
      %v4022 = vmax.f32 %v3801, 0.0
      %v4023 = vmax.f32 %v3226, 0.0
      %v4024 = vmax.f32 %v3228, 0.0
      %v4025 = vmax.f32 %v3419, 0.0
      %v4026 = vmax.f32 %v3421, 0.0
      %v4027 = vmax.f32 %v3612, 0.0
      %v4028 = vmax.f32 %v3614, 0.0
      %v4029 = vmax.f32 %v3805, 0.0
      %v4030 = vmax.f32 %v3807, 0.0
      %v4031 = vmax.f32 %v3230, 0.0
      %v4032 = vmax.f32 %v3232, 0.0
      %v4033 = vmax.f32 %v3423, 0.0
      %v4034 = vmax.f32 %v3425, 0.0
      %v4035 = vmax.f32 %v3616, 0.0
      %v4036 = vmax.f32 %v3618, 0.0
      %v4037 = vmax.f32 %v3809, 0.0
      %v4038 = vmax.f32 %v3811, 0.0
      %v4039 = vmax.f32 %v3236, 0.0
      %v4040 = vmax.f32 %v3238, 0.0
      %v4041 = vmax.f32 %v3429, 0.0
      %v4042 = vmax.f32 %v3431, 0.0
      %v4043 = vmax.f32 %v3622, 0.0
      %v4044 = vmax.f32 %v3624, 0.0
      %v4045 = vmax.f32 %v3815, 0.0
      %v4046 = vmax.f32 %v3817, 0.0
      %v4047 = vmax.f32 %v3240, 0.0
      %v4048 = vmax.f32 %v3242, 0.0
      %v4049 = vmax.f32 %v3433, 0.0
      %v4050 = vmax.f32 %v3435, 0.0
      %v4051 = vmax.f32 %v3626, 0.0
      %v4052 = vmax.f32 %v3628, 0.0
      %v4053 = vmax.f32 %v3819, 0.0
      %v4054 = vmax.f32 %v3821, 0.0
      %v4055 = vmax.f32 %v3246, 0.0
      %v4056 = vmax.f32 %v3248, 0.0
      %v4057 = vmax.f32 %v3439, 0.0
      %v4058 = vmax.f32 %v3441, 0.0
      %v4059 = vmax.f32 %v3632, 0.0
      %v4060 = vmax.f32 %v3634, 0.0
      %v4061 = vmax.f32 %v3825, 0.0
      %v4062 = vmax.f32 %v3827, 0.0
      %v4063 = vmax.f32 %v3250, 0.0
      %v4064 = vmax.f32 %v3252, 0.0
      %v4065 = vmax.f32 %v3443, 0.0
      %v4066 = vmax.f32 %v3445, 0.0
      %v4067 = vmax.f32 %v3636, 0.0
      %v4068 = vmax.f32 %v3638, 0.0
      %v4069 = vmax.f32 %v3829, 0.0
      %v4070 = vmax.f32 %v3831, 0.0
      %v4071 = vmax.f32 %v3256, 0.0
      %v4072 = vmax.f32 %v3258, 0.0
      %v4073 = vmax.f32 %v3449, 0.0
      %v4074 = vmax.f32 %v3451, 0.0
      %v4075 = vmax.f32 %v3642, 0.0
      %v4076 = vmax.f32 %v3644, 0.0
      %v4077 = vmax.f32 %v3835, 0.0
      %v4078 = vmax.f32 %v3837, 0.0
      %v4079 = vmax.f32 %v3260, 0.0
      %v4080 = vmax.f32 %v3262, 0.0
      %v4081 = vmax.f32 %v3453, 0.0
      %v4082 = vmax.f32 %v3455, 0.0
      %v4083 = vmax.f32 %v3646, 0.0
      %v4084 = vmax.f32 %v3648, 0.0
      %v4085 = vmax.f32 %v3839, 0.0
      %v4086 = vmax.f32 %v3841, 0.0
      %v4087 = vmax.f32 %v3266, 0.0
      %v4088 = vmax.f32 %v3268, 0.0
      %v4089 = vmax.f32 %v3459, 0.0
      %v4090 = vmax.f32 %v3461, 0.0
      %v4091 = vmax.f32 %v3652, 0.0
      %v4092 = vmax.f32 %v3654, 0.0
      %v4093 = vmax.f32 %v3845, 0.0
      %v4094 = vmax.f32 %v3847, 0.0
      %v4095 = vmax.f32 %v3270, 0.0
      %v4096 = vmax.f32 %v3272, 0.0
      %v4097 = vmax.f32 %v3463, 0.0
      %v4098 = vmax.f32 %v3465, 0.0
      %v4099 = vmax.f32 %v3656, 0.0
      %v4100 = vmax.f32 %v3658, 0.0
      %v4101 = vmax.f32 %v3849, 0.0
      %v4102 = vmax.f32 %v3851, 0.0
      %v4103 = vmax.f32 %v3276, 0.0
      %v4104 = vmax.f32 %v3278, 0.0
      %v4105 = vmax.f32 %v3469, 0.0
      %v4106 = vmax.f32 %v3471, 0.0
      %v4107 = vmax.f32 %v3662, 0.0
      %v4108 = vmax.f32 %v3664, 0.0
      %v4109 = vmax.f32 %v3855, 0.0
      %v4110 = vmax.f32 %v3857, 0.0
      %v4111 = vmax.f32 %v3280, 0.0
      %v4112 = vmax.f32 %v3282, 0.0
      %v4113 = vmax.f32 %v3473, 0.0
      %v4114 = vmax.f32 %v3475, 0.0
      %v4115 = vmax.f32 %v3666, 0.0
      %v4116 = vmax.f32 %v3668, 0.0
      %v4117 = vmax.f32 %v3859, 0.0
      %v4118 = vmax.f32 %v3861, 0.0
      %v4119 = vmax.f32 %v3863, %v3871
      %v4120 = vmax.f32 %v4119, %v3879
      %v4121 = vmax.f32 %v4120, %v3887
      %v4122 = vmax.f32 %v4121, %v3895
      %v4123 = vmax.f32 %v4122, %v3903
      %v4124 = vmax.f32 %v4123, %v3911
      %v4125 = vmax.f32 %v4124, %v3919
      %v4126 = vmax.f32 %v4125, %v3927
      %v4127 = vmax.f32 %v4126, %v3935
      %v4128 = vmax.f32 %v4127, %v3943
      %v4129 = vmax.f32 %v4128, %v3951
      %v4130 = vmax.f32 %v4129, %v3959
      %v4131 = vmax.f32 %v4130, %v3967
      %v4132 = vmax.f32 %v4131, %v3975
      %v4133 = vmax.f32 %v4132, %v3983
      %v4134 = vmax.f32 %v4133, %v3991
      %v4135 = vmax.f32 %v4134, %v3999
      %v4136 = vmax.f32 %v4135, %v4007
      %v4137 = vmax.f32 %v4136, %v4015
      %v4138 = vmax.f32 %v4137, %v4023
      %v4139 = vmax.f32 %v4138, %v4031
      %v4140 = vmax.f32 %v4139, %v4039
      %v4141 = vmax.f32 %v4140, %v4047
      %v4142 = vmax.f32 %v4141, %v4055
      %v4143 = vmax.f32 %v4142, %v4063
      %v4144 = vmax.f32 %v4143, %v4071
      %v4145 = vmax.f32 %v4144, %v4079
      %v4146 = vmax.f32 %v4145, %v4087
      %v4147 = vmax.f32 %v4146, %v4095
      %v4148 = vmax.f32 %v4147, %v4103
      %v4149 = vmax.f32 %v4148, %v4111
      %v4150 = vrot.slane %v4149, 4
      %v4151 = vmax.f32 %v4149, %v4150
      %v4152 = vrot.slane %v4151, 2
      %v4153 = vmax.f32 %v4151, %v4152
      %v4154 = vrot.slane %v4153, 1
      %v4155 = vmax.f32 %v4153, %v4154
      %v4156 = vmax.f32 %v3864, %v3872
      %v4157 = vmax.f32 %v4156, %v3880
      %v4158 = vmax.f32 %v4157, %v3888
      %v4159 = vmax.f32 %v4158, %v3896
      %v4160 = vmax.f32 %v4159, %v3904
      %v4161 = vmax.f32 %v4160, %v3912
      %v4162 = vmax.f32 %v4161, %v3920
      %v4163 = vmax.f32 %v4162, %v3928
      %v4164 = vmax.f32 %v4163, %v3936
      %v4165 = vmax.f32 %v4164, %v3944
      %v4166 = vmax.f32 %v4165, %v3952
      %v4167 = vmax.f32 %v4166, %v3960
      %v4168 = vmax.f32 %v4167, %v3968
      %v4169 = vmax.f32 %v4168, %v3976
      %v4170 = vmax.f32 %v4169, %v3984
      %v4171 = vmax.f32 %v4170, %v3992
      %v4172 = vmax.f32 %v4171, %v4000
      %v4173 = vmax.f32 %v4172, %v4008
      %v4174 = vmax.f32 %v4173, %v4016
      %v4175 = vmax.f32 %v4174, %v4024
      %v4176 = vmax.f32 %v4175, %v4032
      %v4177 = vmax.f32 %v4176, %v4040
      %v4178 = vmax.f32 %v4177, %v4048
      %v4179 = vmax.f32 %v4178, %v4056
      %v4180 = vmax.f32 %v4179, %v4064
      %v4181 = vmax.f32 %v4180, %v4072
      %v4182 = vmax.f32 %v4181, %v4080
      %v4183 = vmax.f32 %v4182, %v4088
      %v4184 = vmax.f32 %v4183, %v4096
      %v4185 = vmax.f32 %v4184, %v4104
      %v4186 = vmax.f32 %v4185, %v4112
      %v4187 = vrot.slane %v4186, 4
      %v4188 = vmax.f32 %v4186, %v4187
      %v4189 = vrot.slane %v4188, 2
      %v4190 = vmax.f32 %v4188, %v4189
      %v4191 = vrot.slane %v4190, 1
      %v4192 = vmax.f32 %v4190, %v4191
      %v4193 = vmax.f32 %v3865, %v3873
      %v4194 = vmax.f32 %v4193, %v3881
      %v4195 = vmax.f32 %v4194, %v3889
      %v4196 = vmax.f32 %v4195, %v3897
      %v4197 = vmax.f32 %v4196, %v3905
      %v4198 = vmax.f32 %v4197, %v3913
      %v4199 = vmax.f32 %v4198, %v3921
      %v4200 = vmax.f32 %v4199, %v3929
      %v4201 = vmax.f32 %v4200, %v3937
      %v4202 = vmax.f32 %v4201, %v3945
      %v4203 = vmax.f32 %v4202, %v3953
      %v4204 = vmax.f32 %v4203, %v3961
      %v4205 = vmax.f32 %v4204, %v3969
      %v4206 = vmax.f32 %v4205, %v3977
      %v4207 = vmax.f32 %v4206, %v3985
      %v4208 = vmax.f32 %v4207, %v3993
      %v4209 = vmax.f32 %v4208, %v4001
      %v4210 = vmax.f32 %v4209, %v4009
      %v4211 = vmax.f32 %v4210, %v4017
      %v4212 = vmax.f32 %v4211, %v4025
      %v4213 = vmax.f32 %v4212, %v4033
      %v4214 = vmax.f32 %v4213, %v4041
      %v4215 = vmax.f32 %v4214, %v4049
      %v4216 = vmax.f32 %v4215, %v4057
      %v4217 = vmax.f32 %v4216, %v4065
      %v4218 = vmax.f32 %v4217, %v4073
      %v4219 = vmax.f32 %v4218, %v4081
      %v4220 = vmax.f32 %v4219, %v4089
      %v4221 = vmax.f32 %v4220, %v4097
      %v4222 = vmax.f32 %v4221, %v4105
      %v4223 = vmax.f32 %v4222, %v4113
      %v4224 = vrot.slane %v4223, 4
      %v4225 = vmax.f32 %v4223, %v4224
      %v4226 = vrot.slane %v4225, 2
      %v4227 = vmax.f32 %v4225, %v4226
      %v4228 = vrot.slane %v4227, 1
      %v4229 = vmax.f32 %v4227, %v4228
      %v4230 = vmax.f32 %v3866, %v3874
      %v4231 = vmax.f32 %v4230, %v3882
      %v4232 = vmax.f32 %v4231, %v3890
      %v4233 = vmax.f32 %v4232, %v3898
      %v4234 = vmax.f32 %v4233, %v3906
      %v4235 = vmax.f32 %v4234, %v3914
      %v4236 = vmax.f32 %v4235, %v3922
      %v4237 = vmax.f32 %v4236, %v3930
      %v4238 = vmax.f32 %v4237, %v3938
      %v4239 = vmax.f32 %v4238, %v3946
      %v4240 = vmax.f32 %v4239, %v3954
      %v4241 = vmax.f32 %v4240, %v3962
      %v4242 = vmax.f32 %v4241, %v3970
      %v4243 = vmax.f32 %v4242, %v3978
      %v4244 = vmax.f32 %v4243, %v3986
      %v4245 = vmax.f32 %v4244, %v3994
      %v4246 = vmax.f32 %v4245, %v4002
      %v4247 = vmax.f32 %v4246, %v4010
      %v4248 = vmax.f32 %v4247, %v4018
      %v4249 = vmax.f32 %v4248, %v4026
      %v4250 = vmax.f32 %v4249, %v4034
      %v4251 = vmax.f32 %v4250, %v4042
      %v4252 = vmax.f32 %v4251, %v4050
      %v4253 = vmax.f32 %v4252, %v4058
      %v4254 = vmax.f32 %v4253, %v4066
      %v4255 = vmax.f32 %v4254, %v4074
      %v4256 = vmax.f32 %v4255, %v4082
      %v4257 = vmax.f32 %v4256, %v4090
      %v4258 = vmax.f32 %v4257, %v4098
      %v4259 = vmax.f32 %v4258, %v4106
      %v4260 = vmax.f32 %v4259, %v4114
      %v4261 = vrot.slane %v4260, 4
      %v4262 = vmax.f32 %v4260, %v4261
      %v4263 = vrot.slane %v4262, 2
      %v4264 = vmax.f32 %v4262, %v4263
      %v4265 = vrot.slane %v4264, 1
      %v4266 = vmax.f32 %v4264, %v4265
      %v4267 = vmax.f32 %v3867, %v3875
      %v4268 = vmax.f32 %v4267, %v3883
      %v4269 = vmax.f32 %v4268, %v3891
      %v4270 = vmax.f32 %v4269, %v3899
      %v4271 = vmax.f32 %v4270, %v3907
      %v4272 = vmax.f32 %v4271, %v3915
      %v4273 = vmax.f32 %v4272, %v3923
      %v4274 = vmax.f32 %v4273, %v3931
      %v4275 = vmax.f32 %v4274, %v3939
      %v4276 = vmax.f32 %v4275, %v3947
      %v4277 = vmax.f32 %v4276, %v3955
      %v4278 = vmax.f32 %v4277, %v3963
      %v4279 = vmax.f32 %v4278, %v3971
      %v4280 = vmax.f32 %v4279, %v3979
      %v4281 = vmax.f32 %v4280, %v3987
      %v4282 = vmax.f32 %v4281, %v3995
      %v4283 = vmax.f32 %v4282, %v4003
      %v4284 = vmax.f32 %v4283, %v4011
      %v4285 = vmax.f32 %v4284, %v4019
      %v4286 = vmax.f32 %v4285, %v4027
      %v4287 = vmax.f32 %v4286, %v4035
      %v4288 = vmax.f32 %v4287, %v4043
      %v4289 = vmax.f32 %v4288, %v4051
      %v4290 = vmax.f32 %v4289, %v4059
      %v4291 = vmax.f32 %v4290, %v4067
      %v4292 = vmax.f32 %v4291, %v4075
      %v4293 = vmax.f32 %v4292, %v4083
      %v4294 = vmax.f32 %v4293, %v4091
      %v4295 = vmax.f32 %v4294, %v4099
      %v4296 = vmax.f32 %v4295, %v4107
      %v4297 = vmax.f32 %v4296, %v4115
      %v4298 = vrot.slane %v4297, 4
      %v4299 = vmax.f32 %v4297, %v4298
      %v4300 = vrot.slane %v4299, 2
      %v4301 = vmax.f32 %v4299, %v4300
      %v4302 = vrot.slane %v4301, 1
      %v4303 = vmax.f32 %v4301, %v4302
      %v4304 = vmax.f32 %v3868, %v3876
      %v4305 = vmax.f32 %v4304, %v3884
      %v4306 = vmax.f32 %v4305, %v3892
      %v4307 = vmax.f32 %v4306, %v3900
      %v4308 = vmax.f32 %v4307, %v3908
      %v4309 = vmax.f32 %v4308, %v3916
      %v4310 = vmax.f32 %v4309, %v3924
      %v4311 = vmax.f32 %v4310, %v3932
      %v4312 = vmax.f32 %v4311, %v3940
      %v4313 = vmax.f32 %v4312, %v3948
      %v4314 = vmax.f32 %v4313, %v3956
      %v4315 = vmax.f32 %v4314, %v3964
      %v4316 = vmax.f32 %v4315, %v3972
      %v4317 = vmax.f32 %v4316, %v3980
      %v4318 = vmax.f32 %v4317, %v3988
      %v4319 = vmax.f32 %v4318, %v3996
      %v4320 = vmax.f32 %v4319, %v4004
      %v4321 = vmax.f32 %v4320, %v4012
      %v4322 = vmax.f32 %v4321, %v4020
      %v4323 = vmax.f32 %v4322, %v4028
      %v4324 = vmax.f32 %v4323, %v4036
      %v4325 = vmax.f32 %v4324, %v4044
      %v4326 = vmax.f32 %v4325, %v4052
      %v4327 = vmax.f32 %v4326, %v4060
      %v4328 = vmax.f32 %v4327, %v4068
      %v4329 = vmax.f32 %v4328, %v4076
      %v4330 = vmax.f32 %v4329, %v4084
      %v4331 = vmax.f32 %v4330, %v4092
      %v4332 = vmax.f32 %v4331, %v4100
      %v4333 = vmax.f32 %v4332, %v4108
      %v4334 = vmax.f32 %v4333, %v4116
      %v4335 = vrot.slane %v4334, 4
      %v4336 = vmax.f32 %v4334, %v4335
      %v4337 = vrot.slane %v4336, 2
      %v4338 = vmax.f32 %v4336, %v4337
      %v4339 = vrot.slane %v4338, 1
      %v4340 = vmax.f32 %v4338, %v4339
      %v4341 = vmax.f32 %v3869, %v3877
      %v4342 = vmax.f32 %v4341, %v3885
      %v4343 = vmax.f32 %v4342, %v3893
      %v4344 = vmax.f32 %v4343, %v3901
      %v4345 = vmax.f32 %v4344, %v3909
      %v4346 = vmax.f32 %v4345, %v3917
      %v4347 = vmax.f32 %v4346, %v3925
      %v4348 = vmax.f32 %v4347, %v3933
      %v4349 = vmax.f32 %v4348, %v3941
      %v4350 = vmax.f32 %v4349, %v3949
      %v4351 = vmax.f32 %v4350, %v3957
      %v4352 = vmax.f32 %v4351, %v3965
      %v4353 = vmax.f32 %v4352, %v3973
      %v4354 = vmax.f32 %v4353, %v3981
      %v4355 = vmax.f32 %v4354, %v3989
      %v4356 = vmax.f32 %v4355, %v3997
      %v4357 = vmax.f32 %v4356, %v4005
      %v4358 = vmax.f32 %v4357, %v4013
      %v4359 = vmax.f32 %v4358, %v4021
      %v4360 = vmax.f32 %v4359, %v4029
      %v4361 = vmax.f32 %v4360, %v4037
      %v4362 = vmax.f32 %v4361, %v4045
      %v4363 = vmax.f32 %v4362, %v4053
      %v4364 = vmax.f32 %v4363, %v4061
      %v4365 = vmax.f32 %v4364, %v4069
      %v4366 = vmax.f32 %v4365, %v4077
      %v4367 = vmax.f32 %v4366, %v4085
      %v4368 = vmax.f32 %v4367, %v4093
      %v4369 = vmax.f32 %v4368, %v4101
      %v4370 = vmax.f32 %v4369, %v4109
      %v4371 = vmax.f32 %v4370, %v4117
      %v4372 = vrot.slane %v4371, 4
      %v4373 = vmax.f32 %v4371, %v4372
      %v4374 = vrot.slane %v4373, 2
      %v4375 = vmax.f32 %v4373, %v4374
      %v4376 = vrot.slane %v4375, 1
      %v4377 = vmax.f32 %v4375, %v4376
      %v4378 = vmax.f32 %v3870, %v3878
      %v4379 = vmax.f32 %v4378, %v3886
      %v4380 = vmax.f32 %v4379, %v3894
      %v4381 = vmax.f32 %v4380, %v3902
      %v4382 = vmax.f32 %v4381, %v3910
      %v4383 = vmax.f32 %v4382, %v3918
      %v4384 = vmax.f32 %v4383, %v3926
      %v4385 = vmax.f32 %v4384, %v3934
      %v4386 = vmax.f32 %v4385, %v3942
      %v4387 = vmax.f32 %v4386, %v3950
      %v4388 = vmax.f32 %v4387, %v3958
      %v4389 = vmax.f32 %v4388, %v3966
      %v4390 = vmax.f32 %v4389, %v3974
      %v4391 = vmax.f32 %v4390, %v3982
      %v4392 = vmax.f32 %v4391, %v3990
      %v4393 = vmax.f32 %v4392, %v3998
      %v4394 = vmax.f32 %v4393, %v4006
      %v4395 = vmax.f32 %v4394, %v4014
      %v4396 = vmax.f32 %v4395, %v4022
      %v4397 = vmax.f32 %v4396, %v4030
      %v4398 = vmax.f32 %v4397, %v4038
      %v4399 = vmax.f32 %v4398, %v4046
      %v4400 = vmax.f32 %v4399, %v4054
      %v4401 = vmax.f32 %v4400, %v4062
      %v4402 = vmax.f32 %v4401, %v4070
      %v4403 = vmax.f32 %v4402, %v4078
      %v4404 = vmax.f32 %v4403, %v4086
      %v4405 = vmax.f32 %v4404, %v4094
      %v4406 = vmax.f32 %v4405, %v4102
      %v4407 = vmax.f32 %v4406, %v4110
      %v4408 = vmax.f32 %v4407, %v4118
      %v4409 = vrot.slane %v4408, 4
      %v4410 = vmax.f32 %v4408, %v4409
      %v4411 = vrot.slane %v4410, 2
      %v4412 = vmax.f32 %v4410, %v4411
      %v4413 = vrot.slane %v4412, 1
      %v4414 = vmax.f32 %v4412, %v4413
      %v4415 = vmax.f32 %v4155, 0.0
      %v4416 = vmax.f32 %v4192, 0.0
      %v4417 = vmax.f32 %v4229, 0.0
      %v4418 = vmax.f32 %v4266, 0.0
      %v4419 = vmax.f32 %v4303, 0.0
      %v4420 = vmax.f32 %v4340, 0.0
      %v4421 = vmax.f32 %v4377, 0.0
      %v4422 = vmax.f32 %v4414, 0.0
      %4423 = vmatprep.subr.bf16.mxu0 %v3020
      %4424 = vmatpush1.bf16.msra.mxu0 %v3019
      %4425 = vmatprep.subr.bf16.mxu0 %v3012
      %4426 = vmatpush1.bf16.msra.mxu0 %v3011
      %4427 = vmatprep.subr.bf16.mxu0 %v3004
      %4428 = vmatpush1.bf16.msra.mxu0 %v3003
      %4429 = vmatprep.subr.bf16.mxu0 %v2996
      %4430 = vmatpush1.bf16.msra.mxu0 %v2995
      %4431 = vmatprep.subr.bf16.mxu0 %v2988
      %4432 = vmatpush1.bf16.msra.mxu0 %v2987
      %4433 = vmatprep.subr.bf16.mxu0 %v2980
      %4434 = vmatpush1.bf16.msra.mxu0 %v2979
      %4435 = vmatprep.subr.bf16.mxu0 %v2972
      %4436 = vmatpush1.bf16.msra.mxu0 %v2971
      %4437 = vmatprep.subr.bf16.mxu0 %v2964
      %4438 = vmatpush1.bf16.msra.mxu0 %v2963
      %4439 = vmatprep.subr.bf16.mxu0 0
      %4440 = vmatpush2.bf16.msra.mxu0 0
      %4441 = vmatprep.subr.bf16.mxu0 0
      %4442 = vmatpush2.bf16.msra.mxu0 0
      %4443 = vmatprep.subr.bf16.mxu0 0
      %4444 = vmatpush2.bf16.msra.mxu0 0
      %4445 = vmatprep.subr.bf16.mxu0 0
      %4446 = vmatpush2.bf16.msra.mxu0 0
      %4447 = vmatprep.subr.bf16.mxu0 0
      %4448 = vmatpush2.bf16.msra.mxu0 0
      %4449 = vmatprep.subr.bf16.mxu0 0
      %4450 = vmatpush2.bf16.msra.mxu0 0
      %4451 = vmatprep.subr.bf16.mxu0 0
      %4452 = vmatpush2.bf16.msra.mxu0 0
      %4453 = vmatprep.subr.bf16.mxu0 0
      %4454 = vmatpush2.bf16.msra.mxu0 0
      %4455 = vmatprep.mubr.bf16.mxu0 0
      %4456 = vmatmul.mubr.bf16.gmra.mxu0 %v2617
      %v4457 = vpop.f32.mrf.mxu0
      %v4458 = vadd.f32 %v2734, %v4457
      %v4459 = vpop.f32.mrf.mxu0
      %v4460 = vadd.f32 %v2738, %v4459
      %v4461 = vpop.f32.mrf.mxu0
      %v4462 = vadd.f32 %v2734, %v4461
      %v4463 = vpop.f32.mrf.mxu0
      %v4464 = vadd.f32 %v2738, %v4463
      %4465 = vmatprep.mubr.bf16.mxu0 0
      %4466 = vmatmul.mubr.bf16.gmra.mxu0 %v2618
      %v4467 = vpop.f32.mrf.mxu0
      %v4468 = vadd.f32 %v2734, %v4467
      %v4469 = vpop.f32.mrf.mxu0
      %v4470 = vadd.f32 %v2738, %v4469
      %v4471 = vpop.f32.mrf.mxu0
      %v4472 = vadd.f32 %v2734, %v4471
      %v4473 = vpop.f32.mrf.mxu0
      %v4474 = vadd.f32 %v2738, %v4473
      %4475 = vmatprep.mubr.bf16.mxu0 0
      %4476 = vmatmul.mubr.bf16.gmra.mxu0 %v2619
      %v4477 = vpop.f32.mrf.mxu0
      %v4478 = vadd.f32 %v2734, %v4477
      %v4479 = vpop.f32.mrf.mxu0
      %v4480 = vadd.f32 %v2738, %v4479
      %v4481 = vpop.f32.mrf.mxu0
      %v4482 = vadd.f32 %v2734, %v4481
      %v4483 = vpop.f32.mrf.mxu0
      %v4484 = vadd.f32 %v2738, %v4483
      %4485 = vmatprep.mubr.bf16.mxu0 0
      %4486 = vmatmul.mubr.bf16.gmra.mxu0 %v2620
      %v4487 = vpop.f32.mrf.mxu0
      %v4488 = vadd.f32 %v2734, %v4487
      %v4489 = vpop.f32.mrf.mxu0
      %v4490 = vadd.f32 %v2738, %v4489
      %v4491 = vpop.f32.mrf.mxu0
      %v4492 = vadd.f32 %v2734, %v4491
      %v4493 = vpop.f32.mrf.mxu0
      %v4494 = vadd.f32 %v2738, %v4493
      %4495 = vmatprep.mubr.bf16.mxu0 0
      %4496 = vmatmul.mubr.bf16.gmra.mxu0 %v2621
      %v4497 = vpop.f32.mrf.mxu0
      %v4498 = vadd.f32 %v2734, %v4497
      %v4499 = vpop.f32.mrf.mxu0
      %v4500 = vadd.f32 %v2738, %v4499
      %v4501 = vpop.f32.mrf.mxu0
      %v4502 = vadd.f32 %v2734, %v4501
      %v4503 = vpop.f32.mrf.mxu0
      %v4504 = vadd.f32 %v2738, %v4503
      %4505 = vmatprep.mubr.bf16.mxu0 0
      %4506 = vmatmul.mubr.bf16.gmra.mxu0 %v2622
      %v4507 = vpop.f32.mrf.mxu0
      %v4508 = vadd.f32 %v2734, %v4507
      %v4509 = vpop.f32.mrf.mxu0
      %v4510 = vadd.f32 %v2738, %v4509
      %v4511 = vpop.f32.mrf.mxu0
      %v4512 = vadd.f32 %v2734, %v4511
      %v4513 = vpop.f32.mrf.mxu0
      %v4514 = vadd.f32 %v2738, %v4513
      %4515 = vmatprep.mubr.bf16.mxu0 0
      %4516 = vmatmul.mubr.bf16.gmra.mxu0 %v2623
      %v4517 = vpop.f32.mrf.mxu0
      %v4518 = vadd.f32 %v2734, %v4517
      %v4519 = vpop.f32.mrf.mxu0
      %v4520 = vadd.f32 %v2738, %v4519
      %v4521 = vpop.f32.mrf.mxu0
      %v4522 = vadd.f32 %v2734, %v4521
      %v4523 = vpop.f32.mrf.mxu0
      %v4524 = vadd.f32 %v2738, %v4523
      %4525 = vmatprep.mubr.bf16.mxu0 0
      %4526 = vmatmul.mubr.bf16.gmra.mxu0 %v2624
      %v4527 = vpop.f32.mrf.mxu0
      %v4528 = vadd.f32 %v2734, %v4527
      %v4529 = vpop.f32.mrf.mxu0
      %v4530 = vadd.f32 %v2738, %v4529
      %v4531 = vpop.f32.mrf.mxu0
      %v4532 = vadd.f32 %v2734, %v4531
      %v4533 = vpop.f32.mrf.mxu0
      %v4534 = vadd.f32 %v2738, %v4533
      %4535 = vmatprep.mubr.bf16.mxu0 0
      %4536 = vmatmul.mubr.bf16.gmra.mxu0 %v2625
      %v4537 = vpop.f32.mrf.mxu0
      %v4538 = vadd.f32 %v2734, %v4537
      %v4539 = vpop.f32.mrf.mxu0
      %v4540 = vadd.f32 %v2738, %v4539
      %v4541 = vpop.f32.mrf.mxu0
      %v4542 = vadd.f32 %v2734, %v4541
      %v4543 = vpop.f32.mrf.mxu0
      %v4544 = vadd.f32 %v2738, %v4543
      %4545 = vmatprep.mubr.bf16.mxu0 0
      %4546 = vmatmul.mubr.bf16.gmra.mxu0 %v2626
      %v4547 = vpop.f32.mrf.mxu0
      %v4548 = vadd.f32 %v2734, %v4547
      %v4549 = vpop.f32.mrf.mxu0
      %v4550 = vadd.f32 %v2738, %v4549
      %v4551 = vpop.f32.mrf.mxu0
      %v4552 = vadd.f32 %v2734, %v4551
      %v4553 = vpop.f32.mrf.mxu0
      %v4554 = vadd.f32 %v2738, %v4553
      %4555 = vmatprep.mubr.bf16.mxu0 0
      %4556 = vmatmul.mubr.bf16.gmra.mxu0 %v2627
      %v4557 = vpop.f32.mrf.mxu0
      %v4558 = vadd.f32 %v2734, %v4557
      %v4559 = vpop.f32.mrf.mxu0
      %v4560 = vadd.f32 %v2738, %v4559
      %v4561 = vpop.f32.mrf.mxu0
      %v4562 = vadd.f32 %v2734, %v4561
      %v4563 = vpop.f32.mrf.mxu0
      %v4564 = vadd.f32 %v2738, %v4563
      %4565 = vmatprep.mubr.bf16.mxu0 0
      %4566 = vmatmul.mubr.bf16.gmra.mxu0 %v2628
      %v4567 = vpop.f32.mrf.mxu0
      %v4568 = vadd.f32 %v2734, %v4567
      %v4569 = vpop.f32.mrf.mxu0
      %v4570 = vadd.f32 %v2738, %v4569
      %v4571 = vpop.f32.mrf.mxu0
      %v4572 = vadd.f32 %v2734, %v4571
      %v4573 = vpop.f32.mrf.mxu0
      %v4574 = vadd.f32 %v2738, %v4573
      %4575 = vmatprep.mubr.bf16.mxu0 0
      %4576 = vmatmul.mubr.bf16.gmra.mxu0 %v2629
      %v4577 = vpop.f32.mrf.mxu0
      %v4578 = vadd.f32 %v2734, %v4577
      %v4579 = vpop.f32.mrf.mxu0
      %v4580 = vadd.f32 %v2738, %v4579
      %v4581 = vpop.f32.mrf.mxu0
      %v4582 = vadd.f32 %v2734, %v4581
      %v4583 = vpop.f32.mrf.mxu0
      %v4584 = vadd.f32 %v2738, %v4583
      %4585 = vmatprep.mubr.bf16.mxu0 0
      %4586 = vmatmul.mubr.bf16.gmra.mxu0 %v2630
      %v4587 = vpop.f32.mrf.mxu0
      %v4588 = vadd.f32 %v2734, %v4587
      %v4589 = vpop.f32.mrf.mxu0
      %v4590 = vadd.f32 %v2738, %v4589
      %v4591 = vpop.f32.mrf.mxu0
      %v4592 = vadd.f32 %v2734, %v4591
      %v4593 = vpop.f32.mrf.mxu0
      %v4594 = vadd.f32 %v2738, %v4593
      %4595 = vmatprep.mubr.bf16.mxu0 0
      %4596 = vmatmul.mubr.bf16.gmra.mxu0 %v2631
      %v4597 = vpop.f32.mrf.mxu0
      %v4598 = vadd.f32 %v2734, %v4597
      %v4599 = vpop.f32.mrf.mxu0
      %v4600 = vadd.f32 %v2738, %v4599
      %v4601 = vpop.f32.mrf.mxu0
      %v4602 = vadd.f32 %v2734, %v4601
      %v4603 = vpop.f32.mrf.mxu0
      %v4604 = vadd.f32 %v2738, %v4603
      %4605 = vmatprep.mubr.bf16.mxu0 0
      %4606 = vmatmul.mubr.bf16.gmra.mxu0 %v2632
      %v4607 = vpop.f32.mrf.mxu0
      %v4608 = vadd.f32 %v2734, %v4607
      %v4609 = vpop.f32.mrf.mxu0
      %v4610 = vadd.f32 %v2738, %v4609
      %v4611 = vpop.f32.mrf.mxu0
      %v4612 = vadd.f32 %v2734, %v4611
      %v4613 = vpop.f32.mrf.mxu0
      %v4614 = vadd.f32 %v2738, %v4613
      %4615 = vdwg.mxu0
      %4616 = vmatprep.subr.bf16.mxu0 %v3022
      %4617 = vmatpush1.bf16.msra.mxu0 %v3021
      %4618 = vmatprep.subr.bf16.mxu0 %v3014
      %4619 = vmatpush1.bf16.msra.mxu0 %v3013
      %4620 = vmatprep.subr.bf16.mxu0 %v3006
      %4621 = vmatpush1.bf16.msra.mxu0 %v3005
      %4622 = vmatprep.subr.bf16.mxu0 %v2998
      %4623 = vmatpush1.bf16.msra.mxu0 %v2997
      %4624 = vmatprep.subr.bf16.mxu0 %v2990
      %4625 = vmatpush1.bf16.msra.mxu0 %v2989
      %4626 = vmatprep.subr.bf16.mxu0 %v2982
      %4627 = vmatpush1.bf16.msra.mxu0 %v2981
      %4628 = vmatprep.subr.bf16.mxu0 %v2974
      %4629 = vmatpush1.bf16.msra.mxu0 %v2973
      %4630 = vmatprep.subr.bf16.mxu0 %v2966
      %4631 = vmatpush1.bf16.msra.mxu0 %v2965
      %4632 = vmatprep.subr.bf16.mxu0 0
      %4633 = vmatpush2.bf16.msra.mxu0 0
      %4634 = vmatprep.subr.bf16.mxu0 0
      %4635 = vmatpush2.bf16.msra.mxu0 0
      %4636 = vmatprep.subr.bf16.mxu0 0
      %4637 = vmatpush2.bf16.msra.mxu0 0
      %4638 = vmatprep.subr.bf16.mxu0 0
      %4639 = vmatpush2.bf16.msra.mxu0 0
      %4640 = vmatprep.subr.bf16.mxu0 0
      %4641 = vmatpush2.bf16.msra.mxu0 0
      %4642 = vmatprep.subr.bf16.mxu0 0
      %4643 = vmatpush2.bf16.msra.mxu0 0
      %4644 = vmatprep.subr.bf16.mxu0 0
      %4645 = vmatpush2.bf16.msra.mxu0 0
      %4646 = vmatprep.subr.bf16.mxu0 0
      %4647 = vmatpush2.bf16.msra.mxu0 0
      %4648 = vmatprep.mubr.bf16.mxu0 0
      %4649 = vmatmul.mubr.bf16.gmra.mxu0 %v2617
      %v4650 = vpop.f32.mrf.mxu0
      %v4651 = vadd.f32 %v2742, %v4650
      %v4652 = vpop.f32.mrf.mxu0
      %v4653 = vadd.f32 %v2746, %v4652
      %v4654 = vpop.f32.mrf.mxu0
      %v4655 = vadd.f32 %v2742, %v4654
      %v4656 = vpop.f32.mrf.mxu0
      %v4657 = vadd.f32 %v2746, %v4656
      %4658 = vmatprep.mubr.bf16.mxu0 0
      %4659 = vmatmul.mubr.bf16.gmra.mxu0 %v2618
      %v4660 = vpop.f32.mrf.mxu0
      %v4661 = vadd.f32 %v2742, %v4660
      %v4662 = vpop.f32.mrf.mxu0
      %v4663 = vadd.f32 %v2746, %v4662
      %v4664 = vpop.f32.mrf.mxu0
      %v4665 = vadd.f32 %v2742, %v4664
      %v4666 = vpop.f32.mrf.mxu0
      %v4667 = vadd.f32 %v2746, %v4666
      %4668 = vmatprep.mubr.bf16.mxu0 0
      %4669 = vmatmul.mubr.bf16.gmra.mxu0 %v2619
      %v4670 = vpop.f32.mrf.mxu0
      %v4671 = vadd.f32 %v2742, %v4670
      %v4672 = vpop.f32.mrf.mxu0
      %v4673 = vadd.f32 %v2746, %v4672
      %v4674 = vpop.f32.mrf.mxu0
      %v4675 = vadd.f32 %v2742, %v4674
      %v4676 = vpop.f32.mrf.mxu0
      %v4677 = vadd.f32 %v2746, %v4676
      %4678 = vmatprep.mubr.bf16.mxu0 0
      %4679 = vmatmul.mubr.bf16.gmra.mxu0 %v2620
      %v4680 = vpop.f32.mrf.mxu0
      %v4681 = vadd.f32 %v2742, %v4680
      %v4682 = vpop.f32.mrf.mxu0
      %v4683 = vadd.f32 %v2746, %v4682
      %v4684 = vpop.f32.mrf.mxu0
      %v4685 = vadd.f32 %v2742, %v4684
      %v4686 = vpop.f32.mrf.mxu0
      %v4687 = vadd.f32 %v2746, %v4686
      %4688 = vmatprep.mubr.bf16.mxu0 0
      %4689 = vmatmul.mubr.bf16.gmra.mxu0 %v2621
      %v4690 = vpop.f32.mrf.mxu0
      %v4691 = vadd.f32 %v2742, %v4690
      %v4692 = vpop.f32.mrf.mxu0
      %v4693 = vadd.f32 %v2746, %v4692
      %v4694 = vpop.f32.mrf.mxu0
      %v4695 = vadd.f32 %v2742, %v4694
      %v4696 = vpop.f32.mrf.mxu0
      %v4697 = vadd.f32 %v2746, %v4696
      %4698 = vmatprep.mubr.bf16.mxu0 0
      %4699 = vmatmul.mubr.bf16.gmra.mxu0 %v2622
      %v4700 = vpop.f32.mrf.mxu0
      %v4701 = vadd.f32 %v2742, %v4700
      %v4702 = vpop.f32.mrf.mxu0
      %v4703 = vadd.f32 %v2746, %v4702
      %v4704 = vpop.f32.mrf.mxu0
      %v4705 = vadd.f32 %v2742, %v4704
      %v4706 = vpop.f32.mrf.mxu0
      %v4707 = vadd.f32 %v2746, %v4706
      %4708 = vmatprep.mubr.bf16.mxu0 0
      %4709 = vmatmul.mubr.bf16.gmra.mxu0 %v2623
      %v4710 = vpop.f32.mrf.mxu0
      %v4711 = vadd.f32 %v2742, %v4710
      %v4712 = vpop.f32.mrf.mxu0
      %v4713 = vadd.f32 %v2746, %v4712
      %v4714 = vpop.f32.mrf.mxu0
      %v4715 = vadd.f32 %v2742, %v4714
      %v4716 = vpop.f32.mrf.mxu0
      %v4717 = vadd.f32 %v2746, %v4716
      %4718 = vmatprep.mubr.bf16.mxu0 0
      %4719 = vmatmul.mubr.bf16.gmra.mxu0 %v2624
      %v4720 = vpop.f32.mrf.mxu0
      %v4721 = vadd.f32 %v2742, %v4720
      %v4722 = vpop.f32.mrf.mxu0
      %v4723 = vadd.f32 %v2746, %v4722
      %v4724 = vpop.f32.mrf.mxu0
      %v4725 = vadd.f32 %v2742, %v4724
      %v4726 = vpop.f32.mrf.mxu0
      %v4727 = vadd.f32 %v2746, %v4726
      %4728 = vmatprep.mubr.bf16.mxu0 0
      %4729 = vmatmul.mubr.bf16.gmra.mxu0 %v2625
      %v4730 = vpop.f32.mrf.mxu0
      %v4731 = vadd.f32 %v2742, %v4730
      %v4732 = vpop.f32.mrf.mxu0
      %v4733 = vadd.f32 %v2746, %v4732
      %v4734 = vpop.f32.mrf.mxu0
      %v4735 = vadd.f32 %v2742, %v4734
      %v4736 = vpop.f32.mrf.mxu0
      %v4737 = vadd.f32 %v2746, %v4736
      %4738 = vmatprep.mubr.bf16.mxu0 0
      %4739 = vmatmul.mubr.bf16.gmra.mxu0 %v2626
      %v4740 = vpop.f32.mrf.mxu0
      %v4741 = vadd.f32 %v2742, %v4740
      %v4742 = vpop.f32.mrf.mxu0
      %v4743 = vadd.f32 %v2746, %v4742
      %v4744 = vpop.f32.mrf.mxu0
      %v4745 = vadd.f32 %v2742, %v4744
      %v4746 = vpop.f32.mrf.mxu0
      %v4747 = vadd.f32 %v2746, %v4746
      %4748 = vmatprep.mubr.bf16.mxu0 0
      %4749 = vmatmul.mubr.bf16.gmra.mxu0 %v2627
      %v4750 = vpop.f32.mrf.mxu0
      %v4751 = vadd.f32 %v2742, %v4750
      %v4752 = vpop.f32.mrf.mxu0
      %v4753 = vadd.f32 %v2746, %v4752
      %v4754 = vpop.f32.mrf.mxu0
      %v4755 = vadd.f32 %v2742, %v4754
      %v4756 = vpop.f32.mrf.mxu0
      %v4757 = vadd.f32 %v2746, %v4756
      %4758 = vmatprep.mubr.bf16.mxu0 0
      %4759 = vmatmul.mubr.bf16.gmra.mxu0 %v2628
      %v4760 = vpop.f32.mrf.mxu0
      %v4761 = vadd.f32 %v2742, %v4760
      %v4762 = vpop.f32.mrf.mxu0
      %v4763 = vadd.f32 %v2746, %v4762
      %v4764 = vpop.f32.mrf.mxu0
      %v4765 = vadd.f32 %v2742, %v4764
      %v4766 = vpop.f32.mrf.mxu0
      %v4767 = vadd.f32 %v2746, %v4766
      %4768 = vmatprep.mubr.bf16.mxu0 0
      %4769 = vmatmul.mubr.bf16.gmra.mxu0 %v2629
      %v4770 = vpop.f32.mrf.mxu0
      %v4771 = vadd.f32 %v2742, %v4770
      %v4772 = vpop.f32.mrf.mxu0
      %v4773 = vadd.f32 %v2746, %v4772
      %v4774 = vpop.f32.mrf.mxu0
      %v4775 = vadd.f32 %v2742, %v4774
      %v4776 = vpop.f32.mrf.mxu0
      %v4777 = vadd.f32 %v2746, %v4776
      %4778 = vmatprep.mubr.bf16.mxu0 0
      %4779 = vmatmul.mubr.bf16.gmra.mxu0 %v2630
      %v4780 = vpop.f32.mrf.mxu0
      %v4781 = vadd.f32 %v2742, %v4780
      %v4782 = vpop.f32.mrf.mxu0
      %v4783 = vadd.f32 %v2746, %v4782
      %v4784 = vpop.f32.mrf.mxu0
      %v4785 = vadd.f32 %v2742, %v4784
      %v4786 = vpop.f32.mrf.mxu0
      %v4787 = vadd.f32 %v2746, %v4786
      %4788 = vmatprep.mubr.bf16.mxu0 0
      %4789 = vmatmul.mubr.bf16.gmra.mxu0 %v2631
      %v4790 = vpop.f32.mrf.mxu0
      %v4791 = vadd.f32 %v2742, %v4790
      %v4792 = vpop.f32.mrf.mxu0
      %v4793 = vadd.f32 %v2746, %v4792
      %v4794 = vpop.f32.mrf.mxu0
      %v4795 = vadd.f32 %v2742, %v4794
      %v4796 = vpop.f32.mrf.mxu0
      %v4797 = vadd.f32 %v2746, %v4796
      %4798 = vmatprep.mubr.bf16.mxu0 0
      %4799 = vmatmul.mubr.bf16.gmra.mxu0 %v2632
      %v4800 = vpop.f32.mrf.mxu0
      %v4801 = vadd.f32 %v2742, %v4800
      %v4802 = vpop.f32.mrf.mxu0
      %v4803 = vadd.f32 %v2746, %v4802
      %v4804 = vpop.f32.mrf.mxu0
      %v4805 = vadd.f32 %v2742, %v4804
      %v4806 = vpop.f32.mrf.mxu0
      %v4807 = vadd.f32 %v2746, %v4806
      %4808 = vdwg.mxu0
      %4809 = vmatprep.subr.bf16.mxu0 %v3024
      %4810 = vmatpush1.bf16.msra.mxu0 %v3023
      %4811 = vmatprep.subr.bf16.mxu0 %v3016
      %4812 = vmatpush1.bf16.msra.mxu0 %v3015
      %4813 = vmatprep.subr.bf16.mxu0 %v3008
      %4814 = vmatpush1.bf16.msra.mxu0 %v3007
      %4815 = vmatprep.subr.bf16.mxu0 %v3000
      %4816 = vmatpush1.bf16.msra.mxu0 %v2999
      %4817 = vmatprep.subr.bf16.mxu0 %v2992
      %4818 = vmatpush1.bf16.msra.mxu0 %v2991
      %4819 = vmatprep.subr.bf16.mxu0 %v2984
      %4820 = vmatpush1.bf16.msra.mxu0 %v2983
      %4821 = vmatprep.subr.bf16.mxu0 %v2976
      %4822 = vmatpush1.bf16.msra.mxu0 %v2975
      %4823 = vmatprep.subr.bf16.mxu0 %v2968
      %4824 = vmatpush1.bf16.msra.mxu0 %v2967
      %4825 = vmatprep.subr.bf16.mxu0 0
      %4826 = vmatpush2.bf16.msra.mxu0 0
      %4827 = vmatprep.subr.bf16.mxu0 0
      %4828 = vmatpush2.bf16.msra.mxu0 0
      %4829 = vmatprep.subr.bf16.mxu0 0
      %4830 = vmatpush2.bf16.msra.mxu0 0
      %4831 = vmatprep.subr.bf16.mxu0 0
      %4832 = vmatpush2.bf16.msra.mxu0 0
      %4833 = vmatprep.subr.bf16.mxu0 0
      %4834 = vmatpush2.bf16.msra.mxu0 0
      %4835 = vmatprep.subr.bf16.mxu0 0
      %4836 = vmatpush2.bf16.msra.mxu0 0
      %4837 = vmatprep.subr.bf16.mxu0 0
      %4838 = vmatpush2.bf16.msra.mxu0 0
      %4839 = vmatprep.subr.bf16.mxu0 0
      %4840 = vmatpush2.bf16.msra.mxu0 0
      %4841 = vmatprep.mubr.bf16.mxu0 0
      %4842 = vmatmul.mubr.bf16.gmra.mxu0 %v2617
      %v4843 = vpop.f32.mrf.mxu0
      %v4844 = vadd.f32 %v2750, %v4843
      %v4845 = vpop.f32.mrf.mxu0
      %v4846 = vadd.f32 %v2754, %v4845
      %v4847 = vpop.f32.mrf.mxu0
      %v4848 = vadd.f32 %v2750, %v4847
      %v4849 = vpop.f32.mrf.mxu0
      %v4850 = vadd.f32 %v2754, %v4849
      %4851 = vmatprep.mubr.bf16.mxu0 0
      %4852 = vmatmul.mubr.bf16.gmra.mxu0 %v2618
      %v4853 = vpop.f32.mrf.mxu0
      %v4854 = vadd.f32 %v2750, %v4853
      %v4855 = vpop.f32.mrf.mxu0
      %v4856 = vadd.f32 %v2754, %v4855
      %v4857 = vpop.f32.mrf.mxu0
      %v4858 = vadd.f32 %v2750, %v4857
      %v4859 = vpop.f32.mrf.mxu0
      %v4860 = vadd.f32 %v2754, %v4859
      %4861 = vmatprep.mubr.bf16.mxu0 0
      %4862 = vmatmul.mubr.bf16.gmra.mxu0 %v2619
      %v4863 = vpop.f32.mrf.mxu0
      %v4864 = vadd.f32 %v2750, %v4863
      %v4865 = vpop.f32.mrf.mxu0
      %v4866 = vadd.f32 %v2754, %v4865
      %v4867 = vpop.f32.mrf.mxu0
      %v4868 = vadd.f32 %v2750, %v4867
      %v4869 = vpop.f32.mrf.mxu0
      %v4870 = vadd.f32 %v2754, %v4869
      %4871 = vmatprep.mubr.bf16.mxu0 0
      %4872 = vmatmul.mubr.bf16.gmra.mxu0 %v2620
      %v4873 = vpop.f32.mrf.mxu0
      %v4874 = vadd.f32 %v2750, %v4873
      %v4875 = vpop.f32.mrf.mxu0
      %v4876 = vadd.f32 %v2754, %v4875
      %v4877 = vpop.f32.mrf.mxu0
      %v4878 = vadd.f32 %v2750, %v4877
      %v4879 = vpop.f32.mrf.mxu0
      %v4880 = vadd.f32 %v2754, %v4879
      %4881 = vmatprep.mubr.bf16.mxu0 0
      %4882 = vmatmul.mubr.bf16.gmra.mxu0 %v2621
      %v4883 = vpop.f32.mrf.mxu0
      %v4884 = vadd.f32 %v2750, %v4883
      %v4885 = vpop.f32.mrf.mxu0
      %v4886 = vadd.f32 %v2754, %v4885
      %v4887 = vpop.f32.mrf.mxu0
      %v4888 = vadd.f32 %v2750, %v4887
      %v4889 = vpop.f32.mrf.mxu0
      %v4890 = vadd.f32 %v2754, %v4889
      %4891 = vmatprep.mubr.bf16.mxu0 0
      %4892 = vmatmul.mubr.bf16.gmra.mxu0 %v2622
      %v4893 = vpop.f32.mrf.mxu0
      %v4894 = vadd.f32 %v2750, %v4893
      %v4895 = vpop.f32.mrf.mxu0
      %v4896 = vadd.f32 %v2754, %v4895
      %v4897 = vpop.f32.mrf.mxu0
      %v4898 = vadd.f32 %v2750, %v4897
      %v4899 = vpop.f32.mrf.mxu0
      %v4900 = vadd.f32 %v2754, %v4899
      %4901 = vmatprep.mubr.bf16.mxu0 0
      %4902 = vmatmul.mubr.bf16.gmra.mxu0 %v2623
      %v4903 = vpop.f32.mrf.mxu0
      %v4904 = vadd.f32 %v2750, %v4903
      %v4905 = vpop.f32.mrf.mxu0
      %v4906 = vadd.f32 %v2754, %v4905
      %v4907 = vpop.f32.mrf.mxu0
      %v4908 = vadd.f32 %v2750, %v4907
      %v4909 = vpop.f32.mrf.mxu0
      %v4910 = vadd.f32 %v2754, %v4909
      %4911 = vmatprep.mubr.bf16.mxu0 0
      %4912 = vmatmul.mubr.bf16.gmra.mxu0 %v2624
      %v4913 = vpop.f32.mrf.mxu0
      %v4914 = vadd.f32 %v2750, %v4913
      %v4915 = vpop.f32.mrf.mxu0
      %v4916 = vadd.f32 %v2754, %v4915
      %v4917 = vpop.f32.mrf.mxu0
      %v4918 = vadd.f32 %v2750, %v4917
      %v4919 = vpop.f32.mrf.mxu0
      %v4920 = vadd.f32 %v2754, %v4919
      %4921 = vmatprep.mubr.bf16.mxu0 0
      %4922 = vmatmul.mubr.bf16.gmra.mxu0 %v2625
      %v4923 = vpop.f32.mrf.mxu0
      %v4924 = vadd.f32 %v2750, %v4923
      %v4925 = vpop.f32.mrf.mxu0
      %v4926 = vadd.f32 %v2754, %v4925
      %v4927 = vpop.f32.mrf.mxu0
      %v4928 = vadd.f32 %v2750, %v4927
      %v4929 = vpop.f32.mrf.mxu0
      %v4930 = vadd.f32 %v2754, %v4929
      %4931 = vmatprep.mubr.bf16.mxu0 0
      %4932 = vmatmul.mubr.bf16.gmra.mxu0 %v2626
      %v4933 = vpop.f32.mrf.mxu0
      %v4934 = vadd.f32 %v2750, %v4933
      %v4935 = vpop.f32.mrf.mxu0
      %v4936 = vadd.f32 %v2754, %v4935
      %v4937 = vpop.f32.mrf.mxu0
      %v4938 = vadd.f32 %v2750, %v4937
      %v4939 = vpop.f32.mrf.mxu0
      %v4940 = vadd.f32 %v2754, %v4939
      %4941 = vmatprep.mubr.bf16.mxu0 0
      %4942 = vmatmul.mubr.bf16.gmra.mxu0 %v2627
      %v4943 = vpop.f32.mrf.mxu0
      %v4944 = vadd.f32 %v2750, %v4943
      %v4945 = vpop.f32.mrf.mxu0
      %v4946 = vadd.f32 %v2754, %v4945
      %v4947 = vpop.f32.mrf.mxu0
      %v4948 = vadd.f32 %v2750, %v4947
      %v4949 = vpop.f32.mrf.mxu0
      %v4950 = vadd.f32 %v2754, %v4949
      %4951 = vmatprep.mubr.bf16.mxu0 0
      %4952 = vmatmul.mubr.bf16.gmra.mxu0 %v2628
      %v4953 = vpop.f32.mrf.mxu0
      %v4954 = vadd.f32 %v2750, %v4953
      %v4955 = vpop.f32.mrf.mxu0
      %v4956 = vadd.f32 %v2754, %v4955
      %v4957 = vpop.f32.mrf.mxu0
      %v4958 = vadd.f32 %v2750, %v4957
      %v4959 = vpop.f32.mrf.mxu0
      %v4960 = vadd.f32 %v2754, %v4959
      %4961 = vmatprep.mubr.bf16.mxu0 0
      %4962 = vmatmul.mubr.bf16.gmra.mxu0 %v2629
      %v4963 = vpop.f32.mrf.mxu0
      %v4964 = vadd.f32 %v2750, %v4963
      %v4965 = vpop.f32.mrf.mxu0
      %v4966 = vadd.f32 %v2754, %v4965
      %v4967 = vpop.f32.mrf.mxu0
      %v4968 = vadd.f32 %v2750, %v4967
      %v4969 = vpop.f32.mrf.mxu0
      %v4970 = vadd.f32 %v2754, %v4969
      %4971 = vmatprep.mubr.bf16.mxu0 0
      %4972 = vmatmul.mubr.bf16.gmra.mxu0 %v2630
      %v4973 = vpop.f32.mrf.mxu0
      %v4974 = vadd.f32 %v2750, %v4973
      %v4975 = vpop.f32.mrf.mxu0
      %v4976 = vadd.f32 %v2754, %v4975
      %v4977 = vpop.f32.mrf.mxu0
      %v4978 = vadd.f32 %v2750, %v4977
      %v4979 = vpop.f32.mrf.mxu0
      %v4980 = vadd.f32 %v2754, %v4979
      %4981 = vmatprep.mubr.bf16.mxu0 0
      %4982 = vmatmul.mubr.bf16.gmra.mxu0 %v2631
      %v4983 = vpop.f32.mrf.mxu0
      %v4984 = vadd.f32 %v2750, %v4983
      %v4985 = vpop.f32.mrf.mxu0
      %v4986 = vadd.f32 %v2754, %v4985
      %v4987 = vpop.f32.mrf.mxu0
      %v4988 = vadd.f32 %v2750, %v4987
      %v4989 = vpop.f32.mrf.mxu0
      %v4990 = vadd.f32 %v2754, %v4989
      %4991 = vmatprep.mubr.bf16.mxu0 0
      %4992 = vmatmul.mubr.bf16.gmra.mxu0 %v2632
      %v4993 = vpop.f32.mrf.mxu0
      %v4994 = vadd.f32 %v2750, %v4993
      %v4995 = vpop.f32.mrf.mxu0
      %v4996 = vadd.f32 %v2754, %v4995
      %v4997 = vpop.f32.mrf.mxu0
      %v4998 = vadd.f32 %v2750, %v4997
      %v4999 = vpop.f32.mrf.mxu0
      %v5000 = vadd.f32 %v2754, %v4999
      %5001 = vdwg.mxu0
      %5002 = vmatprep.subr.bf16.mxu0 %v3026
      %5003 = vmatpush1.bf16.msra.mxu0 %v3025
      %5004 = vmatprep.subr.bf16.mxu0 %v3018
      %5005 = vmatpush1.bf16.msra.mxu0 %v3017
      %5006 = vmatprep.subr.bf16.mxu0 %v3010
      %5007 = vmatpush1.bf16.msra.mxu0 %v3009
      %5008 = vmatprep.subr.bf16.mxu0 %v3002
      %5009 = vmatpush1.bf16.msra.mxu0 %v3001
      %5010 = vmatprep.subr.bf16.mxu0 %v2994
      %5011 = vmatpush1.bf16.msra.mxu0 %v2993
      %5012 = vmatprep.subr.bf16.mxu0 %v2986
      %5013 = vmatpush1.bf16.msra.mxu0 %v2985
      %5014 = vmatprep.subr.bf16.mxu0 %v2978
      %5015 = vmatpush1.bf16.msra.mxu0 %v2977
      %5016 = vmatprep.subr.bf16.mxu0 %v2970
      %5017 = vmatpush1.bf16.msra.mxu0 %v2969
      %5018 = vmatprep.subr.bf16.mxu0 0
      %5019 = vmatpush2.bf16.msra.mxu0 0
      %5020 = vmatprep.subr.bf16.mxu0 0
      %5021 = vmatpush2.bf16.msra.mxu0 0
      %5022 = vmatprep.subr.bf16.mxu0 0
      %5023 = vmatpush2.bf16.msra.mxu0 0
      %5024 = vmatprep.subr.bf16.mxu0 0
      %5025 = vmatpush2.bf16.msra.mxu0 0
      %5026 = vmatprep.subr.bf16.mxu0 0
      %5027 = vmatpush2.bf16.msra.mxu0 0
      %5028 = vmatprep.subr.bf16.mxu0 0
      %5029 = vmatpush2.bf16.msra.mxu0 0
      %5030 = vmatprep.subr.bf16.mxu0 0
      %5031 = vmatpush2.bf16.msra.mxu0 0
      %5032 = vmatprep.subr.bf16.mxu0 0
      %5033 = vmatpush2.bf16.msra.mxu0 0
      %5034 = vmatprep.mubr.bf16.mxu0 0
      %5035 = vmatmul.mubr.bf16.gmra.mxu0 %v2617
      %v5036 = vpop.f32.mrf.mxu0
      %v5037 = vadd.f32 %v2758, %v5036
      %v5038 = vpop.f32.mrf.mxu0
      %v5039 = vadd.f32 %v2762, %v5038
      %v5040 = vpop.f32.mrf.mxu0
      %v5041 = vadd.f32 %v2758, %v5040
      %v5042 = vpop.f32.mrf.mxu0
      %v5043 = vadd.f32 %v2762, %v5042
      %5044 = vmatprep.mubr.bf16.mxu0 0
      %5045 = vmatmul.mubr.bf16.gmra.mxu0 %v2618
      %v5046 = vpop.f32.mrf.mxu0
      %v5047 = vadd.f32 %v2758, %v5046
      %v5048 = vpop.f32.mrf.mxu0
      %v5049 = vadd.f32 %v2762, %v5048
      %v5050 = vpop.f32.mrf.mxu0
      %v5051 = vadd.f32 %v2758, %v5050
      %v5052 = vpop.f32.mrf.mxu0
      %v5053 = vadd.f32 %v2762, %v5052
      %5054 = vmatprep.mubr.bf16.mxu0 0
      %5055 = vmatmul.mubr.bf16.gmra.mxu0 %v2619
      %v5056 = vpop.f32.mrf.mxu0
      %v5057 = vadd.f32 %v2758, %v5056
      %v5058 = vpop.f32.mrf.mxu0
      %v5059 = vadd.f32 %v2762, %v5058
      %v5060 = vpop.f32.mrf.mxu0
      %v5061 = vadd.f32 %v2758, %v5060
      %v5062 = vpop.f32.mrf.mxu0
      %v5063 = vadd.f32 %v2762, %v5062
      %5064 = vmatprep.mubr.bf16.mxu0 0
      %5065 = vmatmul.mubr.bf16.gmra.mxu0 %v2620
      %v5066 = vpop.f32.mrf.mxu0
      %v5067 = vadd.f32 %v2758, %v5066
      %v5068 = vpop.f32.mrf.mxu0
      %v5069 = vadd.f32 %v2762, %v5068
      %v5070 = vpop.f32.mrf.mxu0
      %v5071 = vadd.f32 %v2758, %v5070
      %v5072 = vpop.f32.mrf.mxu0
      %v5073 = vadd.f32 %v2762, %v5072
      %5074 = vmatprep.mubr.bf16.mxu0 0
      %5075 = vmatmul.mubr.bf16.gmra.mxu0 %v2621
      %v5076 = vpop.f32.mrf.mxu0
      %v5077 = vadd.f32 %v2758, %v5076
      %v5078 = vpop.f32.mrf.mxu0
      %v5079 = vadd.f32 %v2762, %v5078
      %v5080 = vpop.f32.mrf.mxu0
      %v5081 = vadd.f32 %v2758, %v5080
      %v5082 = vpop.f32.mrf.mxu0
      %v5083 = vadd.f32 %v2762, %v5082
      %5084 = vmatprep.mubr.bf16.mxu0 0
      %5085 = vmatmul.mubr.bf16.gmra.mxu0 %v2622
      %v5086 = vpop.f32.mrf.mxu0
      %v5087 = vadd.f32 %v2758, %v5086
      %v5088 = vpop.f32.mrf.mxu0
      %v5089 = vadd.f32 %v2762, %v5088
      %v5090 = vpop.f32.mrf.mxu0
      %v5091 = vadd.f32 %v2758, %v5090
      %v5092 = vpop.f32.mrf.mxu0
      %v5093 = vadd.f32 %v2762, %v5092
      %5094 = vmatprep.mubr.bf16.mxu0 0
      %5095 = vmatmul.mubr.bf16.gmra.mxu0 %v2623
      %v5096 = vpop.f32.mrf.mxu0
      %v5097 = vadd.f32 %v2758, %v5096
      %v5098 = vpop.f32.mrf.mxu0
      %v5099 = vadd.f32 %v2762, %v5098
      %v5100 = vpop.f32.mrf.mxu0
      %v5101 = vadd.f32 %v2758, %v5100
      %v5102 = vpop.f32.mrf.mxu0
      %v5103 = vadd.f32 %v2762, %v5102
      %5104 = vmatprep.mubr.bf16.mxu0 0
      %5105 = vmatmul.mubr.bf16.gmra.mxu0 %v2624
      %v5106 = vpop.f32.mrf.mxu0
      %v5107 = vadd.f32 %v2758, %v5106
      %v5108 = vpop.f32.mrf.mxu0
      %v5109 = vadd.f32 %v2762, %v5108
      %v5110 = vpop.f32.mrf.mxu0
      %v5111 = vadd.f32 %v2758, %v5110
      %v5112 = vpop.f32.mrf.mxu0
      %v5113 = vadd.f32 %v2762, %v5112
      %5114 = vmatprep.mubr.bf16.mxu0 0
      %5115 = vmatmul.mubr.bf16.gmra.mxu0 %v2625
      %v5116 = vpop.f32.mrf.mxu0
      %v5117 = vadd.f32 %v2758, %v5116
      %v5118 = vpop.f32.mrf.mxu0
      %v5119 = vadd.f32 %v2762, %v5118
      %v5120 = vpop.f32.mrf.mxu0
      %v5121 = vadd.f32 %v2758, %v5120
      %v5122 = vpop.f32.mrf.mxu0
      %v5123 = vadd.f32 %v2762, %v5122
      %5124 = vmatprep.mubr.bf16.mxu0 0
      %5125 = vmatmul.mubr.bf16.gmra.mxu0 %v2626
      %v5126 = vpop.f32.mrf.mxu0
      %v5127 = vadd.f32 %v2758, %v5126
      %v5128 = vpop.f32.mrf.mxu0
      %v5129 = vadd.f32 %v2762, %v5128
      %v5130 = vpop.f32.mrf.mxu0
      %v5131 = vadd.f32 %v2758, %v5130
      %v5132 = vpop.f32.mrf.mxu0
      %v5133 = vadd.f32 %v2762, %v5132
      %5134 = vmatprep.mubr.bf16.mxu0 0
      %5135 = vmatmul.mubr.bf16.gmra.mxu0 %v2627
      %v5136 = vpop.f32.mrf.mxu0
      %v5137 = vadd.f32 %v2758, %v5136
      %v5138 = vpop.f32.mrf.mxu0
      %v5139 = vadd.f32 %v2762, %v5138
      %v5140 = vpop.f32.mrf.mxu0
      %v5141 = vadd.f32 %v2758, %v5140
      %v5142 = vpop.f32.mrf.mxu0
      %v5143 = vadd.f32 %v2762, %v5142
      %5144 = vmatprep.mubr.bf16.mxu0 0
      %5145 = vmatmul.mubr.bf16.gmra.mxu0 %v2628
      %v5146 = vpop.f32.mrf.mxu0
      %v5147 = vadd.f32 %v2758, %v5146
      %v5148 = vpop.f32.mrf.mxu0
      %v5149 = vadd.f32 %v2762, %v5148
      %v5150 = vpop.f32.mrf.mxu0
      %v5151 = vadd.f32 %v2758, %v5150
      %v5152 = vpop.f32.mrf.mxu0
      %v5153 = vadd.f32 %v2762, %v5152
      %5154 = vmatprep.mubr.bf16.mxu0 0
      %5155 = vmatmul.mubr.bf16.gmra.mxu0 %v2629
      %v5156 = vpop.f32.mrf.mxu0
      %v5157 = vadd.f32 %v2758, %v5156
      %v5158 = vpop.f32.mrf.mxu0
      %v5159 = vadd.f32 %v2762, %v5158
      %v5160 = vpop.f32.mrf.mxu0
      %v5161 = vadd.f32 %v2758, %v5160
      %v5162 = vpop.f32.mrf.mxu0
      %v5163 = vadd.f32 %v2762, %v5162
      %5164 = vmatprep.mubr.bf16.mxu0 0
      %5165 = vmatmul.mubr.bf16.gmra.mxu0 %v2630
      %v5166 = vpop.f32.mrf.mxu0
      %v5167 = vadd.f32 %v2758, %v5166
      %v5168 = vpop.f32.mrf.mxu0
      %v5169 = vadd.f32 %v2762, %v5168
      %v5170 = vpop.f32.mrf.mxu0
      %v5171 = vadd.f32 %v2758, %v5170
      %v5172 = vpop.f32.mrf.mxu0
      %v5173 = vadd.f32 %v2762, %v5172
      %5174 = vmatprep.mubr.bf16.mxu0 0
      %5175 = vmatmul.mubr.bf16.gmra.mxu0 %v2631
      %v5176 = vpop.f32.mrf.mxu0
      %v5177 = vadd.f32 %v2758, %v5176
      %v5178 = vpop.f32.mrf.mxu0
      %v5179 = vadd.f32 %v2762, %v5178
      %v5180 = vpop.f32.mrf.mxu0
      %v5181 = vadd.f32 %v2758, %v5180
      %v5182 = vpop.f32.mrf.mxu0
      %v5183 = vadd.f32 %v2762, %v5182
      %5184 = vmatprep.mubr.bf16.mxu0 0
      %5185 = vmatmul.mubr.bf16.gmra.mxu0 %v2632
      %v5186 = vpop.f32.mrf.mxu0
      %v5187 = vadd.f32 %v2758, %v5186
      %v5188 = vpop.f32.mrf.mxu0
      %v5189 = vadd.f32 %v2762, %v5188
      %v5190 = vpop.f32.mrf.mxu0
      %v5191 = vadd.f32 %v2758, %v5190
      %v5192 = vpop.f32.mrf.mxu0
      %v5193 = vadd.f32 %v2762, %v5192
      %5194 = vdwg.mxu0
      %v5195 = vmax.f32 %v4458, 0.0
      %v5196 = vmax.f32 %v4460, 0.0
      %v5197 = vmax.f32 %v4651, 0.0
      %v5198 = vmax.f32 %v4653, 0.0
      %v5199 = vmax.f32 %v4844, 0.0
      %v5200 = vmax.f32 %v4846, 0.0
      %v5201 = vmax.f32 %v5037, 0.0
      %v5202 = vmax.f32 %v5039, 0.0
      %v5203 = vmax.f32 %v4462, 0.0
      %v5204 = vmax.f32 %v4464, 0.0
      %v5205 = vmax.f32 %v4655, 0.0
      %v5206 = vmax.f32 %v4657, 0.0
      %v5207 = vmax.f32 %v4848, 0.0
      %v5208 = vmax.f32 %v4850, 0.0
      %v5209 = vmax.f32 %v5041, 0.0
      %v5210 = vmax.f32 %v5043, 0.0
      %v5211 = vmax.f32 %v4468, 0.0
      %v5212 = vmax.f32 %v4470, 0.0
      %v5213 = vmax.f32 %v4661, 0.0
      %v5214 = vmax.f32 %v4663, 0.0
      %v5215 = vmax.f32 %v4854, 0.0
      %v5216 = vmax.f32 %v4856, 0.0
      %v5217 = vmax.f32 %v5047, 0.0
      %v5218 = vmax.f32 %v5049, 0.0
      %v5219 = vmax.f32 %v4472, 0.0
      %v5220 = vmax.f32 %v4474, 0.0
      %v5221 = vmax.f32 %v4665, 0.0
      %v5222 = vmax.f32 %v4667, 0.0
      %v5223 = vmax.f32 %v4858, 0.0
      %v5224 = vmax.f32 %v4860, 0.0
      %v5225 = vmax.f32 %v5051, 0.0
      %v5226 = vmax.f32 %v5053, 0.0
      %v5227 = vmax.f32 %v4478, 0.0
      %v5228 = vmax.f32 %v4480, 0.0
      %v5229 = vmax.f32 %v4671, 0.0
      %v5230 = vmax.f32 %v4673, 0.0
      %v5231 = vmax.f32 %v4864, 0.0
      %v5232 = vmax.f32 %v4866, 0.0
      %v5233 = vmax.f32 %v5057, 0.0
      %v5234 = vmax.f32 %v5059, 0.0
      %v5235 = vmax.f32 %v4482, 0.0
      %v5236 = vmax.f32 %v4484, 0.0
      %v5237 = vmax.f32 %v4675, 0.0
      %v5238 = vmax.f32 %v4677, 0.0
      %v5239 = vmax.f32 %v4868, 0.0
      %v5240 = vmax.f32 %v4870, 0.0
      %v5241 = vmax.f32 %v5061, 0.0
      %v5242 = vmax.f32 %v5063, 0.0
      %v5243 = vmax.f32 %v4488, 0.0
      %v5244 = vmax.f32 %v4490, 0.0
      %v5245 = vmax.f32 %v4681, 0.0
      %v5246 = vmax.f32 %v4683, 0.0
      %v5247 = vmax.f32 %v4874, 0.0
      %v5248 = vmax.f32 %v4876, 0.0
      %v5249 = vmax.f32 %v5067, 0.0
      %v5250 = vmax.f32 %v5069, 0.0
      %v5251 = vmax.f32 %v4492, 0.0
      %v5252 = vmax.f32 %v4494, 0.0
      %v5253 = vmax.f32 %v4685, 0.0
      %v5254 = vmax.f32 %v4687, 0.0
      %v5255 = vmax.f32 %v4878, 0.0
      %v5256 = vmax.f32 %v4880, 0.0
      %v5257 = vmax.f32 %v5071, 0.0
      %v5258 = vmax.f32 %v5073, 0.0
      %v5259 = vmax.f32 %v4498, 0.0
      %v5260 = vmax.f32 %v4500, 0.0
      %v5261 = vmax.f32 %v4691, 0.0
      %v5262 = vmax.f32 %v4693, 0.0
      %v5263 = vmax.f32 %v4884, 0.0
      %v5264 = vmax.f32 %v4886, 0.0
      %v5265 = vmax.f32 %v5077, 0.0
      %v5266 = vmax.f32 %v5079, 0.0
      %v5267 = vmax.f32 %v4502, 0.0
      %v5268 = vmax.f32 %v4504, 0.0
      %v5269 = vmax.f32 %v4695, 0.0
      %v5270 = vmax.f32 %v4697, 0.0
      %v5271 = vmax.f32 %v4888, 0.0
      %v5272 = vmax.f32 %v4890, 0.0
      %v5273 = vmax.f32 %v5081, 0.0
      %v5274 = vmax.f32 %v5083, 0.0
      %v5275 = vmax.f32 %v4508, 0.0
      %v5276 = vmax.f32 %v4510, 0.0
      %v5277 = vmax.f32 %v4701, 0.0
      %v5278 = vmax.f32 %v4703, 0.0
      %v5279 = vmax.f32 %v4894, 0.0
      %v5280 = vmax.f32 %v4896, 0.0
      %v5281 = vmax.f32 %v5087, 0.0
      %v5282 = vmax.f32 %v5089, 0.0
      %v5283 = vmax.f32 %v4512, 0.0
      %v5284 = vmax.f32 %v4514, 0.0
      %v5285 = vmax.f32 %v4705, 0.0
      %v5286 = vmax.f32 %v4707, 0.0
      %v5287 = vmax.f32 %v4898, 0.0
      %v5288 = vmax.f32 %v4900, 0.0
      %v5289 = vmax.f32 %v5091, 0.0
      %v5290 = vmax.f32 %v5093, 0.0
      %v5291 = vmax.f32 %v4518, 0.0
      %v5292 = vmax.f32 %v4520, 0.0
      %v5293 = vmax.f32 %v4711, 0.0
      %v5294 = vmax.f32 %v4713, 0.0
      %v5295 = vmax.f32 %v4904, 0.0
      %v5296 = vmax.f32 %v4906, 0.0
      %v5297 = vmax.f32 %v5097, 0.0
      %v5298 = vmax.f32 %v5099, 0.0
      %v5299 = vmax.f32 %v4522, 0.0
      %v5300 = vmax.f32 %v4524, 0.0
      %v5301 = vmax.f32 %v4715, 0.0
      %v5302 = vmax.f32 %v4717, 0.0
      %v5303 = vmax.f32 %v4908, 0.0
      %v5304 = vmax.f32 %v4910, 0.0
      %v5305 = vmax.f32 %v5101, 0.0
      %v5306 = vmax.f32 %v5103, 0.0
      %v5307 = vmax.f32 %v4528, 0.0
      %v5308 = vmax.f32 %v4530, 0.0
      %v5309 = vmax.f32 %v4721, 0.0
      %v5310 = vmax.f32 %v4723, 0.0
      %v5311 = vmax.f32 %v4914, 0.0
      %v5312 = vmax.f32 %v4916, 0.0
      %v5313 = vmax.f32 %v5107, 0.0
      %v5314 = vmax.f32 %v5109, 0.0
      %v5315 = vmax.f32 %v4532, 0.0
      %v5316 = vmax.f32 %v4534, 0.0
      %v5317 = vmax.f32 %v4725, 0.0
      %v5318 = vmax.f32 %v4727, 0.0
      %v5319 = vmax.f32 %v4918, 0.0
      %v5320 = vmax.f32 %v4920, 0.0
      %v5321 = vmax.f32 %v5111, 0.0
      %v5322 = vmax.f32 %v5113, 0.0
      %v5323 = vmax.f32 %v4538, 0.0
      %v5324 = vmax.f32 %v4540, 0.0
      %v5325 = vmax.f32 %v4731, 0.0
      %v5326 = vmax.f32 %v4733, 0.0
      %v5327 = vmax.f32 %v4924, 0.0
      %v5328 = vmax.f32 %v4926, 0.0
      %v5329 = vmax.f32 %v5117, 0.0
      %v5330 = vmax.f32 %v5119, 0.0
      %v5331 = vmax.f32 %v4542, 0.0
      %v5332 = vmax.f32 %v4544, 0.0
      %v5333 = vmax.f32 %v4735, 0.0
      %v5334 = vmax.f32 %v4737, 0.0
      %v5335 = vmax.f32 %v4928, 0.0
      %v5336 = vmax.f32 %v4930, 0.0
      %v5337 = vmax.f32 %v5121, 0.0
      %v5338 = vmax.f32 %v5123, 0.0
      %v5339 = vmax.f32 %v4548, 0.0
      %v5340 = vmax.f32 %v4550, 0.0
      %v5341 = vmax.f32 %v4741, 0.0
      %v5342 = vmax.f32 %v4743, 0.0
      %v5343 = vmax.f32 %v4934, 0.0
      %v5344 = vmax.f32 %v4936, 0.0
      %v5345 = vmax.f32 %v5127, 0.0
      %v5346 = vmax.f32 %v5129, 0.0
      %v5347 = vmax.f32 %v4552, 0.0
      %v5348 = vmax.f32 %v4554, 0.0
      %v5349 = vmax.f32 %v4745, 0.0
      %v5350 = vmax.f32 %v4747, 0.0
      %v5351 = vmax.f32 %v4938, 0.0
      %v5352 = vmax.f32 %v4940, 0.0
      %v5353 = vmax.f32 %v5131, 0.0
      %v5354 = vmax.f32 %v5133, 0.0
      %v5355 = vmax.f32 %v4558, 0.0
      %v5356 = vmax.f32 %v4560, 0.0
      %v5357 = vmax.f32 %v4751, 0.0
      %v5358 = vmax.f32 %v4753, 0.0
      %v5359 = vmax.f32 %v4944, 0.0
      %v5360 = vmax.f32 %v4946, 0.0
      %v5361 = vmax.f32 %v5137, 0.0
      %v5362 = vmax.f32 %v5139, 0.0
      %v5363 = vmax.f32 %v4562, 0.0
      %v5364 = vmax.f32 %v4564, 0.0
      %v5365 = vmax.f32 %v4755, 0.0
      %v5366 = vmax.f32 %v4757, 0.0
      %v5367 = vmax.f32 %v4948, 0.0
      %v5368 = vmax.f32 %v4950, 0.0
      %v5369 = vmax.f32 %v5141, 0.0
      %v5370 = vmax.f32 %v5143, 0.0
      %v5371 = vmax.f32 %v4568, 0.0
      %v5372 = vmax.f32 %v4570, 0.0
      %v5373 = vmax.f32 %v4761, 0.0
      %v5374 = vmax.f32 %v4763, 0.0
      %v5375 = vmax.f32 %v4954, 0.0
      %v5376 = vmax.f32 %v4956, 0.0
      %v5377 = vmax.f32 %v5147, 0.0
      %v5378 = vmax.f32 %v5149, 0.0
      %v5379 = vmax.f32 %v4572, 0.0
      %v5380 = vmax.f32 %v4574, 0.0
      %v5381 = vmax.f32 %v4765, 0.0
      %v5382 = vmax.f32 %v4767, 0.0
      %v5383 = vmax.f32 %v4958, 0.0
      %v5384 = vmax.f32 %v4960, 0.0
      %v5385 = vmax.f32 %v5151, 0.0
      %v5386 = vmax.f32 %v5153, 0.0
      %v5387 = vmax.f32 %v4578, 0.0
      %v5388 = vmax.f32 %v4580, 0.0
      %v5389 = vmax.f32 %v4771, 0.0
      %v5390 = vmax.f32 %v4773, 0.0
      %v5391 = vmax.f32 %v4964, 0.0
      %v5392 = vmax.f32 %v4966, 0.0
      %v5393 = vmax.f32 %v5157, 0.0
      %v5394 = vmax.f32 %v5159, 0.0
      %v5395 = vmax.f32 %v4582, 0.0
      %v5396 = vmax.f32 %v4584, 0.0
      %v5397 = vmax.f32 %v4775, 0.0
      %v5398 = vmax.f32 %v4777, 0.0
      %v5399 = vmax.f32 %v4968, 0.0
      %v5400 = vmax.f32 %v4970, 0.0
      %v5401 = vmax.f32 %v5161, 0.0
      %v5402 = vmax.f32 %v5163, 0.0
      %v5403 = vmax.f32 %v4588, 0.0
      %v5404 = vmax.f32 %v4590, 0.0
      %v5405 = vmax.f32 %v4781, 0.0
      %v5406 = vmax.f32 %v4783, 0.0
      %v5407 = vmax.f32 %v4974, 0.0
      %v5408 = vmax.f32 %v4976, 0.0
      %v5409 = vmax.f32 %v5167, 0.0
      %v5410 = vmax.f32 %v5169, 0.0
      %v5411 = vmax.f32 %v4592, 0.0
      %v5412 = vmax.f32 %v4594, 0.0
      %v5413 = vmax.f32 %v4785, 0.0
      %v5414 = vmax.f32 %v4787, 0.0
      %v5415 = vmax.f32 %v4978, 0.0
      %v5416 = vmax.f32 %v4980, 0.0
      %v5417 = vmax.f32 %v5171, 0.0
      %v5418 = vmax.f32 %v5173, 0.0
      %v5419 = vmax.f32 %v4598, 0.0
      %v5420 = vmax.f32 %v4600, 0.0
      %v5421 = vmax.f32 %v4791, 0.0
      %v5422 = vmax.f32 %v4793, 0.0
      %v5423 = vmax.f32 %v4984, 0.0
      %v5424 = vmax.f32 %v4986, 0.0
      %v5425 = vmax.f32 %v5177, 0.0
      %v5426 = vmax.f32 %v5179, 0.0
      %v5427 = vmax.f32 %v4602, 0.0
      %v5428 = vmax.f32 %v4604, 0.0
      %v5429 = vmax.f32 %v4795, 0.0
      %v5430 = vmax.f32 %v4797, 0.0
      %v5431 = vmax.f32 %v4988, 0.0
      %v5432 = vmax.f32 %v4990, 0.0
      %v5433 = vmax.f32 %v5181, 0.0
      %v5434 = vmax.f32 %v5183, 0.0
      %v5435 = vmax.f32 %v4608, 0.0
      %v5436 = vmax.f32 %v4610, 0.0
      %v5437 = vmax.f32 %v4801, 0.0
      %v5438 = vmax.f32 %v4803, 0.0
      %v5439 = vmax.f32 %v4994, 0.0
      %v5440 = vmax.f32 %v4996, 0.0
      %v5441 = vmax.f32 %v5187, 0.0
      %v5442 = vmax.f32 %v5189, 0.0
      %v5443 = vmax.f32 %v4612, 0.0
      %v5444 = vmax.f32 %v4614, 0.0
      %v5445 = vmax.f32 %v4805, 0.0
      %v5446 = vmax.f32 %v4807, 0.0
      %v5447 = vmax.f32 %v4998, 0.0
      %v5448 = vmax.f32 %v5000, 0.0
      %v5449 = vmax.f32 %v5191, 0.0
      %v5450 = vmax.f32 %v5193, 0.0
      %v5451 = vmax.f32 %v5195, %v5203
      %v5452 = vmax.f32 %v5451, %v5211
      %v5453 = vmax.f32 %v5452, %v5219
      %v5454 = vmax.f32 %v5453, %v5227
      %v5455 = vmax.f32 %v5454, %v5235
      %v5456 = vmax.f32 %v5455, %v5243
      %v5457 = vmax.f32 %v5456, %v5251
      %v5458 = vmax.f32 %v5457, %v5259
      %v5459 = vmax.f32 %v5458, %v5267
      %v5460 = vmax.f32 %v5459, %v5275
      %v5461 = vmax.f32 %v5460, %v5283
      %v5462 = vmax.f32 %v5461, %v5291
      %v5463 = vmax.f32 %v5462, %v5299
      %v5464 = vmax.f32 %v5463, %v5307
      %v5465 = vmax.f32 %v5464, %v5315
      %v5466 = vmax.f32 %v5465, %v5323
      %v5467 = vmax.f32 %v5466, %v5331
      %v5468 = vmax.f32 %v5467, %v5339
      %v5469 = vmax.f32 %v5468, %v5347
      %v5470 = vmax.f32 %v5469, %v5355
      %v5471 = vmax.f32 %v5470, %v5363
      %v5472 = vmax.f32 %v5471, %v5371
      %v5473 = vmax.f32 %v5472, %v5379
      %v5474 = vmax.f32 %v5473, %v5387
      %v5475 = vmax.f32 %v5474, %v5395
      %v5476 = vmax.f32 %v5475, %v5403
      %v5477 = vmax.f32 %v5476, %v5411
      %v5478 = vmax.f32 %v5477, %v5419
      %v5479 = vmax.f32 %v5478, %v5427
      %v5480 = vmax.f32 %v5479, %v5435
      %v5481 = vmax.f32 %v5480, %v5443
      %v5482 = vrot.slane %v5481, 4
      %v5483 = vmax.f32 %v5481, %v5482
      %v5484 = vrot.slane %v5483, 2
      %v5485 = vmax.f32 %v5483, %v5484
      %v5486 = vrot.slane %v5485, 1
      %v5487 = vmax.f32 %v5485, %v5486
      %v5488 = vmax.f32 %v5196, %v5204
      %v5489 = vmax.f32 %v5488, %v5212
      %v5490 = vmax.f32 %v5489, %v5220
      %v5491 = vmax.f32 %v5490, %v5228
      %v5492 = vmax.f32 %v5491, %v5236
      %v5493 = vmax.f32 %v5492, %v5244
      %v5494 = vmax.f32 %v5493, %v5252
      %v5495 = vmax.f32 %v5494, %v5260
      %v5496 = vmax.f32 %v5495, %v5268
      %v5497 = vmax.f32 %v5496, %v5276
      %v5498 = vmax.f32 %v5497, %v5284
      %v5499 = vmax.f32 %v5498, %v5292
      %v5500 = vmax.f32 %v5499, %v5300
      %v5501 = vmax.f32 %v5500, %v5308
      %v5502 = vmax.f32 %v5501, %v5316
      %v5503 = vmax.f32 %v5502, %v5324
      %v5504 = vmax.f32 %v5503, %v5332
      %v5505 = vmax.f32 %v5504, %v5340
      %v5506 = vmax.f32 %v5505, %v5348
      %v5507 = vmax.f32 %v5506, %v5356
      %v5508 = vmax.f32 %v5507, %v5364
      %v5509 = vmax.f32 %v5508, %v5372
      %v5510 = vmax.f32 %v5509, %v5380
      %v5511 = vmax.f32 %v5510, %v5388
      %v5512 = vmax.f32 %v5511, %v5396
      %v5513 = vmax.f32 %v5512, %v5404
      %v5514 = vmax.f32 %v5513, %v5412
      %v5515 = vmax.f32 %v5514, %v5420
      %v5516 = vmax.f32 %v5515, %v5428
      %v5517 = vmax.f32 %v5516, %v5436
      %v5518 = vmax.f32 %v5517, %v5444
      %v5519 = vrot.slane %v5518, 4
      %v5520 = vmax.f32 %v5518, %v5519
      %v5521 = vrot.slane %v5520, 2
      %v5522 = vmax.f32 %v5520, %v5521
      %v5523 = vrot.slane %v5522, 1
      %v5524 = vmax.f32 %v5522, %v5523
      %v5525 = vmax.f32 %v5197, %v5205
      %v5526 = vmax.f32 %v5525, %v5213
      %v5527 = vmax.f32 %v5526, %v5221
      %v5528 = vmax.f32 %v5527, %v5229
      %v5529 = vmax.f32 %v5528, %v5237
      %v5530 = vmax.f32 %v5529, %v5245
      %v5531 = vmax.f32 %v5530, %v5253
      %v5532 = vmax.f32 %v5531, %v5261
      %v5533 = vmax.f32 %v5532, %v5269
      %v5534 = vmax.f32 %v5533, %v5277
      %v5535 = vmax.f32 %v5534, %v5285
      %v5536 = vmax.f32 %v5535, %v5293
      %v5537 = vmax.f32 %v5536, %v5301
      %v5538 = vmax.f32 %v5537, %v5309
      %v5539 = vmax.f32 %v5538, %v5317
      %v5540 = vmax.f32 %v5539, %v5325
      %v5541 = vmax.f32 %v5540, %v5333
      %v5542 = vmax.f32 %v5541, %v5341
      %v5543 = vmax.f32 %v5542, %v5349
      %v5544 = vmax.f32 %v5543, %v5357
      %v5545 = vmax.f32 %v5544, %v5365
      %v5546 = vmax.f32 %v5545, %v5373
      %v5547 = vmax.f32 %v5546, %v5381
      %v5548 = vmax.f32 %v5547, %v5389
      %v5549 = vmax.f32 %v5548, %v5397
      %v5550 = vmax.f32 %v5549, %v5405
      %v5551 = vmax.f32 %v5550, %v5413
      %v5552 = vmax.f32 %v5551, %v5421
      %v5553 = vmax.f32 %v5552, %v5429
      %v5554 = vmax.f32 %v5553, %v5437
      %v5555 = vmax.f32 %v5554, %v5445
      %v5556 = vrot.slane %v5555, 4
      %v5557 = vmax.f32 %v5555, %v5556
      %v5558 = vrot.slane %v5557, 2
      %v5559 = vmax.f32 %v5557, %v5558
      %v5560 = vrot.slane %v5559, 1
      %v5561 = vmax.f32 %v5559, %v5560
      %v5562 = vmax.f32 %v5198, %v5206
      %v5563 = vmax.f32 %v5562, %v5214
      %v5564 = vmax.f32 %v5563, %v5222
      %v5565 = vmax.f32 %v5564, %v5230
      %v5566 = vmax.f32 %v5565, %v5238
      %v5567 = vmax.f32 %v5566, %v5246
      %v5568 = vmax.f32 %v5567, %v5254
      %v5569 = vmax.f32 %v5568, %v5262
      %v5570 = vmax.f32 %v5569, %v5270
      %v5571 = vmax.f32 %v5570, %v5278
      %v5572 = vmax.f32 %v5571, %v5286
      %v5573 = vmax.f32 %v5572, %v5294
      %v5574 = vmax.f32 %v5573, %v5302
      %v5575 = vmax.f32 %v5574, %v5310
      %v5576 = vmax.f32 %v5575, %v5318
      %v5577 = vmax.f32 %v5576, %v5326
      %v5578 = vmax.f32 %v5577, %v5334
      %v5579 = vmax.f32 %v5578, %v5342
      %v5580 = vmax.f32 %v5579, %v5350
      %v5581 = vmax.f32 %v5580, %v5358
      %v5582 = vmax.f32 %v5581, %v5366
      %v5583 = vmax.f32 %v5582, %v5374
      %v5584 = vmax.f32 %v5583, %v5382
      %v5585 = vmax.f32 %v5584, %v5390
      %v5586 = vmax.f32 %v5585, %v5398
      %v5587 = vmax.f32 %v5586, %v5406
      %v5588 = vmax.f32 %v5587, %v5414
      %v5589 = vmax.f32 %v5588, %v5422
      %v5590 = vmax.f32 %v5589, %v5430
      %v5591 = vmax.f32 %v5590, %v5438
      %v5592 = vmax.f32 %v5591, %v5446
      %v5593 = vrot.slane %v5592, 4
      %v5594 = vmax.f32 %v5592, %v5593
      %v5595 = vrot.slane %v5594, 2
      %v5596 = vmax.f32 %v5594, %v5595
      %v5597 = vrot.slane %v5596, 1
      %v5598 = vmax.f32 %v5596, %v5597
      %v5599 = vmax.f32 %v5199, %v5207
      %v5600 = vmax.f32 %v5599, %v5215
      %v5601 = vmax.f32 %v5600, %v5223
      %v5602 = vmax.f32 %v5601, %v5231
      %v5603 = vmax.f32 %v5602, %v5239
      %v5604 = vmax.f32 %v5603, %v5247
      %v5605 = vmax.f32 %v5604, %v5255
      %v5606 = vmax.f32 %v5605, %v5263
      %v5607 = vmax.f32 %v5606, %v5271
      %v5608 = vmax.f32 %v5607, %v5279
      %v5609 = vmax.f32 %v5608, %v5287
      %v5610 = vmax.f32 %v5609, %v5295
      %v5611 = vmax.f32 %v5610, %v5303
      %v5612 = vmax.f32 %v5611, %v5311
      %v5613 = vmax.f32 %v5612, %v5319
      %v5614 = vmax.f32 %v5613, %v5327
      %v5615 = vmax.f32 %v5614, %v5335
      %v5616 = vmax.f32 %v5615, %v5343
      %v5617 = vmax.f32 %v5616, %v5351
      %v5618 = vmax.f32 %v5617, %v5359
      %v5619 = vmax.f32 %v5618, %v5367
      %v5620 = vmax.f32 %v5619, %v5375
      %v5621 = vmax.f32 %v5620, %v5383
      %v5622 = vmax.f32 %v5621, %v5391
      %v5623 = vmax.f32 %v5622, %v5399
      %v5624 = vmax.f32 %v5623, %v5407
      %v5625 = vmax.f32 %v5624, %v5415
      %v5626 = vmax.f32 %v5625, %v5423
      %v5627 = vmax.f32 %v5626, %v5431
      %v5628 = vmax.f32 %v5627, %v5439
      %v5629 = vmax.f32 %v5628, %v5447
      %v5630 = vrot.slane %v5629, 4
      %v5631 = vmax.f32 %v5629, %v5630
      %v5632 = vrot.slane %v5631, 2
      %v5633 = vmax.f32 %v5631, %v5632
      %v5634 = vrot.slane %v5633, 1
      %v5635 = vmax.f32 %v5633, %v5634
      %v5636 = vmax.f32 %v5200, %v5208
      %v5637 = vmax.f32 %v5636, %v5216
      %v5638 = vmax.f32 %v5637, %v5224
      %v5639 = vmax.f32 %v5638, %v5232
      %v5640 = vmax.f32 %v5639, %v5240
      %v5641 = vmax.f32 %v5640, %v5248
      %v5642 = vmax.f32 %v5641, %v5256
      %v5643 = vmax.f32 %v5642, %v5264
      %v5644 = vmax.f32 %v5643, %v5272
      %v5645 = vmax.f32 %v5644, %v5280
      %v5646 = vmax.f32 %v5645, %v5288
      %v5647 = vmax.f32 %v5646, %v5296
      %v5648 = vmax.f32 %v5647, %v5304
      %v5649 = vmax.f32 %v5648, %v5312
      %v5650 = vmax.f32 %v5649, %v5320
      %v5651 = vmax.f32 %v5650, %v5328
      %v5652 = vmax.f32 %v5651, %v5336
      %v5653 = vmax.f32 %v5652, %v5344
      %v5654 = vmax.f32 %v5653, %v5352
      %v5655 = vmax.f32 %v5654, %v5360
      %v5656 = vmax.f32 %v5655, %v5368
      %v5657 = vmax.f32 %v5656, %v5376
      %v5658 = vmax.f32 %v5657, %v5384
      %v5659 = vmax.f32 %v5658, %v5392
      %v5660 = vmax.f32 %v5659, %v5400
      %v5661 = vmax.f32 %v5660, %v5408
      %v5662 = vmax.f32 %v5661, %v5416
      %v5663 = vmax.f32 %v5662, %v5424
      %v5664 = vmax.f32 %v5663, %v5432
      %v5665 = vmax.f32 %v5664, %v5440
      %v5666 = vmax.f32 %v5665, %v5448
      %v5667 = vrot.slane %v5666, 4
      %v5668 = vmax.f32 %v5666, %v5667
      %v5669 = vrot.slane %v5668, 2
      %v5670 = vmax.f32 %v5668, %v5669
      %v5671 = vrot.slane %v5670, 1
      %v5672 = vmax.f32 %v5670, %v5671
      %v5673 = vmax.f32 %v5201, %v5209
      %v5674 = vmax.f32 %v5673, %v5217
      %v5675 = vmax.f32 %v5674, %v5225
      %v5676 = vmax.f32 %v5675, %v5233
      %v5677 = vmax.f32 %v5676, %v5241
      %v5678 = vmax.f32 %v5677, %v5249
      %v5679 = vmax.f32 %v5678, %v5257
      %v5680 = vmax.f32 %v5679, %v5265
      %v5681 = vmax.f32 %v5680, %v5273
      %v5682 = vmax.f32 %v5681, %v5281
      %v5683 = vmax.f32 %v5682, %v5289
      %v5684 = vmax.f32 %v5683, %v5297
      %v5685 = vmax.f32 %v5684, %v5305
      %v5686 = vmax.f32 %v5685, %v5313
      %v5687 = vmax.f32 %v5686, %v5321
      %v5688 = vmax.f32 %v5687, %v5329
      %v5689 = vmax.f32 %v5688, %v5337
      %v5690 = vmax.f32 %v5689, %v5345
      %v5691 = vmax.f32 %v5690, %v5353
      %v5692 = vmax.f32 %v5691, %v5361
      %v5693 = vmax.f32 %v5692, %v5369
      %v5694 = vmax.f32 %v5693, %v5377
      %v5695 = vmax.f32 %v5694, %v5385
      %v5696 = vmax.f32 %v5695, %v5393
      %v5697 = vmax.f32 %v5696, %v5401
      %v5698 = vmax.f32 %v5697, %v5409
      %v5699 = vmax.f32 %v5698, %v5417
      %v5700 = vmax.f32 %v5699, %v5425
      %v5701 = vmax.f32 %v5700, %v5433
      %v5702 = vmax.f32 %v5701, %v5441
      %v5703 = vmax.f32 %v5702, %v5449
      %v5704 = vrot.slane %v5703, 4
      %v5705 = vmax.f32 %v5703, %v5704
      %v5706 = vrot.slane %v5705, 2
      %v5707 = vmax.f32 %v5705, %v5706
      %v5708 = vrot.slane %v5707, 1
      %v5709 = vmax.f32 %v5707, %v5708
      %v5710 = vmax.f32 %v5202, %v5210
      %v5711 = vmax.f32 %v5710, %v5218
      %v5712 = vmax.f32 %v5711, %v5226
      %v5713 = vmax.f32 %v5712, %v5234
      %v5714 = vmax.f32 %v5713, %v5242
      %v5715 = vmax.f32 %v5714, %v5250
      %v5716 = vmax.f32 %v5715, %v5258
      %v5717 = vmax.f32 %v5716, %v5266
      %v5718 = vmax.f32 %v5717, %v5274
      %v5719 = vmax.f32 %v5718, %v5282
      %v5720 = vmax.f32 %v5719, %v5290
      %v5721 = vmax.f32 %v5720, %v5298
      %v5722 = vmax.f32 %v5721, %v5306
      %v5723 = vmax.f32 %v5722, %v5314
      %v5724 = vmax.f32 %v5723, %v5322
      %v5725 = vmax.f32 %v5724, %v5330
      %v5726 = vmax.f32 %v5725, %v5338
      %v5727 = vmax.f32 %v5726, %v5346
      %v5728 = vmax.f32 %v5727, %v5354
      %v5729 = vmax.f32 %v5728, %v5362
      %v5730 = vmax.f32 %v5729, %v5370
      %v5731 = vmax.f32 %v5730, %v5378
      %v5732 = vmax.f32 %v5731, %v5386
      %v5733 = vmax.f32 %v5732, %v5394
      %v5734 = vmax.f32 %v5733, %v5402
      %v5735 = vmax.f32 %v5734, %v5410
      %v5736 = vmax.f32 %v5735, %v5418
      %v5737 = vmax.f32 %v5736, %v5426
      %v5738 = vmax.f32 %v5737, %v5434
      %v5739 = vmax.f32 %v5738, %v5442
      %v5740 = vmax.f32 %v5739, %v5450
      %v5741 = vrot.slane %v5740, 4
      %v5742 = vmax.f32 %v5740, %v5741
      %v5743 = vrot.slane %v5742, 2
      %v5744 = vmax.f32 %v5742, %v5743
      %v5745 = vrot.slane %v5744, 1
      %v5746 = vmax.f32 %v5744, %v5745
      %v5747 = vmax.f32 %v4415, %v5487
      %v5748 = vmax.f32 %v4416, %v5524
      %v5749 = vmax.f32 %v4417, %v5561
      %v5750 = vmax.f32 %v4418, %v5598
      %v5751 = vmax.f32 %v4419, %v5635
      %v5752 = vmax.f32 %v4420, %v5672
      %v5753 = vmax.f32 %v4421, %v5709
      %v5754 = vmax.f32 %v4422, %v5746
      %5755 = vmatprep.subr.bf16.mxu0 %v3020
      %5756 = vmatpush1.bf16.msra.mxu0 %v3019
      %5757 = vmatprep.subr.bf16.mxu0 %v3012
      %5758 = vmatpush1.bf16.msra.mxu0 %v3011
      %5759 = vmatprep.subr.bf16.mxu0 %v3004
      %5760 = vmatpush1.bf16.msra.mxu0 %v3003
      %5761 = vmatprep.subr.bf16.mxu0 %v2996
      %5762 = vmatpush1.bf16.msra.mxu0 %v2995
      %5763 = vmatprep.subr.bf16.mxu0 %v2988
      %5764 = vmatpush1.bf16.msra.mxu0 %v2987
      %5765 = vmatprep.subr.bf16.mxu0 %v2980
      %5766 = vmatpush1.bf16.msra.mxu0 %v2979
      %5767 = vmatprep.subr.bf16.mxu0 %v2972
      %5768 = vmatpush1.bf16.msra.mxu0 %v2971
      %5769 = vmatprep.subr.bf16.mxu0 %v2964
      %5770 = vmatpush1.bf16.msra.mxu0 %v2963
      %5771 = vmatprep.subr.bf16.mxu0 0
      %5772 = vmatpush2.bf16.msra.mxu0 0
      %5773 = vmatprep.subr.bf16.mxu0 0
      %5774 = vmatpush2.bf16.msra.mxu0 0
      %5775 = vmatprep.subr.bf16.mxu0 0
      %5776 = vmatpush2.bf16.msra.mxu0 0
      %5777 = vmatprep.subr.bf16.mxu0 0
      %5778 = vmatpush2.bf16.msra.mxu0 0
      %5779 = vmatprep.subr.bf16.mxu0 0
      %5780 = vmatpush2.bf16.msra.mxu0 0
      %5781 = vmatprep.subr.bf16.mxu0 0
      %5782 = vmatpush2.bf16.msra.mxu0 0
      %5783 = vmatprep.subr.bf16.mxu0 0
      %5784 = vmatpush2.bf16.msra.mxu0 0
      %5785 = vmatprep.subr.bf16.mxu0 0
      %5786 = vmatpush2.bf16.msra.mxu0 0
      %5787 = vmatprep.mubr.bf16.mxu0 0
      %5788 = vmatmul.mubr.bf16.gmra.mxu0 %v2633
      %v5789 = vpop.f32.mrf.mxu0
      %v5790 = vadd.f32 %v2734, %v5789
      %v5791 = vpop.f32.mrf.mxu0
      %v5792 = vadd.f32 %v2738, %v5791
      %v5793 = vpop.f32.mrf.mxu0
      %v5794 = vadd.f32 %v2734, %v5793
      %v5795 = vpop.f32.mrf.mxu0
      %v5796 = vadd.f32 %v2738, %v5795
      %5797 = vmatprep.mubr.bf16.mxu0 0
      %5798 = vmatmul.mubr.bf16.gmra.mxu0 %v2634
      %v5799 = vpop.f32.mrf.mxu0
      %v5800 = vadd.f32 %v2734, %v5799
      %v5801 = vpop.f32.mrf.mxu0
      %v5802 = vadd.f32 %v2738, %v5801
      %v5803 = vpop.f32.mrf.mxu0
      %v5804 = vadd.f32 %v2734, %v5803
      %v5805 = vpop.f32.mrf.mxu0
      %v5806 = vadd.f32 %v2738, %v5805
      %5807 = vmatprep.mubr.bf16.mxu0 0
      %5808 = vmatmul.mubr.bf16.gmra.mxu0 %v2635
      %v5809 = vpop.f32.mrf.mxu0
      %v5810 = vadd.f32 %v2734, %v5809
      %v5811 = vpop.f32.mrf.mxu0
      %v5812 = vadd.f32 %v2738, %v5811
      %v5813 = vpop.f32.mrf.mxu0
      %v5814 = vadd.f32 %v2734, %v5813
      %v5815 = vpop.f32.mrf.mxu0
      %v5816 = vadd.f32 %v2738, %v5815
      %5817 = vmatprep.mubr.bf16.mxu0 0
      %5818 = vmatmul.mubr.bf16.gmra.mxu0 %v2636
      %v5819 = vpop.f32.mrf.mxu0
      %v5820 = vadd.f32 %v2734, %v5819
      %v5821 = vpop.f32.mrf.mxu0
      %v5822 = vadd.f32 %v2738, %v5821
      %v5823 = vpop.f32.mrf.mxu0
      %v5824 = vadd.f32 %v2734, %v5823
      %v5825 = vpop.f32.mrf.mxu0
      %v5826 = vadd.f32 %v2738, %v5825
      %5827 = vmatprep.mubr.bf16.mxu0 0
      %5828 = vmatmul.mubr.bf16.gmra.mxu0 %v2637
      %v5829 = vpop.f32.mrf.mxu0
      %v5830 = vadd.f32 %v2734, %v5829
      %v5831 = vpop.f32.mrf.mxu0
      %v5832 = vadd.f32 %v2738, %v5831
      %v5833 = vpop.f32.mrf.mxu0
      %v5834 = vadd.f32 %v2734, %v5833
      %v5835 = vpop.f32.mrf.mxu0
      %v5836 = vadd.f32 %v2738, %v5835
      %5837 = vmatprep.mubr.bf16.mxu0 0
      %5838 = vmatmul.mubr.bf16.gmra.mxu0 %v2638
      %v5839 = vpop.f32.mrf.mxu0
      %v5840 = vadd.f32 %v2734, %v5839
      %v5841 = vpop.f32.mrf.mxu0
      %v5842 = vadd.f32 %v2738, %v5841
      %v5843 = vpop.f32.mrf.mxu0
      %v5844 = vadd.f32 %v2734, %v5843
      %v5845 = vpop.f32.mrf.mxu0
      %v5846 = vadd.f32 %v2738, %v5845
      %5847 = vmatprep.mubr.bf16.mxu0 0
      %5848 = vmatmul.mubr.bf16.gmra.mxu0 %v2639
      %v5849 = vpop.f32.mrf.mxu0
      %v5850 = vadd.f32 %v2734, %v5849
      %v5851 = vpop.f32.mrf.mxu0
      %v5852 = vadd.f32 %v2738, %v5851
      %v5853 = vpop.f32.mrf.mxu0
      %v5854 = vadd.f32 %v2734, %v5853
      %v5855 = vpop.f32.mrf.mxu0
      %v5856 = vadd.f32 %v2738, %v5855
      %5857 = vmatprep.mubr.bf16.mxu0 0
      %5858 = vmatmul.mubr.bf16.gmra.mxu0 %v2640
      %v5859 = vpop.f32.mrf.mxu0
      %v5860 = vadd.f32 %v2734, %v5859
      %v5861 = vpop.f32.mrf.mxu0
      %v5862 = vadd.f32 %v2738, %v5861
      %v5863 = vpop.f32.mrf.mxu0
      %v5864 = vadd.f32 %v2734, %v5863
      %v5865 = vpop.f32.mrf.mxu0
      %v5866 = vadd.f32 %v2738, %v5865
      %5867 = vmatprep.mubr.bf16.mxu0 0
      %5868 = vmatmul.mubr.bf16.gmra.mxu0 %v2641
      %v5869 = vpop.f32.mrf.mxu0
      %v5870 = vadd.f32 %v2734, %v5869
      %v5871 = vpop.f32.mrf.mxu0
      %v5872 = vadd.f32 %v2738, %v5871
      %v5873 = vpop.f32.mrf.mxu0
      %v5874 = vadd.f32 %v2734, %v5873
      %v5875 = vpop.f32.mrf.mxu0
      %v5876 = vadd.f32 %v2738, %v5875
      %5877 = vmatprep.mubr.bf16.mxu0 0
      %5878 = vmatmul.mubr.bf16.gmra.mxu0 %v2642
      %v5879 = vpop.f32.mrf.mxu0
      %v5880 = vadd.f32 %v2734, %v5879
      %v5881 = vpop.f32.mrf.mxu0
      %v5882 = vadd.f32 %v2738, %v5881
      %v5883 = vpop.f32.mrf.mxu0
      %v5884 = vadd.f32 %v2734, %v5883
      %v5885 = vpop.f32.mrf.mxu0
      %v5886 = vadd.f32 %v2738, %v5885
      %5887 = vmatprep.mubr.bf16.mxu0 0
      %5888 = vmatmul.mubr.bf16.gmra.mxu0 %v2643
      %v5889 = vpop.f32.mrf.mxu0
      %v5890 = vadd.f32 %v2734, %v5889
      %v5891 = vpop.f32.mrf.mxu0
      %v5892 = vadd.f32 %v2738, %v5891
      %v5893 = vpop.f32.mrf.mxu0
      %v5894 = vadd.f32 %v2734, %v5893
      %v5895 = vpop.f32.mrf.mxu0
      %v5896 = vadd.f32 %v2738, %v5895
      %5897 = vmatprep.mubr.bf16.mxu0 0
      %5898 = vmatmul.mubr.bf16.gmra.mxu0 %v2644
      %v5899 = vpop.f32.mrf.mxu0
      %v5900 = vadd.f32 %v2734, %v5899
      %v5901 = vpop.f32.mrf.mxu0
      %v5902 = vadd.f32 %v2738, %v5901
      %v5903 = vpop.f32.mrf.mxu0
      %v5904 = vadd.f32 %v2734, %v5903
      %v5905 = vpop.f32.mrf.mxu0
      %v5906 = vadd.f32 %v2738, %v5905
      %5907 = vmatprep.mubr.bf16.mxu0 0
      %5908 = vmatmul.mubr.bf16.gmra.mxu0 %v2645
      %v5909 = vpop.f32.mrf.mxu0
      %v5910 = vadd.f32 %v2734, %v5909
      %v5911 = vpop.f32.mrf.mxu0
      %v5912 = vadd.f32 %v2738, %v5911
      %v5913 = vpop.f32.mrf.mxu0
      %v5914 = vadd.f32 %v2734, %v5913
      %v5915 = vpop.f32.mrf.mxu0
      %v5916 = vadd.f32 %v2738, %v5915
      %5917 = vmatprep.mubr.bf16.mxu0 0
      %5918 = vmatmul.mubr.bf16.gmra.mxu0 %v2646
      %v5919 = vpop.f32.mrf.mxu0
      %v5920 = vadd.f32 %v2734, %v5919
      %v5921 = vpop.f32.mrf.mxu0
      %v5922 = vadd.f32 %v2738, %v5921
      %v5923 = vpop.f32.mrf.mxu0
      %v5924 = vadd.f32 %v2734, %v5923
      %v5925 = vpop.f32.mrf.mxu0
      %v5926 = vadd.f32 %v2738, %v5925
      %5927 = vmatprep.mubr.bf16.mxu0 0
      %5928 = vmatmul.mubr.bf16.gmra.mxu0 %v2647
      %v5929 = vpop.f32.mrf.mxu0
      %v5930 = vadd.f32 %v2734, %v5929
      %v5931 = vpop.f32.mrf.mxu0
      %v5932 = vadd.f32 %v2738, %v5931
      %v5933 = vpop.f32.mrf.mxu0
      %v5934 = vadd.f32 %v2734, %v5933
      %v5935 = vpop.f32.mrf.mxu0
      %v5936 = vadd.f32 %v2738, %v5935
      %5937 = vmatprep.mubr.bf16.mxu0 0
      %5938 = vmatmul.mubr.bf16.gmra.mxu0 %v2648
      %v5939 = vpop.f32.mrf.mxu0
      %v5940 = vadd.f32 %v2734, %v5939
      %v5941 = vpop.f32.mrf.mxu0
      %v5942 = vadd.f32 %v2738, %v5941
      %v5943 = vpop.f32.mrf.mxu0
      %v5944 = vadd.f32 %v2734, %v5943
      %v5945 = vpop.f32.mrf.mxu0
      %v5946 = vadd.f32 %v2738, %v5945
      %5947 = vdwg.mxu0
      %5948 = vmatprep.subr.bf16.mxu0 %v3022
      %5949 = vmatpush1.bf16.msra.mxu0 %v3021
      %5950 = vmatprep.subr.bf16.mxu0 %v3014
      %5951 = vmatpush1.bf16.msra.mxu0 %v3013
      %5952 = vmatprep.subr.bf16.mxu0 %v3006
      %5953 = vmatpush1.bf16.msra.mxu0 %v3005
      %5954 = vmatprep.subr.bf16.mxu0 %v2998
      %5955 = vmatpush1.bf16.msra.mxu0 %v2997
      %5956 = vmatprep.subr.bf16.mxu0 %v2990
      %5957 = vmatpush1.bf16.msra.mxu0 %v2989
      %5958 = vmatprep.subr.bf16.mxu0 %v2982
      %5959 = vmatpush1.bf16.msra.mxu0 %v2981
      %5960 = vmatprep.subr.bf16.mxu0 %v2974
      %5961 = vmatpush1.bf16.msra.mxu0 %v2973
      %5962 = vmatprep.subr.bf16.mxu0 %v2966
      %5963 = vmatpush1.bf16.msra.mxu0 %v2965
      %5964 = vmatprep.subr.bf16.mxu0 0
      %5965 = vmatpush2.bf16.msra.mxu0 0
      %5966 = vmatprep.subr.bf16.mxu0 0
      %5967 = vmatpush2.bf16.msra.mxu0 0
      %5968 = vmatprep.subr.bf16.mxu0 0
      %5969 = vmatpush2.bf16.msra.mxu0 0
      %5970 = vmatprep.subr.bf16.mxu0 0
      %5971 = vmatpush2.bf16.msra.mxu0 0
      %5972 = vmatprep.subr.bf16.mxu0 0
      %5973 = vmatpush2.bf16.msra.mxu0 0
      %5974 = vmatprep.subr.bf16.mxu0 0
      %5975 = vmatpush2.bf16.msra.mxu0 0
      %5976 = vmatprep.subr.bf16.mxu0 0
      %5977 = vmatpush2.bf16.msra.mxu0 0
      %5978 = vmatprep.subr.bf16.mxu0 0
      %5979 = vmatpush2.bf16.msra.mxu0 0
      %5980 = vmatprep.mubr.bf16.mxu0 0
      %5981 = vmatmul.mubr.bf16.gmra.mxu0 %v2633
      %v5982 = vpop.f32.mrf.mxu0
      %v5983 = vadd.f32 %v2742, %v5982
      %v5984 = vpop.f32.mrf.mxu0
      %v5985 = vadd.f32 %v2746, %v5984
      %v5986 = vpop.f32.mrf.mxu0
      %v5987 = vadd.f32 %v2742, %v5986
      %v5988 = vpop.f32.mrf.mxu0
      %v5989 = vadd.f32 %v2746, %v5988
      %5990 = vmatprep.mubr.bf16.mxu0 0
      %5991 = vmatmul.mubr.bf16.gmra.mxu0 %v2634
      %v5992 = vpop.f32.mrf.mxu0
      %v5993 = vadd.f32 %v2742, %v5992
      %v5994 = vpop.f32.mrf.mxu0
      %v5995 = vadd.f32 %v2746, %v5994
      %v5996 = vpop.f32.mrf.mxu0
      %v5997 = vadd.f32 %v2742, %v5996
      %v5998 = vpop.f32.mrf.mxu0
      %v5999 = vadd.f32 %v2746, %v5998
      %6000 = vmatprep.mubr.bf16.mxu0 0
      %6001 = vmatmul.mubr.bf16.gmra.mxu0 %v2635
      %v6002 = vpop.f32.mrf.mxu0
      %v6003 = vadd.f32 %v2742, %v6002
      %v6004 = vpop.f32.mrf.mxu0
      %v6005 = vadd.f32 %v2746, %v6004
      %v6006 = vpop.f32.mrf.mxu0
      %v6007 = vadd.f32 %v2742, %v6006
      %v6008 = vpop.f32.mrf.mxu0
      %v6009 = vadd.f32 %v2746, %v6008
      %6010 = vmatprep.mubr.bf16.mxu0 0
      %6011 = vmatmul.mubr.bf16.gmra.mxu0 %v2636
      %v6012 = vpop.f32.mrf.mxu0
      %v6013 = vadd.f32 %v2742, %v6012
      %v6014 = vpop.f32.mrf.mxu0
      %v6015 = vadd.f32 %v2746, %v6014
      %v6016 = vpop.f32.mrf.mxu0
      %v6017 = vadd.f32 %v2742, %v6016
      %v6018 = vpop.f32.mrf.mxu0
      %v6019 = vadd.f32 %v2746, %v6018
      %6020 = vmatprep.mubr.bf16.mxu0 0
      %6021 = vmatmul.mubr.bf16.gmra.mxu0 %v2637
      %v6022 = vpop.f32.mrf.mxu0
      %v6023 = vadd.f32 %v2742, %v6022
      %v6024 = vpop.f32.mrf.mxu0
      %v6025 = vadd.f32 %v2746, %v6024
      %v6026 = vpop.f32.mrf.mxu0
      %v6027 = vadd.f32 %v2742, %v6026
      %v6028 = vpop.f32.mrf.mxu0
      %v6029 = vadd.f32 %v2746, %v6028
      %6030 = vmatprep.mubr.bf16.mxu0 0
      %6031 = vmatmul.mubr.bf16.gmra.mxu0 %v2638
      %v6032 = vpop.f32.mrf.mxu0
      %v6033 = vadd.f32 %v2742, %v6032
      %v6034 = vpop.f32.mrf.mxu0
      %v6035 = vadd.f32 %v2746, %v6034
      %v6036 = vpop.f32.mrf.mxu0
      %v6037 = vadd.f32 %v2742, %v6036
      %v6038 = vpop.f32.mrf.mxu0
      %v6039 = vadd.f32 %v2746, %v6038
      %6040 = vmatprep.mubr.bf16.mxu0 0
      %6041 = vmatmul.mubr.bf16.gmra.mxu0 %v2639
      %v6042 = vpop.f32.mrf.mxu0
      %v6043 = vadd.f32 %v2742, %v6042
      %v6044 = vpop.f32.mrf.mxu0
      %v6045 = vadd.f32 %v2746, %v6044
      %v6046 = vpop.f32.mrf.mxu0
      %v6047 = vadd.f32 %v2742, %v6046
      %v6048 = vpop.f32.mrf.mxu0
      %v6049 = vadd.f32 %v2746, %v6048
      %6050 = vmatprep.mubr.bf16.mxu0 0
      %6051 = vmatmul.mubr.bf16.gmra.mxu0 %v2640
      %v6052 = vpop.f32.mrf.mxu0
      %v6053 = vadd.f32 %v2742, %v6052
      %v6054 = vpop.f32.mrf.mxu0
      %v6055 = vadd.f32 %v2746, %v6054
      %v6056 = vpop.f32.mrf.mxu0
      %v6057 = vadd.f32 %v2742, %v6056
      %v6058 = vpop.f32.mrf.mxu0
      %v6059 = vadd.f32 %v2746, %v6058
      %6060 = vmatprep.mubr.bf16.mxu0 0
      %6061 = vmatmul.mubr.bf16.gmra.mxu0 %v2641
      %v6062 = vpop.f32.mrf.mxu0
      %v6063 = vadd.f32 %v2742, %v6062
      %v6064 = vpop.f32.mrf.mxu0
      %v6065 = vadd.f32 %v2746, %v6064
      %v6066 = vpop.f32.mrf.mxu0
      %v6067 = vadd.f32 %v2742, %v6066
      %v6068 = vpop.f32.mrf.mxu0
      %v6069 = vadd.f32 %v2746, %v6068
      %6070 = vmatprep.mubr.bf16.mxu0 0
      %6071 = vmatmul.mubr.bf16.gmra.mxu0 %v2642
      %v6072 = vpop.f32.mrf.mxu0
      %v6073 = vadd.f32 %v2742, %v6072
      %v6074 = vpop.f32.mrf.mxu0
      %v6075 = vadd.f32 %v2746, %v6074
      %v6076 = vpop.f32.mrf.mxu0
      %v6077 = vadd.f32 %v2742, %v6076
      %v6078 = vpop.f32.mrf.mxu0
      %v6079 = vadd.f32 %v2746, %v6078
      %6080 = vmatprep.mubr.bf16.mxu0 0
      %6081 = vmatmul.mubr.bf16.gmra.mxu0 %v2643
      %v6082 = vpop.f32.mrf.mxu0
      %v6083 = vadd.f32 %v2742, %v6082
      %v6084 = vpop.f32.mrf.mxu0
      %v6085 = vadd.f32 %v2746, %v6084
      %v6086 = vpop.f32.mrf.mxu0
      %v6087 = vadd.f32 %v2742, %v6086
      %v6088 = vpop.f32.mrf.mxu0
      %v6089 = vadd.f32 %v2746, %v6088
      %6090 = vmatprep.mubr.bf16.mxu0 0
      %6091 = vmatmul.mubr.bf16.gmra.mxu0 %v2644
      %v6092 = vpop.f32.mrf.mxu0
      %v6093 = vadd.f32 %v2742, %v6092
      %v6094 = vpop.f32.mrf.mxu0
      %v6095 = vadd.f32 %v2746, %v6094
      %v6096 = vpop.f32.mrf.mxu0
      %v6097 = vadd.f32 %v2742, %v6096
      %v6098 = vpop.f32.mrf.mxu0
      %v6099 = vadd.f32 %v2746, %v6098
      %6100 = vmatprep.mubr.bf16.mxu0 0
      %6101 = vmatmul.mubr.bf16.gmra.mxu0 %v2645
      %v6102 = vpop.f32.mrf.mxu0
      %v6103 = vadd.f32 %v2742, %v6102
      %v6104 = vpop.f32.mrf.mxu0
      %v6105 = vadd.f32 %v2746, %v6104
      %v6106 = vpop.f32.mrf.mxu0
      %v6107 = vadd.f32 %v2742, %v6106
      %v6108 = vpop.f32.mrf.mxu0
      %v6109 = vadd.f32 %v2746, %v6108
      %6110 = vmatprep.mubr.bf16.mxu0 0
      %6111 = vmatmul.mubr.bf16.gmra.mxu0 %v2646
      %v6112 = vpop.f32.mrf.mxu0
      %v6113 = vadd.f32 %v2742, %v6112
      %v6114 = vpop.f32.mrf.mxu0
      %v6115 = vadd.f32 %v2746, %v6114
      %v6116 = vpop.f32.mrf.mxu0
      %v6117 = vadd.f32 %v2742, %v6116
      %v6118 = vpop.f32.mrf.mxu0
      %v6119 = vadd.f32 %v2746, %v6118
      %6120 = vmatprep.mubr.bf16.mxu0 0
      %6121 = vmatmul.mubr.bf16.gmra.mxu0 %v2647
      %v6122 = vpop.f32.mrf.mxu0
      %v6123 = vadd.f32 %v2742, %v6122
      %v6124 = vpop.f32.mrf.mxu0
      %v6125 = vadd.f32 %v2746, %v6124
      %v6126 = vpop.f32.mrf.mxu0
      %v6127 = vadd.f32 %v2742, %v6126
      %v6128 = vpop.f32.mrf.mxu0
      %v6129 = vadd.f32 %v2746, %v6128
      %6130 = vmatprep.mubr.bf16.mxu0 0
      %6131 = vmatmul.mubr.bf16.gmra.mxu0 %v2648
      %v6132 = vpop.f32.mrf.mxu0
      %v6133 = vadd.f32 %v2742, %v6132
      %v6134 = vpop.f32.mrf.mxu0
      %v6135 = vadd.f32 %v2746, %v6134
      %v6136 = vpop.f32.mrf.mxu0
      %v6137 = vadd.f32 %v2742, %v6136
      %v6138 = vpop.f32.mrf.mxu0
      %v6139 = vadd.f32 %v2746, %v6138
      %6140 = vdwg.mxu0
      %6141 = vmatprep.subr.bf16.mxu0 %v3024
      %6142 = vmatpush1.bf16.msra.mxu0 %v3023
      %6143 = vmatprep.subr.bf16.mxu0 %v3016
      %6144 = vmatpush1.bf16.msra.mxu0 %v3015
      %6145 = vmatprep.subr.bf16.mxu0 %v3008
      %6146 = vmatpush1.bf16.msra.mxu0 %v3007
      %6147 = vmatprep.subr.bf16.mxu0 %v3000
      %6148 = vmatpush1.bf16.msra.mxu0 %v2999
      %6149 = vmatprep.subr.bf16.mxu0 %v2992
      %6150 = vmatpush1.bf16.msra.mxu0 %v2991
      %6151 = vmatprep.subr.bf16.mxu0 %v2984
      %6152 = vmatpush1.bf16.msra.mxu0 %v2983
      %6153 = vmatprep.subr.bf16.mxu0 %v2976
      %6154 = vmatpush1.bf16.msra.mxu0 %v2975
      %6155 = vmatprep.subr.bf16.mxu0 %v2968
      %6156 = vmatpush1.bf16.msra.mxu0 %v2967
      %6157 = vmatprep.subr.bf16.mxu0 0
      %6158 = vmatpush2.bf16.msra.mxu0 0
      %6159 = vmatprep.subr.bf16.mxu0 0
      %6160 = vmatpush2.bf16.msra.mxu0 0
      %6161 = vmatprep.subr.bf16.mxu0 0
      %6162 = vmatpush2.bf16.msra.mxu0 0
      %6163 = vmatprep.subr.bf16.mxu0 0
      %6164 = vmatpush2.bf16.msra.mxu0 0
      %6165 = vmatprep.subr.bf16.mxu0 0
      %6166 = vmatpush2.bf16.msra.mxu0 0
      %6167 = vmatprep.subr.bf16.mxu0 0
      %6168 = vmatpush2.bf16.msra.mxu0 0
      %6169 = vmatprep.subr.bf16.mxu0 0
      %6170 = vmatpush2.bf16.msra.mxu0 0
      %6171 = vmatprep.subr.bf16.mxu0 0
      %6172 = vmatpush2.bf16.msra.mxu0 0
      %6173 = vmatprep.mubr.bf16.mxu0 0
      %6174 = vmatmul.mubr.bf16.gmra.mxu0 %v2633
      %v6175 = vpop.f32.mrf.mxu0
      %v6176 = vadd.f32 %v2750, %v6175
      %v6177 = vpop.f32.mrf.mxu0
      %v6178 = vadd.f32 %v2754, %v6177
      %v6179 = vpop.f32.mrf.mxu0
      %v6180 = vadd.f32 %v2750, %v6179
      %v6181 = vpop.f32.mrf.mxu0
      %v6182 = vadd.f32 %v2754, %v6181
      %6183 = vmatprep.mubr.bf16.mxu0 0
      %6184 = vmatmul.mubr.bf16.gmra.mxu0 %v2634
      %v6185 = vpop.f32.mrf.mxu0
      %v6186 = vadd.f32 %v2750, %v6185
      %v6187 = vpop.f32.mrf.mxu0
      %v6188 = vadd.f32 %v2754, %v6187
      %v6189 = vpop.f32.mrf.mxu0
      %v6190 = vadd.f32 %v2750, %v6189
      %v6191 = vpop.f32.mrf.mxu0
      %v6192 = vadd.f32 %v2754, %v6191
      %6193 = vmatprep.mubr.bf16.mxu0 0
      %6194 = vmatmul.mubr.bf16.gmra.mxu0 %v2635
      %v6195 = vpop.f32.mrf.mxu0
      %v6196 = vadd.f32 %v2750, %v6195
      %v6197 = vpop.f32.mrf.mxu0
      %v6198 = vadd.f32 %v2754, %v6197
      %v6199 = vpop.f32.mrf.mxu0
      %v6200 = vadd.f32 %v2750, %v6199
      %v6201 = vpop.f32.mrf.mxu0
      %v6202 = vadd.f32 %v2754, %v6201
      %6203 = vmatprep.mubr.bf16.mxu0 0
      %6204 = vmatmul.mubr.bf16.gmra.mxu0 %v2636
      %v6205 = vpop.f32.mrf.mxu0
      %v6206 = vadd.f32 %v2750, %v6205
      %v6207 = vpop.f32.mrf.mxu0
      %v6208 = vadd.f32 %v2754, %v6207
      %v6209 = vpop.f32.mrf.mxu0
      %v6210 = vadd.f32 %v2750, %v6209
      %v6211 = vpop.f32.mrf.mxu0
      %v6212 = vadd.f32 %v2754, %v6211
      %6213 = vmatprep.mubr.bf16.mxu0 0
      %6214 = vmatmul.mubr.bf16.gmra.mxu0 %v2637
      %v6215 = vpop.f32.mrf.mxu0
      %v6216 = vadd.f32 %v2750, %v6215
      %v6217 = vpop.f32.mrf.mxu0
      %v6218 = vadd.f32 %v2754, %v6217
      %v6219 = vpop.f32.mrf.mxu0
      %v6220 = vadd.f32 %v2750, %v6219
      %v6221 = vpop.f32.mrf.mxu0
      %v6222 = vadd.f32 %v2754, %v6221
      %6223 = vmatprep.mubr.bf16.mxu0 0
      %6224 = vmatmul.mubr.bf16.gmra.mxu0 %v2638
      %v6225 = vpop.f32.mrf.mxu0
      %v6226 = vadd.f32 %v2750, %v6225
      %v6227 = vpop.f32.mrf.mxu0
      %v6228 = vadd.f32 %v2754, %v6227
      %v6229 = vpop.f32.mrf.mxu0
      %v6230 = vadd.f32 %v2750, %v6229
      %v6231 = vpop.f32.mrf.mxu0
      %v6232 = vadd.f32 %v2754, %v6231
      %6233 = vmatprep.mubr.bf16.mxu0 0
      %6234 = vmatmul.mubr.bf16.gmra.mxu0 %v2639
      %v6235 = vpop.f32.mrf.mxu0
      %v6236 = vadd.f32 %v2750, %v6235
      %v6237 = vpop.f32.mrf.mxu0
      %v6238 = vadd.f32 %v2754, %v6237
      %v6239 = vpop.f32.mrf.mxu0
      %v6240 = vadd.f32 %v2750, %v6239
      %v6241 = vpop.f32.mrf.mxu0
      %v6242 = vadd.f32 %v2754, %v6241
      %6243 = vmatprep.mubr.bf16.mxu0 0
      %6244 = vmatmul.mubr.bf16.gmra.mxu0 %v2640
      %v6245 = vpop.f32.mrf.mxu0
      %v6246 = vadd.f32 %v2750, %v6245
      %v6247 = vpop.f32.mrf.mxu0
      %v6248 = vadd.f32 %v2754, %v6247
      %v6249 = vpop.f32.mrf.mxu0
      %v6250 = vadd.f32 %v2750, %v6249
      %v6251 = vpop.f32.mrf.mxu0
      %v6252 = vadd.f32 %v2754, %v6251
      %6253 = vmatprep.mubr.bf16.mxu0 0
      %6254 = vmatmul.mubr.bf16.gmra.mxu0 %v2641
      %v6255 = vpop.f32.mrf.mxu0
      %v6256 = vadd.f32 %v2750, %v6255
      %v6257 = vpop.f32.mrf.mxu0
      %v6258 = vadd.f32 %v2754, %v6257
      %v6259 = vpop.f32.mrf.mxu0
      %v6260 = vadd.f32 %v2750, %v6259
      %v6261 = vpop.f32.mrf.mxu0
      %v6262 = vadd.f32 %v2754, %v6261
      %6263 = vmatprep.mubr.bf16.mxu0 0
      %6264 = vmatmul.mubr.bf16.gmra.mxu0 %v2642
      %v6265 = vpop.f32.mrf.mxu0
      %v6266 = vadd.f32 %v2750, %v6265
      %v6267 = vpop.f32.mrf.mxu0
      %v6268 = vadd.f32 %v2754, %v6267
      %v6269 = vpop.f32.mrf.mxu0
      %v6270 = vadd.f32 %v2750, %v6269
      %v6271 = vpop.f32.mrf.mxu0
      %v6272 = vadd.f32 %v2754, %v6271
      %6273 = vmatprep.mubr.bf16.mxu0 0
      %6274 = vmatmul.mubr.bf16.gmra.mxu0 %v2643
      %v6275 = vpop.f32.mrf.mxu0
      %v6276 = vadd.f32 %v2750, %v6275
      %v6277 = vpop.f32.mrf.mxu0
      %v6278 = vadd.f32 %v2754, %v6277
      %v6279 = vpop.f32.mrf.mxu0
      %v6280 = vadd.f32 %v2750, %v6279
      %v6281 = vpop.f32.mrf.mxu0
      %v6282 = vadd.f32 %v2754, %v6281
      %6283 = vmatprep.mubr.bf16.mxu0 0
      %6284 = vmatmul.mubr.bf16.gmra.mxu0 %v2644
      %v6285 = vpop.f32.mrf.mxu0
      %v6286 = vadd.f32 %v2750, %v6285
      %v6287 = vpop.f32.mrf.mxu0
      %v6288 = vadd.f32 %v2754, %v6287
      %v6289 = vpop.f32.mrf.mxu0
      %v6290 = vadd.f32 %v2750, %v6289
      %v6291 = vpop.f32.mrf.mxu0
      %v6292 = vadd.f32 %v2754, %v6291
      %6293 = vmatprep.mubr.bf16.mxu0 0
      %6294 = vmatmul.mubr.bf16.gmra.mxu0 %v2645
      %v6295 = vpop.f32.mrf.mxu0
      %v6296 = vadd.f32 %v2750, %v6295
      %v6297 = vpop.f32.mrf.mxu0
      %v6298 = vadd.f32 %v2754, %v6297
      %v6299 = vpop.f32.mrf.mxu0
      %v6300 = vadd.f32 %v2750, %v6299
      %v6301 = vpop.f32.mrf.mxu0
      %v6302 = vadd.f32 %v2754, %v6301
      %6303 = vmatprep.mubr.bf16.mxu0 0
      %6304 = vmatmul.mubr.bf16.gmra.mxu0 %v2646
      %v6305 = vpop.f32.mrf.mxu0
      %v6306 = vadd.f32 %v2750, %v6305
      %v6307 = vpop.f32.mrf.mxu0
      %v6308 = vadd.f32 %v2754, %v6307
      %v6309 = vpop.f32.mrf.mxu0
      %v6310 = vadd.f32 %v2750, %v6309
      %v6311 = vpop.f32.mrf.mxu0
      %v6312 = vadd.f32 %v2754, %v6311
      %6313 = vmatprep.mubr.bf16.mxu0 0
      %6314 = vmatmul.mubr.bf16.gmra.mxu0 %v2647
      %v6315 = vpop.f32.mrf.mxu0
      %v6316 = vadd.f32 %v2750, %v6315
      %v6317 = vpop.f32.mrf.mxu0
      %v6318 = vadd.f32 %v2754, %v6317
      %v6319 = vpop.f32.mrf.mxu0
      %v6320 = vadd.f32 %v2750, %v6319
      %v6321 = vpop.f32.mrf.mxu0
      %v6322 = vadd.f32 %v2754, %v6321
      %6323 = vmatprep.mubr.bf16.mxu0 0
      %6324 = vmatmul.mubr.bf16.gmra.mxu0 %v2648
      %v6325 = vpop.f32.mrf.mxu0
      %v6326 = vadd.f32 %v2750, %v6325
      %v6327 = vpop.f32.mrf.mxu0
      %v6328 = vadd.f32 %v2754, %v6327
      %v6329 = vpop.f32.mrf.mxu0
      %v6330 = vadd.f32 %v2750, %v6329
      %v6331 = vpop.f32.mrf.mxu0
      %v6332 = vadd.f32 %v2754, %v6331
      %6333 = vdwg.mxu0
      %6334 = vmatprep.subr.bf16.mxu0 %v3026
      %6335 = vmatpush1.bf16.msra.mxu0 %v3025
      %6336 = vmatprep.subr.bf16.mxu0 %v3018
      %6337 = vmatpush1.bf16.msra.mxu0 %v3017
      %6338 = vmatprep.subr.bf16.mxu0 %v3010
      %6339 = vmatpush1.bf16.msra.mxu0 %v3009
      %6340 = vmatprep.subr.bf16.mxu0 %v3002
      %6341 = vmatpush1.bf16.msra.mxu0 %v3001
      %6342 = vmatprep.subr.bf16.mxu0 %v2994
      %6343 = vmatpush1.bf16.msra.mxu0 %v2993
      %6344 = vmatprep.subr.bf16.mxu0 %v2986
      %6345 = vmatpush1.bf16.msra.mxu0 %v2985
      %6346 = vmatprep.subr.bf16.mxu0 %v2978
      %6347 = vmatpush1.bf16.msra.mxu0 %v2977
      %6348 = vmatprep.subr.bf16.mxu0 %v2970
      %6349 = vmatpush1.bf16.msra.mxu0 %v2969
      %6350 = vmatprep.subr.bf16.mxu0 0
      %6351 = vmatpush2.bf16.msra.mxu0 0
      %6352 = vmatprep.subr.bf16.mxu0 0
      %6353 = vmatpush2.bf16.msra.mxu0 0
      %6354 = vmatprep.subr.bf16.mxu0 0
      %6355 = vmatpush2.bf16.msra.mxu0 0
      %6356 = vmatprep.subr.bf16.mxu0 0
      %6357 = vmatpush2.bf16.msra.mxu0 0
      %6358 = vmatprep.subr.bf16.mxu0 0
      %6359 = vmatpush2.bf16.msra.mxu0 0
      %6360 = vmatprep.subr.bf16.mxu0 0
      %6361 = vmatpush2.bf16.msra.mxu0 0
      %6362 = vmatprep.subr.bf16.mxu0 0
      %6363 = vmatpush2.bf16.msra.mxu0 0
      %6364 = vmatprep.subr.bf16.mxu0 0
      %6365 = vmatpush2.bf16.msra.mxu0 0
      %6366 = vmatprep.mubr.bf16.mxu0 0
      %6367 = vmatmul.mubr.bf16.gmra.mxu0 %v2633
      %v6368 = vpop.f32.mrf.mxu0
      %v6369 = vadd.f32 %v2758, %v6368
      %v6370 = vpop.f32.mrf.mxu0
      %v6371 = vadd.f32 %v2762, %v6370
      %v6372 = vpop.f32.mrf.mxu0
      %v6373 = vadd.f32 %v2758, %v6372
      %v6374 = vpop.f32.mrf.mxu0
      %v6375 = vadd.f32 %v2762, %v6374
      %6376 = vmatprep.mubr.bf16.mxu0 0
      %6377 = vmatmul.mubr.bf16.gmra.mxu0 %v2634
      %v6378 = vpop.f32.mrf.mxu0
      %v6379 = vadd.f32 %v2758, %v6378
      %v6380 = vpop.f32.mrf.mxu0
      %v6381 = vadd.f32 %v2762, %v6380
      %v6382 = vpop.f32.mrf.mxu0
      %v6383 = vadd.f32 %v2758, %v6382
      %v6384 = vpop.f32.mrf.mxu0
      %v6385 = vadd.f32 %v2762, %v6384
      %6386 = vmatprep.mubr.bf16.mxu0 0
      %6387 = vmatmul.mubr.bf16.gmra.mxu0 %v2635
      %v6388 = vpop.f32.mrf.mxu0
      %v6389 = vadd.f32 %v2758, %v6388
      %v6390 = vpop.f32.mrf.mxu0
      %v6391 = vadd.f32 %v2762, %v6390
      %v6392 = vpop.f32.mrf.mxu0
      %v6393 = vadd.f32 %v2758, %v6392
      %v6394 = vpop.f32.mrf.mxu0
      %v6395 = vadd.f32 %v2762, %v6394
      %6396 = vmatprep.mubr.bf16.mxu0 0
      %6397 = vmatmul.mubr.bf16.gmra.mxu0 %v2636
      %v6398 = vpop.f32.mrf.mxu0
      %v6399 = vadd.f32 %v2758, %v6398
      %v6400 = vpop.f32.mrf.mxu0
      %v6401 = vadd.f32 %v2762, %v6400
      %v6402 = vpop.f32.mrf.mxu0
      %v6403 = vadd.f32 %v2758, %v6402
      %v6404 = vpop.f32.mrf.mxu0
      %v6405 = vadd.f32 %v2762, %v6404
      %6406 = vmatprep.mubr.bf16.mxu0 0
      %6407 = vmatmul.mubr.bf16.gmra.mxu0 %v2637
      %v6408 = vpop.f32.mrf.mxu0
      %v6409 = vadd.f32 %v2758, %v6408
      %v6410 = vpop.f32.mrf.mxu0
      %v6411 = vadd.f32 %v2762, %v6410
      %v6412 = vpop.f32.mrf.mxu0
      %v6413 = vadd.f32 %v2758, %v6412
      %v6414 = vpop.f32.mrf.mxu0
      %v6415 = vadd.f32 %v2762, %v6414
      %6416 = vmatprep.mubr.bf16.mxu0 0
      %6417 = vmatmul.mubr.bf16.gmra.mxu0 %v2638
      %v6418 = vpop.f32.mrf.mxu0
      %v6419 = vadd.f32 %v2758, %v6418
      %v6420 = vpop.f32.mrf.mxu0
      %v6421 = vadd.f32 %v2762, %v6420
      %v6422 = vpop.f32.mrf.mxu0
      %v6423 = vadd.f32 %v2758, %v6422
      %v6424 = vpop.f32.mrf.mxu0
      %v6425 = vadd.f32 %v2762, %v6424
      %6426 = vmatprep.mubr.bf16.mxu0 0
      %6427 = vmatmul.mubr.bf16.gmra.mxu0 %v2639
      %v6428 = vpop.f32.mrf.mxu0
      %v6429 = vadd.f32 %v2758, %v6428
      %v6430 = vpop.f32.mrf.mxu0
      %v6431 = vadd.f32 %v2762, %v6430
      %v6432 = vpop.f32.mrf.mxu0
      %v6433 = vadd.f32 %v2758, %v6432
      %v6434 = vpop.f32.mrf.mxu0
      %v6435 = vadd.f32 %v2762, %v6434
      %6436 = vmatprep.mubr.bf16.mxu0 0
      %6437 = vmatmul.mubr.bf16.gmra.mxu0 %v2640
      %v6438 = vpop.f32.mrf.mxu0
      %v6439 = vadd.f32 %v2758, %v6438
      %v6440 = vpop.f32.mrf.mxu0
      %v6441 = vadd.f32 %v2762, %v6440
      %v6442 = vpop.f32.mrf.mxu0
      %v6443 = vadd.f32 %v2758, %v6442
      %v6444 = vpop.f32.mrf.mxu0
      %v6445 = vadd.f32 %v2762, %v6444
      %6446 = vmatprep.mubr.bf16.mxu0 0
      %6447 = vmatmul.mubr.bf16.gmra.mxu0 %v2641
      %v6448 = vpop.f32.mrf.mxu0
      %v6449 = vadd.f32 %v2758, %v6448
      %v6450 = vpop.f32.mrf.mxu0
      %v6451 = vadd.f32 %v2762, %v6450
      %v6452 = vpop.f32.mrf.mxu0
      %v6453 = vadd.f32 %v2758, %v6452
      %v6454 = vpop.f32.mrf.mxu0
      %v6455 = vadd.f32 %v2762, %v6454
      %6456 = vmatprep.mubr.bf16.mxu0 0
      %6457 = vmatmul.mubr.bf16.gmra.mxu0 %v2642
      %v6458 = vpop.f32.mrf.mxu0
      %v6459 = vadd.f32 %v2758, %v6458
      %v6460 = vpop.f32.mrf.mxu0
      %v6461 = vadd.f32 %v2762, %v6460
      %v6462 = vpop.f32.mrf.mxu0
      %v6463 = vadd.f32 %v2758, %v6462
      %v6464 = vpop.f32.mrf.mxu0
      %v6465 = vadd.f32 %v2762, %v6464
      %6466 = vmatprep.mubr.bf16.mxu0 0
      %6467 = vmatmul.mubr.bf16.gmra.mxu0 %v2643
      %v6468 = vpop.f32.mrf.mxu0
      %v6469 = vadd.f32 %v2758, %v6468
      %v6470 = vpop.f32.mrf.mxu0
      %v6471 = vadd.f32 %v2762, %v6470
      %v6472 = vpop.f32.mrf.mxu0
      %v6473 = vadd.f32 %v2758, %v6472
      %v6474 = vpop.f32.mrf.mxu0
      %v6475 = vadd.f32 %v2762, %v6474
      %6476 = vmatprep.mubr.bf16.mxu0 0
      %6477 = vmatmul.mubr.bf16.gmra.mxu0 %v2644
      %v6478 = vpop.f32.mrf.mxu0
      %v6479 = vadd.f32 %v2758, %v6478
      %v6480 = vpop.f32.mrf.mxu0
      %v6481 = vadd.f32 %v2762, %v6480
      %v6482 = vpop.f32.mrf.mxu0
      %v6483 = vadd.f32 %v2758, %v6482
      %v6484 = vpop.f32.mrf.mxu0
      %v6485 = vadd.f32 %v2762, %v6484
      %6486 = vmatprep.mubr.bf16.mxu0 0
      %6487 = vmatmul.mubr.bf16.gmra.mxu0 %v2645
      %v6488 = vpop.f32.mrf.mxu0
      %v6489 = vadd.f32 %v2758, %v6488
      %v6490 = vpop.f32.mrf.mxu0
      %v6491 = vadd.f32 %v2762, %v6490
      %v6492 = vpop.f32.mrf.mxu0
      %v6493 = vadd.f32 %v2758, %v6492
      %v6494 = vpop.f32.mrf.mxu0
      %v6495 = vadd.f32 %v2762, %v6494
      %6496 = vmatprep.mubr.bf16.mxu0 0
      %6497 = vmatmul.mubr.bf16.gmra.mxu0 %v2646
      %v6498 = vpop.f32.mrf.mxu0
      %v6499 = vadd.f32 %v2758, %v6498
      %v6500 = vpop.f32.mrf.mxu0
      %v6501 = vadd.f32 %v2762, %v6500
      %v6502 = vpop.f32.mrf.mxu0
      %v6503 = vadd.f32 %v2758, %v6502
      %v6504 = vpop.f32.mrf.mxu0
      %v6505 = vadd.f32 %v2762, %v6504
      %6506 = vmatprep.mubr.bf16.mxu0 0
      %6507 = vmatmul.mubr.bf16.gmra.mxu0 %v2647
      %v6508 = vpop.f32.mrf.mxu0
      %v6509 = vadd.f32 %v2758, %v6508
      %v6510 = vpop.f32.mrf.mxu0
      %v6511 = vadd.f32 %v2762, %v6510
      %v6512 = vpop.f32.mrf.mxu0
      %v6513 = vadd.f32 %v2758, %v6512
      %v6514 = vpop.f32.mrf.mxu0
      %v6515 = vadd.f32 %v2762, %v6514
      %6516 = vmatprep.mubr.bf16.mxu0 0
      %6517 = vmatmul.mubr.bf16.gmra.mxu0 %v2648
      %v6518 = vpop.f32.mrf.mxu0
      %v6519 = vadd.f32 %v2758, %v6518
      %v6520 = vpop.f32.mrf.mxu0
      %v6521 = vadd.f32 %v2762, %v6520
      %v6522 = vpop.f32.mrf.mxu0
      %v6523 = vadd.f32 %v2758, %v6522
      %v6524 = vpop.f32.mrf.mxu0
      %v6525 = vadd.f32 %v2762, %v6524
      %6526 = vdwg.mxu0
      %v6527 = vmax.f32 %v5790, 0.0
      %v6528 = vmax.f32 %v5792, 0.0
      %v6529 = vmax.f32 %v5983, 0.0
      %v6530 = vmax.f32 %v5985, 0.0
      %v6531 = vmax.f32 %v6176, 0.0
      %v6532 = vmax.f32 %v6178, 0.0
      %v6533 = vmax.f32 %v6369, 0.0
      %v6534 = vmax.f32 %v6371, 0.0
      %v6535 = vmax.f32 %v5794, 0.0
      %v6536 = vmax.f32 %v5796, 0.0
      %v6537 = vmax.f32 %v5987, 0.0
      %v6538 = vmax.f32 %v5989, 0.0
      %v6539 = vmax.f32 %v6180, 0.0
      %v6540 = vmax.f32 %v6182, 0.0
      %v6541 = vmax.f32 %v6373, 0.0
      %v6542 = vmax.f32 %v6375, 0.0
      %v6543 = vmax.f32 %v5800, 0.0
      %v6544 = vmax.f32 %v5802, 0.0
      %v6545 = vmax.f32 %v5993, 0.0
      %v6546 = vmax.f32 %v5995, 0.0
      %v6547 = vmax.f32 %v6186, 0.0
      %v6548 = vmax.f32 %v6188, 0.0
      %v6549 = vmax.f32 %v6379, 0.0
      %v6550 = vmax.f32 %v6381, 0.0
      %v6551 = vmax.f32 %v5804, 0.0
      %v6552 = vmax.f32 %v5806, 0.0
      %v6553 = vmax.f32 %v5997, 0.0
      %v6554 = vmax.f32 %v5999, 0.0
      %v6555 = vmax.f32 %v6190, 0.0
      %v6556 = vmax.f32 %v6192, 0.0
      %v6557 = vmax.f32 %v6383, 0.0
      %v6558 = vmax.f32 %v6385, 0.0
      %v6559 = vmax.f32 %v5810, 0.0
      %v6560 = vmax.f32 %v5812, 0.0
      %v6561 = vmax.f32 %v6003, 0.0
      %v6562 = vmax.f32 %v6005, 0.0
      %v6563 = vmax.f32 %v6196, 0.0
      %v6564 = vmax.f32 %v6198, 0.0
      %v6565 = vmax.f32 %v6389, 0.0
      %v6566 = vmax.f32 %v6391, 0.0
      %v6567 = vmax.f32 %v5814, 0.0
      %v6568 = vmax.f32 %v5816, 0.0
      %v6569 = vmax.f32 %v6007, 0.0
      %v6570 = vmax.f32 %v6009, 0.0
      %v6571 = vmax.f32 %v6200, 0.0
      %v6572 = vmax.f32 %v6202, 0.0
      %v6573 = vmax.f32 %v6393, 0.0
      %v6574 = vmax.f32 %v6395, 0.0
      %v6575 = vmax.f32 %v5820, 0.0
      %v6576 = vmax.f32 %v5822, 0.0
      %v6577 = vmax.f32 %v6013, 0.0
      %v6578 = vmax.f32 %v6015, 0.0
      %v6579 = vmax.f32 %v6206, 0.0
      %v6580 = vmax.f32 %v6208, 0.0
      %v6581 = vmax.f32 %v6399, 0.0
      %v6582 = vmax.f32 %v6401, 0.0
      %v6583 = vmax.f32 %v5824, 0.0
      %v6584 = vmax.f32 %v5826, 0.0
      %v6585 = vmax.f32 %v6017, 0.0
      %v6586 = vmax.f32 %v6019, 0.0
      %v6587 = vmax.f32 %v6210, 0.0
      %v6588 = vmax.f32 %v6212, 0.0
      %v6589 = vmax.f32 %v6403, 0.0
      %v6590 = vmax.f32 %v6405, 0.0
      %v6591 = vmax.f32 %v5830, 0.0
      %v6592 = vmax.f32 %v5832, 0.0
      %v6593 = vmax.f32 %v6023, 0.0
      %v6594 = vmax.f32 %v6025, 0.0
      %v6595 = vmax.f32 %v6216, 0.0
      %v6596 = vmax.f32 %v6218, 0.0
      %v6597 = vmax.f32 %v6409, 0.0
      %v6598 = vmax.f32 %v6411, 0.0
      %v6599 = vmax.f32 %v5834, 0.0
      %v6600 = vmax.f32 %v5836, 0.0
      %v6601 = vmax.f32 %v6027, 0.0
      %v6602 = vmax.f32 %v6029, 0.0
      %v6603 = vmax.f32 %v6220, 0.0
      %v6604 = vmax.f32 %v6222, 0.0
      %v6605 = vmax.f32 %v6413, 0.0
      %v6606 = vmax.f32 %v6415, 0.0
      %v6607 = vmax.f32 %v5840, 0.0
      %v6608 = vmax.f32 %v5842, 0.0
      %v6609 = vmax.f32 %v6033, 0.0
      %v6610 = vmax.f32 %v6035, 0.0
      %v6611 = vmax.f32 %v6226, 0.0
      %v6612 = vmax.f32 %v6228, 0.0
      %v6613 = vmax.f32 %v6419, 0.0
      %v6614 = vmax.f32 %v6421, 0.0
      %v6615 = vmax.f32 %v5844, 0.0
      %v6616 = vmax.f32 %v5846, 0.0
      %v6617 = vmax.f32 %v6037, 0.0
      %v6618 = vmax.f32 %v6039, 0.0
      %v6619 = vmax.f32 %v6230, 0.0
      %v6620 = vmax.f32 %v6232, 0.0
      %v6621 = vmax.f32 %v6423, 0.0
      %v6622 = vmax.f32 %v6425, 0.0
      %v6623 = vmax.f32 %v5850, 0.0
      %v6624 = vmax.f32 %v5852, 0.0
      %v6625 = vmax.f32 %v6043, 0.0
      %v6626 = vmax.f32 %v6045, 0.0
      %v6627 = vmax.f32 %v6236, 0.0
      %v6628 = vmax.f32 %v6238, 0.0
      %v6629 = vmax.f32 %v6429, 0.0
      %v6630 = vmax.f32 %v6431, 0.0
      %v6631 = vmax.f32 %v5854, 0.0
      %v6632 = vmax.f32 %v5856, 0.0
      %v6633 = vmax.f32 %v6047, 0.0
      %v6634 = vmax.f32 %v6049, 0.0
      %v6635 = vmax.f32 %v6240, 0.0
      %v6636 = vmax.f32 %v6242, 0.0
      %v6637 = vmax.f32 %v6433, 0.0
      %v6638 = vmax.f32 %v6435, 0.0
      %v6639 = vmax.f32 %v5860, 0.0
      %v6640 = vmax.f32 %v5862, 0.0
      %v6641 = vmax.f32 %v6053, 0.0
      %v6642 = vmax.f32 %v6055, 0.0
      %v6643 = vmax.f32 %v6246, 0.0
      %v6644 = vmax.f32 %v6248, 0.0
      %v6645 = vmax.f32 %v6439, 0.0
      %v6646 = vmax.f32 %v6441, 0.0
      %v6647 = vmax.f32 %v5864, 0.0
      %v6648 = vmax.f32 %v5866, 0.0
      %v6649 = vmax.f32 %v6057, 0.0
      %v6650 = vmax.f32 %v6059, 0.0
      %v6651 = vmax.f32 %v6250, 0.0
      %v6652 = vmax.f32 %v6252, 0.0
      %v6653 = vmax.f32 %v6443, 0.0
      %v6654 = vmax.f32 %v6445, 0.0
      %v6655 = vmax.f32 %v5870, 0.0
      %v6656 = vmax.f32 %v5872, 0.0
      %v6657 = vmax.f32 %v6063, 0.0
      %v6658 = vmax.f32 %v6065, 0.0
      %v6659 = vmax.f32 %v6256, 0.0
      %v6660 = vmax.f32 %v6258, 0.0
      %v6661 = vmax.f32 %v6449, 0.0
      %v6662 = vmax.f32 %v6451, 0.0
      %v6663 = vmax.f32 %v5874, 0.0
      %v6664 = vmax.f32 %v5876, 0.0
      %v6665 = vmax.f32 %v6067, 0.0
      %v6666 = vmax.f32 %v6069, 0.0
      %v6667 = vmax.f32 %v6260, 0.0
      %v6668 = vmax.f32 %v6262, 0.0
      %v6669 = vmax.f32 %v6453, 0.0
      %v6670 = vmax.f32 %v6455, 0.0
      %v6671 = vmax.f32 %v5880, 0.0
      %v6672 = vmax.f32 %v5882, 0.0
      %v6673 = vmax.f32 %v6073, 0.0
      %v6674 = vmax.f32 %v6075, 0.0
      %v6675 = vmax.f32 %v6266, 0.0
      %v6676 = vmax.f32 %v6268, 0.0
      %v6677 = vmax.f32 %v6459, 0.0
      %v6678 = vmax.f32 %v6461, 0.0
      %v6679 = vmax.f32 %v5884, 0.0
      %v6680 = vmax.f32 %v5886, 0.0
      %v6681 = vmax.f32 %v6077, 0.0
      %v6682 = vmax.f32 %v6079, 0.0
      %v6683 = vmax.f32 %v6270, 0.0
      %v6684 = vmax.f32 %v6272, 0.0
      %v6685 = vmax.f32 %v6463, 0.0
      %v6686 = vmax.f32 %v6465, 0.0
      %v6687 = vmax.f32 %v5890, 0.0
      %v6688 = vmax.f32 %v5892, 0.0
      %v6689 = vmax.f32 %v6083, 0.0
      %v6690 = vmax.f32 %v6085, 0.0
      %v6691 = vmax.f32 %v6276, 0.0
      %v6692 = vmax.f32 %v6278, 0.0
      %v6693 = vmax.f32 %v6469, 0.0
      %v6694 = vmax.f32 %v6471, 0.0
      %v6695 = vmax.f32 %v5894, 0.0
      %v6696 = vmax.f32 %v5896, 0.0
      %v6697 = vmax.f32 %v6087, 0.0
      %v6698 = vmax.f32 %v6089, 0.0
      %v6699 = vmax.f32 %v6280, 0.0
      %v6700 = vmax.f32 %v6282, 0.0
      %v6701 = vmax.f32 %v6473, 0.0
      %v6702 = vmax.f32 %v6475, 0.0
      %v6703 = vmax.f32 %v5900, 0.0
      %v6704 = vmax.f32 %v5902, 0.0
      %v6705 = vmax.f32 %v6093, 0.0
      %v6706 = vmax.f32 %v6095, 0.0
      %v6707 = vmax.f32 %v6286, 0.0
      %v6708 = vmax.f32 %v6288, 0.0
      %v6709 = vmax.f32 %v6479, 0.0
      %v6710 = vmax.f32 %v6481, 0.0
      %v6711 = vmax.f32 %v5904, 0.0
      %v6712 = vmax.f32 %v5906, 0.0
      %v6713 = vmax.f32 %v6097, 0.0
      %v6714 = vmax.f32 %v6099, 0.0
      %v6715 = vmax.f32 %v6290, 0.0
      %v6716 = vmax.f32 %v6292, 0.0
      %v6717 = vmax.f32 %v6483, 0.0
      %v6718 = vmax.f32 %v6485, 0.0
      %v6719 = vmax.f32 %v5910, 0.0
      %v6720 = vmax.f32 %v5912, 0.0
      %v6721 = vmax.f32 %v6103, 0.0
      %v6722 = vmax.f32 %v6105, 0.0
      %v6723 = vmax.f32 %v6296, 0.0
      %v6724 = vmax.f32 %v6298, 0.0
      %v6725 = vmax.f32 %v6489, 0.0
      %v6726 = vmax.f32 %v6491, 0.0
      %v6727 = vmax.f32 %v5914, 0.0
      %v6728 = vmax.f32 %v5916, 0.0
      %v6729 = vmax.f32 %v6107, 0.0
      %v6730 = vmax.f32 %v6109, 0.0
      %v6731 = vmax.f32 %v6300, 0.0
      %v6732 = vmax.f32 %v6302, 0.0
      %v6733 = vmax.f32 %v6493, 0.0
      %v6734 = vmax.f32 %v6495, 0.0
      %v6735 = vmax.f32 %v5920, 0.0
      %v6736 = vmax.f32 %v5922, 0.0
      %v6737 = vmax.f32 %v6113, 0.0
      %v6738 = vmax.f32 %v6115, 0.0
      %v6739 = vmax.f32 %v6306, 0.0
      %v6740 = vmax.f32 %v6308, 0.0
      %v6741 = vmax.f32 %v6499, 0.0
      %v6742 = vmax.f32 %v6501, 0.0
      %v6743 = vmax.f32 %v5924, 0.0
      %v6744 = vmax.f32 %v5926, 0.0
      %v6745 = vmax.f32 %v6117, 0.0
      %v6746 = vmax.f32 %v6119, 0.0
      %v6747 = vmax.f32 %v6310, 0.0
      %v6748 = vmax.f32 %v6312, 0.0
      %v6749 = vmax.f32 %v6503, 0.0
      %v6750 = vmax.f32 %v6505, 0.0
      %v6751 = vmax.f32 %v5930, 0.0
      %v6752 = vmax.f32 %v5932, 0.0
      %v6753 = vmax.f32 %v6123, 0.0
      %v6754 = vmax.f32 %v6125, 0.0
      %v6755 = vmax.f32 %v6316, 0.0
      %v6756 = vmax.f32 %v6318, 0.0
      %v6757 = vmax.f32 %v6509, 0.0
      %v6758 = vmax.f32 %v6511, 0.0
      %v6759 = vmax.f32 %v5934, 0.0
      %v6760 = vmax.f32 %v5936, 0.0
      %v6761 = vmax.f32 %v6127, 0.0
      %v6762 = vmax.f32 %v6129, 0.0
      %v6763 = vmax.f32 %v6320, 0.0
      %v6764 = vmax.f32 %v6322, 0.0
      %v6765 = vmax.f32 %v6513, 0.0
      %v6766 = vmax.f32 %v6515, 0.0
      %v6767 = vmax.f32 %v5940, 0.0
      %v6768 = vmax.f32 %v5942, 0.0
      %v6769 = vmax.f32 %v6133, 0.0
      %v6770 = vmax.f32 %v6135, 0.0
      %v6771 = vmax.f32 %v6326, 0.0
      %v6772 = vmax.f32 %v6328, 0.0
      %v6773 = vmax.f32 %v6519, 0.0
      %v6774 = vmax.f32 %v6521, 0.0
      %v6775 = vmax.f32 %v5944, 0.0
      %v6776 = vmax.f32 %v5946, 0.0
      %v6777 = vmax.f32 %v6137, 0.0
      %v6778 = vmax.f32 %v6139, 0.0
      %v6779 = vmax.f32 %v6330, 0.0
      %v6780 = vmax.f32 %v6332, 0.0
      %v6781 = vmax.f32 %v6523, 0.0
      %v6782 = vmax.f32 %v6525, 0.0
      %v6783 = vmax.f32 %v6527, %v6535
      %v6784 = vmax.f32 %v6783, %v6543
      %v6785 = vmax.f32 %v6784, %v6551
      %v6786 = vmax.f32 %v6785, %v6559
      %v6787 = vmax.f32 %v6786, %v6567
      %v6788 = vmax.f32 %v6787, %v6575
      %v6789 = vmax.f32 %v6788, %v6583
      %v6790 = vmax.f32 %v6789, %v6591
      %v6791 = vmax.f32 %v6790, %v6599
      %v6792 = vmax.f32 %v6791, %v6607
      %v6793 = vmax.f32 %v6792, %v6615
      %v6794 = vmax.f32 %v6793, %v6623
      %v6795 = vmax.f32 %v6794, %v6631
      %v6796 = vmax.f32 %v6795, %v6639
      %v6797 = vmax.f32 %v6796, %v6647
      %v6798 = vmax.f32 %v6797, %v6655
      %v6799 = vmax.f32 %v6798, %v6663
      %v6800 = vmax.f32 %v6799, %v6671
      %v6801 = vmax.f32 %v6800, %v6679
      %v6802 = vmax.f32 %v6801, %v6687
      %v6803 = vmax.f32 %v6802, %v6695
      %v6804 = vmax.f32 %v6803, %v6703
      %v6805 = vmax.f32 %v6804, %v6711
      %v6806 = vmax.f32 %v6805, %v6719
      %v6807 = vmax.f32 %v6806, %v6727
      %v6808 = vmax.f32 %v6807, %v6735
      %v6809 = vmax.f32 %v6808, %v6743
      %v6810 = vmax.f32 %v6809, %v6751
      %v6811 = vmax.f32 %v6810, %v6759
      %v6812 = vmax.f32 %v6811, %v6767
      %v6813 = vmax.f32 %v6812, %v6775
      %v6814 = vrot.slane %v6813, 4
      %v6815 = vmax.f32 %v6813, %v6814
      %v6816 = vrot.slane %v6815, 2
      %v6817 = vmax.f32 %v6815, %v6816
      %v6818 = vrot.slane %v6817, 1
      %v6819 = vmax.f32 %v6817, %v6818
      %v6820 = vmax.f32 %v6528, %v6536
      %v6821 = vmax.f32 %v6820, %v6544
      %v6822 = vmax.f32 %v6821, %v6552
      %v6823 = vmax.f32 %v6822, %v6560
      %v6824 = vmax.f32 %v6823, %v6568
      %v6825 = vmax.f32 %v6824, %v6576
      %v6826 = vmax.f32 %v6825, %v6584
      %v6827 = vmax.f32 %v6826, %v6592
      %v6828 = vmax.f32 %v6827, %v6600
      %v6829 = vmax.f32 %v6828, %v6608
      %v6830 = vmax.f32 %v6829, %v6616
      %v6831 = vmax.f32 %v6830, %v6624
      %v6832 = vmax.f32 %v6831, %v6632
      %v6833 = vmax.f32 %v6832, %v6640
      %v6834 = vmax.f32 %v6833, %v6648
      %v6835 = vmax.f32 %v6834, %v6656
      %v6836 = vmax.f32 %v6835, %v6664
      %v6837 = vmax.f32 %v6836, %v6672
      %v6838 = vmax.f32 %v6837, %v6680
      %v6839 = vmax.f32 %v6838, %v6688
      %v6840 = vmax.f32 %v6839, %v6696
      %v6841 = vmax.f32 %v6840, %v6704
      %v6842 = vmax.f32 %v6841, %v6712
      %v6843 = vmax.f32 %v6842, %v6720
      %v6844 = vmax.f32 %v6843, %v6728
      %v6845 = vmax.f32 %v6844, %v6736
      %v6846 = vmax.f32 %v6845, %v6744
      %v6847 = vmax.f32 %v6846, %v6752
      %v6848 = vmax.f32 %v6847, %v6760
      %v6849 = vmax.f32 %v6848, %v6768
      %v6850 = vmax.f32 %v6849, %v6776
      %v6851 = vrot.slane %v6850, 4
      %v6852 = vmax.f32 %v6850, %v6851
      %v6853 = vrot.slane %v6852, 2
      %v6854 = vmax.f32 %v6852, %v6853
      %v6855 = vrot.slane %v6854, 1
      %v6856 = vmax.f32 %v6854, %v6855
      %v6857 = vmax.f32 %v6529, %v6537
      %v6858 = vmax.f32 %v6857, %v6545
      %v6859 = vmax.f32 %v6858, %v6553
      %v6860 = vmax.f32 %v6859, %v6561
      %v6861 = vmax.f32 %v6860, %v6569
      %v6862 = vmax.f32 %v6861, %v6577
      %v6863 = vmax.f32 %v6862, %v6585
      %v6864 = vmax.f32 %v6863, %v6593
      %v6865 = vmax.f32 %v6864, %v6601
      %v6866 = vmax.f32 %v6865, %v6609
      %v6867 = vmax.f32 %v6866, %v6617
      %v6868 = vmax.f32 %v6867, %v6625
      %v6869 = vmax.f32 %v6868, %v6633
      %v6870 = vmax.f32 %v6869, %v6641
      %v6871 = vmax.f32 %v6870, %v6649
      %v6872 = vmax.f32 %v6871, %v6657
      %v6873 = vmax.f32 %v6872, %v6665
      %v6874 = vmax.f32 %v6873, %v6673
      %v6875 = vmax.f32 %v6874, %v6681
      %v6876 = vmax.f32 %v6875, %v6689
      %v6877 = vmax.f32 %v6876, %v6697
      %v6878 = vmax.f32 %v6877, %v6705
      %v6879 = vmax.f32 %v6878, %v6713
      %v6880 = vmax.f32 %v6879, %v6721
      %v6881 = vmax.f32 %v6880, %v6729
      %v6882 = vmax.f32 %v6881, %v6737
      %v6883 = vmax.f32 %v6882, %v6745
      %v6884 = vmax.f32 %v6883, %v6753
      %v6885 = vmax.f32 %v6884, %v6761
      %v6886 = vmax.f32 %v6885, %v6769
      %v6887 = vmax.f32 %v6886, %v6777
      %v6888 = vrot.slane %v6887, 4
      %v6889 = vmax.f32 %v6887, %v6888
      %v6890 = vrot.slane %v6889, 2
      %v6891 = vmax.f32 %v6889, %v6890
      %v6892 = vrot.slane %v6891, 1
      %v6893 = vmax.f32 %v6891, %v6892
      %v6894 = vmax.f32 %v6530, %v6538
      %v6895 = vmax.f32 %v6894, %v6546
      %v6896 = vmax.f32 %v6895, %v6554
      %v6897 = vmax.f32 %v6896, %v6562
      %v6898 = vmax.f32 %v6897, %v6570
      %v6899 = vmax.f32 %v6898, %v6578
      %v6900 = vmax.f32 %v6899, %v6586
      %v6901 = vmax.f32 %v6900, %v6594
      %v6902 = vmax.f32 %v6901, %v6602
      %v6903 = vmax.f32 %v6902, %v6610
      %v6904 = vmax.f32 %v6903, %v6618
      %v6905 = vmax.f32 %v6904, %v6626
      %v6906 = vmax.f32 %v6905, %v6634
      %v6907 = vmax.f32 %v6906, %v6642
      %v6908 = vmax.f32 %v6907, %v6650
      %v6909 = vmax.f32 %v6908, %v6658
      %v6910 = vmax.f32 %v6909, %v6666
      %v6911 = vmax.f32 %v6910, %v6674
      %v6912 = vmax.f32 %v6911, %v6682
      %v6913 = vmax.f32 %v6912, %v6690
      %v6914 = vmax.f32 %v6913, %v6698
      %v6915 = vmax.f32 %v6914, %v6706
      %v6916 = vmax.f32 %v6915, %v6714
      %v6917 = vmax.f32 %v6916, %v6722
      %v6918 = vmax.f32 %v6917, %v6730
      %v6919 = vmax.f32 %v6918, %v6738
      %v6920 = vmax.f32 %v6919, %v6746
      %v6921 = vmax.f32 %v6920, %v6754
      %v6922 = vmax.f32 %v6921, %v6762
      %v6923 = vmax.f32 %v6922, %v6770
      %v6924 = vmax.f32 %v6923, %v6778
      %v6925 = vrot.slane %v6924, 4
      %v6926 = vmax.f32 %v6924, %v6925
      %v6927 = vrot.slane %v6926, 2
      %v6928 = vmax.f32 %v6926, %v6927
      %v6929 = vrot.slane %v6928, 1
      %v6930 = vmax.f32 %v6928, %v6929
      %v6931 = vmax.f32 %v6531, %v6539
      %v6932 = vmax.f32 %v6931, %v6547
      %v6933 = vmax.f32 %v6932, %v6555
      %v6934 = vmax.f32 %v6933, %v6563
      %v6935 = vmax.f32 %v6934, %v6571
      %v6936 = vmax.f32 %v6935, %v6579
      %v6937 = vmax.f32 %v6936, %v6587
      %v6938 = vmax.f32 %v6937, %v6595
      %v6939 = vmax.f32 %v6938, %v6603
      %v6940 = vmax.f32 %v6939, %v6611
      %v6941 = vmax.f32 %v6940, %v6619
      %v6942 = vmax.f32 %v6941, %v6627
      %v6943 = vmax.f32 %v6942, %v6635
      %v6944 = vmax.f32 %v6943, %v6643
      %v6945 = vmax.f32 %v6944, %v6651
      %v6946 = vmax.f32 %v6945, %v6659
      %v6947 = vmax.f32 %v6946, %v6667
      %v6948 = vmax.f32 %v6947, %v6675
      %v6949 = vmax.f32 %v6948, %v6683
      %v6950 = vmax.f32 %v6949, %v6691
      %v6951 = vmax.f32 %v6950, %v6699
      %v6952 = vmax.f32 %v6951, %v6707
      %v6953 = vmax.f32 %v6952, %v6715
      %v6954 = vmax.f32 %v6953, %v6723
      %v6955 = vmax.f32 %v6954, %v6731
      %v6956 = vmax.f32 %v6955, %v6739
      %v6957 = vmax.f32 %v6956, %v6747
      %v6958 = vmax.f32 %v6957, %v6755
      %v6959 = vmax.f32 %v6958, %v6763
      %v6960 = vmax.f32 %v6959, %v6771
      %v6961 = vmax.f32 %v6960, %v6779
      %v6962 = vrot.slane %v6961, 4
      %v6963 = vmax.f32 %v6961, %v6962
      %v6964 = vrot.slane %v6963, 2
      %v6965 = vmax.f32 %v6963, %v6964
      %v6966 = vrot.slane %v6965, 1
      %v6967 = vmax.f32 %v6965, %v6966
      %v6968 = vmax.f32 %v6532, %v6540
      %v6969 = vmax.f32 %v6968, %v6548
      %v6970 = vmax.f32 %v6969, %v6556
      %v6971 = vmax.f32 %v6970, %v6564
      %v6972 = vmax.f32 %v6971, %v6572
      %v6973 = vmax.f32 %v6972, %v6580
      %v6974 = vmax.f32 %v6973, %v6588
      %v6975 = vmax.f32 %v6974, %v6596
      %v6976 = vmax.f32 %v6975, %v6604
      %v6977 = vmax.f32 %v6976, %v6612
      %v6978 = vmax.f32 %v6977, %v6620
      %v6979 = vmax.f32 %v6978, %v6628
      %v6980 = vmax.f32 %v6979, %v6636
      %v6981 = vmax.f32 %v6980, %v6644
      %v6982 = vmax.f32 %v6981, %v6652
      %v6983 = vmax.f32 %v6982, %v6660
      %v6984 = vmax.f32 %v6983, %v6668
      %v6985 = vmax.f32 %v6984, %v6676
      %v6986 = vmax.f32 %v6985, %v6684
      %v6987 = vmax.f32 %v6986, %v6692
      %v6988 = vmax.f32 %v6987, %v6700
      %v6989 = vmax.f32 %v6988, %v6708
      %v6990 = vmax.f32 %v6989, %v6716
      %v6991 = vmax.f32 %v6990, %v6724
      %v6992 = vmax.f32 %v6991, %v6732
      %v6993 = vmax.f32 %v6992, %v6740
      %v6994 = vmax.f32 %v6993, %v6748
      %v6995 = vmax.f32 %v6994, %v6756
      %v6996 = vmax.f32 %v6995, %v6764
      %v6997 = vmax.f32 %v6996, %v6772
      %v6998 = vmax.f32 %v6997, %v6780
      %v6999 = vrot.slane %v6998, 4
      %v7000 = vmax.f32 %v6998, %v6999
      %v7001 = vrot.slane %v7000, 2
      %v7002 = vmax.f32 %v7000, %v7001
      %v7003 = vrot.slane %v7002, 1
      %v7004 = vmax.f32 %v7002, %v7003
      %v7005 = vmax.f32 %v6533, %v6541
      %v7006 = vmax.f32 %v7005, %v6549
      %v7007 = vmax.f32 %v7006, %v6557
      %v7008 = vmax.f32 %v7007, %v6565
      %v7009 = vmax.f32 %v7008, %v6573
      %v7010 = vmax.f32 %v7009, %v6581
      %v7011 = vmax.f32 %v7010, %v6589
      %v7012 = vmax.f32 %v7011, %v6597
      %v7013 = vmax.f32 %v7012, %v6605
      %v7014 = vmax.f32 %v7013, %v6613
      %v7015 = vmax.f32 %v7014, %v6621
      %v7016 = vmax.f32 %v7015, %v6629
      %v7017 = vmax.f32 %v7016, %v6637
      %v7018 = vmax.f32 %v7017, %v6645
      %v7019 = vmax.f32 %v7018, %v6653
      %v7020 = vmax.f32 %v7019, %v6661
      %v7021 = vmax.f32 %v7020, %v6669
      %v7022 = vmax.f32 %v7021, %v6677
      %v7023 = vmax.f32 %v7022, %v6685
      %v7024 = vmax.f32 %v7023, %v6693
      %v7025 = vmax.f32 %v7024, %v6701
      %v7026 = vmax.f32 %v7025, %v6709
      %v7027 = vmax.f32 %v7026, %v6717
      %v7028 = vmax.f32 %v7027, %v6725
      %v7029 = vmax.f32 %v7028, %v6733
      %v7030 = vmax.f32 %v7029, %v6741
      %v7031 = vmax.f32 %v7030, %v6749
      %v7032 = vmax.f32 %v7031, %v6757
      %v7033 = vmax.f32 %v7032, %v6765
      %v7034 = vmax.f32 %v7033, %v6773
      %v7035 = vmax.f32 %v7034, %v6781
      %v7036 = vrot.slane %v7035, 4
      %v7037 = vmax.f32 %v7035, %v7036
      %v7038 = vrot.slane %v7037, 2
      %v7039 = vmax.f32 %v7037, %v7038
      %v7040 = vrot.slane %v7039, 1
      %v7041 = vmax.f32 %v7039, %v7040
      %v7042 = vmax.f32 %v6534, %v6542
      %v7043 = vmax.f32 %v7042, %v6550
      %v7044 = vmax.f32 %v7043, %v6558
      %v7045 = vmax.f32 %v7044, %v6566
      %v7046 = vmax.f32 %v7045, %v6574
      %v7047 = vmax.f32 %v7046, %v6582
      %v7048 = vmax.f32 %v7047, %v6590
      %v7049 = vmax.f32 %v7048, %v6598
      %v7050 = vmax.f32 %v7049, %v6606
      %v7051 = vmax.f32 %v7050, %v6614
      %v7052 = vmax.f32 %v7051, %v6622
      %v7053 = vmax.f32 %v7052, %v6630
      %v7054 = vmax.f32 %v7053, %v6638
      %v7055 = vmax.f32 %v7054, %v6646
      %v7056 = vmax.f32 %v7055, %v6654
      %v7057 = vmax.f32 %v7056, %v6662
      %v7058 = vmax.f32 %v7057, %v6670
      %v7059 = vmax.f32 %v7058, %v6678
      %v7060 = vmax.f32 %v7059, %v6686
      %v7061 = vmax.f32 %v7060, %v6694
      %v7062 = vmax.f32 %v7061, %v6702
      %v7063 = vmax.f32 %v7062, %v6710
      %v7064 = vmax.f32 %v7063, %v6718
      %v7065 = vmax.f32 %v7064, %v6726
      %v7066 = vmax.f32 %v7065, %v6734
      %v7067 = vmax.f32 %v7066, %v6742
      %v7068 = vmax.f32 %v7067, %v6750
      %v7069 = vmax.f32 %v7068, %v6758
      %v7070 = vmax.f32 %v7069, %v6766
      %v7071 = vmax.f32 %v7070, %v6774
      %v7072 = vmax.f32 %v7071, %v6782
      %v7073 = vrot.slane %v7072, 4
      %v7074 = vmax.f32 %v7072, %v7073
      %v7075 = vrot.slane %v7074, 2
      %v7076 = vmax.f32 %v7074, %v7075
      %v7077 = vrot.slane %v7076, 1
      %v7078 = vmax.f32 %v7076, %v7077
      %v7079 = vmax.f32 %v5747, %v6819
      %v7080 = vmax.f32 %v5748, %v6856
      %v7081 = vmax.f32 %v5749, %v6893
      %v7082 = vmax.f32 %v5750, %v6930
      %v7083 = vmax.f32 %v5751, %v6967
      %v7084 = vmax.f32 %v5752, %v7004
      %v7085 = vmax.f32 %v5753, %v7041
      %v7086 = vmax.f32 %v5754, %v7078
      %7087 = vmatprep.subr.bf16.mxu0 %v3020
      %7088 = vmatpush1.bf16.msra.mxu0 %v3019
      %7089 = vmatprep.subr.bf16.mxu0 %v3012
      %7090 = vmatpush1.bf16.msra.mxu0 %v3011
      %7091 = vmatprep.subr.bf16.mxu0 %v3004
      %7092 = vmatpush1.bf16.msra.mxu0 %v3003
      %7093 = vmatprep.subr.bf16.mxu0 %v2996
      %7094 = vmatpush1.bf16.msra.mxu0 %v2995
      %7095 = vmatprep.subr.bf16.mxu0 %v2988
      %7096 = vmatpush1.bf16.msra.mxu0 %v2987
      %7097 = vmatprep.subr.bf16.mxu0 %v2980
      %7098 = vmatpush1.bf16.msra.mxu0 %v2979
      %7099 = vmatprep.subr.bf16.mxu0 %v2972
      %7100 = vmatpush1.bf16.msra.mxu0 %v2971
      %7101 = vmatprep.subr.bf16.mxu0 %v2964
      %7102 = vmatpush1.bf16.msra.mxu0 %v2963
      %7103 = vmatprep.subr.bf16.mxu0 0
      %7104 = vmatpush2.bf16.msra.mxu0 0
      %7105 = vmatprep.subr.bf16.mxu0 0
      %7106 = vmatpush2.bf16.msra.mxu0 0
      %7107 = vmatprep.subr.bf16.mxu0 0
      %7108 = vmatpush2.bf16.msra.mxu0 0
      %7109 = vmatprep.subr.bf16.mxu0 0
      %7110 = vmatpush2.bf16.msra.mxu0 0
      %7111 = vmatprep.subr.bf16.mxu0 0
      %7112 = vmatpush2.bf16.msra.mxu0 0
      %7113 = vmatprep.subr.bf16.mxu0 0
      %7114 = vmatpush2.bf16.msra.mxu0 0
      %7115 = vmatprep.subr.bf16.mxu0 0
      %7116 = vmatpush2.bf16.msra.mxu0 0
      %7117 = vmatprep.subr.bf16.mxu0 0
      %7118 = vmatpush2.bf16.msra.mxu0 0
      %7119 = vmatprep.mubr.bf16.mxu0 0
      %7120 = vmatmul.mubr.bf16.gmra.mxu0 %v2649
      %v7121 = vpop.f32.mrf.mxu0
      %v7122 = vadd.f32 %v2734, %v7121
      %v7123 = vpop.f32.mrf.mxu0
      %v7124 = vadd.f32 %v2738, %v7123
      %v7125 = vpop.f32.mrf.mxu0
      %v7126 = vadd.f32 %v2734, %v7125
      %v7127 = vpop.f32.mrf.mxu0
      %v7128 = vadd.f32 %v2738, %v7127
      %7129 = vmatprep.mubr.bf16.mxu0 0
      %7130 = vmatmul.mubr.bf16.gmra.mxu0 %v2650
      %v7131 = vpop.f32.mrf.mxu0
      %v7132 = vadd.f32 %v2734, %v7131
      %v7133 = vpop.f32.mrf.mxu0
      %v7134 = vadd.f32 %v2738, %v7133
      %v7135 = vpop.f32.mrf.mxu0
      %v7136 = vadd.f32 %v2734, %v7135
      %v7137 = vpop.f32.mrf.mxu0
      %v7138 = vadd.f32 %v2738, %v7137
      %7139 = vmatprep.mubr.bf16.mxu0 0
      %7140 = vmatmul.mubr.bf16.gmra.mxu0 %v2651
      %v7141 = vpop.f32.mrf.mxu0
      %v7142 = vadd.f32 %v2734, %v7141
      %v7143 = vpop.f32.mrf.mxu0
      %v7144 = vadd.f32 %v2738, %v7143
      %v7145 = vpop.f32.mrf.mxu0
      %v7146 = vadd.f32 %v2734, %v7145
      %v7147 = vpop.f32.mrf.mxu0
      %v7148 = vadd.f32 %v2738, %v7147
      %7149 = vmatprep.mubr.bf16.mxu0 0
      %7150 = vmatmul.mubr.bf16.gmra.mxu0 %v2652
      %v7151 = vpop.f32.mrf.mxu0
      %v7152 = vadd.f32 %v2734, %v7151
      %v7153 = vpop.f32.mrf.mxu0
      %v7154 = vadd.f32 %v2738, %v7153
      %v7155 = vpop.f32.mrf.mxu0
      %v7156 = vadd.f32 %v2734, %v7155
      %v7157 = vpop.f32.mrf.mxu0
      %v7158 = vadd.f32 %v2738, %v7157
      %7159 = vmatprep.mubr.bf16.mxu0 0
      %7160 = vmatmul.mubr.bf16.gmra.mxu0 %v2653
      %v7161 = vpop.f32.mrf.mxu0
      %v7162 = vadd.f32 %v2734, %v7161
      %v7163 = vpop.f32.mrf.mxu0
      %v7164 = vadd.f32 %v2738, %v7163
      %v7165 = vpop.f32.mrf.mxu0
      %v7166 = vadd.f32 %v2734, %v7165
      %v7167 = vpop.f32.mrf.mxu0
      %v7168 = vadd.f32 %v2738, %v7167
      %7169 = vmatprep.mubr.bf16.mxu0 0
      %7170 = vmatmul.mubr.bf16.gmra.mxu0 %v2654
      %v7171 = vpop.f32.mrf.mxu0
      %v7172 = vadd.f32 %v2734, %v7171
      %v7173 = vpop.f32.mrf.mxu0
      %v7174 = vadd.f32 %v2738, %v7173
      %v7175 = vpop.f32.mrf.mxu0
      %v7176 = vadd.f32 %v2734, %v7175
      %v7177 = vpop.f32.mrf.mxu0
      %v7178 = vadd.f32 %v2738, %v7177
      %7179 = vmatprep.mubr.bf16.mxu0 0
      %7180 = vmatmul.mubr.bf16.gmra.mxu0 %v2655
      %v7181 = vpop.f32.mrf.mxu0
      %v7182 = vadd.f32 %v2734, %v7181
      %v7183 = vpop.f32.mrf.mxu0
      %v7184 = vadd.f32 %v2738, %v7183
      %v7185 = vpop.f32.mrf.mxu0
      %v7186 = vadd.f32 %v2734, %v7185
      %v7187 = vpop.f32.mrf.mxu0
      %v7188 = vadd.f32 %v2738, %v7187
      %7189 = vmatprep.mubr.bf16.mxu0 0
      %7190 = vmatmul.mubr.bf16.gmra.mxu0 %v2656
      %v7191 = vpop.f32.mrf.mxu0
      %v7192 = vadd.f32 %v2734, %v7191
      %v7193 = vpop.f32.mrf.mxu0
      %v7194 = vadd.f32 %v2738, %v7193
      %v7195 = vpop.f32.mrf.mxu0
      %v7196 = vadd.f32 %v2734, %v7195
      %v7197 = vpop.f32.mrf.mxu0
      %v7198 = vadd.f32 %v2738, %v7197
      %7199 = vmatprep.mubr.bf16.mxu0 0
      %7200 = vmatmul.mubr.bf16.gmra.mxu0 %v2657
      %v7201 = vpop.f32.mrf.mxu0
      %v7202 = vadd.f32 %v2734, %v7201
      %v7203 = vpop.f32.mrf.mxu0
      %v7204 = vadd.f32 %v2738, %v7203
      %v7205 = vpop.f32.mrf.mxu0
      %v7206 = vadd.f32 %v2734, %v7205
      %v7207 = vpop.f32.mrf.mxu0
      %v7208 = vadd.f32 %v2738, %v7207
      %7209 = vmatprep.mubr.bf16.mxu0 0
      %7210 = vmatmul.mubr.bf16.gmra.mxu0 %v2658
      %v7211 = vpop.f32.mrf.mxu0
      %v7212 = vadd.f32 %v2734, %v7211
      %v7213 = vpop.f32.mrf.mxu0
      %v7214 = vadd.f32 %v2738, %v7213
      %v7215 = vpop.f32.mrf.mxu0
      %v7216 = vadd.f32 %v2734, %v7215
      %v7217 = vpop.f32.mrf.mxu0
      %v7218 = vadd.f32 %v2738, %v7217
      %7219 = vmatprep.mubr.bf16.mxu0 0
      %7220 = vmatmul.mubr.bf16.gmra.mxu0 %v2659
      %v7221 = vpop.f32.mrf.mxu0
      %v7222 = vadd.f32 %v2734, %v7221
      %v7223 = vpop.f32.mrf.mxu0
      %v7224 = vadd.f32 %v2738, %v7223
      %v7225 = vpop.f32.mrf.mxu0
      %v7226 = vadd.f32 %v2734, %v7225
      %v7227 = vpop.f32.mrf.mxu0
      %v7228 = vadd.f32 %v2738, %v7227
      %7229 = vmatprep.mubr.bf16.mxu0 0
      %7230 = vmatmul.mubr.bf16.gmra.mxu0 %v2660
      %v7231 = vpop.f32.mrf.mxu0
      %v7232 = vadd.f32 %v2734, %v7231
      %v7233 = vpop.f32.mrf.mxu0
      %v7234 = vadd.f32 %v2738, %v7233
      %v7235 = vpop.f32.mrf.mxu0
      %v7236 = vadd.f32 %v2734, %v7235
      %v7237 = vpop.f32.mrf.mxu0
      %v7238 = vadd.f32 %v2738, %v7237
      %7239 = vmatprep.mubr.bf16.mxu0 0
      %7240 = vmatmul.mubr.bf16.gmra.mxu0 %v2661
      %v7241 = vpop.f32.mrf.mxu0
      %v7242 = vadd.f32 %v2734, %v7241
      %v7243 = vpop.f32.mrf.mxu0
      %v7244 = vadd.f32 %v2738, %v7243
      %v7245 = vpop.f32.mrf.mxu0
      %v7246 = vadd.f32 %v2734, %v7245
      %v7247 = vpop.f32.mrf.mxu0
      %v7248 = vadd.f32 %v2738, %v7247
      %7249 = vmatprep.mubr.bf16.mxu0 0
      %7250 = vmatmul.mubr.bf16.gmra.mxu0 %v2662
      %v7251 = vpop.f32.mrf.mxu0
      %v7252 = vadd.f32 %v2734, %v7251
      %v7253 = vpop.f32.mrf.mxu0
      %v7254 = vadd.f32 %v2738, %v7253
      %v7255 = vpop.f32.mrf.mxu0
      %v7256 = vadd.f32 %v2734, %v7255
      %v7257 = vpop.f32.mrf.mxu0
      %v7258 = vadd.f32 %v2738, %v7257
      %7259 = vmatprep.mubr.bf16.mxu0 0
      %7260 = vmatmul.mubr.bf16.gmra.mxu0 %v2663
      %v7261 = vpop.f32.mrf.mxu0
      %v7262 = vadd.f32 %v2734, %v7261
      %v7263 = vpop.f32.mrf.mxu0
      %v7264 = vadd.f32 %v2738, %v7263
      %v7265 = vpop.f32.mrf.mxu0
      %v7266 = vadd.f32 %v2734, %v7265
      %v7267 = vpop.f32.mrf.mxu0
      %v7268 = vadd.f32 %v2738, %v7267
      %7269 = vmatprep.mubr.bf16.mxu0 0
      %7270 = vmatmul.mubr.bf16.gmra.mxu0 %v2664
      %v7271 = vpop.f32.mrf.mxu0
      %v7272 = vadd.f32 %v2734, %v7271
      %v7273 = vpop.f32.mrf.mxu0
      %v7274 = vadd.f32 %v2738, %v7273
      %v7275 = vpop.f32.mrf.mxu0
      %v7276 = vadd.f32 %v2734, %v7275
      %v7277 = vpop.f32.mrf.mxu0
      %v7278 = vadd.f32 %v2738, %v7277
      %7279 = vdwg.mxu0
      %7280 = vmatprep.subr.bf16.mxu0 %v3022
      %7281 = vmatpush1.bf16.msra.mxu0 %v3021
      %7282 = vmatprep.subr.bf16.mxu0 %v3014
      %7283 = vmatpush1.bf16.msra.mxu0 %v3013
      %7284 = vmatprep.subr.bf16.mxu0 %v3006
      %7285 = vmatpush1.bf16.msra.mxu0 %v3005
      %7286 = vmatprep.subr.bf16.mxu0 %v2998
      %7287 = vmatpush1.bf16.msra.mxu0 %v2997
      %7288 = vmatprep.subr.bf16.mxu0 %v2990
      %7289 = vmatpush1.bf16.msra.mxu0 %v2989
      %7290 = vmatprep.subr.bf16.mxu0 %v2982
      %7291 = vmatpush1.bf16.msra.mxu0 %v2981
      %7292 = vmatprep.subr.bf16.mxu0 %v2974
      %7293 = vmatpush1.bf16.msra.mxu0 %v2973
      %7294 = vmatprep.subr.bf16.mxu0 %v2966
      %7295 = vmatpush1.bf16.msra.mxu0 %v2965
      %7296 = vmatprep.subr.bf16.mxu0 0
      %7297 = vmatpush2.bf16.msra.mxu0 0
      %7298 = vmatprep.subr.bf16.mxu0 0
      %7299 = vmatpush2.bf16.msra.mxu0 0
      %7300 = vmatprep.subr.bf16.mxu0 0
      %7301 = vmatpush2.bf16.msra.mxu0 0
      %7302 = vmatprep.subr.bf16.mxu0 0
      %7303 = vmatpush2.bf16.msra.mxu0 0
      %7304 = vmatprep.subr.bf16.mxu0 0
      %7305 = vmatpush2.bf16.msra.mxu0 0
      %7306 = vmatprep.subr.bf16.mxu0 0
      %7307 = vmatpush2.bf16.msra.mxu0 0
      %7308 = vmatprep.subr.bf16.mxu0 0
      %7309 = vmatpush2.bf16.msra.mxu0 0
      %7310 = vmatprep.subr.bf16.mxu0 0
      %7311 = vmatpush2.bf16.msra.mxu0 0
      %7312 = vmatprep.mubr.bf16.mxu0 0
      %7313 = vmatmul.mubr.bf16.gmra.mxu0 %v2649
      %v7314 = vpop.f32.mrf.mxu0
      %v7315 = vadd.f32 %v2742, %v7314
      %v7316 = vpop.f32.mrf.mxu0
      %v7317 = vadd.f32 %v2746, %v7316
      %v7318 = vpop.f32.mrf.mxu0
      %v7319 = vadd.f32 %v2742, %v7318
      %v7320 = vpop.f32.mrf.mxu0
      %v7321 = vadd.f32 %v2746, %v7320
      %7322 = vmatprep.mubr.bf16.mxu0 0
      %7323 = vmatmul.mubr.bf16.gmra.mxu0 %v2650
      %v7324 = vpop.f32.mrf.mxu0
      %v7325 = vadd.f32 %v2742, %v7324
      %v7326 = vpop.f32.mrf.mxu0
      %v7327 = vadd.f32 %v2746, %v7326
      %v7328 = vpop.f32.mrf.mxu0
      %v7329 = vadd.f32 %v2742, %v7328
      %v7330 = vpop.f32.mrf.mxu0
      %v7331 = vadd.f32 %v2746, %v7330
      %7332 = vmatprep.mubr.bf16.mxu0 0
      %7333 = vmatmul.mubr.bf16.gmra.mxu0 %v2651
      %v7334 = vpop.f32.mrf.mxu0
      %v7335 = vadd.f32 %v2742, %v7334
      %v7336 = vpop.f32.mrf.mxu0
      %v7337 = vadd.f32 %v2746, %v7336
      %v7338 = vpop.f32.mrf.mxu0
      %v7339 = vadd.f32 %v2742, %v7338
      %v7340 = vpop.f32.mrf.mxu0
      %v7341 = vadd.f32 %v2746, %v7340
      %7342 = vmatprep.mubr.bf16.mxu0 0
      %7343 = vmatmul.mubr.bf16.gmra.mxu0 %v2652
      %v7344 = vpop.f32.mrf.mxu0
      %v7345 = vadd.f32 %v2742, %v7344
      %v7346 = vpop.f32.mrf.mxu0
      %v7347 = vadd.f32 %v2746, %v7346
      %v7348 = vpop.f32.mrf.mxu0
      %v7349 = vadd.f32 %v2742, %v7348
      %v7350 = vpop.f32.mrf.mxu0
      %v7351 = vadd.f32 %v2746, %v7350
      %7352 = vmatprep.mubr.bf16.mxu0 0
      %7353 = vmatmul.mubr.bf16.gmra.mxu0 %v2653
      %v7354 = vpop.f32.mrf.mxu0
      %v7355 = vadd.f32 %v2742, %v7354
      %v7356 = vpop.f32.mrf.mxu0
      %v7357 = vadd.f32 %v2746, %v7356
      %v7358 = vpop.f32.mrf.mxu0
      %v7359 = vadd.f32 %v2742, %v7358
      %v7360 = vpop.f32.mrf.mxu0
      %v7361 = vadd.f32 %v2746, %v7360
      %7362 = vmatprep.mubr.bf16.mxu0 0
      %7363 = vmatmul.mubr.bf16.gmra.mxu0 %v2654
      %v7364 = vpop.f32.mrf.mxu0
      %v7365 = vadd.f32 %v2742, %v7364
      %v7366 = vpop.f32.mrf.mxu0
      %v7367 = vadd.f32 %v2746, %v7366
      %v7368 = vpop.f32.mrf.mxu0
      %v7369 = vadd.f32 %v2742, %v7368
      %v7370 = vpop.f32.mrf.mxu0
      %v7371 = vadd.f32 %v2746, %v7370
      %7372 = vmatprep.mubr.bf16.mxu0 0
      %7373 = vmatmul.mubr.bf16.gmra.mxu0 %v2655
      %v7374 = vpop.f32.mrf.mxu0
      %v7375 = vadd.f32 %v2742, %v7374
      %v7376 = vpop.f32.mrf.mxu0
      %v7377 = vadd.f32 %v2746, %v7376
      %v7378 = vpop.f32.mrf.mxu0
      %v7379 = vadd.f32 %v2742, %v7378
      %v7380 = vpop.f32.mrf.mxu0
      %v7381 = vadd.f32 %v2746, %v7380
      %7382 = vmatprep.mubr.bf16.mxu0 0
      %7383 = vmatmul.mubr.bf16.gmra.mxu0 %v2656
      %v7384 = vpop.f32.mrf.mxu0
      %v7385 = vadd.f32 %v2742, %v7384
      %v7386 = vpop.f32.mrf.mxu0
      %v7387 = vadd.f32 %v2746, %v7386
      %v7388 = vpop.f32.mrf.mxu0
      %v7389 = vadd.f32 %v2742, %v7388
      %v7390 = vpop.f32.mrf.mxu0
      %v7391 = vadd.f32 %v2746, %v7390
      %7392 = vmatprep.mubr.bf16.mxu0 0
      %7393 = vmatmul.mubr.bf16.gmra.mxu0 %v2657
      %v7394 = vpop.f32.mrf.mxu0
      %v7395 = vadd.f32 %v2742, %v7394
      %v7396 = vpop.f32.mrf.mxu0
      %v7397 = vadd.f32 %v2746, %v7396
      %v7398 = vpop.f32.mrf.mxu0
      %v7399 = vadd.f32 %v2742, %v7398
      %v7400 = vpop.f32.mrf.mxu0
      %v7401 = vadd.f32 %v2746, %v7400
      %7402 = vmatprep.mubr.bf16.mxu0 0
      %7403 = vmatmul.mubr.bf16.gmra.mxu0 %v2658
      %v7404 = vpop.f32.mrf.mxu0
      %v7405 = vadd.f32 %v2742, %v7404
      %v7406 = vpop.f32.mrf.mxu0
      %v7407 = vadd.f32 %v2746, %v7406
      %v7408 = vpop.f32.mrf.mxu0
      %v7409 = vadd.f32 %v2742, %v7408
      %v7410 = vpop.f32.mrf.mxu0
      %v7411 = vadd.f32 %v2746, %v7410
      %7412 = vmatprep.mubr.bf16.mxu0 0
      %7413 = vmatmul.mubr.bf16.gmra.mxu0 %v2659
      %v7414 = vpop.f32.mrf.mxu0
      %v7415 = vadd.f32 %v2742, %v7414
      %v7416 = vpop.f32.mrf.mxu0
      %v7417 = vadd.f32 %v2746, %v7416
      %v7418 = vpop.f32.mrf.mxu0
      %v7419 = vadd.f32 %v2742, %v7418
      %v7420 = vpop.f32.mrf.mxu0
      %v7421 = vadd.f32 %v2746, %v7420
      %7422 = vmatprep.mubr.bf16.mxu0 0
      %7423 = vmatmul.mubr.bf16.gmra.mxu0 %v2660
      %v7424 = vpop.f32.mrf.mxu0
      %v7425 = vadd.f32 %v2742, %v7424
      %v7426 = vpop.f32.mrf.mxu0
      %v7427 = vadd.f32 %v2746, %v7426
      %v7428 = vpop.f32.mrf.mxu0
      %v7429 = vadd.f32 %v2742, %v7428
      %v7430 = vpop.f32.mrf.mxu0
      %v7431 = vadd.f32 %v2746, %v7430
      %7432 = vmatprep.mubr.bf16.mxu0 0
      %7433 = vmatmul.mubr.bf16.gmra.mxu0 %v2661
      %v7434 = vpop.f32.mrf.mxu0
      %v7435 = vadd.f32 %v2742, %v7434
      %v7436 = vpop.f32.mrf.mxu0
      %v7437 = vadd.f32 %v2746, %v7436
      %v7438 = vpop.f32.mrf.mxu0
      %v7439 = vadd.f32 %v2742, %v7438
      %v7440 = vpop.f32.mrf.mxu0
      %v7441 = vadd.f32 %v2746, %v7440
      %7442 = vmatprep.mubr.bf16.mxu0 0
      %7443 = vmatmul.mubr.bf16.gmra.mxu0 %v2662
      %v7444 = vpop.f32.mrf.mxu0
      %v7445 = vadd.f32 %v2742, %v7444
      %v7446 = vpop.f32.mrf.mxu0
      %v7447 = vadd.f32 %v2746, %v7446
      %v7448 = vpop.f32.mrf.mxu0
      %v7449 = vadd.f32 %v2742, %v7448
      %v7450 = vpop.f32.mrf.mxu0
      %v7451 = vadd.f32 %v2746, %v7450
      %7452 = vmatprep.mubr.bf16.mxu0 0
      %7453 = vmatmul.mubr.bf16.gmra.mxu0 %v2663
      %v7454 = vpop.f32.mrf.mxu0
      %v7455 = vadd.f32 %v2742, %v7454
      %v7456 = vpop.f32.mrf.mxu0
      %v7457 = vadd.f32 %v2746, %v7456
      %v7458 = vpop.f32.mrf.mxu0
      %v7459 = vadd.f32 %v2742, %v7458
      %v7460 = vpop.f32.mrf.mxu0
      %v7461 = vadd.f32 %v2746, %v7460
      %7462 = vmatprep.mubr.bf16.mxu0 0
      %7463 = vmatmul.mubr.bf16.gmra.mxu0 %v2664
      %v7464 = vpop.f32.mrf.mxu0
      %v7465 = vadd.f32 %v2742, %v7464
      %v7466 = vpop.f32.mrf.mxu0
      %v7467 = vadd.f32 %v2746, %v7466
      %v7468 = vpop.f32.mrf.mxu0
      %v7469 = vadd.f32 %v2742, %v7468
      %v7470 = vpop.f32.mrf.mxu0
      %v7471 = vadd.f32 %v2746, %v7470
      %7472 = vdwg.mxu0
      %7473 = vmatprep.subr.bf16.mxu0 %v3024
      %7474 = vmatpush1.bf16.msra.mxu0 %v3023
      %7475 = vmatprep.subr.bf16.mxu0 %v3016
      %7476 = vmatpush1.bf16.msra.mxu0 %v3015
      %7477 = vmatprep.subr.bf16.mxu0 %v3008
      %7478 = vmatpush1.bf16.msra.mxu0 %v3007
      %7479 = vmatprep.subr.bf16.mxu0 %v3000
      %7480 = vmatpush1.bf16.msra.mxu0 %v2999
      %7481 = vmatprep.subr.bf16.mxu0 %v2992
      %7482 = vmatpush1.bf16.msra.mxu0 %v2991
      %7483 = vmatprep.subr.bf16.mxu0 %v2984
      %7484 = vmatpush1.bf16.msra.mxu0 %v2983
      %7485 = vmatprep.subr.bf16.mxu0 %v2976
      %7486 = vmatpush1.bf16.msra.mxu0 %v2975
      %7487 = vmatprep.subr.bf16.mxu0 %v2968
      %7488 = vmatpush1.bf16.msra.mxu0 %v2967
      %7489 = vmatprep.subr.bf16.mxu0 0
      %7490 = vmatpush2.bf16.msra.mxu0 0
      %7491 = vmatprep.subr.bf16.mxu0 0
      %7492 = vmatpush2.bf16.msra.mxu0 0
      %7493 = vmatprep.subr.bf16.mxu0 0
      %7494 = vmatpush2.bf16.msra.mxu0 0
      %7495 = vmatprep.subr.bf16.mxu0 0
      %7496 = vmatpush2.bf16.msra.mxu0 0
      %7497 = vmatprep.subr.bf16.mxu0 0
      %7498 = vmatpush2.bf16.msra.mxu0 0
      %7499 = vmatprep.subr.bf16.mxu0 0
      %7500 = vmatpush2.bf16.msra.mxu0 0
      %7501 = vmatprep.subr.bf16.mxu0 0
      %7502 = vmatpush2.bf16.msra.mxu0 0
      %7503 = vmatprep.subr.bf16.mxu0 0
      %7504 = vmatpush2.bf16.msra.mxu0 0
      %7505 = vmatprep.mubr.bf16.mxu0 0
      %7506 = vmatmul.mubr.bf16.gmra.mxu0 %v2649
      %v7507 = vpop.f32.mrf.mxu0
      %v7508 = vadd.f32 %v2750, %v7507
      %v7509 = vpop.f32.mrf.mxu0
      %v7510 = vadd.f32 %v2754, %v7509
      %v7511 = vpop.f32.mrf.mxu0
      %v7512 = vadd.f32 %v2750, %v7511
      %v7513 = vpop.f32.mrf.mxu0
      %v7514 = vadd.f32 %v2754, %v7513
      %7515 = vmatprep.mubr.bf16.mxu0 0
      %7516 = vmatmul.mubr.bf16.gmra.mxu0 %v2650
      %v7517 = vpop.f32.mrf.mxu0
      %v7518 = vadd.f32 %v2750, %v7517
      %v7519 = vpop.f32.mrf.mxu0
      %v7520 = vadd.f32 %v2754, %v7519
      %v7521 = vpop.f32.mrf.mxu0
      %v7522 = vadd.f32 %v2750, %v7521
      %v7523 = vpop.f32.mrf.mxu0
      %v7524 = vadd.f32 %v2754, %v7523
      %7525 = vmatprep.mubr.bf16.mxu0 0
      %7526 = vmatmul.mubr.bf16.gmra.mxu0 %v2651
      %v7527 = vpop.f32.mrf.mxu0
      %v7528 = vadd.f32 %v2750, %v7527
      %v7529 = vpop.f32.mrf.mxu0
      %v7530 = vadd.f32 %v2754, %v7529
      %v7531 = vpop.f32.mrf.mxu0
      %v7532 = vadd.f32 %v2750, %v7531
      %v7533 = vpop.f32.mrf.mxu0
      %v7534 = vadd.f32 %v2754, %v7533
      %7535 = vmatprep.mubr.bf16.mxu0 0
      %7536 = vmatmul.mubr.bf16.gmra.mxu0 %v2652
      %v7537 = vpop.f32.mrf.mxu0
      %v7538 = vadd.f32 %v2750, %v7537
      %v7539 = vpop.f32.mrf.mxu0
      %v7540 = vadd.f32 %v2754, %v7539
      %v7541 = vpop.f32.mrf.mxu0
      %v7542 = vadd.f32 %v2750, %v7541
      %v7543 = vpop.f32.mrf.mxu0
      %v7544 = vadd.f32 %v2754, %v7543
      %7545 = vmatprep.mubr.bf16.mxu0 0
      %7546 = vmatmul.mubr.bf16.gmra.mxu0 %v2653
      %v7547 = vpop.f32.mrf.mxu0
      %v7548 = vadd.f32 %v2750, %v7547
      %v7549 = vpop.f32.mrf.mxu0
      %v7550 = vadd.f32 %v2754, %v7549
      %v7551 = vpop.f32.mrf.mxu0
      %v7552 = vadd.f32 %v2750, %v7551
      %v7553 = vpop.f32.mrf.mxu0
      %v7554 = vadd.f32 %v2754, %v7553
      %7555 = vmatprep.mubr.bf16.mxu0 0
      %7556 = vmatmul.mubr.bf16.gmra.mxu0 %v2654
      %v7557 = vpop.f32.mrf.mxu0
      %v7558 = vadd.f32 %v2750, %v7557
      %v7559 = vpop.f32.mrf.mxu0
      %v7560 = vadd.f32 %v2754, %v7559
      %v7561 = vpop.f32.mrf.mxu0
      %v7562 = vadd.f32 %v2750, %v7561
      %v7563 = vpop.f32.mrf.mxu0
      %v7564 = vadd.f32 %v2754, %v7563
      %7565 = vmatprep.mubr.bf16.mxu0 0
      %7566 = vmatmul.mubr.bf16.gmra.mxu0 %v2655
      %v7567 = vpop.f32.mrf.mxu0
      %v7568 = vadd.f32 %v2750, %v7567
      %v7569 = vpop.f32.mrf.mxu0
      %v7570 = vadd.f32 %v2754, %v7569
      %v7571 = vpop.f32.mrf.mxu0
      %v7572 = vadd.f32 %v2750, %v7571
      %v7573 = vpop.f32.mrf.mxu0
      %v7574 = vadd.f32 %v2754, %v7573
      %7575 = vmatprep.mubr.bf16.mxu0 0
      %7576 = vmatmul.mubr.bf16.gmra.mxu0 %v2656
      %v7577 = vpop.f32.mrf.mxu0
      %v7578 = vadd.f32 %v2750, %v7577
      %v7579 = vpop.f32.mrf.mxu0
      %v7580 = vadd.f32 %v2754, %v7579
      %v7581 = vpop.f32.mrf.mxu0
      %v7582 = vadd.f32 %v2750, %v7581
      %v7583 = vpop.f32.mrf.mxu0
      %v7584 = vadd.f32 %v2754, %v7583
      %7585 = vmatprep.mubr.bf16.mxu0 0
      %7586 = vmatmul.mubr.bf16.gmra.mxu0 %v2657
      %v7587 = vpop.f32.mrf.mxu0
      %v7588 = vadd.f32 %v2750, %v7587
      %v7589 = vpop.f32.mrf.mxu0
      %v7590 = vadd.f32 %v2754, %v7589
      %v7591 = vpop.f32.mrf.mxu0
      %v7592 = vadd.f32 %v2750, %v7591
      %v7593 = vpop.f32.mrf.mxu0
      %v7594 = vadd.f32 %v2754, %v7593
      %7595 = vmatprep.mubr.bf16.mxu0 0
      %7596 = vmatmul.mubr.bf16.gmra.mxu0 %v2658
      %v7597 = vpop.f32.mrf.mxu0
      %v7598 = vadd.f32 %v2750, %v7597
      %v7599 = vpop.f32.mrf.mxu0
      %v7600 = vadd.f32 %v2754, %v7599
      %v7601 = vpop.f32.mrf.mxu0
      %v7602 = vadd.f32 %v2750, %v7601
      %v7603 = vpop.f32.mrf.mxu0
      %v7604 = vadd.f32 %v2754, %v7603
      %7605 = vmatprep.mubr.bf16.mxu0 0
      %7606 = vmatmul.mubr.bf16.gmra.mxu0 %v2659
      %v7607 = vpop.f32.mrf.mxu0
      %v7608 = vadd.f32 %v2750, %v7607
      %v7609 = vpop.f32.mrf.mxu0
      %v7610 = vadd.f32 %v2754, %v7609
      %v7611 = vpop.f32.mrf.mxu0
      %v7612 = vadd.f32 %v2750, %v7611
      %v7613 = vpop.f32.mrf.mxu0
      %v7614 = vadd.f32 %v2754, %v7613
      %7615 = vmatprep.mubr.bf16.mxu0 0
      %7616 = vmatmul.mubr.bf16.gmra.mxu0 %v2660
      %v7617 = vpop.f32.mrf.mxu0
      %v7618 = vadd.f32 %v2750, %v7617
      %v7619 = vpop.f32.mrf.mxu0
      %v7620 = vadd.f32 %v2754, %v7619
      %v7621 = vpop.f32.mrf.mxu0
      %v7622 = vadd.f32 %v2750, %v7621
      %v7623 = vpop.f32.mrf.mxu0
      %v7624 = vadd.f32 %v2754, %v7623
      %7625 = vmatprep.mubr.bf16.mxu0 0
      %7626 = vmatmul.mubr.bf16.gmra.mxu0 %v2661
      %v7627 = vpop.f32.mrf.mxu0
      %v7628 = vadd.f32 %v2750, %v7627
      %v7629 = vpop.f32.mrf.mxu0
      %v7630 = vadd.f32 %v2754, %v7629
      %v7631 = vpop.f32.mrf.mxu0
      %v7632 = vadd.f32 %v2750, %v7631
      %v7633 = vpop.f32.mrf.mxu0
      %v7634 = vadd.f32 %v2754, %v7633
      %7635 = vmatprep.mubr.bf16.mxu0 0
      %7636 = vmatmul.mubr.bf16.gmra.mxu0 %v2662
      %v7637 = vpop.f32.mrf.mxu0
      %v7638 = vadd.f32 %v2750, %v7637
      %v7639 = vpop.f32.mrf.mxu0
      %v7640 = vadd.f32 %v2754, %v7639
      %v7641 = vpop.f32.mrf.mxu0
      %v7642 = vadd.f32 %v2750, %v7641
      %v7643 = vpop.f32.mrf.mxu0
      %v7644 = vadd.f32 %v2754, %v7643
      %7645 = vmatprep.mubr.bf16.mxu0 0
      %7646 = vmatmul.mubr.bf16.gmra.mxu0 %v2663
      %v7647 = vpop.f32.mrf.mxu0
      %v7648 = vadd.f32 %v2750, %v7647
      %v7649 = vpop.f32.mrf.mxu0
      %v7650 = vadd.f32 %v2754, %v7649
      %v7651 = vpop.f32.mrf.mxu0
      %v7652 = vadd.f32 %v2750, %v7651
      %v7653 = vpop.f32.mrf.mxu0
      %v7654 = vadd.f32 %v2754, %v7653
      %7655 = vmatprep.mubr.bf16.mxu0 0
      %7656 = vmatmul.mubr.bf16.gmra.mxu0 %v2664
      %v7657 = vpop.f32.mrf.mxu0
      %v7658 = vadd.f32 %v2750, %v7657
      %v7659 = vpop.f32.mrf.mxu0
      %v7660 = vadd.f32 %v2754, %v7659
      %v7661 = vpop.f32.mrf.mxu0
      %v7662 = vadd.f32 %v2750, %v7661
      %v7663 = vpop.f32.mrf.mxu0
      %v7664 = vadd.f32 %v2754, %v7663
      %7665 = vdwg.mxu0
      %7666 = vmatprep.subr.bf16.mxu0 %v3026
      %7667 = vmatpush1.bf16.msra.mxu0 %v3025
      %7668 = vmatprep.subr.bf16.mxu0 %v3018
      %7669 = vmatpush1.bf16.msra.mxu0 %v3017
      %7670 = vmatprep.subr.bf16.mxu0 %v3010
      %7671 = vmatpush1.bf16.msra.mxu0 %v3009
      %7672 = vmatprep.subr.bf16.mxu0 %v3002
      %7673 = vmatpush1.bf16.msra.mxu0 %v3001
      %7674 = vmatprep.subr.bf16.mxu0 %v2994
      %7675 = vmatpush1.bf16.msra.mxu0 %v2993
      %7676 = vmatprep.subr.bf16.mxu0 %v2986
      %7677 = vmatpush1.bf16.msra.mxu0 %v2985
      %7678 = vmatprep.subr.bf16.mxu0 %v2978
      %7679 = vmatpush1.bf16.msra.mxu0 %v2977
      %7680 = vmatprep.subr.bf16.mxu0 %v2970
      %7681 = vmatpush1.bf16.msra.mxu0 %v2969
      %7682 = vmatprep.subr.bf16.mxu0 0
      %7683 = vmatpush2.bf16.msra.mxu0 0
      %7684 = vmatprep.subr.bf16.mxu0 0
      %7685 = vmatpush2.bf16.msra.mxu0 0
      %7686 = vmatprep.subr.bf16.mxu0 0
      %7687 = vmatpush2.bf16.msra.mxu0 0
      %7688 = vmatprep.subr.bf16.mxu0 0
      %7689 = vmatpush2.bf16.msra.mxu0 0
      %7690 = vmatprep.subr.bf16.mxu0 0
      %7691 = vmatpush2.bf16.msra.mxu0 0
      %7692 = vmatprep.subr.bf16.mxu0 0
      %7693 = vmatpush2.bf16.msra.mxu0 0
      %7694 = vmatprep.subr.bf16.mxu0 0
      %7695 = vmatpush2.bf16.msra.mxu0 0
      %7696 = vmatprep.subr.bf16.mxu0 0
      %7697 = vmatpush2.bf16.msra.mxu0 0
      %7698 = vmatprep.mubr.bf16.mxu0 0
      %7699 = vmatmul.mubr.bf16.gmra.mxu0 %v2649
      %v7700 = vpop.f32.mrf.mxu0
      %v7701 = vadd.f32 %v2758, %v7700
      %v7702 = vpop.f32.mrf.mxu0
      %v7703 = vadd.f32 %v2762, %v7702
      %v7704 = vpop.f32.mrf.mxu0
      %v7705 = vadd.f32 %v2758, %v7704
      %v7706 = vpop.f32.mrf.mxu0
      %v7707 = vadd.f32 %v2762, %v7706
      %7708 = vmatprep.mubr.bf16.mxu0 0
      %7709 = vmatmul.mubr.bf16.gmra.mxu0 %v2650
      %v7710 = vpop.f32.mrf.mxu0
      %v7711 = vadd.f32 %v2758, %v7710
      %v7712 = vpop.f32.mrf.mxu0
      %v7713 = vadd.f32 %v2762, %v7712
      %v7714 = vpop.f32.mrf.mxu0
      %v7715 = vadd.f32 %v2758, %v7714
      %v7716 = vpop.f32.mrf.mxu0
      %v7717 = vadd.f32 %v2762, %v7716
      %7718 = vmatprep.mubr.bf16.mxu0 0
      %7719 = vmatmul.mubr.bf16.gmra.mxu0 %v2651
      %v7720 = vpop.f32.mrf.mxu0
      %v7721 = vadd.f32 %v2758, %v7720
      %v7722 = vpop.f32.mrf.mxu0
      %v7723 = vadd.f32 %v2762, %v7722
      %v7724 = vpop.f32.mrf.mxu0
      %v7725 = vadd.f32 %v2758, %v7724
      %v7726 = vpop.f32.mrf.mxu0
      %v7727 = vadd.f32 %v2762, %v7726
      %7728 = vmatprep.mubr.bf16.mxu0 0
      %7729 = vmatmul.mubr.bf16.gmra.mxu0 %v2652
      %v7730 = vpop.f32.mrf.mxu0
      %v7731 = vadd.f32 %v2758, %v7730
      %v7732 = vpop.f32.mrf.mxu0
      %v7733 = vadd.f32 %v2762, %v7732
      %v7734 = vpop.f32.mrf.mxu0
      %v7735 = vadd.f32 %v2758, %v7734
      %v7736 = vpop.f32.mrf.mxu0
      %v7737 = vadd.f32 %v2762, %v7736
      %7738 = vmatprep.mubr.bf16.mxu0 0
      %7739 = vmatmul.mubr.bf16.gmra.mxu0 %v2653
      %v7740 = vpop.f32.mrf.mxu0
      %v7741 = vadd.f32 %v2758, %v7740
      %v7742 = vpop.f32.mrf.mxu0
      %v7743 = vadd.f32 %v2762, %v7742
      %v7744 = vpop.f32.mrf.mxu0
      %v7745 = vadd.f32 %v2758, %v7744
      %v7746 = vpop.f32.mrf.mxu0
      %v7747 = vadd.f32 %v2762, %v7746
      %7748 = vmatprep.mubr.bf16.mxu0 0
      %7749 = vmatmul.mubr.bf16.gmra.mxu0 %v2654
      %v7750 = vpop.f32.mrf.mxu0
      %v7751 = vadd.f32 %v2758, %v7750
      %v7752 = vpop.f32.mrf.mxu0
      %v7753 = vadd.f32 %v2762, %v7752
      %v7754 = vpop.f32.mrf.mxu0
      %v7755 = vadd.f32 %v2758, %v7754
      %v7756 = vpop.f32.mrf.mxu0
      %v7757 = vadd.f32 %v2762, %v7756
      %7758 = vmatprep.mubr.bf16.mxu0 0
      %7759 = vmatmul.mubr.bf16.gmra.mxu0 %v2655
      %v7760 = vpop.f32.mrf.mxu0
      %v7761 = vadd.f32 %v2758, %v7760
      %v7762 = vpop.f32.mrf.mxu0
      %v7763 = vadd.f32 %v2762, %v7762
      %v7764 = vpop.f32.mrf.mxu0
      %v7765 = vadd.f32 %v2758, %v7764
      %v7766 = vpop.f32.mrf.mxu0
      %v7767 = vadd.f32 %v2762, %v7766
      %7768 = vmatprep.mubr.bf16.mxu0 0
      %7769 = vmatmul.mubr.bf16.gmra.mxu0 %v2656
      %v7770 = vpop.f32.mrf.mxu0
      %v7771 = vadd.f32 %v2758, %v7770
      %v7772 = vpop.f32.mrf.mxu0
      %v7773 = vadd.f32 %v2762, %v7772
      %v7774 = vpop.f32.mrf.mxu0
      %v7775 = vadd.f32 %v2758, %v7774
      %v7776 = vpop.f32.mrf.mxu0
      %v7777 = vadd.f32 %v2762, %v7776
      %7778 = vmatprep.mubr.bf16.mxu0 0
      %7779 = vmatmul.mubr.bf16.gmra.mxu0 %v2657
      %v7780 = vpop.f32.mrf.mxu0
      %v7781 = vadd.f32 %v2758, %v7780
      %v7782 = vpop.f32.mrf.mxu0
      %v7783 = vadd.f32 %v2762, %v7782
      %v7784 = vpop.f32.mrf.mxu0
      %v7785 = vadd.f32 %v2758, %v7784
      %v7786 = vpop.f32.mrf.mxu0
      %v7787 = vadd.f32 %v2762, %v7786
      %7788 = vmatprep.mubr.bf16.mxu0 0
      %7789 = vmatmul.mubr.bf16.gmra.mxu0 %v2658
      %v7790 = vpop.f32.mrf.mxu0
      %v7791 = vadd.f32 %v2758, %v7790
      %v7792 = vpop.f32.mrf.mxu0
      %v7793 = vadd.f32 %v2762, %v7792
      %v7794 = vpop.f32.mrf.mxu0
      %v7795 = vadd.f32 %v2758, %v7794
      %v7796 = vpop.f32.mrf.mxu0
      %v7797 = vadd.f32 %v2762, %v7796
      %7798 = vmatprep.mubr.bf16.mxu0 0
      %7799 = vmatmul.mubr.bf16.gmra.mxu0 %v2659
      %v7800 = vpop.f32.mrf.mxu0
      %v7801 = vadd.f32 %v2758, %v7800
      %v7802 = vpop.f32.mrf.mxu0
      %v7803 = vadd.f32 %v2762, %v7802
      %v7804 = vpop.f32.mrf.mxu0
      %v7805 = vadd.f32 %v2758, %v7804
      %v7806 = vpop.f32.mrf.mxu0
      %v7807 = vadd.f32 %v2762, %v7806
      %7808 = vmatprep.mubr.bf16.mxu0 0
      %7809 = vmatmul.mubr.bf16.gmra.mxu0 %v2660
      %v7810 = vpop.f32.mrf.mxu0
      %v7811 = vadd.f32 %v2758, %v7810
      %v7812 = vpop.f32.mrf.mxu0
      %v7813 = vadd.f32 %v2762, %v7812
      %v7814 = vpop.f32.mrf.mxu0
      %v7815 = vadd.f32 %v2758, %v7814
      %v7816 = vpop.f32.mrf.mxu0
      %v7817 = vadd.f32 %v2762, %v7816
      %7818 = vmatprep.mubr.bf16.mxu0 0
      %7819 = vmatmul.mubr.bf16.gmra.mxu0 %v2661
      %v7820 = vpop.f32.mrf.mxu0
      %v7821 = vadd.f32 %v2758, %v7820
      %v7822 = vpop.f32.mrf.mxu0
      %v7823 = vadd.f32 %v2762, %v7822
      %v7824 = vpop.f32.mrf.mxu0
      %v7825 = vadd.f32 %v2758, %v7824
      %v7826 = vpop.f32.mrf.mxu0
      %v7827 = vadd.f32 %v2762, %v7826
      %7828 = vmatprep.mubr.bf16.mxu0 0
      %7829 = vmatmul.mubr.bf16.gmra.mxu0 %v2662
      %v7830 = vpop.f32.mrf.mxu0
      %v7831 = vadd.f32 %v2758, %v7830
      %v7832 = vpop.f32.mrf.mxu0
      %v7833 = vadd.f32 %v2762, %v7832
      %v7834 = vpop.f32.mrf.mxu0
      %v7835 = vadd.f32 %v2758, %v7834
      %v7836 = vpop.f32.mrf.mxu0
      %v7837 = vadd.f32 %v2762, %v7836
      %7838 = vmatprep.mubr.bf16.mxu0 0
      %7839 = vmatmul.mubr.bf16.gmra.mxu0 %v2663
      %v7840 = vpop.f32.mrf.mxu0
      %v7841 = vadd.f32 %v2758, %v7840
      %v7842 = vpop.f32.mrf.mxu0
      %v7843 = vadd.f32 %v2762, %v7842
      %v7844 = vpop.f32.mrf.mxu0
      %v7845 = vadd.f32 %v2758, %v7844
      %v7846 = vpop.f32.mrf.mxu0
      %v7847 = vadd.f32 %v2762, %v7846
      %7848 = vmatprep.mubr.bf16.mxu0 0
      %7849 = vmatmul.mubr.bf16.gmra.mxu0 %v2664
      %v7850 = vpop.f32.mrf.mxu0
      %v7851 = vadd.f32 %v2758, %v7850
      %v7852 = vpop.f32.mrf.mxu0
      %v7853 = vadd.f32 %v2762, %v7852
      %v7854 = vpop.f32.mrf.mxu0
      %v7855 = vadd.f32 %v2758, %v7854
      %v7856 = vpop.f32.mrf.mxu0
      %v7857 = vadd.f32 %v2762, %v7856
      %7858 = vdwg.mxu0
      %v7859 = vmax.f32 %v7122, 0.0
      %v7860 = vmax.f32 %v7124, 0.0
      %v7861 = vmax.f32 %v7315, 0.0
      %v7862 = vmax.f32 %v7317, 0.0
      %v7863 = vmax.f32 %v7508, 0.0
      %v7864 = vmax.f32 %v7510, 0.0
      %v7865 = vmax.f32 %v7701, 0.0
      %v7866 = vmax.f32 %v7703, 0.0
      %v7867 = vmax.f32 %v7126, 0.0
      %v7868 = vmax.f32 %v7128, 0.0
      %v7869 = vmax.f32 %v7319, 0.0
      %v7870 = vmax.f32 %v7321, 0.0
      %v7871 = vmax.f32 %v7512, 0.0
      %v7872 = vmax.f32 %v7514, 0.0
      %v7873 = vmax.f32 %v7705, 0.0
      %v7874 = vmax.f32 %v7707, 0.0
      %v7875 = vmax.f32 %v7132, 0.0
      %v7876 = vmax.f32 %v7134, 0.0
      %v7877 = vmax.f32 %v7325, 0.0
      %v7878 = vmax.f32 %v7327, 0.0
      %v7879 = vmax.f32 %v7518, 0.0
      %v7880 = vmax.f32 %v7520, 0.0
      %v7881 = vmax.f32 %v7711, 0.0
      %v7882 = vmax.f32 %v7713, 0.0
      %v7883 = vmax.f32 %v7136, 0.0
      %v7884 = vmax.f32 %v7138, 0.0
      %v7885 = vmax.f32 %v7329, 0.0
      %v7886 = vmax.f32 %v7331, 0.0
      %v7887 = vmax.f32 %v7522, 0.0
      %v7888 = vmax.f32 %v7524, 0.0
      %v7889 = vmax.f32 %v7715, 0.0
      %v7890 = vmax.f32 %v7717, 0.0
      %v7891 = vmax.f32 %v7142, 0.0
      %v7892 = vmax.f32 %v7144, 0.0
      %v7893 = vmax.f32 %v7335, 0.0
      %v7894 = vmax.f32 %v7337, 0.0
      %v7895 = vmax.f32 %v7528, 0.0
      %v7896 = vmax.f32 %v7530, 0.0
      %v7897 = vmax.f32 %v7721, 0.0
      %v7898 = vmax.f32 %v7723, 0.0
      %v7899 = vmax.f32 %v7146, 0.0
      %v7900 = vmax.f32 %v7148, 0.0
      %v7901 = vmax.f32 %v7339, 0.0
      %v7902 = vmax.f32 %v7341, 0.0
      %v7903 = vmax.f32 %v7532, 0.0
      %v7904 = vmax.f32 %v7534, 0.0
      %v7905 = vmax.f32 %v7725, 0.0
      %v7906 = vmax.f32 %v7727, 0.0
      %v7907 = vmax.f32 %v7152, 0.0
      %v7908 = vmax.f32 %v7154, 0.0
      %v7909 = vmax.f32 %v7345, 0.0
      %v7910 = vmax.f32 %v7347, 0.0
      %v7911 = vmax.f32 %v7538, 0.0
      %v7912 = vmax.f32 %v7540, 0.0
      %v7913 = vmax.f32 %v7731, 0.0
      %v7914 = vmax.f32 %v7733, 0.0
      %v7915 = vmax.f32 %v7156, 0.0
      %v7916 = vmax.f32 %v7158, 0.0
      %v7917 = vmax.f32 %v7349, 0.0
      %v7918 = vmax.f32 %v7351, 0.0
      %v7919 = vmax.f32 %v7542, 0.0
      %v7920 = vmax.f32 %v7544, 0.0
      %v7921 = vmax.f32 %v7735, 0.0
      %v7922 = vmax.f32 %v7737, 0.0
      %v7923 = vmax.f32 %v7162, 0.0
      %v7924 = vmax.f32 %v7164, 0.0
      %v7925 = vmax.f32 %v7355, 0.0
      %v7926 = vmax.f32 %v7357, 0.0
      %v7927 = vmax.f32 %v7548, 0.0
      %v7928 = vmax.f32 %v7550, 0.0
      %v7929 = vmax.f32 %v7741, 0.0
      %v7930 = vmax.f32 %v7743, 0.0
      %v7931 = vmax.f32 %v7166, 0.0
      %v7932 = vmax.f32 %v7168, 0.0
      %v7933 = vmax.f32 %v7359, 0.0
      %v7934 = vmax.f32 %v7361, 0.0
      %v7935 = vmax.f32 %v7552, 0.0
      %v7936 = vmax.f32 %v7554, 0.0
      %v7937 = vmax.f32 %v7745, 0.0
      %v7938 = vmax.f32 %v7747, 0.0
      %v7939 = vmax.f32 %v7172, 0.0
      %v7940 = vmax.f32 %v7174, 0.0
      %v7941 = vmax.f32 %v7365, 0.0
      %v7942 = vmax.f32 %v7367, 0.0
      %v7943 = vmax.f32 %v7558, 0.0
      %v7944 = vmax.f32 %v7560, 0.0
      %v7945 = vmax.f32 %v7751, 0.0
      %v7946 = vmax.f32 %v7753, 0.0
      %v7947 = vmax.f32 %v7176, 0.0
      %v7948 = vmax.f32 %v7178, 0.0
      %v7949 = vmax.f32 %v7369, 0.0
      %v7950 = vmax.f32 %v7371, 0.0
      %v7951 = vmax.f32 %v7562, 0.0
      %v7952 = vmax.f32 %v7564, 0.0
      %v7953 = vmax.f32 %v7755, 0.0
      %v7954 = vmax.f32 %v7757, 0.0
      %v7955 = vmax.f32 %v7182, 0.0
      %v7956 = vmax.f32 %v7184, 0.0
      %v7957 = vmax.f32 %v7375, 0.0
      %v7958 = vmax.f32 %v7377, 0.0
      %v7959 = vmax.f32 %v7568, 0.0
      %v7960 = vmax.f32 %v7570, 0.0
      %v7961 = vmax.f32 %v7761, 0.0
      %v7962 = vmax.f32 %v7763, 0.0
      %v7963 = vmax.f32 %v7186, 0.0
      %v7964 = vmax.f32 %v7188, 0.0
      %v7965 = vmax.f32 %v7379, 0.0
      %v7966 = vmax.f32 %v7381, 0.0
      %v7967 = vmax.f32 %v7572, 0.0
      %v7968 = vmax.f32 %v7574, 0.0
      %v7969 = vmax.f32 %v7765, 0.0
      %v7970 = vmax.f32 %v7767, 0.0
      %v7971 = vmax.f32 %v7192, 0.0
      %v7972 = vmax.f32 %v7194, 0.0
      %v7973 = vmax.f32 %v7385, 0.0
      %v7974 = vmax.f32 %v7387, 0.0
      %v7975 = vmax.f32 %v7578, 0.0
      %v7976 = vmax.f32 %v7580, 0.0
      %v7977 = vmax.f32 %v7771, 0.0
      %v7978 = vmax.f32 %v7773, 0.0
      %v7979 = vmax.f32 %v7196, 0.0
      %v7980 = vmax.f32 %v7198, 0.0
      %v7981 = vmax.f32 %v7389, 0.0
      %v7982 = vmax.f32 %v7391, 0.0
      %v7983 = vmax.f32 %v7582, 0.0
      %v7984 = vmax.f32 %v7584, 0.0
      %v7985 = vmax.f32 %v7775, 0.0
      %v7986 = vmax.f32 %v7777, 0.0
      %v7987 = vmax.f32 %v7202, 0.0
      %v7988 = vmax.f32 %v7204, 0.0
      %v7989 = vmax.f32 %v7395, 0.0
      %v7990 = vmax.f32 %v7397, 0.0
      %v7991 = vmax.f32 %v7588, 0.0
      %v7992 = vmax.f32 %v7590, 0.0
      %v7993 = vmax.f32 %v7781, 0.0
      %v7994 = vmax.f32 %v7783, 0.0
      %v7995 = vmax.f32 %v7206, 0.0
      %v7996 = vmax.f32 %v7208, 0.0
      %v7997 = vmax.f32 %v7399, 0.0
      %v7998 = vmax.f32 %v7401, 0.0
      %v7999 = vmax.f32 %v7592, 0.0
      %v8000 = vmax.f32 %v7594, 0.0
      %v8001 = vmax.f32 %v7785, 0.0
      %v8002 = vmax.f32 %v7787, 0.0
      %v8003 = vmax.f32 %v7212, 0.0
      %v8004 = vmax.f32 %v7214, 0.0
      %v8005 = vmax.f32 %v7405, 0.0
      %v8006 = vmax.f32 %v7407, 0.0
      %v8007 = vmax.f32 %v7598, 0.0
      %v8008 = vmax.f32 %v7600, 0.0
      %v8009 = vmax.f32 %v7791, 0.0
      %v8010 = vmax.f32 %v7793, 0.0
      %v8011 = vmax.f32 %v7216, 0.0
      %v8012 = vmax.f32 %v7218, 0.0
      %v8013 = vmax.f32 %v7409, 0.0
      %v8014 = vmax.f32 %v7411, 0.0
      %v8015 = vmax.f32 %v7602, 0.0
      %v8016 = vmax.f32 %v7604, 0.0
      %v8017 = vmax.f32 %v7795, 0.0
      %v8018 = vmax.f32 %v7797, 0.0
      %v8019 = vmax.f32 %v7222, 0.0
      %v8020 = vmax.f32 %v7224, 0.0
      %v8021 = vmax.f32 %v7415, 0.0
      %v8022 = vmax.f32 %v7417, 0.0
      %v8023 = vmax.f32 %v7608, 0.0
      %v8024 = vmax.f32 %v7610, 0.0
      %v8025 = vmax.f32 %v7801, 0.0
      %v8026 = vmax.f32 %v7803, 0.0
      %v8027 = vmax.f32 %v7226, 0.0
      %v8028 = vmax.f32 %v7228, 0.0
      %v8029 = vmax.f32 %v7419, 0.0
      %v8030 = vmax.f32 %v7421, 0.0
      %v8031 = vmax.f32 %v7612, 0.0
      %v8032 = vmax.f32 %v7614, 0.0
      %v8033 = vmax.f32 %v7805, 0.0
      %v8034 = vmax.f32 %v7807, 0.0
      %v8035 = vmax.f32 %v7232, 0.0
      %v8036 = vmax.f32 %v7234, 0.0
      %v8037 = vmax.f32 %v7425, 0.0
      %v8038 = vmax.f32 %v7427, 0.0
      %v8039 = vmax.f32 %v7618, 0.0
      %v8040 = vmax.f32 %v7620, 0.0
      %v8041 = vmax.f32 %v7811, 0.0
      %v8042 = vmax.f32 %v7813, 0.0
      %v8043 = vmax.f32 %v7236, 0.0
      %v8044 = vmax.f32 %v7238, 0.0
      %v8045 = vmax.f32 %v7429, 0.0
      %v8046 = vmax.f32 %v7431, 0.0
      %v8047 = vmax.f32 %v7622, 0.0
      %v8048 = vmax.f32 %v7624, 0.0
      %v8049 = vmax.f32 %v7815, 0.0
      %v8050 = vmax.f32 %v7817, 0.0
      %v8051 = vmax.f32 %v7242, 0.0
      %v8052 = vmax.f32 %v7244, 0.0
      %v8053 = vmax.f32 %v7435, 0.0
      %v8054 = vmax.f32 %v7437, 0.0
      %v8055 = vmax.f32 %v7628, 0.0
      %v8056 = vmax.f32 %v7630, 0.0
      %v8057 = vmax.f32 %v7821, 0.0
      %v8058 = vmax.f32 %v7823, 0.0
      %v8059 = vmax.f32 %v7246, 0.0
      %v8060 = vmax.f32 %v7248, 0.0
      %v8061 = vmax.f32 %v7439, 0.0
      %v8062 = vmax.f32 %v7441, 0.0
      %v8063 = vmax.f32 %v7632, 0.0
      %v8064 = vmax.f32 %v7634, 0.0
      %v8065 = vmax.f32 %v7825, 0.0
      %v8066 = vmax.f32 %v7827, 0.0
      %v8067 = vmax.f32 %v7252, 0.0
      %v8068 = vmax.f32 %v7254, 0.0
      %v8069 = vmax.f32 %v7445, 0.0
      %v8070 = vmax.f32 %v7447, 0.0
      %v8071 = vmax.f32 %v7638, 0.0
      %v8072 = vmax.f32 %v7640, 0.0
      %v8073 = vmax.f32 %v7831, 0.0
      %v8074 = vmax.f32 %v7833, 0.0
      %v8075 = vmax.f32 %v7256, 0.0
      %v8076 = vmax.f32 %v7258, 0.0
      %v8077 = vmax.f32 %v7449, 0.0
      %v8078 = vmax.f32 %v7451, 0.0
      %v8079 = vmax.f32 %v7642, 0.0
      %v8080 = vmax.f32 %v7644, 0.0
      %v8081 = vmax.f32 %v7835, 0.0
      %v8082 = vmax.f32 %v7837, 0.0
      %v8083 = vmax.f32 %v7262, 0.0
      %v8084 = vmax.f32 %v7264, 0.0
      %v8085 = vmax.f32 %v7455, 0.0
      %v8086 = vmax.f32 %v7457, 0.0
      %v8087 = vmax.f32 %v7648, 0.0
      %v8088 = vmax.f32 %v7650, 0.0
      %v8089 = vmax.f32 %v7841, 0.0
      %v8090 = vmax.f32 %v7843, 0.0
      %v8091 = vmax.f32 %v7266, 0.0
      %v8092 = vmax.f32 %v7268, 0.0
      %v8093 = vmax.f32 %v7459, 0.0
      %v8094 = vmax.f32 %v7461, 0.0
      %v8095 = vmax.f32 %v7652, 0.0
      %v8096 = vmax.f32 %v7654, 0.0
      %v8097 = vmax.f32 %v7845, 0.0
      %v8098 = vmax.f32 %v7847, 0.0
      %v8099 = vmax.f32 %v7272, 0.0
      %v8100 = vmax.f32 %v7274, 0.0
      %v8101 = vmax.f32 %v7465, 0.0
      %v8102 = vmax.f32 %v7467, 0.0
      %v8103 = vmax.f32 %v7658, 0.0
      %v8104 = vmax.f32 %v7660, 0.0
      %v8105 = vmax.f32 %v7851, 0.0
      %v8106 = vmax.f32 %v7853, 0.0
      %v8107 = vmax.f32 %v7276, 0.0
      %v8108 = vmax.f32 %v7278, 0.0
      %v8109 = vmax.f32 %v7469, 0.0
      %v8110 = vmax.f32 %v7471, 0.0
      %v8111 = vmax.f32 %v7662, 0.0
      %v8112 = vmax.f32 %v7664, 0.0
      %v8113 = vmax.f32 %v7855, 0.0
      %v8114 = vmax.f32 %v7857, 0.0
      %v8115 = vmax.f32 %v7859, %v7867
      %v8116 = vmax.f32 %v8115, %v7875
      %v8117 = vmax.f32 %v8116, %v7883
      %v8118 = vmax.f32 %v8117, %v7891
      %v8119 = vmax.f32 %v8118, %v7899
      %v8120 = vmax.f32 %v8119, %v7907
      %v8121 = vmax.f32 %v8120, %v7915
      %v8122 = vmax.f32 %v8121, %v7923
      %v8123 = vmax.f32 %v8122, %v7931
      %v8124 = vmax.f32 %v8123, %v7939
      %v8125 = vmax.f32 %v8124, %v7947
      %v8126 = vmax.f32 %v8125, %v7955
      %v8127 = vmax.f32 %v8126, %v7963
      %v8128 = vmax.f32 %v8127, %v7971
      %v8129 = vmax.f32 %v8128, %v7979
      %v8130 = vmax.f32 %v8129, %v7987
      %v8131 = vmax.f32 %v8130, %v7995
      %v8132 = vmax.f32 %v8131, %v8003
      %v8133 = vmax.f32 %v8132, %v8011
      %v8134 = vmax.f32 %v8133, %v8019
      %v8135 = vmax.f32 %v8134, %v8027
      %v8136 = vmax.f32 %v8135, %v8035
      %v8137 = vmax.f32 %v8136, %v8043
      %v8138 = vmax.f32 %v8137, %v8051
      %v8139 = vmax.f32 %v8138, %v8059
      %v8140 = vmax.f32 %v8139, %v8067
      %v8141 = vmax.f32 %v8140, %v8075
      %v8142 = vmax.f32 %v8141, %v8083
      %v8143 = vmax.f32 %v8142, %v8091
      %v8144 = vmax.f32 %v8143, %v8099
      %v8145 = vmax.f32 %v8144, %v8107
      %v8146 = vrot.slane %v8145, 4
      %v8147 = vmax.f32 %v8145, %v8146
      %v8148 = vrot.slane %v8147, 2
      %v8149 = vmax.f32 %v8147, %v8148
      %v8150 = vrot.slane %v8149, 1
      %v8151 = vmax.f32 %v8149, %v8150
      %v8152 = vmax.f32 %v7860, %v7868
      %v8153 = vmax.f32 %v8152, %v7876
      %v8154 = vmax.f32 %v8153, %v7884
      %v8155 = vmax.f32 %v8154, %v7892
      %v8156 = vmax.f32 %v8155, %v7900
      %v8157 = vmax.f32 %v8156, %v7908
      %v8158 = vmax.f32 %v8157, %v7916
      %v8159 = vmax.f32 %v8158, %v7924
      %v8160 = vmax.f32 %v8159, %v7932
      %v8161 = vmax.f32 %v8160, %v7940
      %v8162 = vmax.f32 %v8161, %v7948
      %v8163 = vmax.f32 %v8162, %v7956
      %v8164 = vmax.f32 %v8163, %v7964
      %v8165 = vmax.f32 %v8164, %v7972
      %v8166 = vmax.f32 %v8165, %v7980
      %v8167 = vmax.f32 %v8166, %v7988
      %v8168 = vmax.f32 %v8167, %v7996
      %v8169 = vmax.f32 %v8168, %v8004
      %v8170 = vmax.f32 %v8169, %v8012
      %v8171 = vmax.f32 %v8170, %v8020
      %v8172 = vmax.f32 %v8171, %v8028
      %v8173 = vmax.f32 %v8172, %v8036
      %v8174 = vmax.f32 %v8173, %v8044
      %v8175 = vmax.f32 %v8174, %v8052
      %v8176 = vmax.f32 %v8175, %v8060
      %v8177 = vmax.f32 %v8176, %v8068
      %v8178 = vmax.f32 %v8177, %v8076
      %v8179 = vmax.f32 %v8178, %v8084
      %v8180 = vmax.f32 %v8179, %v8092
      %v8181 = vmax.f32 %v8180, %v8100
      %v8182 = vmax.f32 %v8181, %v8108
      %v8183 = vrot.slane %v8182, 4
      %v8184 = vmax.f32 %v8182, %v8183
      %v8185 = vrot.slane %v8184, 2
      %v8186 = vmax.f32 %v8184, %v8185
      %v8187 = vrot.slane %v8186, 1
      %v8188 = vmax.f32 %v8186, %v8187
      %v8189 = vmax.f32 %v7861, %v7869
      %v8190 = vmax.f32 %v8189, %v7877
      %v8191 = vmax.f32 %v8190, %v7885
      %v8192 = vmax.f32 %v8191, %v7893
      %v8193 = vmax.f32 %v8192, %v7901
      %v8194 = vmax.f32 %v8193, %v7909
      %v8195 = vmax.f32 %v8194, %v7917
      %v8196 = vmax.f32 %v8195, %v7925
      %v8197 = vmax.f32 %v8196, %v7933
      %v8198 = vmax.f32 %v8197, %v7941
      %v8199 = vmax.f32 %v8198, %v7949
      %v8200 = vmax.f32 %v8199, %v7957
      %v8201 = vmax.f32 %v8200, %v7965
      %v8202 = vmax.f32 %v8201, %v7973
      %v8203 = vmax.f32 %v8202, %v7981
      %v8204 = vmax.f32 %v8203, %v7989
      %v8205 = vmax.f32 %v8204, %v7997
      %v8206 = vmax.f32 %v8205, %v8005
      %v8207 = vmax.f32 %v8206, %v8013
      %v8208 = vmax.f32 %v8207, %v8021
      %v8209 = vmax.f32 %v8208, %v8029
      %v8210 = vmax.f32 %v8209, %v8037
      %v8211 = vmax.f32 %v8210, %v8045
      %v8212 = vmax.f32 %v8211, %v8053
      %v8213 = vmax.f32 %v8212, %v8061
      %v8214 = vmax.f32 %v8213, %v8069
      %v8215 = vmax.f32 %v8214, %v8077
      %v8216 = vmax.f32 %v8215, %v8085
      %v8217 = vmax.f32 %v8216, %v8093
      %v8218 = vmax.f32 %v8217, %v8101
      %v8219 = vmax.f32 %v8218, %v8109
      %v8220 = vrot.slane %v8219, 4
      %v8221 = vmax.f32 %v8219, %v8220
      %v8222 = vrot.slane %v8221, 2
      %v8223 = vmax.f32 %v8221, %v8222
      %v8224 = vrot.slane %v8223, 1
      %v8225 = vmax.f32 %v8223, %v8224
      %v8226 = vmax.f32 %v7862, %v7870
      %v8227 = vmax.f32 %v8226, %v7878
      %v8228 = vmax.f32 %v8227, %v7886
      %v8229 = vmax.f32 %v8228, %v7894
      %v8230 = vmax.f32 %v8229, %v7902
      %v8231 = vmax.f32 %v8230, %v7910
      %v8232 = vmax.f32 %v8231, %v7918
      %v8233 = vmax.f32 %v8232, %v7926
      %v8234 = vmax.f32 %v8233, %v7934
      %v8235 = vmax.f32 %v8234, %v7942
      %v8236 = vmax.f32 %v8235, %v7950
      %v8237 = vmax.f32 %v8236, %v7958
      %v8238 = vmax.f32 %v8237, %v7966
      %v8239 = vmax.f32 %v8238, %v7974
      %v8240 = vmax.f32 %v8239, %v7982
      %v8241 = vmax.f32 %v8240, %v7990
      %v8242 = vmax.f32 %v8241, %v7998
      %v8243 = vmax.f32 %v8242, %v8006
      %v8244 = vmax.f32 %v8243, %v8014
      %v8245 = vmax.f32 %v8244, %v8022
      %v8246 = vmax.f32 %v8245, %v8030
      %v8247 = vmax.f32 %v8246, %v8038
      %v8248 = vmax.f32 %v8247, %v8046
      %v8249 = vmax.f32 %v8248, %v8054
      %v8250 = vmax.f32 %v8249, %v8062
      %v8251 = vmax.f32 %v8250, %v8070
      %v8252 = vmax.f32 %v8251, %v8078
      %v8253 = vmax.f32 %v8252, %v8086
      %v8254 = vmax.f32 %v8253, %v8094
      %v8255 = vmax.f32 %v8254, %v8102
      %v8256 = vmax.f32 %v8255, %v8110
      %v8257 = vrot.slane %v8256, 4
      %v8258 = vmax.f32 %v8256, %v8257
      %v8259 = vrot.slane %v8258, 2
      %v8260 = vmax.f32 %v8258, %v8259
      %v8261 = vrot.slane %v8260, 1
      %v8262 = vmax.f32 %v8260, %v8261
      %v8263 = vmax.f32 %v7863, %v7871
      %v8264 = vmax.f32 %v8263, %v7879
      %v8265 = vmax.f32 %v8264, %v7887
      %v8266 = vmax.f32 %v8265, %v7895
      %v8267 = vmax.f32 %v8266, %v7903
      %v8268 = vmax.f32 %v8267, %v7911
      %v8269 = vmax.f32 %v8268, %v7919
      %v8270 = vmax.f32 %v8269, %v7927
      %v8271 = vmax.f32 %v8270, %v7935
      %v8272 = vmax.f32 %v8271, %v7943
      %v8273 = vmax.f32 %v8272, %v7951
      %v8274 = vmax.f32 %v8273, %v7959
      %v8275 = vmax.f32 %v8274, %v7967
      %v8276 = vmax.f32 %v8275, %v7975
      %v8277 = vmax.f32 %v8276, %v7983
      %v8278 = vmax.f32 %v8277, %v7991
      %v8279 = vmax.f32 %v8278, %v7999
      %v8280 = vmax.f32 %v8279, %v8007
      %v8281 = vmax.f32 %v8280, %v8015
      %v8282 = vmax.f32 %v8281, %v8023
      %v8283 = vmax.f32 %v8282, %v8031
      %v8284 = vmax.f32 %v8283, %v8039
      %v8285 = vmax.f32 %v8284, %v8047
      %v8286 = vmax.f32 %v8285, %v8055
      %v8287 = vmax.f32 %v8286, %v8063
      %v8288 = vmax.f32 %v8287, %v8071
      %v8289 = vmax.f32 %v8288, %v8079
      %v8290 = vmax.f32 %v8289, %v8087
      %v8291 = vmax.f32 %v8290, %v8095
      %v8292 = vmax.f32 %v8291, %v8103
      %v8293 = vmax.f32 %v8292, %v8111
      %v8294 = vrot.slane %v8293, 4
      %v8295 = vmax.f32 %v8293, %v8294
      %v8296 = vrot.slane %v8295, 2
      %v8297 = vmax.f32 %v8295, %v8296
      %v8298 = vrot.slane %v8297, 1
      %v8299 = vmax.f32 %v8297, %v8298
      %v8300 = vmax.f32 %v7864, %v7872
      %v8301 = vmax.f32 %v8300, %v7880
      %v8302 = vmax.f32 %v8301, %v7888
      %v8303 = vmax.f32 %v8302, %v7896
      %v8304 = vmax.f32 %v8303, %v7904
      %v8305 = vmax.f32 %v8304, %v7912
      %v8306 = vmax.f32 %v8305, %v7920
      %v8307 = vmax.f32 %v8306, %v7928
      %v8308 = vmax.f32 %v8307, %v7936
      %v8309 = vmax.f32 %v8308, %v7944
      %v8310 = vmax.f32 %v8309, %v7952
      %v8311 = vmax.f32 %v8310, %v7960
      %v8312 = vmax.f32 %v8311, %v7968
      %v8313 = vmax.f32 %v8312, %v7976
      %v8314 = vmax.f32 %v8313, %v7984
      %v8315 = vmax.f32 %v8314, %v7992
      %v8316 = vmax.f32 %v8315, %v8000
      %v8317 = vmax.f32 %v8316, %v8008
      %v8318 = vmax.f32 %v8317, %v8016
      %v8319 = vmax.f32 %v8318, %v8024
      %v8320 = vmax.f32 %v8319, %v8032
      %v8321 = vmax.f32 %v8320, %v8040
      %v8322 = vmax.f32 %v8321, %v8048
      %v8323 = vmax.f32 %v8322, %v8056
      %v8324 = vmax.f32 %v8323, %v8064
      %v8325 = vmax.f32 %v8324, %v8072
      %v8326 = vmax.f32 %v8325, %v8080
      %v8327 = vmax.f32 %v8326, %v8088
      %v8328 = vmax.f32 %v8327, %v8096
      %v8329 = vmax.f32 %v8328, %v8104
      %v8330 = vmax.f32 %v8329, %v8112
      %v8331 = vrot.slane %v8330, 4
      %v8332 = vmax.f32 %v8330, %v8331
      %v8333 = vrot.slane %v8332, 2
      %v8334 = vmax.f32 %v8332, %v8333
      %v8335 = vrot.slane %v8334, 1
      %v8336 = vmax.f32 %v8334, %v8335
      %v8337 = vmax.f32 %v7865, %v7873
      %v8338 = vmax.f32 %v8337, %v7881
      %v8339 = vmax.f32 %v8338, %v7889
      %v8340 = vmax.f32 %v8339, %v7897
      %v8341 = vmax.f32 %v8340, %v7905
      %v8342 = vmax.f32 %v8341, %v7913
      %v8343 = vmax.f32 %v8342, %v7921
      %v8344 = vmax.f32 %v8343, %v7929
      %v8345 = vmax.f32 %v8344, %v7937
      %v8346 = vmax.f32 %v8345, %v7945
      %v8347 = vmax.f32 %v8346, %v7953
      %v8348 = vmax.f32 %v8347, %v7961
      %v8349 = vmax.f32 %v8348, %v7969
      %v8350 = vmax.f32 %v8349, %v7977
      %v8351 = vmax.f32 %v8350, %v7985
      %v8352 = vmax.f32 %v8351, %v7993
      %v8353 = vmax.f32 %v8352, %v8001
      %v8354 = vmax.f32 %v8353, %v8009
      %v8355 = vmax.f32 %v8354, %v8017
      %v8356 = vmax.f32 %v8355, %v8025
      %v8357 = vmax.f32 %v8356, %v8033
      %v8358 = vmax.f32 %v8357, %v8041
      %v8359 = vmax.f32 %v8358, %v8049
      %v8360 = vmax.f32 %v8359, %v8057
      %v8361 = vmax.f32 %v8360, %v8065
      %v8362 = vmax.f32 %v8361, %v8073
      %v8363 = vmax.f32 %v8362, %v8081
      %v8364 = vmax.f32 %v8363, %v8089
      %v8365 = vmax.f32 %v8364, %v8097
      %v8366 = vmax.f32 %v8365, %v8105
      %v8367 = vmax.f32 %v8366, %v8113
      %v8368 = vrot.slane %v8367, 4
      %v8369 = vmax.f32 %v8367, %v8368
      %v8370 = vrot.slane %v8369, 2
      %v8371 = vmax.f32 %v8369, %v8370
      %v8372 = vrot.slane %v8371, 1
      %v8373 = vmax.f32 %v8371, %v8372
      %v8374 = vmax.f32 %v7866, %v7874
      %v8375 = vmax.f32 %v8374, %v7882
      %v8376 = vmax.f32 %v8375, %v7890
      %v8377 = vmax.f32 %v8376, %v7898
      %v8378 = vmax.f32 %v8377, %v7906
      %v8379 = vmax.f32 %v8378, %v7914
      %v8380 = vmax.f32 %v8379, %v7922
      %v8381 = vmax.f32 %v8380, %v7930
      %v8382 = vmax.f32 %v8381, %v7938
      %v8383 = vmax.f32 %v8382, %v7946
      %v8384 = vmax.f32 %v8383, %v7954
      %v8385 = vmax.f32 %v8384, %v7962
      %v8386 = vmax.f32 %v8385, %v7970
      %v8387 = vmax.f32 %v8386, %v7978
      %v8388 = vmax.f32 %v8387, %v7986
      %v8389 = vmax.f32 %v8388, %v7994
      %v8390 = vmax.f32 %v8389, %v8002
      %v8391 = vmax.f32 %v8390, %v8010
      %v8392 = vmax.f32 %v8391, %v8018
      %v8393 = vmax.f32 %v8392, %v8026
      %v8394 = vmax.f32 %v8393, %v8034
      %v8395 = vmax.f32 %v8394, %v8042
      %v8396 = vmax.f32 %v8395, %v8050
      %v8397 = vmax.f32 %v8396, %v8058
      %v8398 = vmax.f32 %v8397, %v8066
      %v8399 = vmax.f32 %v8398, %v8074
      %v8400 = vmax.f32 %v8399, %v8082
      %v8401 = vmax.f32 %v8400, %v8090
      %v8402 = vmax.f32 %v8401, %v8098
      %v8403 = vmax.f32 %v8402, %v8106
      %v8404 = vmax.f32 %v8403, %v8114
      %v8405 = vrot.slane %v8404, 4
      %v8406 = vmax.f32 %v8404, %v8405
      %v8407 = vrot.slane %v8406, 2
      %v8408 = vmax.f32 %v8406, %v8407
      %v8409 = vrot.slane %v8408, 1
      %v8410 = vmax.f32 %v8408, %v8409
      %v8411 = vmax.f32 %v7079, %v8151
      %v8412 = vmax.f32 %v7080, %v8188
      %v8413 = vmax.f32 %v7081, %v8225
      %v8414 = vmax.f32 %v7082, %v8262
      %v8415 = vmax.f32 %v7083, %v8299
      %v8416 = vmax.f32 %v7084, %v8336
      %v8417 = vmax.f32 %v7085, %v8373
      %v8418 = vmax.f32 %v7086, %v8410
      %p8419 = scmp.eq.s32.totalorder %s23, 0
      // Predicated region
      $region49: #{pointnet_feat.1} parent=47 // pred_check
        %p8420 = pneg %p8419
      $region50: #{pointnet_feat.1} parent=47 // pred_check_branch
        %8422 = sbr.rel (%p8420) target = $region52
      $region51: #{pointnet_feat.1} parent=47 // pred_region
        %8423 = vst [vmem:[%s304] sm:$0xff] 0.0
      $region52: #{pointnet_feat.1} parent=47 // pred_fallthru
        _
      %v8424 = vld [vmem:[%s304] sm:$0xff]
      %v8433 = vcombine.low %v8411, %v8412
      %v8434 = vcombine.low %v8413, %v8414
      %v8435 = vcombine.low %v8415, %v8416
      %v8436 = vcombine.low %v8417, %v8418
      %v8438 = vunpack.c.l.s4 1966171168
      %v8439 = vunpack.c.0.s8 %v8438
      %v8440 = vlaneseq
      %v8441 = vshrl.u32 %v8440, 7
      %v8442 = vsub.s32 %v8439, %v8441
      %v8443 = vrot.slane %v8433, %v8442
      %v8445 = vunpack.c.l.s4 1966171168
      %v8446 = vunpack.c.0.s8 %v8445
      %v8447 = vlaneseq
      %v8448 = vshrl.u32 %v8447, 7
      %v8449 = vsub.s32 %v8446, %v8448
      %v8450 = vrot.slane %v8434, %v8449
      %v8452 = vunpack.c.l.s4 1966171168
      %v8453 = vunpack.c.0.s8 %v8452
      %v8454 = vlaneseq
      %v8455 = vshrl.u32 %v8454, 7
      %v8456 = vsub.s32 %v8453, %v8455
      %v8457 = vrot.slane %v8435, %v8456
      %v8459 = vunpack.c.l.s4 1966171168
      %v8460 = vunpack.c.0.s8 %v8459
      %v8461 = vlaneseq
      %v8462 = vshrl.u32 %v8461, 7
      %v8463 = vsub.s32 %v8460, %v8462
      %v8464 = vrot.slane %v8436, %v8463
      %v8465 = vcombine.low %v8443, %v8450
      %v8466 = vcombine.low %v8457, %v8464
      %v8468 = vunpack.c.l.s4 1966171168
      %v8469 = vunpack.c.0.s8 %v8468
      %v8470 = vlaneseq
      %v8471 = vshrl.u32 %v8470, 7
      %v8472 = vsub.s32 %v8469, %v8471
      %v8473 = vrot.slane %v8465, %v8472
      %v8475 = vunpack.c.l.s4 1966171168
      %v8476 = vunpack.c.0.s8 %v8475
      %v8477 = vlaneseq
      %v8478 = vshrl.u32 %v8477, 7
      %v8479 = vsub.s32 %v8476, %v8478
      %v8480 = vrot.slane %v8466, %v8479
      %v8481 = vcombine.low %v8473, %v8480
      %v8483 = vmax.f32 %v8424, %v8481
      %8484 = vst [vmem:[%s304] sm:$0xff] %v8483
      %p8485 = scmp.lt.s32.totalorder %s22, 1
      %s8486 = scalar_select %p8485, %s22, 1
      %s8487 = smul.addr %s8486, 8
      %s8488 = scalar_lea.vmem %s7, %s8487
      // Predicated region
      $region53: #{pointnet_feat.1} parent=47 // pred_check
        %p8489 = pneg %p202
      $region54: #{pointnet_feat.1} parent=47 // pred_check_branch
        %8491 = sbr.rel (%p8489) target = $region56
      $region55: #{pointnet_feat.1} parent=47 // pred_region
        _
      $region56: #{pointnet_feat.1} parent=47 // pred_fallthru
        _
    $region48: #{pointnet_feat.1} parent=5 // pred_fallthru
      _
    %p8492 = scmp.le.s32.totalorder 2, %s13
    // Predicated region
    $region57: #{pointnet_feat.1} parent=5 // pred_check
      %p8493 = pneg %p8492
    $region58: #{pointnet_feat.1} parent=5 // pred_check_branch
      %8495 = sbr.rel (%p8493) target = $region60
    $region59: #{pointnet_feat.1} parent=5 // pred_region
      %s8496 = ssub.s32 %s13, 2
      // Predicated region
      $region61: #{pointnet_feat.1} parent=59 // pred_check
        %p8497 = pneg %p208
      $region62: #{pointnet_feat.1} parent=59 // pred_check_branch
        %8499 = sbr.rel (%p8497) target = $region64
      $region63: #{pointnet_feat.1} parent=59 // pred_region
        %p8500 = scmp.lt.s32.totalorder %s24, 1
        %s8501 = scalar_select %p8500, %s24, 1
        %s8502 = smul.addr %s8501, 8
        %s8503 = scalar_lea.vmem %s7, %s8502
      $region64: #{pointnet_feat.1} parent=59 // pred_fallthru
        _
    $region60: #{pointnet_feat.1} parent=5 // pred_fallthru
      _
  $region6: #{pointnet_feat.1} parent=0 // loop_footer
    %s17 = sadd.s32 1, %s13
  $region7: #{pointnet_feat.1} parent=0 // loop_footer_branch
    %12 = sbr.rel target = $region3
  $region8: #{pointnet_feat.1} parent=0 // loop_exit
    _

</llo_original>
